<compile_context>
chip_gen: v7x
topology: tpu7x:2x2x1
jax: 0.10.0
libtpu: 0.0.40
codegen_flags: <defaults>
</compile_context>

<pallas_src>
import jax
import jax.numpy as jnp
from jax.experimental import pallas as pl
from jax.experimental.pallas import tpu as pltpu


# ============================================================================
# Fused forward kernel: entire CrossAttentionBlock per batch element.
# ============================================================================
def make_fused_kernel(H, W, C, K):
    HW = H * W
    C2 = 2 * C
    P7 = K // 2                      # spatial-attention pad (3 for 7x7)

    def kernel(x_ref, wconv_ref, bconv_ref, wsa_ref,
               w1ca_ref, b1ca_ref, w2ca_ref, b2ca_ref,
               out_ref, xpad):
        # Zero the padded conv-input scratch once per grid step.  Every conv
        # stage below only rewrites the interior, so the zero border persists.
        xpad[...] = jnp.zeros_like(xpad)

        def conv_pair(stage):
            # im2col: 9 shifted (HW, C) tap windows concatenated on lanes ->
            # (HW, 9C) patch matrix, then ONE MXU matmul against the fused
            # (9C, 2C) weights of both parallel 3x3 convs (+ bias, ReLU).
            taps = [xpad[dy:dy + H, dx:dx + W, :].reshape(HW, C)
                    for dy in range(3) for dx in range(3)]
            patches = jnp.concatenate(taps, axis=-1)                # (HW, 9C)
            y = jnp.dot(patches, wconv_ref[stage],
                        preferred_element_type=jnp.float32) + bconv_ref[stage]
            return jnp.maximum(y, 0.0)                              # (HW, 2C)

        x = x_ref[0]                                                # (H, W, C)

        # -- 1. two initial 3x3 convs (fused), merged --------------------------
        xpad[1:H + 1, 1:W + 1, :] = x
        y3 = conv_pair(0).reshape(H, W, C2)
        z0 = y3[:, :, :C] + y3[:, :, C:]

        # -- 2. triple-bond branch: dual conv + cross spatial attention --------
        xpad[1:H + 1, 1:W + 1, :] = z0
        y3 = conv_pair(1).reshape(H, W, C2)
        z1t = y3[:, :, :C]                                          # z1_trp
        z2t = y3[:, :, C:]                                          # z2_trp

        # channel-wise mean/max maps of both branches, stacked on lanes:
        # columns = [avg(z2) | max(z2) | avg(z1) | max(z1)]  -> (H, 4W)
        maps = jnp.concatenate(
            [jnp.mean(z2t, axis=-1), jnp.max(z2t, axis=-1),
             jnp.mean(z1t, axis=-1), jnp.max(z1t, axis=-1)], axis=-1)
        zrows = jnp.zeros((P7, 4 * W), jnp.float32)
        featp = jnp.concatenate([zrows, maps, zrows], axis=0)       # (H+K-1, 4W)

        # 7x7 spatial-attention convs == K band matmuls (one per kernel row);
        # horizontal zero-padding is folded into the precomputed band matrices,
        # vertical padding is the zero rows above/below.
        acc = jnp.dot(featp[0:H, :], wsa_ref[0],
                      preferred_element_type=jnp.float32)
        for dy in range(1, K):
            acc = acc + jnp.dot(featp[dy:dy + H, :], wsa_ref[dy],
                                preferred_element_type=jnp.float32)
        attn = jax.nn.sigmoid(acc)          # [:, :W] = sa_12(z2t), [:, W:] = sa_21(z1t)
        m_trp = z1t * attn[:, :W, None] + z2t * attn[:, W:, None]   # (H, W, C)

        # -- 3. two mid 3x3 convs (fused), merged ------------------------------
        xpad[1:H + 1, 1:W + 1, :] = m_trp
        y3 = conv_pair(2).reshape(H, W, C2)
        z1 = y3[:, :, :C] + y3[:, :, C:]

        # -- 4. double-bond branch: dual conv + cross channel attention --------
        xpad[1:H + 1, 1:W + 1, :] = z1
        y = conv_pair(3)                                            # (HW, 2C)

        gap = jnp.mean(y, axis=0, keepdims=True)        # (1, 2C) = [GAP(z1)|GAP(z2)]
        h = jnp.maximum(
            jnp.dot(gap, w1ca_ref[...], preferred_element_type=jnp.float32)
            + b1ca_ref[...], 0.0)                       # (1, 2Cr) = [h_12 | h_21]
        a = jax.nn.sigmoid(
            jnp.dot(h, w2ca_ref[...], preferred_element_type=jnp.float32)
            + b2ca_ref[...])                            # (1, 2C) = [ca_12(z2)|ca_21(z1)]

        y3 = y.reshape(H, W, C2)
        m_dbl = (y3[:, :, :C] * a[:, :C].reshape(1, 1, C)
                 + y3[:, :, C:] * a[:, C:].reshape(1, 1, C))

        # -- 5. residual -------------------------------------------------------
        out_ref[0] = x + m_dbl

    return kernel


# ============================================================================
# Wrapper-side weight preprocessing (pure JAX, traced once under jit).
# ============================================================================
def _fuse_conv(w1, b1, w2, b2):
    C = w1.shape[2]
    w = jnp.concatenate([w1, w2], axis=-1).reshape(9 * C, 2 * C)  # (9C, 2C)
    b = jnp.concatenate([b1, b2]).reshape(1, 2 * C)
    return w, b


def _band(wrow, W, K):
    # (W, W) band matrix: band[j, x] = wrow[j - x + K//2] if |j - x| <= K//2.
    d = jnp.arange(W)[:, None] - jnp.arange(W)[None, :] + K // 2
    out = jnp.zeros((W, W), jnp.float32)
    for k in range(K):
        out = out + jnp.where(d == k, wrow[k], 0.0)
    return out


def _build_sa_bands(w12, w21, W, K):
    # w12/w21: (K, K, 2, 1) HWIO; in-channel 0 = channel-mean, 1 = channel-max.
    # Result (K, 4W, 2W): row blocks [avg(z2)|max(z2)|avg(z1)|max(z1)],
    # column blocks [attn12 | attn21].  Horizontal zero padding of the 7x7
    # conv is folded into the band structure.
    zb = jnp.zeros((W, W), jnp.float32)
    per_dy = []
    for dy in range(K):
        left = jnp.concatenate([_band(w12[dy, :, 0, 0], W, K),
                                _band(w12[dy, :, 1, 0], W, K), zb, zb], axis=0)
        right = jnp.concatenate([zb, zb,
                                 _band(w21[dy, :, 0, 0], W, K),
                                 _band(w21[dy, :, 1, 0], W, K)], axis=0)
        per_dy.append(jnp.concatenate([left, right], axis=1))
    return jnp.stack(per_dy)


def _fuse_ca(w1_12, b1_12, w2_12, b2_12, w1_21, b1_21, w2_21, b2_21):
    # Both SE branches as two block matmuls.  Kernel-side row vector is
    # [GAP(z1_dbl) | GAP(z2_dbl)]; ca_12 consumes GAP(z2), ca_21 consumes GAP(z1).
    C, Cr = w1_12.shape
    zc = jnp.zeros((C, Cr), jnp.float32)
    zr = jnp.zeros((Cr, C), jnp.float32)
    w1 = jnp.concatenate([jnp.concatenate([zc, w1_21], axis=1),
                          jnp.concatenate([w1_12, zc], axis=1)], axis=0)  # (2C, 2Cr)
    b1 = jnp.concatenate([b1_12, b1_21]).reshape(1, 2 * Cr)
    w2 = jnp.concatenate([jnp.concatenate([w2_12, zr], axis=1),
                          jnp.concatenate([zr, w2_21], axis=1)], axis=0)  # (2Cr, 2C)
    b2 = jnp.concatenate([b2_12, b2_21]).reshape(1, 2 * C)
    return w1, b1, w2, b2


# ============================================================================
# Full forward (Pallas path).
# ============================================================================
def cross_attention_block(x_nchw, p):
    B, C, H, W = x_nchw.shape
    K = p['w_sa12'].shape[0]
    Cr = p['ca12_w1'].shape[1]
    x = jnp.transpose(x_nchw, (0, 2, 3, 1))                # NCHW -> NHWC

    wc, bc = [], []
    for n1, n2 in (('init1', 'init2'), ('trp1', 'trp2'),
                   ('mid1', 'mid2'), ('dbl1', 'dbl2')):
        w, b = _fuse_conv(p[f'w_{n1}'], p[f'b_{n1}'], p[f'w_{n2}'], p[f'b_{n2}'])
        wc.append(w)
        bc.append(b)
    w_conv = jnp.stack(wc)                                 # (4, 9C, 2C)
    b_conv = jnp.stack(bc)                                 # (4, 1, 2C)

    w_sa = _build_sa_bands(p['w_sa12'], p['w_sa21'], W, K)         # (K, 4W, 2W)
    w1ca, b1ca, w2ca, b2ca = _fuse_ca(
        p['ca12_w1'], p['ca12_b1'], p['ca12_w2'], p['ca12_b2'],
        p['ca21_w1'], p['ca21_b1'], p['ca21_w2'], p['ca21_b2'])

    kernel = make_fused_kernel(H, W, C, K)
    const3 = lambda b: (0, 0, 0)
    const2 = lambda b: (0, 0)

    out = pl.pallas_call(
        kernel,
        out_shape=jax.ShapeDtypeStruct((B, H, W, C), jnp.float32),
        grid=(B,),
        in_specs=[
            pl.BlockSpec((1, H, W, C), lambda b: (b, 0, 0, 0)),
            pl.BlockSpec((4, 9 * C, 2 * C), const3),
            pl.BlockSpec((4, 1, 2 * C), const3),
            pl.BlockSpec((K, 4 * W, 2 * W), const3),
            pl.BlockSpec((2 * C, 2 * Cr), const2),
            pl.BlockSpec((1, 2 * Cr), const2),
            pl.BlockSpec((2 * Cr, 2 * C), const2),
            pl.BlockSpec((1, 2 * C), const2),
        ],
        out_specs=pl.BlockSpec((1, H, W, C), lambda b: (b, 0, 0, 0)),
        scratch_shapes=[
            pltpu.VMEM((H + 2, W + 2, C), jnp.float32),    # zero-padded conv input
        ],
        compiler_params=pltpu.CompilerParams(
            dimension_semantics=("parallel",),
            vmem_limit_bytes=32 * 1024 * 1024),
    )(x, w_conv, b_conv, w_sa, w1ca, b1ca, w2ca, b2ca)

    return jnp.transpose(out, (0, 3, 1, 2))                # NHWC -> NCHW


# ============================================================================
# Pure-JAX reference (correctness check only).
# ============================================================================
def cross_attention_ref(x_nchw, p):
    x = jnp.transpose(x_nchw, (0, 2, 3, 1))
    relu = lambda a: jnp.maximum(a, 0.0)

    def conv(z, w, b=None, pad='SAME'):
        y = jax.lax.conv_general_dilated(
            z, w, (1, 1), pad, dimension_numbers=('NHWC', 'HWIO', 'NHWC'))
        return y if b is None else y + b.reshape(1, 1, 1, -1)

    def sa(z, w):
        f = jnp.concatenate([jnp.mean(z, -1, keepdims=True),
                             jnp.max(z, -1, keepdims=True)], axis=-1)
        return jax.nn.sigmoid(conv(f, w))

    def ca(z, w1, b1, w2, b2):
        g = jnp.mean(z, axis=(1, 2))                       # (B, C)
        h = jnp.maximum(g @ w1 + b1, 0.0)
        return jax.nn.sigmoid(h @ w2 + b2)[:, None, None, :]

    z0 = relu(conv(x, p['w_init1'], p['b_init1'])) + relu(conv(x, p['w_init2'], p['b_init2']))
    z1t = relu(conv(z0, p['w_trp1'], p['b_trp1']))
    z2t = relu(conv(z0, p['w_trp2'], p['b_trp2']))
    M_trp = z1t * sa(z2t, p['w_sa12']) + z2t * sa(z1t, p['w_sa21'])
    z1 = relu(conv(M_trp, p['w_mid1'], p['b_mid1'])) + relu(conv(M_trp, p['w_mid2'], p['b_mid2']))
    z1d = relu(conv(z1, p['w_dbl1'], p['b_dbl1']))
    z2d = relu(conv(z1, p['w_dbl2'], p['b_dbl2']))
    M_dbl = (z1d * ca(z2d, p['ca12_w1'], p['ca12_b1'], p['ca12_w2'], p['ca12_b2'])
             + z2d * ca(z1d, p['ca21_w1'], p['ca21_b1'], p['ca21_w2'], p['ca21_b2']))
    return jnp.transpose(x + M_dbl, (0, 3, 1, 2))


# ============================================================================
# Deterministic parameter init (shapes follow the PyTorch __init__).
# ============================================================================
def init_params(key, C, reduction, kernel_size=7):
    Cr = max(C // reduction, 1)
    keys = iter(jax.random.split(key, 26))
    nrm = lambda k, s, sc: sc * jax.random.normal(k, s, dtype=jnp.float32)
    p = {}
    for n in ['init1', 'init2', 'trp1', 'trp2', 'mid1', 'mid2', 'dbl1', 'dbl2']:
        p[f'w_{n}'] = nrm(next(keys), (3, 3, C, C), 0.1)        # HWIO
        p[f'b_{n}'] = nrm(next(keys), (C,), 0.05)
    p['w_sa12'] = nrm(next(keys), (kernel_size, kernel_size, 2, 1), 0.1)
    p['w_sa21'] = nrm(next(keys), (kernel_size, kernel_size, 2, 1), 0.1)
    for tag in ['ca12', 'ca21']:
        p[f'{tag}_w1'] = nrm(next(keys), (C, Cr), 0.1)          # fc1 (row-vector form)
        p[f'{tag}_b1'] = nrm(next(keys), (Cr,), 0.05)
        p[f'{tag}_w2'] = nrm(next(keys), (Cr, C), 0.1)          # fc2 (row-vector form)
        p[f'{tag}_b2'] = nrm(next(keys), (C,), 0.05)
    return p


if __name__ == "__main__":
    B, C, H, W = 2, 16, 16, 16
    reduction = 4          # CrossAttentionBlock(in_channels=16, reduction=4)
    key = jax.random.PRNGKey(0)
    kx, kp = jax.random.split(key)
    x_nchw = jax.random.normal(kx, (B, C, H, W), dtype=jnp.float32)
    params = init_params(kp, C, reduction)

    fwd = jax.jit(cross_attention_block)
    out = jax.block_until_ready(fwd(x_nchw, params))
    assert out.shape == (B, C, H, W), out.shape

    ref = cross_attention_ref(x_nchw, params)
    err = float(jnp.max(jnp.abs(out - ref)))
    assert err < 2e-3, f"mismatch vs reference: max abs err = {err}"

    print("KERNEL_OK")
</pallas_src>

<mosaic_0001>
module attributes {stable_mosaic.version = 11 : i64} {
  func.func @kernel(%arg0: i32, %arg1: memref<1x16x16x16xf32, #tpu.memory_space<vmem>>, %arg2: memref<4x144x32xf32, #tpu.memory_space<vmem>>, %arg3: memref<4x1x32xf32, #tpu.memory_space<vmem>>, %arg4: memref<7x64x32xf32, #tpu.memory_space<vmem>>, %arg5: memref<32x8xf32, #tpu.memory_space<vmem>>, %arg6: memref<1x8xf32, #tpu.memory_space<vmem>>, %arg7: memref<8x32xf32, #tpu.memory_space<vmem>>, %arg8: memref<1x32xf32, #tpu.memory_space<vmem>>, %arg9: memref<1x16x16x16xf32, #tpu.memory_space<vmem>>, %arg10: memref<18x18x16xf32, #tpu.memory_space<vmem>>) attributes {dimension_semantics = [#tpu.dimension_semantics<parallel>], iteration_bounds = array<i64: 2>, scalar_prefetch = 0 : i64, scratch_operands = 1 : i64, tpu.core_type = #tpu.core_type<tc>, window_params = [{transform_indices = @transform_0, window_bounds = array<i64: 1, 16, 16, 16>}, {pipeline_mode = #tpu.pipeline_mode<synchronous>, transform_indices = @transform_1, window_bounds = array<i64: 4, 144, 32>}, {pipeline_mode = #tpu.pipeline_mode<synchronous>, transform_indices = @transform_2, window_bounds = array<i64: 4, 1, 32>}, {pipeline_mode = #tpu.pipeline_mode<synchronous>, transform_indices = @transform_3, window_bounds = array<i64: 7, 64, 32>}, {pipeline_mode = #tpu.pipeline_mode<synchronous>, transform_indices = @transform_4, window_bounds = array<i64: 32, 8>}, {pipeline_mode = #tpu.pipeline_mode<synchronous>, transform_indices = @transform_5, window_bounds = array<i64: 1, 8>}, {pipeline_mode = #tpu.pipeline_mode<synchronous>, transform_indices = @transform_6, window_bounds = array<i64: 8, 32>}, {pipeline_mode = #tpu.pipeline_mode<synchronous>, transform_indices = @transform_7, window_bounds = array<i64: 1, 32>}, {transform_indices = @transform_8, window_bounds = array<i64: 1, 16, 16, 16>}]} {
    %cst = arith.constant 0.000000e+00 : f32
    %0 = vector.broadcast %cst : f32 to vector<18x18x16xf32>
    %c0 = arith.constant 0 : index
    %c0_0 = arith.constant 0 : index
    %c0_1 = arith.constant 0 : index
    %1 = vector.load %arg10[%c0, %c0_0, %c0_1] : memref<18x18x16xf32, #tpu.memory_space<vmem>>, vector<18x18x16xf32>
    tpu.vector_store %arg10[%c0, %c0_0, %c0_1], %0 {strides = array<i32>} : memref<18x18x16xf32, #tpu.memory_space<vmem>>, vector<18x18x16xf32>,
    %c0_2 = arith.constant 0 : index
    %c0_3 = arith.constant 0 : index
    %c0_4 = arith.constant 0 : index
    %c0_5 = arith.constant 0 : index
    %2 = vector.load %arg1[%c0_2, %c0_3, %c0_4, %c0_5] : memref<1x16x16x16xf32, #tpu.memory_space<vmem>>, vector<1x16x16x16xf32>
    %3 = vector.shape_cast %2 : vector<1x16x16x16xf32> to vector<16x16x16xf32>
    %c1 = arith.constant 1 : index
    %c1_6 = arith.constant 1 : index
    %c0_7 = arith.constant 0 : index
    %4 = vector.load %arg10[%c1, %c1_6, %c0_7] : memref<18x18x16xf32, #tpu.memory_space<vmem>>, vector<16x16x16xf32>
    tpu.vector_store %arg10[%c1, %c1_6, %c0_7], %3 {strides = array<i32>} : memref<18x18x16xf32, #tpu.memory_space<vmem>>, vector<16x16x16xf32>,
    %c0_8 = arith.constant 0 : index
    %c0_9 = arith.constant 0 : index
    %c0_10 = arith.constant 0 : index
    %5 = vector.load %arg10[%c0_8, %c0_9, %c0_10] : memref<18x18x16xf32, #tpu.memory_space<vmem>>, vector<16x16x16xf32>
    %6 = vector.shape_cast %5 : vector<16x16x16xf32> to vector<256x16xf32>
    %c0_11 = arith.constant 0 : index
    %c1_12 = arith.constant 1 : index
    %c0_13 = arith.constant 0 : index
    %7 = vector.load %arg10[%c0_11, %c1_12, %c0_13] : memref<18x18x16xf32, #tpu.memory_space<vmem>>, vector<16x16x16xf32>
    %8 = vector.shape_cast %7 : vector<16x16x16xf32> to vector<256x16xf32>
    %c0_14 = arith.constant 0 : index
    %c2 = arith.constant 2 : index
    %c0_15 = arith.constant 0 : index
    %9 = vector.load %arg10[%c0_14, %c2, %c0_15] : memref<18x18x16xf32, #tpu.memory_space<vmem>>, vector<16x16x16xf32>
    %10 = vector.shape_cast %9 : vector<16x16x16xf32> to vector<256x16xf32>
    %c1_16 = arith.constant 1 : index
    %c0_17 = arith.constant 0 : index
    %c0_18 = arith.constant 0 : index
    %11 = vector.load %arg10[%c1_16, %c0_17, %c0_18] : memref<18x18x16xf32, #tpu.memory_space<vmem>>, vector<16x16x16xf32>
    %12 = vector.shape_cast %11 : vector<16x16x16xf32> to vector<256x16xf32>
    %c1_19 = arith.constant 1 : index
    %c1_20 = arith.constant 1 : index
    %c0_21 = arith.constant 0 : index
    %13 = vector.load %arg10[%c1_19, %c1_20, %c0_21] : memref<18x18x16xf32, #tpu.memory_space<vmem>>, vector<16x16x16xf32>
    %14 = vector.shape_cast %13 : vector<16x16x16xf32> to vector<256x16xf32>
    %c1_22 = arith.constant 1 : index
    %c2_23 = arith.constant 2 : index
    %c0_24 = arith.constant 0 : index
    %15 = vector.load %arg10[%c1_22, %c2_23, %c0_24] : memref<18x18x16xf32, #tpu.memory_space<vmem>>, vector<16x16x16xf32>
    %16 = vector.shape_cast %15 : vector<16x16x16xf32> to vector<256x16xf32>
    %c2_25 = arith.constant 2 : index
    %c0_26 = arith.constant 0 : index
    %c0_27 = arith.constant 0 : index
    %17 = vector.load %arg10[%c2_25, %c0_26, %c0_27] : memref<18x18x16xf32, #tpu.memory_space<vmem>>, vector<16x16x16xf32>
    %18 = vector.shape_cast %17 : vector<16x16x16xf32> to vector<256x16xf32>
    %c2_28 = arith.constant 2 : index
    %c1_29 = arith.constant 1 : index
    %c0_30 = arith.constant 0 : index
    %19 = vector.load %arg10[%c2_28, %c1_29, %c0_30] : memref<18x18x16xf32, #tpu.memory_space<vmem>>, vector<16x16x16xf32>
    %20 = vector.shape_cast %19 : vector<16x16x16xf32> to vector<256x16xf32>
    %c2_31 = arith.constant 2 : index
    %c2_32 = arith.constant 2 : index
    %c0_33 = arith.constant 0 : index
    %21 = vector.load %arg10[%c2_31, %c2_32, %c0_33] : memref<18x18x16xf32, #tpu.memory_space<vmem>>, vector<16x16x16xf32>
    %22 = vector.shape_cast %21 : vector<16x16x16xf32> to vector<256x16xf32>
    %23 = tpu.concatenate %6, %8, %10, %12, %14, %16, %18, %20, %22 in 1 : vector<256x16xf32>, vector<256x16xf32>, vector<256x16xf32>, vector<256x16xf32>, vector<256x16xf32>, vector<256x16xf32>, vector<256x16xf32>, vector<256x16xf32>, vector<256x16xf32> -> vector<256x144xf32>
    %c0_34 = arith.constant 0 : index
    %c0_35 = arith.constant 0 : index
    %c0_36 = arith.constant 0 : index
    %24 = vector.load %arg2[%c0_34, %c0_35, %c0_36] : memref<4x144x32xf32, #tpu.memory_space<vmem>>, vector<1x144x32xf32>
    %25 = vector.shape_cast %24 : vector<1x144x32xf32> to vector<144x32xf32>
    %cst_37 = arith.constant dense<0.000000e+00> : vector<256x32xf32>
    %26 = tpu.matmul %23, %25, %cst_37 {dimension_numbers = #tpu.dot_dimension_numbers<[1], [0], [0], [1], [0, 0, 1, 1], [], []>} : vector<256x144xf32>, vector<144x32xf32>, vector<256x32xf32> -> vector<256x32xf32>
    %c0_38 = arith.constant 0 : index
    %c0_39 = arith.constant 0 : index
    %c0_40 = arith.constant 0 : index
    %27 = vector.load %arg3[%c0_38, %c0_39, %c0_40] : memref<4x1x32xf32, #tpu.memory_space<vmem>>, vector<1x1x32xf32>
    %28 = vector.shape_cast %27 : vector<1x1x32xf32> to vector<1x32xf32>
    %29 = vector.broadcast %28 : vector<1x32xf32> to vector<256x32xf32>
    %30 = arith.addf %26, %29 : vector<256x32xf32>
    %cst_41 = arith.constant 0.000000e+00 : f32
    %31 = vector.broadcast %cst_41 : f32 to vector<256x32xf32>
    %32 = arith.maximumf %30, %31 : vector<256x32xf32>
    %33 = vector.shape_cast %32 : vector<256x32xf32> to vector<16x16x32xf32>
    %34 = vector.extract_strided_slice %33 {offsets = [0, 0, 0], sizes = [16, 16, 16], strides = [1, 1, 1]} : vector<16x16x32xf32> to vector<16x16x16xf32>
    %35 = vector.extract_strided_slice %33 {offsets = [0, 0, 16], sizes = [16, 16, 16], strides = [1, 1, 1]} : vector<16x16x32xf32> to vector<16x16x16xf32>
    %36 = arith.addf %34, %35 : vector<16x16x16xf32>
    %c1_42 = arith.constant 1 : index
    %c1_43 = arith.constant 1 : index
    %c0_44 = arith.constant 0 : index
    %37 = vector.load %arg10[%c1_42, %c1_43, %c0_44] : memref<18x18x16xf32, #tpu.memory_space<vmem>>, vector<16x16x16xf32>
    tpu.vector_store %arg10[%c1_42, %c1_43, %c0_44], %36 {strides = array<i32>} : memref<18x18x16xf32, #tpu.memory_space<vmem>>, vector<16x16x16xf32>,
    %c0_45 = arith.constant 0 : index
    %c0_46 = arith.constant 0 : index
    %c0_47 = arith.constant 0 : index
    %38 = vector.load %arg10[%c0_45, %c0_46, %c0_47] : memref<18x18x16xf32, #tpu.memory_space<vmem>>, vector<16x16x16xf32>
    %39 = vector.shape_cast %38 : vector<16x16x16xf32> to vector<256x16xf32>
    %c0_48 = arith.constant 0 : index
    %c1_49 = arith.constant 1 : index
    %c0_50 = arith.constant 0 : index
    %40 = vector.load %arg10[%c0_48, %c1_49, %c0_50] : memref<18x18x16xf32, #tpu.memory_space<vmem>>, vector<16x16x16xf32>
    %41 = vector.shape_cast %40 : vector<16x16x16xf32> to vector<256x16xf32>
    %c0_51 = arith.constant 0 : index
    %c2_52 = arith.constant 2 : index
    %c0_53 = arith.constant 0 : index
    %42 = vector.load %arg10[%c0_51, %c2_52, %c0_53] : memref<18x18x16xf32, #tpu.memory_space<vmem>>, vector<16x16x16xf32>
    %43 = vector.shape_cast %42 : vector<16x16x16xf32> to vector<256x16xf32>
    %c1_54 = arith.constant 1 : index
    %c0_55 = arith.constant 0 : index
    %c0_56 = arith.constant 0 : index
    %44 = vector.load %arg10[%c1_54, %c0_55, %c0_56] : memref<18x18x16xf32, #tpu.memory_space<vmem>>, vector<16x16x16xf32>
    %45 = vector.shape_cast %44 : vector<16x16x16xf32> to vector<256x16xf32>
    %c1_57 = arith.constant 1 : index
    %c1_58 = arith.constant 1 : index
    %c0_59 = arith.constant 0 : index
    %46 = vector.load %arg10[%c1_57, %c1_58, %c0_59] : memref<18x18x16xf32, #tpu.memory_space<vmem>>, vector<16x16x16xf32>
    %47 = vector.shape_cast %46 : vector<16x16x16xf32> to vector<256x16xf32>
    %c1_60 = arith.constant 1 : index
    %c2_61 = arith.constant 2 : index
    %c0_62 = arith.constant 0 : index
    %48 = vector.load %arg10[%c1_60, %c2_61, %c0_62] : memref<18x18x16xf32, #tpu.memory_space<vmem>>, vector<16x16x16xf32>
    %49 = vector.shape_cast %48 : vector<16x16x16xf32> to vector<256x16xf32>
    %c2_63 = arith.constant 2 : index
    %c0_64 = arith.constant 0 : index
    %c0_65 = arith.constant 0 : index
    %50 = vector.load %arg10[%c2_63, %c0_64, %c0_65] : memref<18x18x16xf32, #tpu.memory_space<vmem>>, vector<16x16x16xf32>
    %51 = vector.shape_cast %50 : vector<16x16x16xf32> to vector<256x16xf32>
    %c2_66 = arith.constant 2 : index
    %c1_67 = arith.constant 1 : index
    %c0_68 = arith.constant 0 : index
    %52 = vector.load %arg10[%c2_66, %c1_67, %c0_68] : memref<18x18x16xf32, #tpu.memory_space<vmem>>, vector<16x16x16xf32>
    %53 = vector.shape_cast %52 : vector<16x16x16xf32> to vector<256x16xf32>
    %c2_69 = arith.constant 2 : index
    %c2_70 = arith.constant 2 : index
    %c0_71 = arith.constant 0 : index
    %54 = vector.load %arg10[%c2_69, %c2_70, %c0_71] : memref<18x18x16xf32, #tpu.memory_space<vmem>>, vector<16x16x16xf32>
    %55 = vector.shape_cast %54 : vector<16x16x16xf32> to vector<256x16xf32>
    %56 = tpu.concatenate %39, %41, %43, %45, %47, %49, %51, %53, %55 in 1 : vector<256x16xf32>, vector<256x16xf32>, vector<256x16xf32>, vector<256x16xf32>, vector<256x16xf32>, vector<256x16xf32>, vector<256x16xf32>, vector<256x16xf32>, vector<256x16xf32> -> vector<256x144xf32>
    %c1_72 = arith.constant 1 : index
    %c0_73 = arith.constant 0 : index
    %c0_74 = arith.constant 0 : index
    %57 = vector.load %arg2[%c1_72, %c0_73, %c0_74] : memref<4x144x32xf32, #tpu.memory_space<vmem>>, vector<1x144x32xf32>
    %58 = vector.shape_cast %57 : vector<1x144x32xf32> to vector<144x32xf32>
    %cst_75 = arith.constant dense<0.000000e+00> : vector<256x32xf32>
    %59 = tpu.matmul %56, %58, %cst_75 {dimension_numbers = #tpu.dot_dimension_numbers<[1], [0], [0], [1], [0, 0, 1, 1], [], []>} : vector<256x144xf32>, vector<144x32xf32>, vector<256x32xf32> -> vector<256x32xf32>
    %c1_76 = arith.constant 1 : index
    %c0_77 = arith.constant 0 : index
    %c0_78 = arith.constant 0 : index
    %60 = vector.load %arg3[%c1_76, %c0_77, %c0_78] : memref<4x1x32xf32, #tpu.memory_space<vmem>>, vector<1x1x32xf32>
    %61 = vector.shape_cast %60 : vector<1x1x32xf32> to vector<1x32xf32>
    %62 = vector.broadcast %61 : vector<1x32xf32> to vector<256x32xf32>
    %63 = arith.addf %59, %62 : vector<256x32xf32>
    %cst_79 = arith.constant 0.000000e+00 : f32
    %64 = vector.broadcast %cst_79 : f32 to vector<256x32xf32>
    %65 = arith.maximumf %63, %64 : vector<256x32xf32>
    %66 = vector.shape_cast %65 : vector<256x32xf32> to vector<16x16x32xf32>
    %67 = vector.extract_strided_slice %66 {offsets = [0, 0, 0], sizes = [16, 16, 16], strides = [1, 1, 1]} : vector<16x16x32xf32> to vector<16x16x16xf32>
    %68 = vector.extract_strided_slice %66 {offsets = [0, 0, 16], sizes = [16, 16, 16], strides = [1, 1, 1]} : vector<16x16x32xf32> to vector<16x16x16xf32>
    %cst_80 = arith.constant dense<0.000000e+00> : vector<16x16xf32>
    %69 = vector.multi_reduction <add>, %68, %cst_80 [2] : vector<16x16x16xf32> to vector<16x16xf32>
    %cst_81 = arith.constant 1.600000e+01 : f32
    %70 = vector.broadcast %cst_81 : f32 to vector<16x16xf32>
    %71 = arith.divf %69, %70 : vector<16x16xf32>
    %cst_82 = arith.constant dense<0xFF800000> : vector<16x16xf32>
    %72 = vector.multi_reduction <maximumf>, %68, %cst_82 [2] : vector<16x16x16xf32> to vector<16x16xf32>
    %cst_83 = arith.constant dense<0.000000e+00> : vector<16x16xf32>
    %73 = vector.multi_reduction <add>, %67, %cst_83 [2] : vector<16x16x16xf32> to vector<16x16xf32>
    %cst_84 = arith.constant 1.600000e+01 : f32
    %74 = vector.broadcast %cst_84 : f32 to vector<16x16xf32>
    %75 = arith.divf %73, %74 : vector<16x16xf32>
    %cst_85 = arith.constant dense<0xFF800000> : vector<16x16xf32>
    %76 = vector.multi_reduction <maximumf>, %67, %cst_85 [2] : vector<16x16x16xf32> to vector<16x16xf32>
    %77 = tpu.concatenate %71, %72, %75, %76 in 1 : vector<16x16xf32>, vector<16x16xf32>, vector<16x16xf32>, vector<16x16xf32> -> vector<16x64xf32>
    %cst_86 = arith.constant 0.000000e+00 : f32
    %78 = vector.broadcast %cst_86 : f32 to vector<3x64xf32>
    %79 = tpu.concatenate %78, %77, %78 in 0 : vector<3x64xf32>, vector<16x64xf32>, vector<3x64xf32> -> vector<22x64xf32>
    %80 = vector.extract_strided_slice %79 {offsets = [0, 0], sizes = [16, 64], strides = [1, 1]} : vector<22x64xf32> to vector<16x64xf32>
    %c0_87 = arith.constant 0 : index
    %c0_88 = arith.constant 0 : index
    %c0_89 = arith.constant 0 : index
    %81 = vector.load %arg4[%c0_87, %c0_88, %c0_89] : memref<7x64x32xf32, #tpu.memory_space<vmem>>, vector<1x64x32xf32>
    %82 = vector.shape_cast %81 : vector<1x64x32xf32> to vector<64x32xf32>
    %cst_90 = arith.constant dense<0.000000e+00> : vector<16x32xf32>
    %83 = tpu.matmul %80, %82, %cst_90 {dimension_numbers = #tpu.dot_dimension_numbers<[1], [0], [0], [1], [0, 0, 1, 1], [], []>} : vector<16x64xf32>, vector<64x32xf32>, vector<16x32xf32> -> vector<16x32xf32>
    %84 = vector.extract_strided_slice %79 {offsets = [1, 0], sizes = [16, 64], strides = [1, 1]} : vector<22x64xf32> to vector<16x64xf32>
    %c1_91 = arith.constant 1 : index
    %c0_92 = arith.constant 0 : index
    %c0_93 = arith.constant 0 : index
    %85 = vector.load %arg4[%c1_91, %c0_92, %c0_93] : memref<7x64x32xf32, #tpu.memory_space<vmem>>, vector<1x64x32xf32>
    %86 = vector.shape_cast %85 : vector<1x64x32xf32> to vector<64x32xf32>
    %cst_94 = arith.constant dense<0.000000e+00> : vector<16x32xf32>
    %87 = tpu.matmul %84, %86, %cst_94 {dimension_numbers = #tpu.dot_dimension_numbers<[1], [0], [0], [1], [0, 0, 1, 1], [], []>} : vector<16x64xf32>, vector<64x32xf32>, vector<16x32xf32> -> vector<16x32xf32>
    %88 = arith.addf %83, %87 : vector<16x32xf32>
    %89 = vector.extract_strided_slice %79 {offsets = [2, 0], sizes = [16, 64], strides = [1, 1]} : vector<22x64xf32> to vector<16x64xf32>
    %c2_95 = arith.constant 2 : index
    %c0_96 = arith.constant 0 : index
    %c0_97 = arith.constant 0 : index
    %90 = vector.load %arg4[%c2_95, %c0_96, %c0_97] : memref<7x64x32xf32, #tpu.memory_space<vmem>>, vector<1x64x32xf32>
    %91 = vector.shape_cast %90 : vector<1x64x32xf32> to vector<64x32xf32>
    %cst_98 = arith.constant dense<0.000000e+00> : vector<16x32xf32>
    %92 = tpu.matmul %89, %91, %cst_98 {dimension_numbers = #tpu.dot_dimension_numbers<[1], [0], [0], [1], [0, 0, 1, 1], [], []>} : vector<16x64xf32>, vector<64x32xf32>, vector<16x32xf32> -> vector<16x32xf32>
    %93 = arith.addf %88, %92 : vector<16x32xf32>
    %94 = vector.extract_strided_slice %79 {offsets = [3, 0], sizes = [16, 64], strides = [1, 1]} : vector<22x64xf32> to vector<16x64xf32>
    %c3 = arith.constant 3 : index
    %c0_99 = arith.constant 0 : index
    %c0_100 = arith.constant 0 : index
    %95 = vector.load %arg4[%c3, %c0_99, %c0_100] : memref<7x64x32xf32, #tpu.memory_space<vmem>>, vector<1x64x32xf32>
    %96 = vector.shape_cast %95 : vector<1x64x32xf32> to vector<64x32xf32>
    %cst_101 = arith.constant dense<0.000000e+00> : vector<16x32xf32>
    %97 = tpu.matmul %94, %96, %cst_101 {dimension_numbers = #tpu.dot_dimension_numbers<[1], [0], [0], [1], [0, 0, 1, 1], [], []>} : vector<16x64xf32>, vector<64x32xf32>, vector<16x32xf32> -> vector<16x32xf32>
    %98 = arith.addf %93, %97 : vector<16x32xf32>
    %99 = vector.extract_strided_slice %79 {offsets = [4, 0], sizes = [16, 64], strides = [1, 1]} : vector<22x64xf32> to vector<16x64xf32>
    %c4 = arith.constant 4 : index
    %c0_102 = arith.constant 0 : index
    %c0_103 = arith.constant 0 : index
    %100 = vector.load %arg4[%c4, %c0_102, %c0_103] : memref<7x64x32xf32, #tpu.memory_space<vmem>>, vector<1x64x32xf32>
    %101 = vector.shape_cast %100 : vector<1x64x32xf32> to vector<64x32xf32>
    %cst_104 = arith.constant dense<0.000000e+00> : vector<16x32xf32>
    %102 = tpu.matmul %99, %101, %cst_104 {dimension_numbers = #tpu.dot_dimension_numbers<[1], [0], [0], [1], [0, 0, 1, 1], [], []>} : vector<16x64xf32>, vector<64x32xf32>, vector<16x32xf32> -> vector<16x32xf32>
    %103 = arith.addf %98, %102 : vector<16x32xf32>
    %104 = vector.extract_strided_slice %79 {offsets = [5, 0], sizes = [16, 64], strides = [1, 1]} : vector<22x64xf32> to vector<16x64xf32>
    %c5 = arith.constant 5 : index
    %c0_105 = arith.constant 0 : index
    %c0_106 = arith.constant 0 : index
    %105 = vector.load %arg4[%c5, %c0_105, %c0_106] : memref<7x64x32xf32, #tpu.memory_space<vmem>>, vector<1x64x32xf32>
    %106 = vector.shape_cast %105 : vector<1x64x32xf32> to vector<64x32xf32>
    %cst_107 = arith.constant dense<0.000000e+00> : vector<16x32xf32>
    %107 = tpu.matmul %104, %106, %cst_107 {dimension_numbers = #tpu.dot_dimension_numbers<[1], [0], [0], [1], [0, 0, 1, 1], [], []>} : vector<16x64xf32>, vector<64x32xf32>, vector<16x32xf32> -> vector<16x32xf32>
    %108 = arith.addf %103, %107 : vector<16x32xf32>
    %109 = vector.extract_strided_slice %79 {offsets = [6, 0], sizes = [16, 64], strides = [1, 1]} : vector<22x64xf32> to vector<16x64xf32>
    %c6 = arith.constant 6 : index
    %c0_108 = arith.constant 0 : index
    %c0_109 = arith.constant 0 : index
    %110 = vector.load %arg4[%c6, %c0_108, %c0_109] : memref<7x64x32xf32, #tpu.memory_space<vmem>>, vector<1x64x32xf32>
    %111 = vector.shape_cast %110 : vector<1x64x32xf32> to vector<64x32xf32>
    %cst_110 = arith.constant dense<0.000000e+00> : vector<16x32xf32>
    %112 = tpu.matmul %109, %111, %cst_110 {dimension_numbers = #tpu.dot_dimension_numbers<[1], [0], [0], [1], [0, 0, 1, 1], [], []>} : vector<16x64xf32>, vector<64x32xf32>, vector<16x32xf32> -> vector<16x32xf32>
    %113 = arith.addf %108, %112 : vector<16x32xf32>
    %114 = arith.negf %113 : vector<16x32xf32>
    %115 = math.exp %114 : vector<16x32xf32>
    %cst_111 = arith.constant 1.000000e+00 : f32
    %116 = vector.broadcast %cst_111 : f32 to vector<16x32xf32>
    %117 = arith.addf %116, %115 : vector<16x32xf32>
    %118 = arith.divf %116, %117 : vector<16x32xf32>
    %119 = vector.extract_strided_slice %118 {offsets = [0, 0], sizes = [16, 16], strides = [1, 1]} : vector<16x32xf32> to vector<16x16xf32>
    %120 = vector.shape_cast %119 : vector<16x16xf32> to vector<16x16x1xf32>
    %121 = vector.broadcast %120 : vector<16x16x1xf32> to vector<16x16x16xf32>
    %122 = arith.mulf %67, %121 : vector<16x16x16xf32>
    %123 = vector.extract_strided_slice %118 {offsets = [0, 16], sizes = [16, 16], strides = [1, 1]} : vector<16x32xf32> to vector<16x16xf32>
    %124 = vector.shape_cast %123 : vector<16x16xf32> to vector<16x16x1xf32>
    %125 = vector.broadcast %124 : vector<16x16x1xf32> to vector<16x16x16xf32>
    %126 = arith.mulf %68, %125 : vector<16x16x16xf32>
    %127 = arith.addf %122, %126 : vector<16x16x16xf32>
    %c1_112 = arith.constant 1 : index
    %c1_113 = arith.constant 1 : index
    %c0_114 = arith.constant 0 : index
    %128 = vector.load %arg10[%c1_112, %c1_113, %c0_114] : memref<18x18x16xf32, #tpu.memory_space<vmem>>, vector<16x16x16xf32>
    tpu.vector_store %arg10[%c1_112, %c1_113, %c0_114], %127 {strides = array<i32>} : memref<18x18x16xf32, #tpu.memory_space<vmem>>, vector<16x16x16xf32>,
    %c0_115 = arith.constant 0 : index
    %c0_116 = arith.constant 0 : index
    %c0_117 = arith.constant 0 : index
    %129 = vector.load %arg10[%c0_115, %c0_116, %c0_117] : memref<18x18x16xf32, #tpu.memory_space<vmem>>, vector<16x16x16xf32>
    %130 = vector.shape_cast %129 : vector<16x16x16xf32> to vector<256x16xf32>
    %c0_118 = arith.constant 0 : index
    %c1_119 = arith.constant 1 : index
    %c0_120 = arith.constant 0 : index
    %131 = vector.load %arg10[%c0_118, %c1_119, %c0_120] : memref<18x18x16xf32, #tpu.memory_space<vmem>>, vector<16x16x16xf32>
    %132 = vector.shape_cast %131 : vector<16x16x16xf32> to vector<256x16xf32>
    %c0_121 = arith.constant 0 : index
    %c2_122 = arith.constant 2 : index
    %c0_123 = arith.constant 0 : index
    %133 = vector.load %arg10[%c0_121, %c2_122, %c0_123] : memref<18x18x16xf32, #tpu.memory_space<vmem>>, vector<16x16x16xf32>
    %134 = vector.shape_cast %133 : vector<16x16x16xf32> to vector<256x16xf32>
    %c1_124 = arith.constant 1 : index
    %c0_125 = arith.constant 0 : index
    %c0_126 = arith.constant 0 : index
    %135 = vector.load %arg10[%c1_124, %c0_125, %c0_126] : memref<18x18x16xf32, #tpu.memory_space<vmem>>, vector<16x16x16xf32>
    %136 = vector.shape_cast %135 : vector<16x16x16xf32> to vector<256x16xf32>
    %c1_127 = arith.constant 1 : index
    %c1_128 = arith.constant 1 : index
    %c0_129 = arith.constant 0 : index
    %137 = vector.load %arg10[%c1_127, %c1_128, %c0_129] : memref<18x18x16xf32, #tpu.memory_space<vmem>>, vector<16x16x16xf32>
    %138 = vector.shape_cast %137 : vector<16x16x16xf32> to vector<256x16xf32>
    %c1_130 = arith.constant 1 : index
    %c2_131 = arith.constant 2 : index
    %c0_132 = arith.constant 0 : index
    %139 = vector.load %arg10[%c1_130, %c2_131, %c0_132] : memref<18x18x16xf32, #tpu.memory_space<vmem>>, vector<16x16x16xf32>
    %140 = vector.shape_cast %139 : vector<16x16x16xf32> to vector<256x16xf32>
    %c2_133 = arith.constant 2 : index
    %c0_134 = arith.constant 0 : index
    %c0_135 = arith.constant 0 : index
    %141 = vector.load %arg10[%c2_133, %c0_134, %c0_135] : memref<18x18x16xf32, #tpu.memory_space<vmem>>, vector<16x16x16xf32>
    %142 = vector.shape_cast %141 : vector<16x16x16xf32> to vector<256x16xf32>
    %c2_136 = arith.constant 2 : index
    %c1_137 = arith.constant 1 : index
    %c0_138 = arith.constant 0 : index
    %143 = vector.load %arg10[%c2_136, %c1_137, %c0_138] : memref<18x18x16xf32, #tpu.memory_space<vmem>>, vector<16x16x16xf32>
    %144 = vector.shape_cast %143 : vector<16x16x16xf32> to vector<256x16xf32>
    %c2_139 = arith.constant 2 : index
    %c2_140 = arith.constant 2 : index
    %c0_141 = arith.constant 0 : index
    %145 = vector.load %arg10[%c2_139, %c2_140, %c0_141] : memref<18x18x16xf32, #tpu.memory_space<vmem>>, vector<16x16x16xf32>
    %146 = vector.shape_cast %145 : vector<16x16x16xf32> to vector<256x16xf32>
    %147 = tpu.concatenate %130, %132, %134, %136, %138, %140, %142, %144, %146 in 1 : vector<256x16xf32>, vector<256x16xf32>, vector<256x16xf32>, vector<256x16xf32>, vector<256x16xf32>, vector<256x16xf32>, vector<256x16xf32>, vector<256x16xf32>, vector<256x16xf32> -> vector<256x144xf32>
    %c2_142 = arith.constant 2 : index
    %c0_143 = arith.constant 0 : index
    %c0_144 = arith.constant 0 : index
    %148 = vector.load %arg2[%c2_142, %c0_143, %c0_144] : memref<4x144x32xf32, #tpu.memory_space<vmem>>, vector<1x144x32xf32>
    %149 = vector.shape_cast %148 : vector<1x144x32xf32> to vector<144x32xf32>
    %cst_145 = arith.constant dense<0.000000e+00> : vector<256x32xf32>
    %150 = tpu.matmul %147, %149, %cst_145 {dimension_numbers = #tpu.dot_dimension_numbers<[1], [0], [0], [1], [0, 0, 1, 1], [], []>} : vector<256x144xf32>, vector<144x32xf32>, vector<256x32xf32> -> vector<256x32xf32>
    %c2_146 = arith.constant 2 : index
    %c0_147 = arith.constant 0 : index
    %c0_148 = arith.constant 0 : index
    %151 = vector.load %arg3[%c2_146, %c0_147, %c0_148] : memref<4x1x32xf32, #tpu.memory_space<vmem>>, vector<1x1x32xf32>
    %152 = vector.shape_cast %151 : vector<1x1x32xf32> to vector<1x32xf32>
    %153 = vector.broadcast %152 : vector<1x32xf32> to vector<256x32xf32>
    %154 = arith.addf %150, %153 : vector<256x32xf32>
    %cst_149 = arith.constant 0.000000e+00 : f32
    %155 = vector.broadcast %cst_149 : f32 to vector<256x32xf32>
    %156 = arith.maximumf %154, %155 : vector<256x32xf32>
    %157 = vector.shape_cast %156 : vector<256x32xf32> to vector<16x16x32xf32>
    %158 = vector.extract_strided_slice %157 {offsets = [0, 0, 0], sizes = [16, 16, 16], strides = [1, 1, 1]} : vector<16x16x32xf32> to vector<16x16x16xf32>
    %159 = vector.extract_strided_slice %157 {offsets = [0, 0, 16], sizes = [16, 16, 16], strides = [1, 1, 1]} : vector<16x16x32xf32> to vector<16x16x16xf32>
    %160 = arith.addf %158, %159 : vector<16x16x16xf32>
    %c1_150 = arith.constant 1 : index
    %c1_151 = arith.constant 1 : index
    %c0_152 = arith.constant 0 : index
    %161 = vector.load %arg10[%c1_150, %c1_151, %c0_152] : memref<18x18x16xf32, #tpu.memory_space<vmem>>, vector<16x16x16xf32>
    tpu.vector_store %arg10[%c1_150, %c1_151, %c0_152], %160 {strides = array<i32>} : memref<18x18x16xf32, #tpu.memory_space<vmem>>, vector<16x16x16xf32>,
    %c0_153 = arith.constant 0 : index
    %c0_154 = arith.constant 0 : index
    %c0_155 = arith.constant 0 : index
    %162 = vector.load %arg10[%c0_153, %c0_154, %c0_155] : memref<18x18x16xf32, #tpu.memory_space<vmem>>, vector<16x16x16xf32>
    %163 = vector.shape_cast %162 : vector<16x16x16xf32> to vector<256x16xf32>
    %c0_156 = arith.constant 0 : index
    %c1_157 = arith.constant 1 : index
    %c0_158 = arith.constant 0 : index
    %164 = vector.load %arg10[%c0_156, %c1_157, %c0_158] : memref<18x18x16xf32, #tpu.memory_space<vmem>>, vector<16x16x16xf32>
    %165 = vector.shape_cast %164 : vector<16x16x16xf32> to vector<256x16xf32>
    %c0_159 = arith.constant 0 : index
    %c2_160 = arith.constant 2 : index
    %c0_161 = arith.constant 0 : index
    %166 = vector.load %arg10[%c0_159, %c2_160, %c0_161] : memref<18x18x16xf32, #tpu.memory_space<vmem>>, vector<16x16x16xf32>
    %167 = vector.shape_cast %166 : vector<16x16x16xf32> to vector<256x16xf32>
    %c1_162 = arith.constant 1 : index
    %c0_163 = arith.constant 0 : index
    %c0_164 = arith.constant 0 : index
    %168 = vector.load %arg10[%c1_162, %c0_163, %c0_164] : memref<18x18x16xf32, #tpu.memory_space<vmem>>, vector<16x16x16xf32>
    %169 = vector.shape_cast %168 : vector<16x16x16xf32> to vector<256x16xf32>
    %c1_165 = arith.constant 1 : index
    %c1_166 = arith.constant 1 : index
    %c0_167 = arith.constant 0 : index
    %170 = vector.load %arg10[%c1_165, %c1_166, %c0_167] : memref<18x18x16xf32, #tpu.memory_space<vmem>>, vector<16x16x16xf32>
    %171 = vector.shape_cast %170 : vector<16x16x16xf32> to vector<256x16xf32>
    %c1_168 = arith.constant 1 : index
    %c2_169 = arith.constant 2 : index
    %c0_170 = arith.constant 0 : index
    %172 = vector.load %arg10[%c1_168, %c2_169, %c0_170] : memref<18x18x16xf32, #tpu.memory_space<vmem>>, vector<16x16x16xf32>
    %173 = vector.shape_cast %172 : vector<16x16x16xf32> to vector<256x16xf32>
    %c2_171 = arith.constant 2 : index
    %c0_172 = arith.constant 0 : index
    %c0_173 = arith.constant 0 : index
    %174 = vector.load %arg10[%c2_171, %c0_172, %c0_173] : memref<18x18x16xf32, #tpu.memory_space<vmem>>, vector<16x16x16xf32>
    %175 = vector.shape_cast %174 : vector<16x16x16xf32> to vector<256x16xf32>
    %c2_174 = arith.constant 2 : index
    %c1_175 = arith.constant 1 : index
    %c0_176 = arith.constant 0 : index
    %176 = vector.load %arg10[%c2_174, %c1_175, %c0_176] : memref<18x18x16xf32, #tpu.memory_space<vmem>>, vector<16x16x16xf32>
    %177 = vector.shape_cast %176 : vector<16x16x16xf32> to vector<256x16xf32>
    %c2_177 = arith.constant 2 : index
    %c2_178 = arith.constant 2 : index
    %c0_179 = arith.constant 0 : index
    %178 = vector.load %arg10[%c2_177, %c2_178, %c0_179] : memref<18x18x16xf32, #tpu.memory_space<vmem>>, vector<16x16x16xf32>
    %179 = vector.shape_cast %178 : vector<16x16x16xf32> to vector<256x16xf32>
    %180 = tpu.concatenate %163, %165, %167, %169, %171, %173, %175, %177, %179 in 1 : vector<256x16xf32>, vector<256x16xf32>, vector<256x16xf32>, vector<256x16xf32>, vector<256x16xf32>, vector<256x16xf32>, vector<256x16xf32>, vector<256x16xf32>, vector<256x16xf32> -> vector<256x144xf32>
    %c3_180 = arith.constant 3 : index
    %c0_181 = arith.constant 0 : index
    %c0_182 = arith.constant 0 : index
    %181 = vector.load %arg2[%c3_180, %c0_181, %c0_182] : memref<4x144x32xf32, #tpu.memory_space<vmem>>, vector<1x144x32xf32>
    %182 = vector.shape_cast %181 : vector<1x144x32xf32> to vector<144x32xf32>
    %cst_183 = arith.constant dense<0.000000e+00> : vector<256x32xf32>
    %183 = tpu.matmul %180, %182, %cst_183 {dimension_numbers = #tpu.dot_dimension_numbers<[1], [0], [0], [1], [0, 0, 1, 1], [], []>} : vector<256x144xf32>, vector<144x32xf32>, vector<256x32xf32> -> vector<256x32xf32>
    %c3_184 = arith.constant 3 : index
    %c0_185 = arith.constant 0 : index
    %c0_186 = arith.constant 0 : index
    %184 = vector.load %arg3[%c3_184, %c0_185, %c0_186] : memref<4x1x32xf32, #tpu.memory_space<vmem>>, vector<1x1x32xf32>
    %185 = vector.shape_cast %184 : vector<1x1x32xf32> to vector<1x32xf32>
    %186 = vector.broadcast %185 : vector<1x32xf32> to vector<256x32xf32>
    %187 = arith.addf %183, %186 : vector<256x32xf32>
    %cst_187 = arith.constant 0.000000e+00 : f32
    %188 = vector.broadcast %cst_187 : f32 to vector<256x32xf32>
    %189 = arith.maximumf %187, %188 : vector<256x32xf32>
    %cst_188 = arith.constant dense<0.000000e+00> : vector<32xf32>
    %190 = vector.multi_reduction <add>, %189, %cst_188 [0] : vector<256x32xf32> to vector<32xf32>
    %191 = vector.shape_cast %190 : vector<32xf32> to vector<1x32xf32>
    %cst_189 = arith.constant 2.560000e+02 : f32
    %192 = vector.broadcast %cst_189 : f32 to vector<1x32xf32>
    %193 = arith.divf %191, %192 : vector<1x32xf32>
    %c0_190 = arith.constant 0 : index
    %c0_191 = arith.constant 0 : index
    %194 = vector.load %arg5[%c0_190, %c0_191] : memref<32x8xf32, #tpu.memory_space<vmem>>, vector<32x8xf32>
    %cst_192 = arith.constant dense<0.000000e+00> : vector<1x8xf32>
    %195 = tpu.matmul %193, %194, %cst_192 {dimension_numbers = #tpu.dot_dimension_numbers<[1], [0], [0], [1], [0, 0, 1, 1], [], []>} : vector<1x32xf32>, vector<32x8xf32>, vector<1x8xf32> -> vector<1x8xf32>
    %c0_193 = arith.constant 0 : index
    %c0_194 = arith.constant 0 : index
    %196 = vector.load %arg6[%c0_193, %c0_194] : memref<1x8xf32, #tpu.memory_space<vmem>>, vector<1x8xf32>
    %197 = arith.addf %195, %196 : vector<1x8xf32>
    %cst_195 = arith.constant 0.000000e+00 : f32
    %198 = vector.broadcast %cst_195 : f32 to vector<1x8xf32>
    %199 = arith.maximumf %197, %198 : vector<1x8xf32>
    %c0_196 = arith.constant 0 : index
    %c0_197 = arith.constant 0 : index
    %200 = vector.load %arg7[%c0_196, %c0_197] : memref<8x32xf32, #tpu.memory_space<vmem>>, vector<8x32xf32>
    %cst_198 = arith.constant dense<0.000000e+00> : vector<1x32xf32>
    %201 = tpu.matmul %199, %200, %cst_198 {dimension_numbers = #tpu.dot_dimension_numbers<[1], [0], [0], [1], [0, 0, 1, 1], [], []>} : vector<1x8xf32>, vector<8x32xf32>, vector<1x32xf32> -> vector<1x32xf32>
    %c0_199 = arith.constant 0 : index
    %c0_200 = arith.constant 0 : index
    %202 = vector.load %arg8[%c0_199, %c0_200] : memref<1x32xf32, #tpu.memory_space<vmem>>, vector<1x32xf32>
    %203 = arith.addf %201, %202 : vector<1x32xf32>
    %204 = arith.negf %203 : vector<1x32xf32>
    %205 = math.exp %204 : vector<1x32xf32>
    %cst_201 = arith.constant 1.000000e+00 : f32
    %206 = vector.broadcast %cst_201 : f32 to vector<1x32xf32>
    %207 = arith.addf %206, %205 : vector<1x32xf32>
    %208 = arith.divf %206, %207 : vector<1x32xf32>
    %209 = vector.shape_cast %189 : vector<256x32xf32> to vector<16x16x32xf32>
    %210 = vector.extract_strided_slice %209 {offsets = [0, 0, 0], sizes = [16, 16, 16], strides = [1, 1, 1]} : vector<16x16x32xf32> to vector<16x16x16xf32>
    %211 = vector.extract_strided_slice %208 {offsets = [0, 0], sizes = [1, 16], strides = [1, 1]} : vector<1x32xf32> to vector<1x16xf32>
    %212 = vector.shape_cast %211 : vector<1x16xf32> to vector<1x1x16xf32>
    %213 = vector.broadcast %212 : vector<1x1x16xf32> to vector<16x16x16xf32>
    %214 = arith.mulf %210, %213 : vector<16x16x16xf32>
    %215 = vector.extract_strided_slice %209 {offsets = [0, 0, 16], sizes = [16, 16, 16], strides = [1, 1, 1]} : vector<16x16x32xf32> to vector<16x16x16xf32>
    %216 = vector.extract_strided_slice %208 {offsets = [0, 16], sizes = [1, 16], strides = [1, 1]} : vector<1x32xf32> to vector<1x16xf32>
    %217 = vector.shape_cast %216 : vector<1x16xf32> to vector<1x1x16xf32>
    %218 = vector.broadcast %217 : vector<1x1x16xf32> to vector<16x16x16xf32>
    %219 = arith.mulf %215, %218 : vector<16x16x16xf32>
    %220 = arith.addf %214, %219 : vector<16x16x16xf32>
    %221 = arith.addf %3, %220 : vector<16x16x16xf32>
    %c0_202 = arith.constant 0 : index
    %c0_203 = arith.constant 0 : index
    %c0_204 = arith.constant 0 : index
    %c0_205 = arith.constant 0 : index
    %222 = vector.load %arg9[%c0_202, %c0_203, %c0_204, %c0_205] : memref<1x16x16x16xf32, #tpu.memory_space<vmem>>, vector<1x16x16x16xf32>
    %223 = vector.shape_cast %222 : vector<1x16x16x16xf32> to vector<16x16x16xf32>
    %224 = vector.shape_cast %221 : vector<16x16x16xf32> to vector<1x16x16x16xf32>
    tpu.vector_store %arg9[%c0_202, %c0_203, %c0_204, %c0_205], %224 {strides = array<i32>} : memref<1x16x16x16xf32, #tpu.memory_space<vmem>>, vector<1x16x16x16xf32>,
    return
  }
  func.func @transform_0(%arg0: i32) -> (i32, i32, i32, i32) {
    %c0_i32 = arith.constant 0 : i32
    %c0_i32_0 = arith.constant 0 : i32
    %c0_i32_1 = arith.constant 0 : i32
    %c0_i32_2 = arith.constant 0 : i32
    return %arg0, %c0_i32, %c0_i32_0, %c0_i32_1 : i32, i32, i32, i32
  }
  func.func @transform_1(%arg0: i32) -> (i32, i32, i32) {
    %c0_i32 = arith.constant 0 : i32
    %c0_i32_0 = arith.constant 0 : i32
    %c0_i32_1 = arith.constant 0 : i32
    %c0_i32_2 = arith.constant 0 : i32
    return %c0_i32, %c0_i32_0, %c0_i32_1 : i32, i32, i32
  }
  func.func @transform_2(%arg0: i32) -> (i32, i32, i32) {
    %c0_i32 = arith.constant 0 : i32
    %c0_i32_0 = arith.constant 0 : i32
    %c0_i32_1 = arith.constant 0 : i32
    %c0_i32_2 = arith.constant 0 : i32
    return %c0_i32, %c0_i32_0, %c0_i32_1 : i32, i32, i32
  }
  func.func @transform_3(%arg0: i32) -> (i32, i32, i32) {
    %c0_i32 = arith.constant 0 : i32
    %c0_i32_0 = arith.constant 0 : i32
    %c0_i32_1 = arith.constant 0 : i32
    %c0_i32_2 = arith.constant 0 : i32
    return %c0_i32, %c0_i32_0, %c0_i32_1 : i32, i32, i32
  }
  func.func @transform_4(%arg0: i32) -> (i32, i32) {
    %c0_i32 = arith.constant 0 : i32
    %c0_i32_0 = arith.constant 0 : i32
    %c0_i32_1 = arith.constant 0 : i32
    return %c0_i32, %c0_i32_0 : i32, i32
  }
  func.func @transform_5(%arg0: i32) -> (i32, i32) {
    %c0_i32 = arith.constant 0 : i32
    %c0_i32_0 = arith.constant 0 : i32
    %c0_i32_1 = arith.constant 0 : i32
    return %c0_i32, %c0_i32_0 : i32, i32
  }
  func.func @transform_6(%arg0: i32) -> (i32, i32) {
    %c0_i32 = arith.constant 0 : i32
    %c0_i32_0 = arith.constant 0 : i32
    %c0_i32_1 = arith.constant 0 : i32
    return %c0_i32, %c0_i32_0 : i32, i32
  }
  func.func @transform_7(%arg0: i32) -> (i32, i32) {
    %c0_i32 = arith.constant 0 : i32
    %c0_i32_0 = arith.constant 0 : i32
    %c0_i32_1 = arith.constant 0 : i32
    return %c0_i32, %c0_i32_0 : i32, i32
  }
  func.func @transform_8(%arg0: i32) -> (i32, i32, i32, i32) {
    %c0_i32 = arith.constant 0 : i32
    %c0_i32_0 = arith.constant 0 : i32
    %c0_i32_1 = arith.constant 0 : i32
    %c0_i32_2 = arith.constant 0 : i32
    return %arg0, %c0_i32, %c0_i32_0, %c0_i32_1 : i32, i32, i32, i32
  }
}

</mosaic_0001>

<llo_original>
// kernel: cross_attention_block.1
$region0: #{cross_attention_block.1}
  #allocation0 [shape = 'u32[]', space=smem, size = 0x4, offset = 0x4, fixed_abs, tag = 'smem constant byte address 0x4 - core index']
  #allocation1 [shape = 'u32[144,128]{1,0:T(1,128)}', space=vmem, size = 0x12000, scoped, tag = 'internal scratch']
  #allocation2 [shape = 'f32[18,18,16]{2,1,0:T(8,128)}', space=vmem, size = 0x36000, scoped, tag = 'scratch operand']
  %s0 = inlined_call_operand.vmem [shape: f32[2,16,16,16], index: 0, kind: input, shape index: {}]
  %s1 = inlined_call_operand.vmem [shape: f32[4,144,32], index: 1, kind: input, shape index: {}]
  %s2 = inlined_call_operand.vmem [shape: f32[4,1,32], index: 2, kind: input, shape index: {}]
  %s3 = inlined_call_operand.vmem [shape: f32[7,64,32], index: 3, kind: input, shape index: {}]
  %s4 = inlined_call_operand.vmem [shape: f32[32,8], index: 4, kind: input, shape index: {}]
  %s5 = inlined_call_operand.vmem [shape: f32[1,8], index: 5, kind: input, shape index: {}]
  %s6 = inlined_call_operand.vmem [shape: f32[8,32], index: 6, kind: input, shape index: {}]
  %s7 = inlined_call_operand.vmem [shape: f32[1,32], index: 7, kind: input, shape index: {}]
  %s8 = inlined_call_operand.vmem [shape: f32[2,16,16,16], index: 8, kind: output, shape index: {}]
  %s9 = sld [smem:[#allocation0]]
  $region65: #{cross_attention_block.1} parent=0
    _
  %s11 = ssub.s32 1, %s9
  %s12 = scalar_select 0, %s11, %s9
  loop: start=0, step=1, limit=4
  $region2: #{cross_attention_block.1} parent=0 // loop_pre_header
    _
  $region3: #{cross_attention_block.1} parent=0 // loop_header
    %s14 = sphi 0, %s18
    %p15 = scmp.ge.s32.totalorder %s14, 4
    %s24 = sphi 0, %s26
    %s27 = sphi 0, %s24
    %s28 = sphi 0, %s27
    %s44 = sphi 0, %s28
    %s48 = sphi 0, %s48
    %s50 = sphi 0, %s48
    %s51 = sphi 0, %s50
    %s65 = sphi 0, %s51
    %s69 = sphi 0, %s69
    %s71 = sphi 0, %s69
    %s72 = sphi 0, %s71
    %s86 = sphi 0, %s72
    %s90 = sphi 0, %s90
    %s92 = sphi 0, %s90
    %s93 = sphi 0, %s92
    %s107 = sphi 0, %s93
    %s111 = sphi 0, %s111
    %s113 = sphi 0, %s111
    %s114 = sphi 0, %s113
    %s128 = sphi 0, %s114
    %s132 = sphi 0, %s132
    %s134 = sphi 0, %s132
    %s135 = sphi 0, %s134
    %s149 = sphi 0, %s135
    %s153 = sphi 0, %s153
    %s155 = sphi 0, %s153
    %s156 = sphi 0, %s155
    %s170 = sphi 0, %s156
    %s174 = sphi 0, %s174
    %s176 = sphi 0, %s174
    %s177 = sphi 0, %s176
    %s191 = sphi 0, %s177
    %s197 = sphi 0, %s199
    %s200 = sphi 0, %s197
    %s201 = sphi 0, %s200
    %s217 = sphi 0, %s201
  $region4: #{cross_attention_block.1} parent=0 // loop_header_branch
    %17 = sbr.rel (%p15) target = $region8
  $region5: #{cross_attention_block.1} parent=0 // loop_body
    %s19 = ssub.s32 %s14, 1
    %s20 = ssub.s32 %s14, 2
    %s21 = sadd.s32 %s14, 1
    %s22 = ssub.s32 %s14, %s21
    %p23 = scmp.eq.s32.totalorder %s22, 0
    %s25 = sadd.s32 %s24, 1
    %s26 = scalar_select %p23, %s24, %s25
    %p29 = pneg %p23
    %p30 = scmp.eq.s32.totalorder %s14, 1
    %p31 = por %p29, %p30
    %p32 = scmp.ne.s32.totalorder %s24, %s27
    %p33 = scmp.eq.s32.totalorder %s14, 0
    %p34 = por %p32, %p33
    %p35 = scmp.ne.s32.totalorder %s24, %s27
    %p36 = scmp.eq.s32.totalorder %s19, 1
    %p37 = por %p35, %p36
    %p38 = scmp.ne.s32.totalorder %s27, %s28
    %p39 = scmp.eq.s32.totalorder %s19, 0
    %p40 = por %p38, %p39
    %p41 = scmp.ne.s32.totalorder %s27, %s28
    %p42 = scmp.eq.s32.totalorder %s20, 1
    %p43 = por %p41, %p42
    %p45 = scmp.ne.s32.totalorder %s28, %s44
    %p46 = scmp.eq.s32.totalorder %s20, 0
    %p47 = por %p45, %p46
    %s49 = sadd.s32 %s48, 1
    %p52 = scmp.eq.s32.totalorder %s14, 1
    %p53 = scmp.ne.s32.totalorder %s48, %s50
    %p54 = scmp.eq.s32.totalorder %s14, 0
    %p55 = por %p53, %p54
    %p56 = scmp.ne.s32.totalorder %s48, %s50
    %p57 = scmp.eq.s32.totalorder %s19, 1
    %p58 = por %p56, %p57
    %p59 = scmp.ne.s32.totalorder %s50, %s51
    %p60 = scmp.eq.s32.totalorder %s19, 0
    %p61 = por %p59, %p60
    %p62 = scmp.ne.s32.totalorder %s50, %s51
    %p63 = scmp.eq.s32.totalorder %s20, 1
    %p64 = por %p62, %p63
    %p66 = scmp.ne.s32.totalorder %s51, %s65
    %p67 = scmp.eq.s32.totalorder %s20, 0
    %p68 = por %p66, %p67
    %s70 = sadd.s32 %s69, 1
    %p73 = scmp.eq.s32.totalorder %s14, 1
    %p74 = scmp.ne.s32.totalorder %s69, %s71
    %p75 = scmp.eq.s32.totalorder %s14, 0
    %p76 = por %p74, %p75
    %p77 = scmp.ne.s32.totalorder %s69, %s71
    %p78 = scmp.eq.s32.totalorder %s19, 1
    %p79 = por %p77, %p78
    %p80 = scmp.ne.s32.totalorder %s71, %s72
    %p81 = scmp.eq.s32.totalorder %s19, 0
    %p82 = por %p80, %p81
    %p83 = scmp.ne.s32.totalorder %s71, %s72
    %p84 = scmp.eq.s32.totalorder %s20, 1
    %p85 = por %p83, %p84
    %p87 = scmp.ne.s32.totalorder %s72, %s86
    %p88 = scmp.eq.s32.totalorder %s20, 0
    %p89 = por %p87, %p88
    %s91 = sadd.s32 %s90, 1
    %p94 = scmp.eq.s32.totalorder %s14, 1
    %p95 = scmp.ne.s32.totalorder %s90, %s92
    %p96 = scmp.eq.s32.totalorder %s14, 0
    %p97 = por %p95, %p96
    %p98 = scmp.ne.s32.totalorder %s90, %s92
    %p99 = scmp.eq.s32.totalorder %s19, 1
    %p100 = por %p98, %p99
    %p101 = scmp.ne.s32.totalorder %s92, %s93
    %p102 = scmp.eq.s32.totalorder %s19, 0
    %p103 = por %p101, %p102
    %p104 = scmp.ne.s32.totalorder %s92, %s93
    %p105 = scmp.eq.s32.totalorder %s20, 1
    %p106 = por %p104, %p105
    %p108 = scmp.ne.s32.totalorder %s93, %s107
    %p109 = scmp.eq.s32.totalorder %s20, 0
    %p110 = por %p108, %p109
    %s112 = sadd.s32 %s111, 1
    %p115 = scmp.eq.s32.totalorder %s14, 1
    %p116 = scmp.ne.s32.totalorder %s111, %s113
    %p117 = scmp.eq.s32.totalorder %s14, 0
    %p118 = por %p116, %p117
    %p119 = scmp.ne.s32.totalorder %s111, %s113
    %p120 = scmp.eq.s32.totalorder %s19, 1
    %p121 = por %p119, %p120
    %p122 = scmp.ne.s32.totalorder %s113, %s114
    %p123 = scmp.eq.s32.totalorder %s19, 0
    %p124 = por %p122, %p123
    %p125 = scmp.ne.s32.totalorder %s113, %s114
    %p126 = scmp.eq.s32.totalorder %s20, 1
    %p127 = por %p125, %p126
    %p129 = scmp.ne.s32.totalorder %s114, %s128
    %p130 = scmp.eq.s32.totalorder %s20, 0
    %p131 = por %p129, %p130
    %s133 = sadd.s32 %s132, 1
    %p136 = scmp.eq.s32.totalorder %s14, 1
    %p137 = scmp.ne.s32.totalorder %s132, %s134
    %p138 = scmp.eq.s32.totalorder %s14, 0
    %p139 = por %p137, %p138
    %p140 = scmp.ne.s32.totalorder %s132, %s134
    %p141 = scmp.eq.s32.totalorder %s19, 1
    %p142 = por %p140, %p141
    %p143 = scmp.ne.s32.totalorder %s134, %s135
    %p144 = scmp.eq.s32.totalorder %s19, 0
    %p145 = por %p143, %p144
    %p146 = scmp.ne.s32.totalorder %s134, %s135
    %p147 = scmp.eq.s32.totalorder %s20, 1
    %p148 = por %p146, %p147
    %p150 = scmp.ne.s32.totalorder %s135, %s149
    %p151 = scmp.eq.s32.totalorder %s20, 0
    %p152 = por %p150, %p151
    %s154 = sadd.s32 %s153, 1
    %p157 = scmp.eq.s32.totalorder %s14, 1
    %p158 = scmp.ne.s32.totalorder %s153, %s155
    %p159 = scmp.eq.s32.totalorder %s14, 0
    %p160 = por %p158, %p159
    %p161 = scmp.ne.s32.totalorder %s153, %s155
    %p162 = scmp.eq.s32.totalorder %s19, 1
    %p163 = por %p161, %p162
    %p164 = scmp.ne.s32.totalorder %s155, %s156
    %p165 = scmp.eq.s32.totalorder %s19, 0
    %p166 = por %p164, %p165
    %p167 = scmp.ne.s32.totalorder %s155, %s156
    %p168 = scmp.eq.s32.totalorder %s20, 1
    %p169 = por %p167, %p168
    %p171 = scmp.ne.s32.totalorder %s156, %s170
    %p172 = scmp.eq.s32.totalorder %s20, 0
    %p173 = por %p171, %p172
    %s175 = sadd.s32 %s174, 1
    %p178 = scmp.eq.s32.totalorder %s14, 1
    %p179 = scmp.ne.s32.totalorder %s174, %s176
    %p180 = scmp.eq.s32.totalorder %s14, 0
    %p181 = por %p179, %p180
    %p182 = scmp.ne.s32.totalorder %s174, %s176
    %p183 = scmp.eq.s32.totalorder %s19, 1
    %p184 = por %p182, %p183
    %p185 = scmp.ne.s32.totalorder %s176, %s177
    %p186 = scmp.eq.s32.totalorder %s19, 0
    %p187 = por %p185, %p186
    %p188 = scmp.ne.s32.totalorder %s176, %s177
    %p189 = scmp.eq.s32.totalorder %s20, 1
    %p190 = por %p188, %p189
    %p192 = scmp.ne.s32.totalorder %s177, %s191
    %p193 = scmp.eq.s32.totalorder %s20, 0
    %p194 = por %p192, %p193
    %s195 = ssub.s32 %s14, %s21
    %p196 = scmp.eq.s32.totalorder %s195, 0
    %s198 = sadd.s32 %s197, 1
    %s199 = scalar_select %p196, %s197, %s198
    %p202 = pneg %p196
    %p203 = scmp.eq.s32.totalorder %s14, 1
    %p204 = por %p202, %p203
    %p205 = scmp.ne.s32.totalorder %s197, %s200
    %p206 = scmp.eq.s32.totalorder %s14, 0
    %p207 = por %p205, %p206
    %p208 = scmp.ne.s32.totalorder %s197, %s200
    %p209 = scmp.eq.s32.totalorder %s19, 1
    %p210 = por %p208, %p209
    %p211 = scmp.ne.s32.totalorder %s200, %s201
    %p212 = scmp.eq.s32.totalorder %s19, 0
    %p213 = por %p211, %p212
    %p214 = scmp.ne.s32.totalorder %s200, %s201
    %p215 = scmp.eq.s32.totalorder %s20, 1
    %p216 = por %p214, %p215
    %p218 = scmp.ne.s32.totalorder %s201, %s217
    %p219 = scmp.eq.s32.totalorder %s20, 0
    %p220 = por %p218, %p219
    %p221 = scmp.le.s32.totalorder 1, %s14
    %p222 = scmp.lt.s32.totalorder %s14, 3
    %p223 = pnand %p221, %p222
    %p224 = pneg %p223
    // Predicated region
    $region9: #{cross_attention_block.1} parent=5 // pred_check
      _
    $region10: #{cross_attention_block.1} parent=5 // pred_check_branch
      %226 = sbr.rel (%p223) target = $region12
    $region11: #{cross_attention_block.1} parent=5 // pred_region
      %s227 = ssub.s32 %s14, 1
      // Predicated region
      $region13: #{cross_attention_block.1} parent=11 // pred_check
        %p228 = pneg %p61
      $region14: #{cross_attention_block.1} parent=11 // pred_check_branch
        %230 = sbr.rel (%p228) target = $region16
      $region15: #{cross_attention_block.1} parent=11 // pred_region
        _
      $region16: #{cross_attention_block.1} parent=11 // pred_fallthru
        _
      // Predicated region
      $region17: #{cross_attention_block.1} parent=11 // pred_check
        %p231 = pneg %p82
      $region18: #{cross_attention_block.1} parent=11 // pred_check_branch
        %233 = sbr.rel (%p231) target = $region20
      $region19: #{cross_attention_block.1} parent=11 // pred_region
        _
      $region20: #{cross_attention_block.1} parent=11 // pred_fallthru
        _
      // Predicated region
      $region21: #{cross_attention_block.1} parent=11 // pred_check
        %p234 = pneg %p103
      $region22: #{cross_attention_block.1} parent=11 // pred_check_branch
        %236 = sbr.rel (%p234) target = $region24
      $region23: #{cross_attention_block.1} parent=11 // pred_region
        _
      $region24: #{cross_attention_block.1} parent=11 // pred_fallthru
        _
      // Predicated region
      $region25: #{cross_attention_block.1} parent=11 // pred_check
        %p237 = pneg %p124
      $region26: #{cross_attention_block.1} parent=11 // pred_check_branch
        %239 = sbr.rel (%p237) target = $region28
      $region27: #{cross_attention_block.1} parent=11 // pred_region
        _
      $region28: #{cross_attention_block.1} parent=11 // pred_fallthru
        _
      // Predicated region
      $region29: #{cross_attention_block.1} parent=11 // pred_check
        %p240 = pneg %p145
      $region30: #{cross_attention_block.1} parent=11 // pred_check_branch
        %242 = sbr.rel (%p240) target = $region32
      $region31: #{cross_attention_block.1} parent=11 // pred_region
        _
      $region32: #{cross_attention_block.1} parent=11 // pred_fallthru
        _
      // Predicated region
      $region33: #{cross_attention_block.1} parent=11 // pred_check
        %p243 = pneg %p166
      $region34: #{cross_attention_block.1} parent=11 // pred_check_branch
        %245 = sbr.rel (%p243) target = $region36
      $region35: #{cross_attention_block.1} parent=11 // pred_region
        _
      $region36: #{cross_attention_block.1} parent=11 // pred_fallthru
        _
      // Predicated region
      $region37: #{cross_attention_block.1} parent=11 // pred_check
        %p246 = pneg %p187
      $region38: #{cross_attention_block.1} parent=11 // pred_check_branch
        %248 = sbr.rel (%p246) target = $region40
      $region39: #{cross_attention_block.1} parent=11 // pred_region
        _
      $region40: #{cross_attention_block.1} parent=11 // pred_fallthru
        _
    $region12: #{cross_attention_block.1} parent=5 // pred_fallthru
      _
    %p249 = scmp.lt.s32.totalorder %s14, 2
    // Predicated region
    $region41: #{cross_attention_block.1} parent=5 // pred_check
      %p250 = pneg %p249
    $region42: #{cross_attention_block.1} parent=5 // pred_check_branch
      %252 = sbr.rel (%p250) target = $region44
    $region43: #{cross_attention_block.1} parent=5 // pred_region
      // Predicated region
      $region45: #{cross_attention_block.1} parent=43 // pred_check
        %p253 = pneg %p34
      $region46: #{cross_attention_block.1} parent=43 // pred_check_branch
        %255 = sbr.rel (%p253) target = $region48
      $region47: #{cross_attention_block.1} parent=43 // pred_region
        %p256 = scmp.lt.s32.totalorder %s14, 1
        %s257 = scalar_select %p256, %s14, 1
        %s258 = smul.addr %s257, 32
        %s259 = smul.addr %s258, 8
        %s260 = scalar_lea.vmem %s0, %s259
      $region48: #{cross_attention_block.1} parent=43 // pred_fallthru
        _
    $region44: #{cross_attention_block.1} parent=5 // pred_fallthru
      _
    %p261 = scmp.le.s32.totalorder 1, %s14
    %p262 = scmp.lt.s32.totalorder %s14, 3
    %p263 = pnand %p261, %p262
    %p264 = pneg %p263
    // Predicated region
    $region49: #{cross_attention_block.1} parent=5 // pred_check
      _
    $region50: #{cross_attention_block.1} parent=5 // pred_check_branch
      %266 = sbr.rel (%p263) target = $region52
    $region51: #{cross_attention_block.1} parent=5 // pred_region
      %s267 = ssub.s32 %s14, 1
      %p268 = scmp.lt.s32.totalorder %s19, 1
      %s269 = scalar_select %p268, %s19, 1
      %s270 = smul.addr %s269, 32
      %s271 = smul.addr %s270, 8
      %s272 = scalar_lea.vmem %s0, %s271
      %p273 = pneg %p40
      %p274 = pneg %p37
      %p275 = pneg %p61
      %p276 = pneg %p58
      %p277 = pneg %p82
      %p278 = pneg %p79
      %p279 = pneg %p103
      %p280 = pneg %p100
      %p281 = pneg %p124
      %p282 = pneg %p121
      %p283 = pneg %p145
      %p284 = pneg %p142
      %p285 = pneg %p166
      %p286 = pneg %p163
      %p287 = pneg %p187
      %p288 = pneg %p184
      %p289 = pneg %p213
      %p290 = pneg %p210
      %p291 = scmp.lt.s32.totalorder %s19, 1
      %s292 = scalar_select %p291, %s19, 1
      %s293 = smul.addr %s292, 32
      %s294 = smul.addr %s293, 8
      %s295 = scalar_lea.vmem %s8, %s294
      %p296 = scmp.lt.s32.totalorder %s19, 1
      %s297 = scalar_select %p296, %s19, 1
      %s298 = smul.addr %s297, 32
      %s299 = smul.addr %s298, 8
      %s300 = scalar_lea.vmem %s0, %s299
      %p301 = scmp.lt.s32.totalorder %s19, 1
      %s302 = scalar_select %p301, %s19, 1
      %s303 = smul.addr %s302, 32
      %s304 = smul.addr %s303, 8
      %s305 = scalar_lea.vmem %s8, %s304
      %vm306 = vcmask 130048
      %307 = vst.msk [vmem:[#allocation2] sm:$0xff] %vm306, 0.0
      %308 = vst.msk [vmem:[#allocation2 + $0x8] sm:$0xff] %vm306, 0.0
      %vm309 = vcmask 123904
      %310 = vst.msk [vmem:[#allocation2 + $0x10] sm:$0x3] %vm309, 0.0
      %311 = vst.msk [vmem:[#allocation2 + $0x18] sm:$0xff] %vm306, 0.0
      %312 = vst.msk [vmem:[#allocation2 + $0x20] sm:$0xff] %vm306, 0.0
      %313 = vst.msk [vmem:[#allocation2 + $0x28] sm:$0x3] %vm309, 0.0
      %314 = vst.msk [vmem:[#allocation2 + $0x30] sm:$0xff] %vm306, 0.0
      %315 = vst.msk [vmem:[#allocation2 + $0x38] sm:$0xff] %vm306, 0.0
      %316 = vst.msk [vmem:[#allocation2 + $0x40] sm:$0x3] %vm309, 0.0
      %317 = vst.msk [vmem:[#allocation2 + $0x48] sm:$0xff] %vm306, 0.0
      %318 = vst.msk [vmem:[#allocation2 + $0x50] sm:$0xff] %vm306, 0.0
      %319 = vst.msk [vmem:[#allocation2 + $0x58] sm:$0x3] %vm309, 0.0
      %320 = vst.msk [vmem:[#allocation2 + $0x60] sm:$0xff] %vm306, 0.0
      %321 = vst.msk [vmem:[#allocation2 + $0x68] sm:$0xff] %vm306, 0.0
      %322 = vst.msk [vmem:[#allocation2 + $0x70] sm:$0x3] %vm309, 0.0
      %323 = vst.msk [vmem:[#allocation2 + $0x78] sm:$0xff] %vm306, 0.0
      %324 = vst.msk [vmem:[#allocation2 + $0x80] sm:$0xff] %vm306, 0.0
      %325 = vst.msk [vmem:[#allocation2 + $0x88] sm:$0x3] %vm309, 0.0
      %326 = vst.msk [vmem:[#allocation2 + $0x90] sm:$0xff] %vm306, 0.0
      %327 = vst.msk [vmem:[#allocation2 + $0x98] sm:$0xff] %vm306, 0.0
      %328 = vst.msk [vmem:[#allocation2 + $0xa0] sm:$0x3] %vm309, 0.0
      %329 = vst.msk [vmem:[#allocation2 + $0xa8] sm:$0xff] %vm306, 0.0
      %330 = vst.msk [vmem:[#allocation2 + $0xb0] sm:$0xff] %vm306, 0.0
      %331 = vst.msk [vmem:[#allocation2 + $0xb8] sm:$0x3] %vm309, 0.0
      %332 = vst.msk [vmem:[#allocation2 + $0xc0] sm:$0xff] %vm306, 0.0
      %333 = vst.msk [vmem:[#allocation2 + $0xc8] sm:$0xff] %vm306, 0.0
      %334 = vst.msk [vmem:[#allocation2 + $0xd0] sm:$0x3] %vm309, 0.0
      %335 = vst.msk [vmem:[#allocation2 + $0xd8] sm:$0xff] %vm306, 0.0
      %336 = vst.msk [vmem:[#allocation2 + $0xe0] sm:$0xff] %vm306, 0.0
      %337 = vst.msk [vmem:[#allocation2 + $0xe8] sm:$0x3] %vm309, 0.0
      %338 = vst.msk [vmem:[#allocation2 + $0xf0] sm:$0xff] %vm306, 0.0
      %339 = vst.msk [vmem:[#allocation2 + $0xf8] sm:$0xff] %vm306, 0.0
      %340 = vst.msk [vmem:[#allocation2 + $0x100] sm:$0x3] %vm309, 0.0
      %341 = vst.msk [vmem:[#allocation2 + $0x108] sm:$0xff] %vm306, 0.0
      %342 = vst.msk [vmem:[#allocation2 + $0x110] sm:$0xff] %vm306, 0.0
      %343 = vst.msk [vmem:[#allocation2 + $0x118] sm:$0x3] %vm309, 0.0
      %344 = vst.msk [vmem:[#allocation2 + $0x120] sm:$0xff] %vm306, 0.0
      %345 = vst.msk [vmem:[#allocation2 + $0x128] sm:$0xff] %vm306, 0.0
      %346 = vst.msk [vmem:[#allocation2 + $0x130] sm:$0x3] %vm309, 0.0
      %347 = vst.msk [vmem:[#allocation2 + $0x138] sm:$0xff] %vm306, 0.0
      %348 = vst.msk [vmem:[#allocation2 + $0x140] sm:$0xff] %vm306, 0.0
      %349 = vst.msk [vmem:[#allocation2 + $0x148] sm:$0x3] %vm309, 0.0
      %350 = vst.msk [vmem:[#allocation2 + $0x150] sm:$0xff] %vm306, 0.0
      %351 = vst.msk [vmem:[#allocation2 + $0x158] sm:$0xff] %vm306, 0.0
      %352 = vst.msk [vmem:[#allocation2 + $0x160] sm:$0x3] %vm309, 0.0
      %353 = vst.msk [vmem:[#allocation2 + $0x168] sm:$0xff] %vm306, 0.0
      %354 = vst.msk [vmem:[#allocation2 + $0x170] sm:$0xff] %vm306, 0.0
      %355 = vst.msk [vmem:[#allocation2 + $0x178] sm:$0x3] %vm309, 0.0
      %356 = vst.msk [vmem:[#allocation2 + $0x180] sm:$0xff] %vm306, 0.0
      %357 = vst.msk [vmem:[#allocation2 + $0x188] sm:$0xff] %vm306, 0.0
      %358 = vst.msk [vmem:[#allocation2 + $0x190] sm:$0x3] %vm309, 0.0
      %359 = vst.msk [vmem:[#allocation2 + $0x198] sm:$0xff] %vm306, 0.0
      %360 = vst.msk [vmem:[#allocation2 + $0x1a0] sm:$0xff] %vm306, 0.0
      %361 = vst.msk [vmem:[#allocation2 + $0x1a8] sm:$0x3] %vm309, 0.0
      %v362 = vld [vmem:[%s300] sm:$0xff]
      %v363 = vld [vmem:[%s300 + $0x8] sm:$0xff]
      %v364 = vld [vmem:[%s300 + $0x10] sm:$0xff]
      %v365 = vld [vmem:[%s300 + $0x18] sm:$0xff]
      %v366 = vld [vmem:[%s300 + $0x20] sm:$0xff]
      %v367 = vld [vmem:[%s300 + $0x28] sm:$0xff]
      %v368 = vld [vmem:[%s300 + $0x30] sm:$0xff]
      %v369 = vld [vmem:[%s300 + $0x38] sm:$0xff]
      %v370 = vld [vmem:[%s300 + $0x40] sm:$0xff]
      %v371 = vld [vmem:[%s300 + $0x48] sm:$0xff]
      %v372 = vld [vmem:[%s300 + $0x50] sm:$0xff]
      %v373 = vld [vmem:[%s300 + $0x58] sm:$0xff]
      %v374 = vld [vmem:[%s300 + $0x60] sm:$0xff]
      %v375 = vld [vmem:[%s300 + $0x68] sm:$0xff]
      %v376 = vld [vmem:[%s300 + $0x70] sm:$0xff]
      %v377 = vld [vmem:[%s300 + $0x78] sm:$0xff]
      %v378 = vld [vmem:[%s300 + $0x80] sm:$0xff]
      %v379 = vld [vmem:[%s300 + $0x88] sm:$0xff]
      %v380 = vld [vmem:[%s300 + $0x90] sm:$0xff]
      %v381 = vld [vmem:[%s300 + $0x98] sm:$0xff]
      %v382 = vld [vmem:[%s300 + $0xa0] sm:$0xff]
      %v383 = vld [vmem:[%s300 + $0xa8] sm:$0xff]
      %v384 = vld [vmem:[%s300 + $0xb0] sm:$0xff]
      %v385 = vld [vmem:[%s300 + $0xb8] sm:$0xff]
      %v386 = vld [vmem:[%s300 + $0xc0] sm:$0xff]
      %v387 = vld [vmem:[%s300 + $0xc8] sm:$0xff]
      %v388 = vld [vmem:[%s300 + $0xd0] sm:$0xff]
      %v389 = vld [vmem:[%s300 + $0xd8] sm:$0xff]
      %v390 = vld [vmem:[%s300 + $0xe0] sm:$0xff]
      %v391 = vld [vmem:[%s300 + $0xe8] sm:$0xff]
      %v392 = vld [vmem:[%s300 + $0xf0] sm:$0xff]
      %v393 = vld [vmem:[%s300 + $0xf8] sm:$0xff]
      %s394 = scalar_lea.vmem [#allocation2], 24
      %395 = vst.msk [vmem:[%s394 + $0x1] sm:$0xff] %vm306, %v362
      %396 = vst.msk [vmem:[%s394 + $0x9] sm:$0xff] %vm306, %v363
      %397 = vst.msk [vmem:[%s394 + $0x19] sm:$0xff] %vm306, %v364
      %398 = vst.msk [vmem:[%s394 + $0x21] sm:$0xff] %vm306, %v365
      %399 = vst.msk [vmem:[%s394 + $0x31] sm:$0xff] %vm306, %v366
      %400 = vst.msk [vmem:[%s394 + $0x39] sm:$0xff] %vm306, %v367
      %401 = vst.msk [vmem:[%s394 + $0x49] sm:$0xff] %vm306, %v368
      %402 = vst.msk [vmem:[%s394 + $0x51] sm:$0xff] %vm306, %v369
      %403 = vst.msk [vmem:[%s394 + $0x61] sm:$0xff] %vm306, %v370
      %404 = vst.msk [vmem:[%s394 + $0x69] sm:$0xff] %vm306, %v371
      %405 = vst.msk [vmem:[%s394 + $0x79] sm:$0xff] %vm306, %v372
      %406 = vst.msk [vmem:[%s394 + $0x81] sm:$0xff] %vm306, %v373
      %407 = vst.msk [vmem:[%s394 + $0x91] sm:$0xff] %vm306, %v374
      %408 = vst.msk [vmem:[%s394 + $0x99] sm:$0xff] %vm306, %v375
      %409 = vst.msk [vmem:[%s394 + $0xa9] sm:$0xff] %vm306, %v376
      %410 = vst.msk [vmem:[%s394 + $0xb1] sm:$0xff] %vm306, %v377
      %411 = vst.msk [vmem:[%s394 + $0xc1] sm:$0xff] %vm306, %v378
      %412 = vst.msk [vmem:[%s394 + $0xc9] sm:$0xff] %vm306, %v379
      %413 = vst.msk [vmem:[%s394 + $0xd9] sm:$0xff] %vm306, %v380
      %414 = vst.msk [vmem:[%s394 + $0xe1] sm:$0xff] %vm306, %v381
      %415 = vst.msk [vmem:[%s394 + $0xf1] sm:$0xff] %vm306, %v382
      %416 = vst.msk [vmem:[%s394 + $0xf9] sm:$0xff] %vm306, %v383
      %417 = vst.msk [vmem:[%s394 + $0x109] sm:$0xff] %vm306, %v384
      %418 = vst.msk [vmem:[%s394 + $0x111] sm:$0xff] %vm306, %v385
      %419 = vst.msk [vmem:[%s394 + $0x121] sm:$0xff] %vm306, %v386
      %420 = vst.msk [vmem:[%s394 + $0x129] sm:$0xff] %vm306, %v387
      %421 = vst.msk [vmem:[%s394 + $0x139] sm:$0xff] %vm306, %v388
      %422 = vst.msk [vmem:[%s394 + $0x141] sm:$0xff] %vm306, %v389
      %423 = vst.msk [vmem:[%s394 + $0x151] sm:$0xff] %vm306, %v390
      %424 = vst.msk [vmem:[%s394 + $0x159] sm:$0xff] %vm306, %v391
      %425 = vst.msk [vmem:[%s394 + $0x169] sm:$0xff] %vm306, %v392
      %426 = vst.msk [vmem:[%s394 + $0x171] sm:$0xff] %vm306, %v393
      %v427 = vld [vmem:[#allocation2] sm:$0xff]
      %v428 = vld [vmem:[#allocation2 + $0x8] sm:$0xff]
      %v429 = vld [vmem:[#allocation2 + $0x18] sm:$0xff]
      %v430 = vld [vmem:[#allocation2 + $0x20] sm:$0xff]
      %v431 = vld [vmem:[#allocation2 + $0x30] sm:$0xff]
      %v432 = vld [vmem:[#allocation2 + $0x38] sm:$0xff]
      %v433 = vld [vmem:[#allocation2 + $0x48] sm:$0xff]
      %v434 = vld [vmem:[#allocation2 + $0x50] sm:$0xff]
      %v435 = vld [vmem:[#allocation2 + $0x60] sm:$0xff]
      %v436 = vld [vmem:[#allocation2 + $0x68] sm:$0xff]
      %v437 = vld [vmem:[#allocation2 + $0x78] sm:$0xff]
      %v438 = vld [vmem:[#allocation2 + $0x80] sm:$0xff]
      %v439 = vld [vmem:[#allocation2 + $0x90] sm:$0xff]
      %v440 = vld [vmem:[#allocation2 + $0x98] sm:$0xff]
      %v441 = vld [vmem:[#allocation2 + $0xa8] sm:$0xff]
      %v442 = vld [vmem:[#allocation2 + $0xb0] sm:$0xff]
      %v443 = vld [vmem:[#allocation2 + $0xc0] sm:$0xff]
      %v444 = vld [vmem:[#allocation2 + $0xc8] sm:$0xff]
      %v445 = vld [vmem:[#allocation2 + $0xd8] sm:$0xff]
      %v446 = vld [vmem:[#allocation2 + $0xe0] sm:$0xff]
      %v447 = vld [vmem:[#allocation2 + $0xf0] sm:$0xff]
      %v448 = vld [vmem:[#allocation2 + $0xf8] sm:$0xff]
      %v449 = vld [vmem:[#allocation2 + $0x108] sm:$0xff]
      %v450 = vld [vmem:[#allocation2 + $0x110] sm:$0xff]
      %v451 = vld [vmem:[#allocation2 + $0x120] sm:$0xff]
      %v452 = vld [vmem:[#allocation2 + $0x128] sm:$0xff]
      %v453 = vld [vmem:[#allocation2 + $0x138] sm:$0xff]
      %v454 = vld [vmem:[#allocation2 + $0x140] sm:$0xff]
      %v455 = vld [vmem:[#allocation2 + $0x150] sm:$0xff]
      %v456 = vld [vmem:[#allocation2 + $0x158] sm:$0xff]
      %v457 = vld [vmem:[#allocation2 + $0x168] sm:$0xff]
      %v458 = vld [vmem:[#allocation2 + $0x170] sm:$0xff]
      %v459 = vld [vmem:[#allocation2 + $0x1] sm:$0xff]
      %v460 = vld [vmem:[#allocation2 + $0x9] sm:$0xff]
      %v461 = vld [vmem:[#allocation2 + $0x19] sm:$0xff]
      %v462 = vld [vmem:[#allocation2 + $0x21] sm:$0xff]
      %v463 = vld [vmem:[#allocation2 + $0x31] sm:$0xff]
      %v464 = vld [vmem:[#allocation2 + $0x39] sm:$0xff]
      %v465 = vld [vmem:[#allocation2 + $0x49] sm:$0xff]
      %v466 = vld [vmem:[#allocation2 + $0x51] sm:$0xff]
      %v467 = vld [vmem:[#allocation2 + $0x61] sm:$0xff]
      %v468 = vld [vmem:[#allocation2 + $0x69] sm:$0xff]
      %v469 = vld [vmem:[#allocation2 + $0x79] sm:$0xff]
      %v470 = vld [vmem:[#allocation2 + $0x81] sm:$0xff]
      %v471 = vld [vmem:[#allocation2 + $0x91] sm:$0xff]
      %v472 = vld [vmem:[#allocation2 + $0x99] sm:$0xff]
      %v473 = vld [vmem:[#allocation2 + $0xa9] sm:$0xff]
      %v474 = vld [vmem:[#allocation2 + $0xb1] sm:$0xff]
      %v475 = vld [vmem:[#allocation2 + $0xc1] sm:$0xff]
      %v476 = vld [vmem:[#allocation2 + $0xc9] sm:$0xff]
      %v477 = vld [vmem:[#allocation2 + $0xd9] sm:$0xff]
      %v478 = vld [vmem:[#allocation2 + $0xe1] sm:$0xff]
      %v479 = vld [vmem:[#allocation2 + $0xf1] sm:$0xff]
      %v480 = vld [vmem:[#allocation2 + $0xf9] sm:$0xff]
      %v481 = vld [vmem:[#allocation2 + $0x109] sm:$0xff]
      %v482 = vld [vmem:[#allocation2 + $0x111] sm:$0xff]
      %v483 = vld [vmem:[#allocation2 + $0x121] sm:$0xff]
      %v484 = vld [vmem:[#allocation2 + $0x129] sm:$0xff]
      %v485 = vld [vmem:[#allocation2 + $0x139] sm:$0xff]
      %v486 = vld [vmem:[#allocation2 + $0x141] sm:$0xff]
      %v487 = vld [vmem:[#allocation2 + $0x151] sm:$0xff]
      %v488 = vld [vmem:[#allocation2 + $0x159] sm:$0xff]
      %v489 = vld [vmem:[#allocation2 + $0x169] sm:$0xff]
      %v490 = vld [vmem:[#allocation2 + $0x171] sm:$0xff]
      %v491 = vld [vmem:[#allocation2 + $0x2] sm:$0xff]
      %v492 = vld [vmem:[#allocation2 + $0xa] sm:$0xff]
      %v493 = vld [vmem:[#allocation2 + $0x1a] sm:$0xff]
      %v494 = vld [vmem:[#allocation2 + $0x22] sm:$0xff]
      %v495 = vld [vmem:[#allocation2 + $0x32] sm:$0xff]
      %v496 = vld [vmem:[#allocation2 + $0x3a] sm:$0xff]
      %v497 = vld [vmem:[#allocation2 + $0x4a] sm:$0xff]
      %v498 = vld [vmem:[#allocation2 + $0x52] sm:$0xff]
      %v499 = vld [vmem:[#allocation2 + $0x62] sm:$0xff]
      %v500 = vld [vmem:[#allocation2 + $0x6a] sm:$0xff]
      %v501 = vld [vmem:[#allocation2 + $0x7a] sm:$0xff]
      %v502 = vld [vmem:[#allocation2 + $0x82] sm:$0xff]
      %v503 = vld [vmem:[#allocation2 + $0x92] sm:$0xff]
      %v504 = vld [vmem:[#allocation2 + $0x9a] sm:$0xff]
      %v505 = vld [vmem:[#allocation2 + $0xaa] sm:$0xff]
      %v506 = vld [vmem:[#allocation2 + $0xb2] sm:$0xff]
      %v507 = vld [vmem:[#allocation2 + $0xc2] sm:$0xff]
      %v508 = vld [vmem:[#allocation2 + $0xca] sm:$0xff]
      %v509 = vld [vmem:[#allocation2 + $0xda] sm:$0xff]
      %v510 = vld [vmem:[#allocation2 + $0xe2] sm:$0xff]
      %v511 = vld [vmem:[#allocation2 + $0xf2] sm:$0xff]
      %v512 = vld [vmem:[#allocation2 + $0xfa] sm:$0xff]
      %v513 = vld [vmem:[#allocation2 + $0x10a] sm:$0xff]
      %v514 = vld [vmem:[#allocation2 + $0x112] sm:$0xff]
      %v515 = vld [vmem:[#allocation2 + $0x122] sm:$0xff]
      %v516 = vld [vmem:[#allocation2 + $0x12a] sm:$0xff]
      %v517 = vld [vmem:[#allocation2 + $0x13a] sm:$0xff]
      %v518 = vld [vmem:[#allocation2 + $0x142] sm:$0xff]
      %v519 = vld [vmem:[#allocation2 + $0x152] sm:$0xff]
      %v520 = vld [vmem:[#allocation2 + $0x15a] sm:$0xff]
      %v521 = vld [vmem:[#allocation2 + $0x16a] sm:$0xff]
      %v522 = vld [vmem:[#allocation2 + $0x172] sm:$0xff]
      %v523 = vld [vmem:[%s394] sm:$0xff]
      %v524 = vld [vmem:[%s394 + $0x8] sm:$0xff]
      %v525 = vld [vmem:[%s394 + $0x18] sm:$0xff]
      %v526 = vld [vmem:[%s394 + $0x20] sm:$0xff]
      %v527 = vld [vmem:[%s394 + $0x30] sm:$0xff]
      %v528 = vld [vmem:[%s394 + $0x38] sm:$0xff]
      %v529 = vld [vmem:[%s394 + $0x48] sm:$0xff]
      %v530 = vld [vmem:[%s394 + $0x50] sm:$0xff]
      %v531 = vld [vmem:[%s394 + $0x60] sm:$0xff]
      %v532 = vld [vmem:[%s394 + $0x68] sm:$0xff]
      %v533 = vld [vmem:[%s394 + $0x78] sm:$0xff]
      %v534 = vld [vmem:[%s394 + $0x80] sm:$0xff]
      %v535 = vld [vmem:[%s394 + $0x90] sm:$0xff]
      %v536 = vld [vmem:[%s394 + $0x98] sm:$0xff]
      %v537 = vld [vmem:[%s394 + $0xa8] sm:$0xff]
      %v538 = vld [vmem:[%s394 + $0xb0] sm:$0xff]
      %v539 = vld [vmem:[%s394 + $0xc0] sm:$0xff]
      %v540 = vld [vmem:[%s394 + $0xc8] sm:$0xff]
      %v541 = vld [vmem:[%s394 + $0xd8] sm:$0xff]
      %v542 = vld [vmem:[%s394 + $0xe0] sm:$0xff]
      %v543 = vld [vmem:[%s394 + $0xf0] sm:$0xff]
      %v544 = vld [vmem:[%s394 + $0xf8] sm:$0xff]
      %v545 = vld [vmem:[%s394 + $0x108] sm:$0xff]
      %v546 = vld [vmem:[%s394 + $0x110] sm:$0xff]
      %v547 = vld [vmem:[%s394 + $0x120] sm:$0xff]
      %v548 = vld [vmem:[%s394 + $0x128] sm:$0xff]
      %v549 = vld [vmem:[%s394 + $0x138] sm:$0xff]
      %v550 = vld [vmem:[%s394 + $0x140] sm:$0xff]
      %v551 = vld [vmem:[%s394 + $0x150] sm:$0xff]
      %v552 = vld [vmem:[%s394 + $0x158] sm:$0xff]
      %v553 = vld [vmem:[%s394 + $0x168] sm:$0xff]
      %v554 = vld [vmem:[%s394 + $0x170] sm:$0xff]
      %v555 = vld [vmem:[%s394 + $0x1] sm:$0xff]
      %v556 = vld [vmem:[%s394 + $0x9] sm:$0xff]
      %v557 = vld [vmem:[%s394 + $0x19] sm:$0xff]
      %v558 = vld [vmem:[%s394 + $0x21] sm:$0xff]
      %v559 = vld [vmem:[%s394 + $0x31] sm:$0xff]
      %v560 = vld [vmem:[%s394 + $0x39] sm:$0xff]
      %v561 = vld [vmem:[%s394 + $0x49] sm:$0xff]
      %v562 = vld [vmem:[%s394 + $0x51] sm:$0xff]
      %v563 = vld [vmem:[%s394 + $0x61] sm:$0xff]
      %v564 = vld [vmem:[%s394 + $0x69] sm:$0xff]
      %v565 = vld [vmem:[%s394 + $0x79] sm:$0xff]
      %v566 = vld [vmem:[%s394 + $0x81] sm:$0xff]
      %v567 = vld [vmem:[%s394 + $0x91] sm:$0xff]
      %v568 = vld [vmem:[%s394 + $0x99] sm:$0xff]
      %v569 = vld [vmem:[%s394 + $0xa9] sm:$0xff]
      %v570 = vld [vmem:[%s394 + $0xb1] sm:$0xff]
      %v571 = vld [vmem:[%s394 + $0xc1] sm:$0xff]
      %v572 = vld [vmem:[%s394 + $0xc9] sm:$0xff]
      %v573 = vld [vmem:[%s394 + $0xd9] sm:$0xff]
      %v574 = vld [vmem:[%s394 + $0xe1] sm:$0xff]
      %v575 = vld [vmem:[%s394 + $0xf1] sm:$0xff]
      %v576 = vld [vmem:[%s394 + $0xf9] sm:$0xff]
      %v577 = vld [vmem:[%s394 + $0x109] sm:$0xff]
      %v578 = vld [vmem:[%s394 + $0x111] sm:$0xff]
      %v579 = vld [vmem:[%s394 + $0x121] sm:$0xff]
      %v580 = vld [vmem:[%s394 + $0x129] sm:$0xff]
      %v581 = vld [vmem:[%s394 + $0x139] sm:$0xff]
      %v582 = vld [vmem:[%s394 + $0x141] sm:$0xff]
      %v583 = vld [vmem:[%s394 + $0x151] sm:$0xff]
      %v584 = vld [vmem:[%s394 + $0x159] sm:$0xff]
      %v585 = vld [vmem:[%s394 + $0x169] sm:$0xff]
      %v586 = vld [vmem:[%s394 + $0x171] sm:$0xff]
      %v587 = vld [vmem:[%s394 + $0x2] sm:$0xff]
      %v588 = vld [vmem:[%s394 + $0xa] sm:$0xff]
      %v589 = vld [vmem:[%s394 + $0x1a] sm:$0xff]
      %v590 = vld [vmem:[%s394 + $0x22] sm:$0xff]
      %v591 = vld [vmem:[%s394 + $0x32] sm:$0xff]
      %v592 = vld [vmem:[%s394 + $0x3a] sm:$0xff]
      %v593 = vld [vmem:[%s394 + $0x4a] sm:$0xff]
      %v594 = vld [vmem:[%s394 + $0x52] sm:$0xff]
      %v595 = vld [vmem:[%s394 + $0x62] sm:$0xff]
      %v596 = vld [vmem:[%s394 + $0x6a] sm:$0xff]
      %v597 = vld [vmem:[%s394 + $0x7a] sm:$0xff]
      %v598 = vld [vmem:[%s394 + $0x82] sm:$0xff]
      %v599 = vld [vmem:[%s394 + $0x92] sm:$0xff]
      %v600 = vld [vmem:[%s394 + $0x9a] sm:$0xff]
      %v601 = vld [vmem:[%s394 + $0xaa] sm:$0xff]
      %v602 = vld [vmem:[%s394 + $0xb2] sm:$0xff]
      %v603 = vld [vmem:[%s394 + $0xc2] sm:$0xff]
      %v604 = vld [vmem:[%s394 + $0xca] sm:$0xff]
      %v605 = vld [vmem:[%s394 + $0xda] sm:$0xff]
      %v606 = vld [vmem:[%s394 + $0xe2] sm:$0xff]
      %v607 = vld [vmem:[%s394 + $0xf2] sm:$0xff]
      %v608 = vld [vmem:[%s394 + $0xfa] sm:$0xff]
      %v609 = vld [vmem:[%s394 + $0x10a] sm:$0xff]
      %v610 = vld [vmem:[%s394 + $0x112] sm:$0xff]
      %v611 = vld [vmem:[%s394 + $0x122] sm:$0xff]
      %v612 = vld [vmem:[%s394 + $0x12a] sm:$0xff]
      %v613 = vld [vmem:[%s394 + $0x13a] sm:$0xff]
      %v614 = vld [vmem:[%s394 + $0x142] sm:$0xff]
      %v615 = vld [vmem:[%s394 + $0x152] sm:$0xff]
      %v616 = vld [vmem:[%s394 + $0x15a] sm:$0xff]
      %v617 = vld [vmem:[%s394 + $0x16a] sm:$0xff]
      %v618 = vld [vmem:[%s394 + $0x172] sm:$0xff]
      %s619 = scalar_lea.vmem [#allocation2], 48
      %v620 = vld [vmem:[%s619] sm:$0xff]
      %v621 = vld [vmem:[%s619 + $0x8] sm:$0xff]
      %v622 = vld [vmem:[%s619 + $0x18] sm:$0xff]
      %v623 = vld [vmem:[%s619 + $0x20] sm:$0xff]
      %v624 = vld [vmem:[%s619 + $0x30] sm:$0xff]
      %v625 = vld [vmem:[%s619 + $0x38] sm:$0xff]
      %v626 = vld [vmem:[%s619 + $0x48] sm:$0xff]
      %v627 = vld [vmem:[%s619 + $0x50] sm:$0xff]
      %v628 = vld [vmem:[%s619 + $0x60] sm:$0xff]
      %v629 = vld [vmem:[%s619 + $0x68] sm:$0xff]
      %v630 = vld [vmem:[%s619 + $0x78] sm:$0xff]
      %v631 = vld [vmem:[%s619 + $0x80] sm:$0xff]
      %v632 = vld [vmem:[%s619 + $0x90] sm:$0xff]
      %v633 = vld [vmem:[%s619 + $0x98] sm:$0xff]
      %v634 = vld [vmem:[%s619 + $0xa8] sm:$0xff]
      %v635 = vld [vmem:[%s619 + $0xb0] sm:$0xff]
      %v636 = vld [vmem:[%s619 + $0xc0] sm:$0xff]
      %v637 = vld [vmem:[%s619 + $0xc8] sm:$0xff]
      %v638 = vld [vmem:[%s619 + $0xd8] sm:$0xff]
      %v639 = vld [vmem:[%s619 + $0xe0] sm:$0xff]
      %v640 = vld [vmem:[%s619 + $0xf0] sm:$0xff]
      %v641 = vld [vmem:[%s619 + $0xf8] sm:$0xff]
      %v642 = vld [vmem:[%s619 + $0x108] sm:$0xff]
      %v643 = vld [vmem:[%s619 + $0x110] sm:$0xff]
      %v644 = vld [vmem:[%s619 + $0x120] sm:$0xff]
      %v645 = vld [vmem:[%s619 + $0x128] sm:$0xff]
      %v646 = vld [vmem:[%s619 + $0x138] sm:$0xff]
      %v647 = vld [vmem:[%s619 + $0x140] sm:$0xff]
      %v648 = vld [vmem:[%s619 + $0x150] sm:$0xff]
      %v649 = vld [vmem:[%s619 + $0x158] sm:$0xff]
      %v650 = vld [vmem:[%s619 + $0x168] sm:$0xff]
      %v651 = vld [vmem:[%s619 + $0x170] sm:$0xff]
      %v652 = vld [vmem:[%s619 + $0x1] sm:$0xff]
      %v653 = vld [vmem:[%s619 + $0x9] sm:$0xff]
      %v654 = vld [vmem:[%s619 + $0x19] sm:$0xff]
      %v655 = vld [vmem:[%s619 + $0x21] sm:$0xff]
      %v656 = vld [vmem:[%s619 + $0x31] sm:$0xff]
      %v657 = vld [vmem:[%s619 + $0x39] sm:$0xff]
      %v658 = vld [vmem:[%s619 + $0x49] sm:$0xff]
      %v659 = vld [vmem:[%s619 + $0x51] sm:$0xff]
      %v660 = vld [vmem:[%s619 + $0x61] sm:$0xff]
      %v661 = vld [vmem:[%s619 + $0x69] sm:$0xff]
      %v662 = vld [vmem:[%s619 + $0x79] sm:$0xff]
      %v663 = vld [vmem:[%s619 + $0x81] sm:$0xff]
      %v664 = vld [vmem:[%s619 + $0x91] sm:$0xff]
      %v665 = vld [vmem:[%s619 + $0x99] sm:$0xff]
      %v666 = vld [vmem:[%s619 + $0xa9] sm:$0xff]
      %v667 = vld [vmem:[%s619 + $0xb1] sm:$0xff]
      %v668 = vld [vmem:[%s619 + $0xc1] sm:$0xff]
      %v669 = vld [vmem:[%s619 + $0xc9] sm:$0xff]
      %v670 = vld [vmem:[%s619 + $0xd9] sm:$0xff]
      %v671 = vld [vmem:[%s619 + $0xe1] sm:$0xff]
      %v672 = vld [vmem:[%s619 + $0xf1] sm:$0xff]
      %v673 = vld [vmem:[%s619 + $0xf9] sm:$0xff]
      %v674 = vld [vmem:[%s619 + $0x109] sm:$0xff]
      %v675 = vld [vmem:[%s619 + $0x111] sm:$0xff]
      %v676 = vld [vmem:[%s619 + $0x121] sm:$0xff]
      %v677 = vld [vmem:[%s619 + $0x129] sm:$0xff]
      %v678 = vld [vmem:[%s619 + $0x139] sm:$0xff]
      %v679 = vld [vmem:[%s619 + $0x141] sm:$0xff]
      %v680 = vld [vmem:[%s619 + $0x151] sm:$0xff]
      %v681 = vld [vmem:[%s619 + $0x159] sm:$0xff]
      %v682 = vld [vmem:[%s619 + $0x169] sm:$0xff]
      %v683 = vld [vmem:[%s619 + $0x171] sm:$0xff]
      %v684 = vld [vmem:[%s619 + $0x2] sm:$0xff]
      %v685 = vld [vmem:[%s619 + $0xa] sm:$0xff]
      %v686 = vld [vmem:[%s619 + $0x1a] sm:$0xff]
      %v687 = vld [vmem:[%s619 + $0x22] sm:$0xff]
      %v688 = vld [vmem:[%s619 + $0x32] sm:$0xff]
      %v689 = vld [vmem:[%s619 + $0x3a] sm:$0xff]
      %v690 = vld [vmem:[%s619 + $0x4a] sm:$0xff]
      %v691 = vld [vmem:[%s619 + $0x52] sm:$0xff]
      %v692 = vld [vmem:[%s619 + $0x62] sm:$0xff]
      %v693 = vld [vmem:[%s619 + $0x6a] sm:$0xff]
      %v694 = vld [vmem:[%s619 + $0x7a] sm:$0xff]
      %v695 = vld [vmem:[%s619 + $0x82] sm:$0xff]
      %v696 = vld [vmem:[%s619 + $0x92] sm:$0xff]
      %v697 = vld [vmem:[%s619 + $0x9a] sm:$0xff]
      %v698 = vld [vmem:[%s619 + $0xaa] sm:$0xff]
      %v699 = vld [vmem:[%s619 + $0xb2] sm:$0xff]
      %v700 = vld [vmem:[%s619 + $0xc2] sm:$0xff]
      %v701 = vld [vmem:[%s619 + $0xca] sm:$0xff]
      %v702 = vld [vmem:[%s619 + $0xda] sm:$0xff]
      %v703 = vld [vmem:[%s619 + $0xe2] sm:$0xff]
      %v704 = vld [vmem:[%s619 + $0xf2] sm:$0xff]
      %v705 = vld [vmem:[%s619 + $0xfa] sm:$0xff]
      %v706 = vld [vmem:[%s619 + $0x10a] sm:$0xff]
      %v707 = vld [vmem:[%s619 + $0x112] sm:$0xff]
      %v708 = vld [vmem:[%s619 + $0x122] sm:$0xff]
      %v709 = vld [vmem:[%s619 + $0x12a] sm:$0xff]
      %v710 = vld [vmem:[%s619 + $0x13a] sm:$0xff]
      %v711 = vld [vmem:[%s619 + $0x142] sm:$0xff]
      %v712 = vld [vmem:[%s619 + $0x152] sm:$0xff]
      %v713 = vld [vmem:[%s619 + $0x15a] sm:$0xff]
      %v714 = vld [vmem:[%s619 + $0x16a] sm:$0xff]
      %v715 = vld [vmem:[%s619 + $0x172] sm:$0xff]
      %748 = vrot.lane.b32.xlu0 %v459, 16
      %v749 = vpop.permute.xlu0 %748
      %750 = vrot.lane.b32.xlu0 %v460, 16
      %v751 = vpop.permute.xlu0 %750
      %752 = vrot.lane.b32.xlu0 %v461, 16
      %v753 = vpop.permute.xlu0 %752
      %754 = vrot.lane.b32.xlu0 %v462, 16
      %v755 = vpop.permute.xlu0 %754
      %756 = vrot.lane.b32.xlu0 %v463, 16
      %v757 = vpop.permute.xlu0 %756
      %758 = vrot.lane.b32.xlu0 %v464, 16
      %v759 = vpop.permute.xlu0 %758
      %760 = vrot.lane.b32.xlu0 %v465, 16
      %v761 = vpop.permute.xlu0 %760
      %762 = vrot.lane.b32.xlu0 %v466, 16
      %v763 = vpop.permute.xlu0 %762
      %764 = vrot.lane.b32.xlu0 %v467, 16
      %v765 = vpop.permute.xlu0 %764
      %766 = vrot.lane.b32.xlu0 %v468, 16
      %v767 = vpop.permute.xlu0 %766
      %768 = vrot.lane.b32.xlu0 %v469, 16
      %v769 = vpop.permute.xlu0 %768
      %770 = vrot.lane.b32.xlu0 %v470, 16
      %v771 = vpop.permute.xlu0 %770
      %772 = vrot.lane.b32.xlu0 %v471, 16
      %v773 = vpop.permute.xlu0 %772
      %774 = vrot.lane.b32.xlu0 %v472, 16
      %v775 = vpop.permute.xlu0 %774
      %776 = vrot.lane.b32.xlu0 %v473, 16
      %v777 = vpop.permute.xlu0 %776
      %778 = vrot.lane.b32.xlu0 %v474, 16
      %v779 = vpop.permute.xlu0 %778
      %780 = vrot.lane.b32.xlu0 %v475, 16
      %v781 = vpop.permute.xlu0 %780
      %782 = vrot.lane.b32.xlu0 %v476, 16
      %v783 = vpop.permute.xlu0 %782
      %784 = vrot.lane.b32.xlu0 %v477, 16
      %v785 = vpop.permute.xlu0 %784
      %786 = vrot.lane.b32.xlu0 %v478, 16
      %v787 = vpop.permute.xlu0 %786
      %788 = vrot.lane.b32.xlu0 %v479, 16
      %v789 = vpop.permute.xlu0 %788
      %790 = vrot.lane.b32.xlu0 %v480, 16
      %v791 = vpop.permute.xlu0 %790
      %792 = vrot.lane.b32.xlu0 %v481, 16
      %v793 = vpop.permute.xlu0 %792
      %794 = vrot.lane.b32.xlu0 %v482, 16
      %v795 = vpop.permute.xlu0 %794
      %796 = vrot.lane.b32.xlu0 %v483, 16
      %v797 = vpop.permute.xlu0 %796
      %798 = vrot.lane.b32.xlu0 %v484, 16
      %v799 = vpop.permute.xlu0 %798
      %800 = vrot.lane.b32.xlu0 %v485, 16
      %v801 = vpop.permute.xlu0 %800
      %802 = vrot.lane.b32.xlu0 %v486, 16
      %v803 = vpop.permute.xlu0 %802
      %804 = vrot.lane.b32.xlu0 %v487, 16
      %v805 = vpop.permute.xlu0 %804
      %806 = vrot.lane.b32.xlu0 %v488, 16
      %v807 = vpop.permute.xlu0 %806
      %808 = vrot.lane.b32.xlu0 %v489, 16
      %v809 = vpop.permute.xlu0 %808
      %810 = vrot.lane.b32.xlu0 %v490, 16
      %v811 = vpop.permute.xlu0 %810
      %876 = vrot.lane.b32.xlu0 %v491, 32
      %v877 = vpop.permute.xlu0 %876
      %878 = vrot.lane.b32.xlu0 %v492, 32
      %v879 = vpop.permute.xlu0 %878
      %880 = vrot.lane.b32.xlu0 %v493, 32
      %v881 = vpop.permute.xlu0 %880
      %882 = vrot.lane.b32.xlu0 %v494, 32
      %v883 = vpop.permute.xlu0 %882
      %884 = vrot.lane.b32.xlu0 %v495, 32
      %v885 = vpop.permute.xlu0 %884
      %886 = vrot.lane.b32.xlu0 %v496, 32
      %v887 = vpop.permute.xlu0 %886
      %888 = vrot.lane.b32.xlu0 %v497, 32
      %v889 = vpop.permute.xlu0 %888
      %890 = vrot.lane.b32.xlu0 %v498, 32
      %v891 = vpop.permute.xlu0 %890
      %892 = vrot.lane.b32.xlu0 %v499, 32
      %v893 = vpop.permute.xlu0 %892
      %894 = vrot.lane.b32.xlu0 %v500, 32
      %v895 = vpop.permute.xlu0 %894
      %896 = vrot.lane.b32.xlu0 %v501, 32
      %v897 = vpop.permute.xlu0 %896
      %898 = vrot.lane.b32.xlu0 %v502, 32
      %v899 = vpop.permute.xlu0 %898
      %900 = vrot.lane.b32.xlu0 %v503, 32
      %v901 = vpop.permute.xlu0 %900
      %902 = vrot.lane.b32.xlu0 %v504, 32
      %v903 = vpop.permute.xlu0 %902
      %904 = vrot.lane.b32.xlu0 %v505, 32
      %v905 = vpop.permute.xlu0 %904
      %906 = vrot.lane.b32.xlu0 %v506, 32
      %v907 = vpop.permute.xlu0 %906
      %908 = vrot.lane.b32.xlu0 %v507, 32
      %v909 = vpop.permute.xlu0 %908
      %910 = vrot.lane.b32.xlu0 %v508, 32
      %v911 = vpop.permute.xlu0 %910
      %912 = vrot.lane.b32.xlu0 %v509, 32
      %v913 = vpop.permute.xlu0 %912
      %914 = vrot.lane.b32.xlu0 %v510, 32
      %v915 = vpop.permute.xlu0 %914
      %916 = vrot.lane.b32.xlu0 %v511, 32
      %v917 = vpop.permute.xlu0 %916
      %918 = vrot.lane.b32.xlu0 %v512, 32
      %v919 = vpop.permute.xlu0 %918
      %920 = vrot.lane.b32.xlu0 %v513, 32
      %v921 = vpop.permute.xlu0 %920
      %922 = vrot.lane.b32.xlu0 %v514, 32
      %v923 = vpop.permute.xlu0 %922
      %924 = vrot.lane.b32.xlu0 %v515, 32
      %v925 = vpop.permute.xlu0 %924
      %926 = vrot.lane.b32.xlu0 %v516, 32
      %v927 = vpop.permute.xlu0 %926
      %928 = vrot.lane.b32.xlu0 %v517, 32
      %v929 = vpop.permute.xlu0 %928
      %930 = vrot.lane.b32.xlu0 %v518, 32
      %v931 = vpop.permute.xlu0 %930
      %932 = vrot.lane.b32.xlu0 %v519, 32
      %v933 = vpop.permute.xlu0 %932
      %934 = vrot.lane.b32.xlu0 %v520, 32
      %v935 = vpop.permute.xlu0 %934
      %936 = vrot.lane.b32.xlu0 %v521, 32
      %v937 = vpop.permute.xlu0 %936
      %938 = vrot.lane.b32.xlu0 %v522, 32
      %v939 = vpop.permute.xlu0 %938
      %1004 = vrot.lane.b32.xlu0 %v523, 48
      %v1005 = vpop.permute.xlu0 %1004
      %1006 = vrot.lane.b32.xlu0 %v524, 48
      %v1007 = vpop.permute.xlu0 %1006
      %1008 = vrot.lane.b32.xlu0 %v525, 48
      %v1009 = vpop.permute.xlu0 %1008
      %1010 = vrot.lane.b32.xlu0 %v526, 48
      %v1011 = vpop.permute.xlu0 %1010
      %1012 = vrot.lane.b32.xlu0 %v527, 48
      %v1013 = vpop.permute.xlu0 %1012
      %1014 = vrot.lane.b32.xlu0 %v528, 48
      %v1015 = vpop.permute.xlu0 %1014
      %1016 = vrot.lane.b32.xlu0 %v529, 48
      %v1017 = vpop.permute.xlu0 %1016
      %1018 = vrot.lane.b32.xlu0 %v530, 48
      %v1019 = vpop.permute.xlu0 %1018
      %1020 = vrot.lane.b32.xlu0 %v531, 48
      %v1021 = vpop.permute.xlu0 %1020
      %1022 = vrot.lane.b32.xlu0 %v532, 48
      %v1023 = vpop.permute.xlu0 %1022
      %1024 = vrot.lane.b32.xlu0 %v533, 48
      %v1025 = vpop.permute.xlu0 %1024
      %1026 = vrot.lane.b32.xlu0 %v534, 48
      %v1027 = vpop.permute.xlu0 %1026
      %1028 = vrot.lane.b32.xlu0 %v535, 48
      %v1029 = vpop.permute.xlu0 %1028
      %1030 = vrot.lane.b32.xlu0 %v536, 48
      %v1031 = vpop.permute.xlu0 %1030
      %1032 = vrot.lane.b32.xlu0 %v537, 48
      %v1033 = vpop.permute.xlu0 %1032
      %1034 = vrot.lane.b32.xlu0 %v538, 48
      %v1035 = vpop.permute.xlu0 %1034
      %1036 = vrot.lane.b32.xlu0 %v539, 48
      %v1037 = vpop.permute.xlu0 %1036
      %1038 = vrot.lane.b32.xlu0 %v540, 48
      %v1039 = vpop.permute.xlu0 %1038
      %1040 = vrot.lane.b32.xlu0 %v541, 48
      %v1041 = vpop.permute.xlu0 %1040
      %1042 = vrot.lane.b32.xlu0 %v542, 48
      %v1043 = vpop.permute.xlu0 %1042
      %1044 = vrot.lane.b32.xlu0 %v543, 48
      %v1045 = vpop.permute.xlu0 %1044
      %1046 = vrot.lane.b32.xlu0 %v544, 48
      %v1047 = vpop.permute.xlu0 %1046
      %1048 = vrot.lane.b32.xlu0 %v545, 48
      %v1049 = vpop.permute.xlu0 %1048
      %1050 = vrot.lane.b32.xlu0 %v546, 48
      %v1051 = vpop.permute.xlu0 %1050
      %1052 = vrot.lane.b32.xlu0 %v547, 48
      %v1053 = vpop.permute.xlu0 %1052
      %1054 = vrot.lane.b32.xlu0 %v548, 48
      %v1055 = vpop.permute.xlu0 %1054
      %1056 = vrot.lane.b32.xlu0 %v549, 48
      %v1057 = vpop.permute.xlu0 %1056
      %1058 = vrot.lane.b32.xlu0 %v550, 48
      %v1059 = vpop.permute.xlu0 %1058
      %1060 = vrot.lane.b32.xlu0 %v551, 48
      %v1061 = vpop.permute.xlu0 %1060
      %1062 = vrot.lane.b32.xlu0 %v552, 48
      %v1063 = vpop.permute.xlu0 %1062
      %1064 = vrot.lane.b32.xlu0 %v553, 48
      %v1065 = vpop.permute.xlu0 %1064
      %1066 = vrot.lane.b32.xlu0 %v554, 48
      %v1067 = vpop.permute.xlu0 %1066
      %1132 = vrot.lane.b32.xlu0 %v555, 64
      %v1133 = vpop.permute.xlu0 %1132
      %1134 = vrot.lane.b32.xlu0 %v556, 64
      %v1135 = vpop.permute.xlu0 %1134
      %1136 = vrot.lane.b32.xlu0 %v557, 64
      %v1137 = vpop.permute.xlu0 %1136
      %1138 = vrot.lane.b32.xlu0 %v558, 64
      %v1139 = vpop.permute.xlu0 %1138
      %1140 = vrot.lane.b32.xlu0 %v559, 64
      %v1141 = vpop.permute.xlu0 %1140
      %1142 = vrot.lane.b32.xlu0 %v560, 64
      %v1143 = vpop.permute.xlu0 %1142
      %1144 = vrot.lane.b32.xlu0 %v561, 64
      %v1145 = vpop.permute.xlu0 %1144
      %1146 = vrot.lane.b32.xlu0 %v562, 64
      %v1147 = vpop.permute.xlu0 %1146
      %1148 = vrot.lane.b32.xlu0 %v563, 64
      %v1149 = vpop.permute.xlu0 %1148
      %1150 = vrot.lane.b32.xlu0 %v564, 64
      %v1151 = vpop.permute.xlu0 %1150
      %1152 = vrot.lane.b32.xlu0 %v565, 64
      %v1153 = vpop.permute.xlu0 %1152
      %1154 = vrot.lane.b32.xlu0 %v566, 64
      %v1155 = vpop.permute.xlu0 %1154
      %1156 = vrot.lane.b32.xlu0 %v567, 64
      %v1157 = vpop.permute.xlu0 %1156
      %1158 = vrot.lane.b32.xlu0 %v568, 64
      %v1159 = vpop.permute.xlu0 %1158
      %1160 = vrot.lane.b32.xlu0 %v569, 64
      %v1161 = vpop.permute.xlu0 %1160
      %1162 = vrot.lane.b32.xlu0 %v570, 64
      %v1163 = vpop.permute.xlu0 %1162
      %1164 = vrot.lane.b32.xlu0 %v571, 64
      %v1165 = vpop.permute.xlu0 %1164
      %1166 = vrot.lane.b32.xlu0 %v572, 64
      %v1167 = vpop.permute.xlu0 %1166
      %1168 = vrot.lane.b32.xlu0 %v573, 64
      %v1169 = vpop.permute.xlu0 %1168
      %1170 = vrot.lane.b32.xlu0 %v574, 64
      %v1171 = vpop.permute.xlu0 %1170
      %1172 = vrot.lane.b32.xlu0 %v575, 64
      %v1173 = vpop.permute.xlu0 %1172
      %1174 = vrot.lane.b32.xlu0 %v576, 64
      %v1175 = vpop.permute.xlu0 %1174
      %1176 = vrot.lane.b32.xlu0 %v577, 64
      %v1177 = vpop.permute.xlu0 %1176
      %1178 = vrot.lane.b32.xlu0 %v578, 64
      %v1179 = vpop.permute.xlu0 %1178
      %1180 = vrot.lane.b32.xlu0 %v579, 64
      %v1181 = vpop.permute.xlu0 %1180
      %1182 = vrot.lane.b32.xlu0 %v580, 64
      %v1183 = vpop.permute.xlu0 %1182
      %1184 = vrot.lane.b32.xlu0 %v581, 64
      %v1185 = vpop.permute.xlu0 %1184
      %1186 = vrot.lane.b32.xlu0 %v582, 64
      %v1187 = vpop.permute.xlu0 %1186
      %1188 = vrot.lane.b32.xlu0 %v583, 64
      %v1189 = vpop.permute.xlu0 %1188
      %1190 = vrot.lane.b32.xlu0 %v584, 64
      %v1191 = vpop.permute.xlu0 %1190
      %1192 = vrot.lane.b32.xlu0 %v585, 64
      %v1193 = vpop.permute.xlu0 %1192
      %1194 = vrot.lane.b32.xlu0 %v586, 64
      %v1195 = vpop.permute.xlu0 %1194
      %1260 = vrot.lane.b32.xlu0 %v587, 80
      %v1261 = vpop.permute.xlu0 %1260
      %1262 = vrot.lane.b32.xlu0 %v588, 80
      %v1263 = vpop.permute.xlu0 %1262
      %1264 = vrot.lane.b32.xlu0 %v589, 80
      %v1265 = vpop.permute.xlu0 %1264
      %1266 = vrot.lane.b32.xlu0 %v590, 80
      %v1267 = vpop.permute.xlu0 %1266
      %1268 = vrot.lane.b32.xlu0 %v591, 80
      %v1269 = vpop.permute.xlu0 %1268
      %1270 = vrot.lane.b32.xlu0 %v592, 80
      %v1271 = vpop.permute.xlu0 %1270
      %1272 = vrot.lane.b32.xlu0 %v593, 80
      %v1273 = vpop.permute.xlu0 %1272
      %1274 = vrot.lane.b32.xlu0 %v594, 80
      %v1275 = vpop.permute.xlu0 %1274
      %1276 = vrot.lane.b32.xlu0 %v595, 80
      %v1277 = vpop.permute.xlu0 %1276
      %1278 = vrot.lane.b32.xlu0 %v596, 80
      %v1279 = vpop.permute.xlu0 %1278
      %1280 = vrot.lane.b32.xlu0 %v597, 80
      %v1281 = vpop.permute.xlu0 %1280
      %1282 = vrot.lane.b32.xlu0 %v598, 80
      %v1283 = vpop.permute.xlu0 %1282
      %1284 = vrot.lane.b32.xlu0 %v599, 80
      %v1285 = vpop.permute.xlu0 %1284
      %1286 = vrot.lane.b32.xlu0 %v600, 80
      %v1287 = vpop.permute.xlu0 %1286
      %1288 = vrot.lane.b32.xlu0 %v601, 80
      %v1289 = vpop.permute.xlu0 %1288
      %1290 = vrot.lane.b32.xlu0 %v602, 80
      %v1291 = vpop.permute.xlu0 %1290
      %1292 = vrot.lane.b32.xlu0 %v603, 80
      %v1293 = vpop.permute.xlu0 %1292
      %1294 = vrot.lane.b32.xlu0 %v604, 80
      %v1295 = vpop.permute.xlu0 %1294
      %1296 = vrot.lane.b32.xlu0 %v605, 80
      %v1297 = vpop.permute.xlu0 %1296
      %1298 = vrot.lane.b32.xlu0 %v606, 80
      %v1299 = vpop.permute.xlu0 %1298
      %1300 = vrot.lane.b32.xlu0 %v607, 80
      %v1301 = vpop.permute.xlu0 %1300
      %1302 = vrot.lane.b32.xlu0 %v608, 80
      %v1303 = vpop.permute.xlu0 %1302
      %1304 = vrot.lane.b32.xlu0 %v609, 80
      %v1305 = vpop.permute.xlu0 %1304
      %1306 = vrot.lane.b32.xlu0 %v610, 80
      %v1307 = vpop.permute.xlu0 %1306
      %1308 = vrot.lane.b32.xlu0 %v611, 80
      %v1309 = vpop.permute.xlu0 %1308
      %1310 = vrot.lane.b32.xlu0 %v612, 80
      %v1311 = vpop.permute.xlu0 %1310
      %1312 = vrot.lane.b32.xlu0 %v613, 80
      %v1313 = vpop.permute.xlu0 %1312
      %1314 = vrot.lane.b32.xlu0 %v614, 80
      %v1315 = vpop.permute.xlu0 %1314
      %1316 = vrot.lane.b32.xlu0 %v615, 80
      %v1317 = vpop.permute.xlu0 %1316
      %1318 = vrot.lane.b32.xlu0 %v616, 80
      %v1319 = vpop.permute.xlu0 %1318
      %1320 = vrot.lane.b32.xlu0 %v617, 80
      %v1321 = vpop.permute.xlu0 %1320
      %1322 = vrot.lane.b32.xlu0 %v618, 80
      %v1323 = vpop.permute.xlu0 %1322
      %1388 = vrot.lane.b32.xlu0 %v620, 96
      %v1389 = vpop.permute.xlu0 %1388
      %1390 = vrot.lane.b32.xlu0 %v621, 96
      %v1391 = vpop.permute.xlu0 %1390
      %1392 = vrot.lane.b32.xlu0 %v622, 96
      %v1393 = vpop.permute.xlu0 %1392
      %1394 = vrot.lane.b32.xlu0 %v623, 96
      %v1395 = vpop.permute.xlu0 %1394
      %1396 = vrot.lane.b32.xlu0 %v624, 96
      %v1397 = vpop.permute.xlu0 %1396
      %1398 = vrot.lane.b32.xlu0 %v625, 96
      %v1399 = vpop.permute.xlu0 %1398
      %1400 = vrot.lane.b32.xlu0 %v626, 96
      %v1401 = vpop.permute.xlu0 %1400
      %1402 = vrot.lane.b32.xlu0 %v627, 96
      %v1403 = vpop.permute.xlu0 %1402
      %1404 = vrot.lane.b32.xlu0 %v628, 96
      %v1405 = vpop.permute.xlu0 %1404
      %1406 = vrot.lane.b32.xlu0 %v629, 96
      %v1407 = vpop.permute.xlu0 %1406
      %1408 = vrot.lane.b32.xlu0 %v630, 96
      %v1409 = vpop.permute.xlu0 %1408
      %1410 = vrot.lane.b32.xlu0 %v631, 96
      %v1411 = vpop.permute.xlu0 %1410
      %1412 = vrot.lane.b32.xlu0 %v632, 96
      %v1413 = vpop.permute.xlu0 %1412
      %1414 = vrot.lane.b32.xlu0 %v633, 96
      %v1415 = vpop.permute.xlu0 %1414
      %1416 = vrot.lane.b32.xlu0 %v634, 96
      %v1417 = vpop.permute.xlu0 %1416
      %1418 = vrot.lane.b32.xlu0 %v635, 96
      %v1419 = vpop.permute.xlu0 %1418
      %1420 = vrot.lane.b32.xlu0 %v636, 96
      %v1421 = vpop.permute.xlu0 %1420
      %1422 = vrot.lane.b32.xlu0 %v637, 96
      %v1423 = vpop.permute.xlu0 %1422
      %1424 = vrot.lane.b32.xlu0 %v638, 96
      %v1425 = vpop.permute.xlu0 %1424
      %1426 = vrot.lane.b32.xlu0 %v639, 96
      %v1427 = vpop.permute.xlu0 %1426
      %1428 = vrot.lane.b32.xlu0 %v640, 96
      %v1429 = vpop.permute.xlu0 %1428
      %1430 = vrot.lane.b32.xlu0 %v641, 96
      %v1431 = vpop.permute.xlu0 %1430
      %1432 = vrot.lane.b32.xlu0 %v642, 96
      %v1433 = vpop.permute.xlu0 %1432
      %1434 = vrot.lane.b32.xlu0 %v643, 96
      %v1435 = vpop.permute.xlu0 %1434
      %1436 = vrot.lane.b32.xlu0 %v644, 96
      %v1437 = vpop.permute.xlu0 %1436
      %1438 = vrot.lane.b32.xlu0 %v645, 96
      %v1439 = vpop.permute.xlu0 %1438
      %1440 = vrot.lane.b32.xlu0 %v646, 96
      %v1441 = vpop.permute.xlu0 %1440
      %1442 = vrot.lane.b32.xlu0 %v647, 96
      %v1443 = vpop.permute.xlu0 %1442
      %1444 = vrot.lane.b32.xlu0 %v648, 96
      %v1445 = vpop.permute.xlu0 %1444
      %1446 = vrot.lane.b32.xlu0 %v649, 96
      %v1447 = vpop.permute.xlu0 %1446
      %1448 = vrot.lane.b32.xlu0 %v650, 96
      %v1449 = vpop.permute.xlu0 %1448
      %1450 = vrot.lane.b32.xlu0 %v651, 96
      %v1451 = vpop.permute.xlu0 %1450
      %1516 = vrot.lane.b32.xlu0 %v652, 112
      %v1517 = vpop.permute.xlu0 %1516
      %1518 = vrot.lane.b32.xlu0 %v653, 112
      %v1519 = vpop.permute.xlu0 %1518
      %1520 = vrot.lane.b32.xlu0 %v654, 112
      %v1521 = vpop.permute.xlu0 %1520
      %1522 = vrot.lane.b32.xlu0 %v655, 112
      %v1523 = vpop.permute.xlu0 %1522
      %1524 = vrot.lane.b32.xlu0 %v656, 112
      %v1525 = vpop.permute.xlu0 %1524
      %1526 = vrot.lane.b32.xlu0 %v657, 112
      %v1527 = vpop.permute.xlu0 %1526
      %1528 = vrot.lane.b32.xlu0 %v658, 112
      %v1529 = vpop.permute.xlu0 %1528
      %1530 = vrot.lane.b32.xlu0 %v659, 112
      %v1531 = vpop.permute.xlu0 %1530
      %1532 = vrot.lane.b32.xlu0 %v660, 112
      %v1533 = vpop.permute.xlu0 %1532
      %1534 = vrot.lane.b32.xlu0 %v661, 112
      %v1535 = vpop.permute.xlu0 %1534
      %1536 = vrot.lane.b32.xlu0 %v662, 112
      %v1537 = vpop.permute.xlu0 %1536
      %1538 = vrot.lane.b32.xlu0 %v663, 112
      %v1539 = vpop.permute.xlu0 %1538
      %1540 = vrot.lane.b32.xlu0 %v664, 112
      %v1541 = vpop.permute.xlu0 %1540
      %1542 = vrot.lane.b32.xlu0 %v665, 112
      %v1543 = vpop.permute.xlu0 %1542
      %1544 = vrot.lane.b32.xlu0 %v666, 112
      %v1545 = vpop.permute.xlu0 %1544
      %1546 = vrot.lane.b32.xlu0 %v667, 112
      %v1547 = vpop.permute.xlu0 %1546
      %1548 = vrot.lane.b32.xlu0 %v668, 112
      %v1549 = vpop.permute.xlu0 %1548
      %1550 = vrot.lane.b32.xlu0 %v669, 112
      %v1551 = vpop.permute.xlu0 %1550
      %1552 = vrot.lane.b32.xlu0 %v670, 112
      %v1553 = vpop.permute.xlu0 %1552
      %1554 = vrot.lane.b32.xlu0 %v671, 112
      %v1555 = vpop.permute.xlu0 %1554
      %1556 = vrot.lane.b32.xlu0 %v672, 112
      %v1557 = vpop.permute.xlu0 %1556
      %1558 = vrot.lane.b32.xlu0 %v673, 112
      %v1559 = vpop.permute.xlu0 %1558
      %1560 = vrot.lane.b32.xlu0 %v674, 112
      %v1561 = vpop.permute.xlu0 %1560
      %1562 = vrot.lane.b32.xlu0 %v675, 112
      %v1563 = vpop.permute.xlu0 %1562
      %1564 = vrot.lane.b32.xlu0 %v676, 112
      %v1565 = vpop.permute.xlu0 %1564
      %1566 = vrot.lane.b32.xlu0 %v677, 112
      %v1567 = vpop.permute.xlu0 %1566
      %1568 = vrot.lane.b32.xlu0 %v678, 112
      %v1569 = vpop.permute.xlu0 %1568
      %1570 = vrot.lane.b32.xlu0 %v679, 112
      %v1571 = vpop.permute.xlu0 %1570
      %1572 = vrot.lane.b32.xlu0 %v680, 112
      %v1573 = vpop.permute.xlu0 %1572
      %1574 = vrot.lane.b32.xlu0 %v681, 112
      %v1575 = vpop.permute.xlu0 %1574
      %1576 = vrot.lane.b32.xlu0 %v682, 112
      %v1577 = vpop.permute.xlu0 %1576
      %1578 = vrot.lane.b32.xlu0 %v683, 112
      %v1579 = vpop.permute.xlu0 %1578
      %v1612 = vsel %vm306, %v427, %v749
      %v1613 = vsel %vm306, %v428, %v751
      %v1614 = vsel %vm306, %v429, %v753
      %v1615 = vsel %vm306, %v430, %v755
      %v1616 = vsel %vm306, %v431, %v757
      %v1617 = vsel %vm306, %v432, %v759
      %v1618 = vsel %vm306, %v433, %v761
      %v1619 = vsel %vm306, %v434, %v763
      %v1620 = vsel %vm306, %v435, %v765
      %v1621 = vsel %vm306, %v436, %v767
      %v1622 = vsel %vm306, %v437, %v769
      %v1623 = vsel %vm306, %v438, %v771
      %v1624 = vsel %vm306, %v439, %v773
      %v1625 = vsel %vm306, %v440, %v775
      %v1626 = vsel %vm306, %v441, %v777
      %v1627 = vsel %vm306, %v442, %v779
      %v1628 = vsel %vm306, %v443, %v781
      %v1629 = vsel %vm306, %v444, %v783
      %v1630 = vsel %vm306, %v445, %v785
      %v1631 = vsel %vm306, %v446, %v787
      %v1632 = vsel %vm306, %v447, %v789
      %v1633 = vsel %vm306, %v448, %v791
      %v1634 = vsel %vm306, %v449, %v793
      %v1635 = vsel %vm306, %v450, %v795
      %v1636 = vsel %vm306, %v451, %v797
      %v1637 = vsel %vm306, %v452, %v799
      %v1638 = vsel %vm306, %v453, %v801
      %v1639 = vsel %vm306, %v454, %v803
      %v1640 = vsel %vm306, %v455, %v805
      %v1641 = vsel %vm306, %v456, %v807
      %v1642 = vsel %vm306, %v457, %v809
      %v1643 = vsel %vm306, %v458, %v811
      %vm1644 = vcmask 261120
      %v1645 = vsel %vm1644, %v1612, %v877
      %v1646 = vsel %vm1644, %v1613, %v879
      %v1647 = vsel %vm1644, %v1614, %v881
      %v1648 = vsel %vm1644, %v1615, %v883
      %v1649 = vsel %vm1644, %v1616, %v885
      %v1650 = vsel %vm1644, %v1617, %v887
      %v1651 = vsel %vm1644, %v1618, %v889
      %v1652 = vsel %vm1644, %v1619, %v891
      %v1653 = vsel %vm1644, %v1620, %v893
      %v1654 = vsel %vm1644, %v1621, %v895
      %v1655 = vsel %vm1644, %v1622, %v897
      %v1656 = vsel %vm1644, %v1623, %v899
      %v1657 = vsel %vm1644, %v1624, %v901
      %v1658 = vsel %vm1644, %v1625, %v903
      %v1659 = vsel %vm1644, %v1626, %v905
      %v1660 = vsel %vm1644, %v1627, %v907
      %v1661 = vsel %vm1644, %v1628, %v909
      %v1662 = vsel %vm1644, %v1629, %v911
      %v1663 = vsel %vm1644, %v1630, %v913
      %v1664 = vsel %vm1644, %v1631, %v915
      %v1665 = vsel %vm1644, %v1632, %v917
      %v1666 = vsel %vm1644, %v1633, %v919
      %v1667 = vsel %vm1644, %v1634, %v921
      %v1668 = vsel %vm1644, %v1635, %v923
      %v1669 = vsel %vm1644, %v1636, %v925
      %v1670 = vsel %vm1644, %v1637, %v927
      %v1671 = vsel %vm1644, %v1638, %v929
      %v1672 = vsel %vm1644, %v1639, %v931
      %v1673 = vsel %vm1644, %v1640, %v933
      %v1674 = vsel %vm1644, %v1641, %v935
      %v1675 = vsel %vm1644, %v1642, %v937
      %v1676 = vsel %vm1644, %v1643, %v939
      %vm1677 = vcmask 392192
      %v1678 = vsel %vm1677, %v1645, %v1005
      %v1679 = vsel %vm1677, %v1646, %v1007
      %v1680 = vsel %vm1677, %v1647, %v1009
      %v1681 = vsel %vm1677, %v1648, %v1011
      %v1682 = vsel %vm1677, %v1649, %v1013
      %v1683 = vsel %vm1677, %v1650, %v1015
      %v1684 = vsel %vm1677, %v1651, %v1017
      %v1685 = vsel %vm1677, %v1652, %v1019
      %v1686 = vsel %vm1677, %v1653, %v1021
      %v1687 = vsel %vm1677, %v1654, %v1023
      %v1688 = vsel %vm1677, %v1655, %v1025
      %v1689 = vsel %vm1677, %v1656, %v1027
      %v1690 = vsel %vm1677, %v1657, %v1029
      %v1691 = vsel %vm1677, %v1658, %v1031
      %v1692 = vsel %vm1677, %v1659, %v1033
      %v1693 = vsel %vm1677, %v1660, %v1035
      %v1694 = vsel %vm1677, %v1661, %v1037
      %v1695 = vsel %vm1677, %v1662, %v1039
      %v1696 = vsel %vm1677, %v1663, %v1041
      %v1697 = vsel %vm1677, %v1664, %v1043
      %v1698 = vsel %vm1677, %v1665, %v1045
      %v1699 = vsel %vm1677, %v1666, %v1047
      %v1700 = vsel %vm1677, %v1667, %v1049
      %v1701 = vsel %vm1677, %v1668, %v1051
      %v1702 = vsel %vm1677, %v1669, %v1053
      %v1703 = vsel %vm1677, %v1670, %v1055
      %v1704 = vsel %vm1677, %v1671, %v1057
      %v1705 = vsel %vm1677, %v1672, %v1059
      %v1706 = vsel %vm1677, %v1673, %v1061
      %v1707 = vsel %vm1677, %v1674, %v1063
      %v1708 = vsel %vm1677, %v1675, %v1065
      %v1709 = vsel %vm1677, %v1676, %v1067
      %vm1710 = vcmask 523264
      %v1711 = vsel %vm1710, %v1678, %v1133
      %v1712 = vsel %vm1710, %v1679, %v1135
      %v1713 = vsel %vm1710, %v1680, %v1137
      %v1714 = vsel %vm1710, %v1681, %v1139
      %v1715 = vsel %vm1710, %v1682, %v1141
      %v1716 = vsel %vm1710, %v1683, %v1143
      %v1717 = vsel %vm1710, %v1684, %v1145
      %v1718 = vsel %vm1710, %v1685, %v1147
      %v1719 = vsel %vm1710, %v1686, %v1149
      %v1720 = vsel %vm1710, %v1687, %v1151
      %v1721 = vsel %vm1710, %v1688, %v1153
      %v1722 = vsel %vm1710, %v1689, %v1155
      %v1723 = vsel %vm1710, %v1690, %v1157
      %v1724 = vsel %vm1710, %v1691, %v1159
      %v1725 = vsel %vm1710, %v1692, %v1161
      %v1726 = vsel %vm1710, %v1693, %v1163
      %v1727 = vsel %vm1710, %v1694, %v1165
      %v1728 = vsel %vm1710, %v1695, %v1167
      %v1729 = vsel %vm1710, %v1696, %v1169
      %v1730 = vsel %vm1710, %v1697, %v1171
      %v1731 = vsel %vm1710, %v1698, %v1173
      %v1732 = vsel %vm1710, %v1699, %v1175
      %v1733 = vsel %vm1710, %v1700, %v1177
      %v1734 = vsel %vm1710, %v1701, %v1179
      %v1735 = vsel %vm1710, %v1702, %v1181
      %v1736 = vsel %vm1710, %v1703, %v1183
      %v1737 = vsel %vm1710, %v1704, %v1185
      %v1738 = vsel %vm1710, %v1705, %v1187
      %v1739 = vsel %vm1710, %v1706, %v1189
      %v1740 = vsel %vm1710, %v1707, %v1191
      %v1741 = vsel %vm1710, %v1708, %v1193
      %v1742 = vsel %vm1710, %v1709, %v1195
      %vm1743 = vcmask 654336
      %v1744 = vsel %vm1743, %v1711, %v1261
      %v1745 = vsel %vm1743, %v1712, %v1263
      %v1746 = vsel %vm1743, %v1713, %v1265
      %v1747 = vsel %vm1743, %v1714, %v1267
      %v1748 = vsel %vm1743, %v1715, %v1269
      %v1749 = vsel %vm1743, %v1716, %v1271
      %v1750 = vsel %vm1743, %v1717, %v1273
      %v1751 = vsel %vm1743, %v1718, %v1275
      %v1752 = vsel %vm1743, %v1719, %v1277
      %v1753 = vsel %vm1743, %v1720, %v1279
      %v1754 = vsel %vm1743, %v1721, %v1281
      %v1755 = vsel %vm1743, %v1722, %v1283
      %v1756 = vsel %vm1743, %v1723, %v1285
      %v1757 = vsel %vm1743, %v1724, %v1287
      %v1758 = vsel %vm1743, %v1725, %v1289
      %v1759 = vsel %vm1743, %v1726, %v1291
      %v1760 = vsel %vm1743, %v1727, %v1293
      %v1761 = vsel %vm1743, %v1728, %v1295
      %v1762 = vsel %vm1743, %v1729, %v1297
      %v1763 = vsel %vm1743, %v1730, %v1299
      %v1764 = vsel %vm1743, %v1731, %v1301
      %v1765 = vsel %vm1743, %v1732, %v1303
      %v1766 = vsel %vm1743, %v1733, %v1305
      %v1767 = vsel %vm1743, %v1734, %v1307
      %v1768 = vsel %vm1743, %v1735, %v1309
      %v1769 = vsel %vm1743, %v1736, %v1311
      %v1770 = vsel %vm1743, %v1737, %v1313
      %v1771 = vsel %vm1743, %v1738, %v1315
      %v1772 = vsel %vm1743, %v1739, %v1317
      %v1773 = vsel %vm1743, %v1740, %v1319
      %v1774 = vsel %vm1743, %v1741, %v1321
      %v1775 = vsel %vm1743, %v1742, %v1323
      %vm1776 = vcmask 785408
      %v1777 = vsel %vm1776, %v1744, %v1389
      %v1778 = vsel %vm1776, %v1745, %v1391
      %v1779 = vsel %vm1776, %v1746, %v1393
      %v1780 = vsel %vm1776, %v1747, %v1395
      %v1781 = vsel %vm1776, %v1748, %v1397
      %v1782 = vsel %vm1776, %v1749, %v1399
      %v1783 = vsel %vm1776, %v1750, %v1401
      %v1784 = vsel %vm1776, %v1751, %v1403
      %v1785 = vsel %vm1776, %v1752, %v1405
      %v1786 = vsel %vm1776, %v1753, %v1407
      %v1787 = vsel %vm1776, %v1754, %v1409
      %v1788 = vsel %vm1776, %v1755, %v1411
      %v1789 = vsel %vm1776, %v1756, %v1413
      %v1790 = vsel %vm1776, %v1757, %v1415
      %v1791 = vsel %vm1776, %v1758, %v1417
      %v1792 = vsel %vm1776, %v1759, %v1419
      %v1793 = vsel %vm1776, %v1760, %v1421
      %v1794 = vsel %vm1776, %v1761, %v1423
      %v1795 = vsel %vm1776, %v1762, %v1425
      %v1796 = vsel %vm1776, %v1763, %v1427
      %v1797 = vsel %vm1776, %v1764, %v1429
      %v1798 = vsel %vm1776, %v1765, %v1431
      %v1799 = vsel %vm1776, %v1766, %v1433
      %v1800 = vsel %vm1776, %v1767, %v1435
      %v1801 = vsel %vm1776, %v1768, %v1437
      %v1802 = vsel %vm1776, %v1769, %v1439
      %v1803 = vsel %vm1776, %v1770, %v1441
      %v1804 = vsel %vm1776, %v1771, %v1443
      %v1805 = vsel %vm1776, %v1772, %v1445
      %v1806 = vsel %vm1776, %v1773, %v1447
      %v1807 = vsel %vm1776, %v1774, %v1449
      %v1808 = vsel %vm1776, %v1775, %v1451
      %vm1809 = vcmask 916480
      %v1810 = vsel %vm1809, %v1777, %v1517
      %v1811 = vsel %vm1809, %v1778, %v1519
      %v1812 = vsel %vm1809, %v1779, %v1521
      %v1813 = vsel %vm1809, %v1780, %v1523
      %v1814 = vsel %vm1809, %v1781, %v1525
      %v1815 = vsel %vm1809, %v1782, %v1527
      %v1816 = vsel %vm1809, %v1783, %v1529
      %v1817 = vsel %vm1809, %v1784, %v1531
      %v1818 = vsel %vm1809, %v1785, %v1533
      %v1819 = vsel %vm1809, %v1786, %v1535
      %v1820 = vsel %vm1809, %v1787, %v1537
      %v1821 = vsel %vm1809, %v1788, %v1539
      %v1822 = vsel %vm1809, %v1789, %v1541
      %v1823 = vsel %vm1809, %v1790, %v1543
      %v1824 = vsel %vm1809, %v1791, %v1545
      %v1825 = vsel %vm1809, %v1792, %v1547
      %v1826 = vsel %vm1809, %v1793, %v1549
      %v1827 = vsel %vm1809, %v1794, %v1551
      %v1828 = vsel %vm1809, %v1795, %v1553
      %v1829 = vsel %vm1809, %v1796, %v1555
      %v1830 = vsel %vm1809, %v1797, %v1557
      %v1831 = vsel %vm1809, %v1798, %v1559
      %v1832 = vsel %vm1809, %v1799, %v1561
      %v1833 = vsel %vm1809, %v1800, %v1563
      %v1834 = vsel %vm1809, %v1801, %v1565
      %v1835 = vsel %vm1809, %v1802, %v1567
      %v1836 = vsel %vm1809, %v1803, %v1569
      %v1837 = vsel %vm1809, %v1804, %v1571
      %v1838 = vsel %vm1809, %v1805, %v1573
      %v1839 = vsel %vm1809, %v1806, %v1575
      %v1840 = vsel %vm1809, %v1807, %v1577
      %v1841 = vsel %vm1809, %v1808, %v1579
      %v1842 = vld [vmem:[%s1] sm:$0xff]
      %v1843 = vld [vmem:[%s1 + $0x8] sm:$0xff]
      %v1844 = vld [vmem:[%s1 + $0x10] sm:$0xff]
      %v1845 = vld [vmem:[%s1 + $0x18] sm:$0xff]
      %v1846 = vld [vmem:[%s1 + $0x20] sm:$0xff]
      %v1847 = vld [vmem:[%s1 + $0x28] sm:$0xff]
      %v1848 = vld [vmem:[%s1 + $0x30] sm:$0xff]
      %v1849 = vld [vmem:[%s1 + $0x38] sm:$0xff]
      %v1850 = vld [vmem:[%s1 + $0x40] sm:$0xff]
      %v1851 = vld [vmem:[%s1 + $0x48] sm:$0xff]
      %v1852 = vld [vmem:[%s1 + $0x50] sm:$0xff]
      %v1853 = vld [vmem:[%s1 + $0x58] sm:$0xff]
      %v1854 = vld [vmem:[%s1 + $0x60] sm:$0xff]
      %v1855 = vld [vmem:[%s1 + $0x68] sm:$0xff]
      %v1856 = vld [vmem:[%s1 + $0x70] sm:$0xff]
      %v1857 = vld [vmem:[%s1 + $0x78] sm:$0xff]
      %v1858 = vld [vmem:[%s1 + $0x80] sm:$0xff]
      %v1859 = vld [vmem:[%s1 + $0x88] sm:$0xff]
      %v1860 = vld [vmem:[%s2] sm:$0x1]
      %v1862 = vlaneseq
      %v1863 = vshrl.u32 %v1862, 7
      %v1864 = vsub.s32 0, %v1863
      %v1865 = vrot.slane %v1860, %v1864
      %v1868 = vsel %vm306, %v684, 0
      %v1871 = vsel %vm306, %v685, 0
      %v1874 = vsel %vm306, %v686, 0
      %v1877 = vsel %vm306, %v687, 0
      %v1880 = vsel %vm306, %v688, 0
      %v1883 = vsel %vm306, %v689, 0
      %v1886 = vsel %vm306, %v690, 0
      %v1889 = vsel %vm306, %v691, 0
      %v1892 = vsel %vm306, %v692, 0
      %v1895 = vsel %vm306, %v693, 0
      %v1898 = vsel %vm306, %v694, 0
      %v1901 = vsel %vm306, %v695, 0
      %v1904 = vsel %vm306, %v696, 0
      %v1907 = vsel %vm306, %v697, 0
      %v1910 = vsel %vm306, %v698, 0
      %v1913 = vsel %vm306, %v699, 0
      %v1916 = vsel %vm306, %v700, 0
      %v1919 = vsel %vm306, %v701, 0
      %v1922 = vsel %vm306, %v702, 0
      %v1925 = vsel %vm306, %v703, 0
      %v1928 = vsel %vm306, %v704, 0
      %v1931 = vsel %vm306, %v705, 0
      %v1934 = vsel %vm306, %v706, 0
      %v1937 = vsel %vm306, %v707, 0
      %v1940 = vsel %vm306, %v708, 0
      %v1943 = vsel %vm306, %v709, 0
      %v1946 = vsel %vm306, %v710, 0
      %v1949 = vsel %vm306, %v711, 0
      %v1952 = vsel %vm306, %v712, 0
      %v1955 = vsel %vm306, %v713, 0
      %v1958 = vsel %vm306, %v714, 0
      %v1961 = vsel %vm306, %v715, 0
      %1963 = vmatprep.subr.mxu0 0.0
      %1964 = vmatpush1.msra.mxu0 %v1842
      %1965 = vmatprep.subr.mxu0 0.0
      %1966 = vmatpush1.msra.mxu0 %v1843
      %1967 = vmatprep.subr.mxu0 0.0
      %1968 = vmatpush1.msra.mxu0 %v1844
      %1969 = vmatprep.subr.mxu0 0.0
      %1970 = vmatpush1.msra.mxu0 %v1845
      %1971 = vmatprep.subr.mxu0 0.0
      %1972 = vmatpush1.msra.mxu0 %v1846
      %1973 = vmatprep.subr.mxu0 0.0
      %1974 = vmatpush1.msra.mxu0 %v1847
      %1975 = vmatprep.subr.mxu0 0.0
      %1976 = vmatpush1.msra.mxu0 %v1848
      %1977 = vmatprep.subr.mxu0 0.0
      %1978 = vmatpush1.msra.mxu0 %v1849
      %1979 = vmatprep.subr.mxu0 0.0
      %1980 = vmatpush1.msra.mxu0 %v1850
      %1981 = vmatprep.subr.mxu0 0.0
      %1982 = vmatpush1.msra.mxu0 %v1851
      %1983 = vmatprep.subr.mxu0 0.0
      %1984 = vmatpush1.msra.mxu0 %v1852
      %1985 = vmatprep.subr.mxu0 0.0
      %1986 = vmatpush1.msra.mxu0 %v1853
      %1987 = vmatprep.subr.mxu0 0.0
      %1988 = vmatpush1.msra.mxu0 %v1854
      %1989 = vmatprep.subr.mxu0 0.0
      %1990 = vmatpush1.msra.mxu0 %v1855
      %1991 = vmatprep.subr.mxu0 0.0
      %1992 = vmatpush1.msra.mxu0 %v1856
      %1993 = vmatprep.subr.mxu0 0.0
      %1994 = vmatpush1.msra.mxu0 %v1857
      %1995 = vmatprep.subr.mxu0 0.0
      %1996 = vmatpush1.msra.mxu0 %v1858
      %1997 = vmatprep.subr.mxu0 0.0
      %1998 = vmatpush1.msra.mxu0 %v1859
      %1999 = vmatprep.subr.mxu0 0.0
      %2000 = vmatpush1.msra.mxu0 0.0
      %2001 = vmatprep.subr.mxu0 0.0
      %2002 = vmatpush1.msra.mxu0 0.0
      %2003 = vmatprep.subr.mxu0 0.0
      %2004 = vmatpush1.msra.mxu0 0.0
      %2005 = vmatprep.subr.mxu0 0.0
      %2006 = vmatpush1.msra.mxu0 0.0
      %2007 = vmatprep.subr.mxu0 0.0
      %2008 = vmatpush1.msra.mxu0 0.0
      %2009 = vmatprep.subr.mxu0 0.0
      %2010 = vmatpush1.msra.mxu0 0.0
      %2011 = vmatprep.subr.mxu0 0.0
      %2012 = vmatpush1.msra.mxu0 0.0
      %2013 = vmatprep.subr.mxu0 0.0
      %2014 = vmatpush1.msra.mxu0 0.0
      %2015 = vmatprep.subr.mxu0 0.0
      %2016 = vmatpush1.msra.mxu0 0.0
      %2017 = vmatprep.subr.mxu0 0.0
      %2018 = vmatpush1.msra.mxu0 0.0
      %2019 = vmatprep.subr.mxu0 0.0
      %2020 = vmatpush1.msra.mxu0 0.0
      %2021 = vmatprep.subr.mxu0 0.0
      %2022 = vmatpush1.msra.mxu0 0.0
      %2023 = vmatprep.subr.mxu0 0.0
      %2024 = vmatpush1.msra.mxu0 0.0
      %2025 = vmatprep.subr.mxu0 0.0
      %2026 = vmatpush1.msra.mxu0 0.0
      %2027 = vmatprep.mubr.f32.mxu0 %v1868
      %2028 = vmatmul.mubr.f32.gmra.mrb[0].mxu0 %v1810
      %v2029 = vpop.f32.mrb[0].mxu0
      %v2030 = vadd.f32 %v1865, %v2029
      %v2031 = vpop.f32.mrb[0].mxu0
      %2032 = vmatprep.mubr.f32.mxu0 %v1871
      %2033 = vmatmul.mubr.f32.gmra.mrb[0].mxu0 %v1811
      %v2034 = vpop.f32.mrb[0].mxu0
      %v2035 = vadd.f32 %v1865, %v2034
      %v2036 = vpop.f32.mrb[0].mxu0
      %2037 = vmatprep.mubr.f32.mxu0 %v1874
      %2038 = vmatmul.mubr.f32.gmra.mrb[0].mxu0 %v1812
      %v2039 = vpop.f32.mrb[0].mxu0
      %v2040 = vadd.f32 %v1865, %v2039
      %v2041 = vpop.f32.mrb[0].mxu0
      %2042 = vmatprep.mubr.f32.mxu0 %v1877
      %2043 = vmatmul.mubr.f32.gmra.mrb[0].mxu0 %v1813
      %v2044 = vpop.f32.mrb[0].mxu0
      %v2045 = vadd.f32 %v1865, %v2044
      %v2046 = vpop.f32.mrb[0].mxu0
      %2047 = vmatprep.mubr.f32.mxu0 %v1880
      %2048 = vmatmul.mubr.f32.gmra.mrb[0].mxu0 %v1814
      %v2049 = vpop.f32.mrb[0].mxu0
      %v2050 = vadd.f32 %v1865, %v2049
      %v2051 = vpop.f32.mrb[0].mxu0
      %2052 = vmatprep.mubr.f32.mxu0 %v1883
      %2053 = vmatmul.mubr.f32.gmra.mrb[0].mxu0 %v1815
      %v2054 = vpop.f32.mrb[0].mxu0
      %v2055 = vadd.f32 %v1865, %v2054
      %v2056 = vpop.f32.mrb[0].mxu0
      %2057 = vmatprep.mubr.f32.mxu0 %v1886
      %2058 = vmatmul.mubr.f32.gmra.mrb[0].mxu0 %v1816
      %v2059 = vpop.f32.mrb[0].mxu0
      %v2060 = vadd.f32 %v1865, %v2059
      %v2061 = vpop.f32.mrb[0].mxu0
      %2062 = vmatprep.mubr.f32.mxu0 %v1889
      %2063 = vmatmul.mubr.f32.gmra.mrb[0].mxu0 %v1817
      %v2064 = vpop.f32.mrb[0].mxu0
      %v2065 = vadd.f32 %v1865, %v2064
      %v2066 = vpop.f32.mrb[0].mxu0
      %2067 = vmatprep.mubr.f32.mxu0 %v1892
      %2068 = vmatmul.mubr.f32.gmra.mrb[0].mxu0 %v1818
      %v2069 = vpop.f32.mrb[0].mxu0
      %v2070 = vadd.f32 %v1865, %v2069
      %v2071 = vpop.f32.mrb[0].mxu0
      %2072 = vmatprep.mubr.f32.mxu0 %v1895
      %2073 = vmatmul.mubr.f32.gmra.mrb[0].mxu0 %v1819
      %v2074 = vpop.f32.mrb[0].mxu0
      %v2075 = vadd.f32 %v1865, %v2074
      %v2076 = vpop.f32.mrb[0].mxu0
      %2077 = vmatprep.mubr.f32.mxu0 %v1898
      %2078 = vmatmul.mubr.f32.gmra.mrb[0].mxu0 %v1820
      %v2079 = vpop.f32.mrb[0].mxu0
      %v2080 = vadd.f32 %v1865, %v2079
      %v2081 = vpop.f32.mrb[0].mxu0
      %2082 = vmatprep.mubr.f32.mxu0 %v1901
      %2083 = vmatmul.mubr.f32.gmra.mrb[0].mxu0 %v1821
      %v2084 = vpop.f32.mrb[0].mxu0
      %v2085 = vadd.f32 %v1865, %v2084
      %v2086 = vpop.f32.mrb[0].mxu0
      %2087 = vmatprep.mubr.f32.mxu0 %v1904
      %2088 = vmatmul.mubr.f32.gmra.mrb[0].mxu0 %v1822
      %v2089 = vpop.f32.mrb[0].mxu0
      %v2090 = vadd.f32 %v1865, %v2089
      %v2091 = vpop.f32.mrb[0].mxu0
      %2092 = vmatprep.mubr.f32.mxu0 %v1907
      %2093 = vmatmul.mubr.f32.gmra.mrb[0].mxu0 %v1823
      %v2094 = vpop.f32.mrb[0].mxu0
      %v2095 = vadd.f32 %v1865, %v2094
      %v2096 = vpop.f32.mrb[0].mxu0
      %2097 = vmatprep.mubr.f32.mxu0 %v1910
      %2098 = vmatmul.mubr.f32.gmra.mrb[0].mxu0 %v1824
      %v2099 = vpop.f32.mrb[0].mxu0
      %v2100 = vadd.f32 %v1865, %v2099
      %v2101 = vpop.f32.mrb[0].mxu0
      %2102 = vmatprep.mubr.f32.mxu0 %v1913
      %2103 = vmatmul.mubr.f32.gmra.mrb[0].mxu0 %v1825
      %v2104 = vpop.f32.mrb[0].mxu0
      %v2105 = vadd.f32 %v1865, %v2104
      %v2106 = vpop.f32.mrb[0].mxu0
      %2107 = vmatprep.mubr.f32.mxu0 %v1916
      %2108 = vmatmul.mubr.f32.gmra.mrb[0].mxu0 %v1826
      %v2109 = vpop.f32.mrb[0].mxu0
      %v2110 = vadd.f32 %v1865, %v2109
      %v2111 = vpop.f32.mrb[0].mxu0
      %2112 = vmatprep.mubr.f32.mxu0 %v1919
      %2113 = vmatmul.mubr.f32.gmra.mrb[0].mxu0 %v1827
      %v2114 = vpop.f32.mrb[0].mxu0
      %v2115 = vadd.f32 %v1865, %v2114
      %v2116 = vpop.f32.mrb[0].mxu0
      %2117 = vmatprep.mubr.f32.mxu0 %v1922
      %2118 = vmatmul.mubr.f32.gmra.mrb[0].mxu0 %v1828
      %v2119 = vpop.f32.mrb[0].mxu0
      %v2120 = vadd.f32 %v1865, %v2119
      %v2121 = vpop.f32.mrb[0].mxu0
      %2122 = vmatprep.mubr.f32.mxu0 %v1925
      %2123 = vmatmul.mubr.f32.gmra.mrb[0].mxu0 %v1829
      %v2124 = vpop.f32.mrb[0].mxu0
      %v2125 = vadd.f32 %v1865, %v2124
      %v2126 = vpop.f32.mrb[0].mxu0
      %2127 = vmatprep.mubr.f32.mxu0 %v1928
      %2128 = vmatmul.mubr.f32.gmra.mrb[0].mxu0 %v1830
      %v2129 = vpop.f32.mrb[0].mxu0
      %v2130 = vadd.f32 %v1865, %v2129
      %v2131 = vpop.f32.mrb[0].mxu0
      %2132 = vmatprep.mubr.f32.mxu0 %v1931
      %2133 = vmatmul.mubr.f32.gmra.mrb[0].mxu0 %v1831
      %v2134 = vpop.f32.mrb[0].mxu0
      %v2135 = vadd.f32 %v1865, %v2134
      %v2136 = vpop.f32.mrb[0].mxu0
      %2137 = vmatprep.mubr.f32.mxu0 %v1934
      %2138 = vmatmul.mubr.f32.gmra.mrb[0].mxu0 %v1832
      %v2139 = vpop.f32.mrb[0].mxu0
      %v2140 = vadd.f32 %v1865, %v2139
      %v2141 = vpop.f32.mrb[0].mxu0
      %2142 = vmatprep.mubr.f32.mxu0 %v1937
      %2143 = vmatmul.mubr.f32.gmra.mrb[0].mxu0 %v1833
      %v2144 = vpop.f32.mrb[0].mxu0
      %v2145 = vadd.f32 %v1865, %v2144
      %v2146 = vpop.f32.mrb[0].mxu0
      %2147 = vmatprep.mubr.f32.mxu0 %v1940
      %2148 = vmatmul.mubr.f32.gmra.mrb[0].mxu0 %v1834
      %v2149 = vpop.f32.mrb[0].mxu0
      %v2150 = vadd.f32 %v1865, %v2149
      %v2151 = vpop.f32.mrb[0].mxu0
      %2152 = vmatprep.mubr.f32.mxu0 %v1943
      %2153 = vmatmul.mubr.f32.gmra.mrb[0].mxu0 %v1835
      %v2154 = vpop.f32.mrb[0].mxu0
      %v2155 = vadd.f32 %v1865, %v2154
      %v2156 = vpop.f32.mrb[0].mxu0
      %2157 = vmatprep.mubr.f32.mxu0 %v1946
      %2158 = vmatmul.mubr.f32.gmra.mrb[0].mxu0 %v1836
      %v2159 = vpop.f32.mrb[0].mxu0
      %v2160 = vadd.f32 %v1865, %v2159
      %v2161 = vpop.f32.mrb[0].mxu0
      %2162 = vmatprep.mubr.f32.mxu0 %v1949
      %2163 = vmatmul.mubr.f32.gmra.mrb[0].mxu0 %v1837
      %v2164 = vpop.f32.mrb[0].mxu0
      %v2165 = vadd.f32 %v1865, %v2164
      %v2166 = vpop.f32.mrb[0].mxu0
      %2167 = vmatprep.mubr.f32.mxu0 %v1952
      %2168 = vmatmul.mubr.f32.gmra.mrb[0].mxu0 %v1838
      %v2169 = vpop.f32.mrb[0].mxu0
      %v2170 = vadd.f32 %v1865, %v2169
      %v2171 = vpop.f32.mrb[0].mxu0
      %2172 = vmatprep.mubr.f32.mxu0 %v1955
      %2173 = vmatmul.mubr.f32.gmra.mrb[0].mxu0 %v1839
      %v2174 = vpop.f32.mrb[0].mxu0
      %v2175 = vadd.f32 %v1865, %v2174
      %v2176 = vpop.f32.mrb[0].mxu0
      %2177 = vmatprep.mubr.f32.mxu0 %v1958
      %2178 = vmatmul.mubr.f32.gmra.mrb[0].mxu0 %v1840
      %v2179 = vpop.f32.mrb[0].mxu0
      %v2180 = vadd.f32 %v1865, %v2179
      %v2181 = vpop.f32.mrb[0].mxu0
      %2182 = vmatprep.mubr.f32.mxu0 %v1961
      %2183 = vmatmul.mubr.f32.gmra.mrb[0].mxu0 %v1841
      %v2184 = vpop.f32.mrb[0].mxu0
      %v2185 = vadd.f32 %v1865, %v2184
      %v2186 = vpop.f32.mrb[0].mxu0
      %2187 = vdwg.mxu0
      %v2188 = vmax.f32 %v2030, 0.0
      %v2189 = vmax.f32 %v2035, 0.0
      %v2190 = vmax.f32 %v2040, 0.0
      %v2191 = vmax.f32 %v2045, 0.0
      %v2192 = vmax.f32 %v2050, 0.0
      %v2193 = vmax.f32 %v2055, 0.0
      %v2194 = vmax.f32 %v2060, 0.0
      %v2195 = vmax.f32 %v2065, 0.0
      %v2196 = vmax.f32 %v2070, 0.0
      %v2197 = vmax.f32 %v2075, 0.0
      %v2198 = vmax.f32 %v2080, 0.0
      %v2199 = vmax.f32 %v2085, 0.0
      %v2200 = vmax.f32 %v2090, 0.0
      %v2201 = vmax.f32 %v2095, 0.0
      %v2202 = vmax.f32 %v2100, 0.0
      %v2203 = vmax.f32 %v2105, 0.0
      %v2204 = vmax.f32 %v2110, 0.0
      %v2205 = vmax.f32 %v2115, 0.0
      %v2206 = vmax.f32 %v2120, 0.0
      %v2207 = vmax.f32 %v2125, 0.0
      %v2208 = vmax.f32 %v2130, 0.0
      %v2209 = vmax.f32 %v2135, 0.0
      %v2210 = vmax.f32 %v2140, 0.0
      %v2211 = vmax.f32 %v2145, 0.0
      %v2212 = vmax.f32 %v2150, 0.0
      %v2213 = vmax.f32 %v2155, 0.0
      %v2214 = vmax.f32 %v2160, 0.0
      %v2215 = vmax.f32 %v2165, 0.0
      %v2216 = vmax.f32 %v2170, 0.0
      %v2217 = vmax.f32 %v2175, 0.0
      %v2218 = vmax.f32 %v2180, 0.0
      %v2219 = vmax.f32 %v2185, 0.0
      %2252 = vrot.lane.b32.xlu0 %v2188, 112
      %v2253 = vpop.permute.xlu0 %2252
      %2254 = vrot.lane.b32.xlu0 %v2189, 112
      %v2255 = vpop.permute.xlu0 %2254
      %2256 = vrot.lane.b32.xlu0 %v2190, 112
      %v2257 = vpop.permute.xlu0 %2256
      %2258 = vrot.lane.b32.xlu0 %v2191, 112
      %v2259 = vpop.permute.xlu0 %2258
      %2260 = vrot.lane.b32.xlu0 %v2192, 112
      %v2261 = vpop.permute.xlu0 %2260
      %2262 = vrot.lane.b32.xlu0 %v2193, 112
      %v2263 = vpop.permute.xlu0 %2262
      %2264 = vrot.lane.b32.xlu0 %v2194, 112
      %v2265 = vpop.permute.xlu0 %2264
      %2266 = vrot.lane.b32.xlu0 %v2195, 112
      %v2267 = vpop.permute.xlu0 %2266
      %2268 = vrot.lane.b32.xlu0 %v2196, 112
      %v2269 = vpop.permute.xlu0 %2268
      %2270 = vrot.lane.b32.xlu0 %v2197, 112
      %v2271 = vpop.permute.xlu0 %2270
      %2272 = vrot.lane.b32.xlu0 %v2198, 112
      %v2273 = vpop.permute.xlu0 %2272
      %2274 = vrot.lane.b32.xlu0 %v2199, 112
      %v2275 = vpop.permute.xlu0 %2274
      %2276 = vrot.lane.b32.xlu0 %v2200, 112
      %v2277 = vpop.permute.xlu0 %2276
      %2278 = vrot.lane.b32.xlu0 %v2201, 112
      %v2279 = vpop.permute.xlu0 %2278
      %2280 = vrot.lane.b32.xlu0 %v2202, 112
      %v2281 = vpop.permute.xlu0 %2280
      %2282 = vrot.lane.b32.xlu0 %v2203, 112
      %v2283 = vpop.permute.xlu0 %2282
      %2284 = vrot.lane.b32.xlu0 %v2204, 112
      %v2285 = vpop.permute.xlu0 %2284
      %2286 = vrot.lane.b32.xlu0 %v2205, 112
      %v2287 = vpop.permute.xlu0 %2286
      %2288 = vrot.lane.b32.xlu0 %v2206, 112
      %v2289 = vpop.permute.xlu0 %2288
      %2290 = vrot.lane.b32.xlu0 %v2207, 112
      %v2291 = vpop.permute.xlu0 %2290
      %2292 = vrot.lane.b32.xlu0 %v2208, 112
      %v2293 = vpop.permute.xlu0 %2292
      %2294 = vrot.lane.b32.xlu0 %v2209, 112
      %v2295 = vpop.permute.xlu0 %2294
      %2296 = vrot.lane.b32.xlu0 %v2210, 112
      %v2297 = vpop.permute.xlu0 %2296
      %2298 = vrot.lane.b32.xlu0 %v2211, 112
      %v2299 = vpop.permute.xlu0 %2298
      %2300 = vrot.lane.b32.xlu0 %v2212, 112
      %v2301 = vpop.permute.xlu0 %2300
      %2302 = vrot.lane.b32.xlu0 %v2213, 112
      %v2303 = vpop.permute.xlu0 %2302
      %2304 = vrot.lane.b32.xlu0 %v2214, 112
      %v2305 = vpop.permute.xlu0 %2304
      %2306 = vrot.lane.b32.xlu0 %v2215, 112
      %v2307 = vpop.permute.xlu0 %2306
      %2308 = vrot.lane.b32.xlu0 %v2216, 112
      %v2309 = vpop.permute.xlu0 %2308
      %2310 = vrot.lane.b32.xlu0 %v2217, 112
      %v2311 = vpop.permute.xlu0 %2310
      %2312 = vrot.lane.b32.xlu0 %v2218, 112
      %v2313 = vpop.permute.xlu0 %2312
      %2314 = vrot.lane.b32.xlu0 %v2219, 112
      %v2315 = vpop.permute.xlu0 %2314
      %v2348 = vadd.f32 %v2188, %v2253
      %v2349 = vadd.f32 %v2189, %v2255
      %v2350 = vadd.f32 %v2190, %v2257
      %v2351 = vadd.f32 %v2191, %v2259
      %v2352 = vadd.f32 %v2192, %v2261
      %v2353 = vadd.f32 %v2193, %v2263
      %v2354 = vadd.f32 %v2194, %v2265
      %v2355 = vadd.f32 %v2195, %v2267
      %v2356 = vadd.f32 %v2196, %v2269
      %v2357 = vadd.f32 %v2197, %v2271
      %v2358 = vadd.f32 %v2198, %v2273
      %v2359 = vadd.f32 %v2199, %v2275
      %v2360 = vadd.f32 %v2200, %v2277
      %v2361 = vadd.f32 %v2201, %v2279
      %v2362 = vadd.f32 %v2202, %v2281
      %v2363 = vadd.f32 %v2203, %v2283
      %v2364 = vadd.f32 %v2204, %v2285
      %v2365 = vadd.f32 %v2205, %v2287
      %v2366 = vadd.f32 %v2206, %v2289
      %v2367 = vadd.f32 %v2207, %v2291
      %v2368 = vadd.f32 %v2208, %v2293
      %v2369 = vadd.f32 %v2209, %v2295
      %v2370 = vadd.f32 %v2210, %v2297
      %v2371 = vadd.f32 %v2211, %v2299
      %v2372 = vadd.f32 %v2212, %v2301
      %v2373 = vadd.f32 %v2213, %v2303
      %v2374 = vadd.f32 %v2214, %v2305
      %v2375 = vadd.f32 %v2215, %v2307
      %v2376 = vadd.f32 %v2216, %v2309
      %v2377 = vadd.f32 %v2217, %v2311
      %v2378 = vadd.f32 %v2218, %v2313
      %v2379 = vadd.f32 %v2219, %v2315
      %2380 = vst.msk [vmem:[%s394 + $0x1] sm:$0xff] %vm306, %v2348
      %2381 = vst.msk [vmem:[%s394 + $0x9] sm:$0xff] %vm306, %v2349
      %2382 = vst.msk [vmem:[%s394 + $0x19] sm:$0xff] %vm306, %v2350
      %2383 = vst.msk [vmem:[%s394 + $0x21] sm:$0xff] %vm306, %v2351
      %2384 = vst.msk [vmem:[%s394 + $0x31] sm:$0xff] %vm306, %v2352
      %2385 = vst.msk [vmem:[%s394 + $0x39] sm:$0xff] %vm306, %v2353
      %2386 = vst.msk [vmem:[%s394 + $0x49] sm:$0xff] %vm306, %v2354
      %2387 = vst.msk [vmem:[%s394 + $0x51] sm:$0xff] %vm306, %v2355
      %2388 = vst.msk [vmem:[%s394 + $0x61] sm:$0xff] %vm306, %v2356
      %2389 = vst.msk [vmem:[%s394 + $0x69] sm:$0xff] %vm306, %v2357
      %2390 = vst.msk [vmem:[%s394 + $0x79] sm:$0xff] %vm306, %v2358
      %2391 = vst.msk [vmem:[%s394 + $0x81] sm:$0xff] %vm306, %v2359
      %2392 = vst.msk [vmem:[%s394 + $0x91] sm:$0xff] %vm306, %v2360
      %2393 = vst.msk [vmem:[%s394 + $0x99] sm:$0xff] %vm306, %v2361
      %2394 = vst.msk [vmem:[%s394 + $0xa9] sm:$0xff] %vm306, %v2362
      %2395 = vst.msk [vmem:[%s394 + $0xb1] sm:$0xff] %vm306, %v2363
      %2396 = vst.msk [vmem:[%s394 + $0xc1] sm:$0xff] %vm306, %v2364
      %2397 = vst.msk [vmem:[%s394 + $0xc9] sm:$0xff] %vm306, %v2365
      %2398 = vst.msk [vmem:[%s394 + $0xd9] sm:$0xff] %vm306, %v2366
      %2399 = vst.msk [vmem:[%s394 + $0xe1] sm:$0xff] %vm306, %v2367
      %2400 = vst.msk [vmem:[%s394 + $0xf1] sm:$0xff] %vm306, %v2368
      %2401 = vst.msk [vmem:[%s394 + $0xf9] sm:$0xff] %vm306, %v2369
      %2402 = vst.msk [vmem:[%s394 + $0x109] sm:$0xff] %vm306, %v2370
      %2403 = vst.msk [vmem:[%s394 + $0x111] sm:$0xff] %vm306, %v2371
      %2404 = vst.msk [vmem:[%s394 + $0x121] sm:$0xff] %vm306, %v2372
      %2405 = vst.msk [vmem:[%s394 + $0x129] sm:$0xff] %vm306, %v2373
      %2406 = vst.msk [vmem:[%s394 + $0x139] sm:$0xff] %vm306, %v2374
      %2407 = vst.msk [vmem:[%s394 + $0x141] sm:$0xff] %vm306, %v2375
      %2408 = vst.msk [vmem:[%s394 + $0x151] sm:$0xff] %vm306, %v2376
      %2409 = vst.msk [vmem:[%s394 + $0x159] sm:$0xff] %vm306, %v2377
      %2410 = vst.msk [vmem:[%s394 + $0x169] sm:$0xff] %vm306, %v2378
      %2411 = vst.msk [vmem:[%s394 + $0x171] sm:$0xff] %vm306, %v2379
      %v2412 = vld [vmem:[#allocation2] sm:$0xff]
      %v2413 = vld [vmem:[#allocation2 + $0x8] sm:$0xff]
      %v2414 = vld [vmem:[#allocation2 + $0x18] sm:$0xff]
      %v2415 = vld [vmem:[#allocation2 + $0x20] sm:$0xff]
      %v2416 = vld [vmem:[#allocation2 + $0x30] sm:$0xff]
      %v2417 = vld [vmem:[#allocation2 + $0x38] sm:$0xff]
      %v2418 = vld [vmem:[#allocation2 + $0x48] sm:$0xff]
      %v2419 = vld [vmem:[#allocation2 + $0x50] sm:$0xff]
      %v2420 = vld [vmem:[#allocation2 + $0x60] sm:$0xff]
      %v2421 = vld [vmem:[#allocation2 + $0x68] sm:$0xff]
      %v2422 = vld [vmem:[#allocation2 + $0x78] sm:$0xff]
      %v2423 = vld [vmem:[#allocation2 + $0x80] sm:$0xff]
      %v2424 = vld [vmem:[#allocation2 + $0x90] sm:$0xff]
      %v2425 = vld [vmem:[#allocation2 + $0x98] sm:$0xff]
      %v2426 = vld [vmem:[#allocation2 + $0xa8] sm:$0xff]
      %v2427 = vld [vmem:[#allocation2 + $0xb0] sm:$0xff]
      %v2428 = vld [vmem:[#allocation2 + $0xc0] sm:$0xff]
      %v2429 = vld [vmem:[#allocation2 + $0xc8] sm:$0xff]
      %v2430 = vld [vmem:[#allocation2 + $0xd8] sm:$0xff]
      %v2431 = vld [vmem:[#allocation2 + $0xe0] sm:$0xff]
      %v2432 = vld [vmem:[#allocation2 + $0xf0] sm:$0xff]
      %v2433 = vld [vmem:[#allocation2 + $0xf8] sm:$0xff]
      %v2434 = vld [vmem:[#allocation2 + $0x108] sm:$0xff]
      %v2435 = vld [vmem:[#allocation2 + $0x110] sm:$0xff]
      %v2436 = vld [vmem:[#allocation2 + $0x120] sm:$0xff]
      %v2437 = vld [vmem:[#allocation2 + $0x128] sm:$0xff]
      %v2438 = vld [vmem:[#allocation2 + $0x138] sm:$0xff]
      %v2439 = vld [vmem:[#allocation2 + $0x140] sm:$0xff]
      %v2440 = vld [vmem:[#allocation2 + $0x150] sm:$0xff]
      %v2441 = vld [vmem:[#allocation2 + $0x158] sm:$0xff]
      %v2442 = vld [vmem:[#allocation2 + $0x168] sm:$0xff]
      %v2443 = vld [vmem:[#allocation2 + $0x170] sm:$0xff]
      %v2444 = vld [vmem:[#allocation2 + $0x1] sm:$0xff]
      %v2445 = vld [vmem:[#allocation2 + $0x9] sm:$0xff]
      %v2446 = vld [vmem:[#allocation2 + $0x19] sm:$0xff]
      %v2447 = vld [vmem:[#allocation2 + $0x21] sm:$0xff]
      %v2448 = vld [vmem:[#allocation2 + $0x31] sm:$0xff]
      %v2449 = vld [vmem:[#allocation2 + $0x39] sm:$0xff]
      %v2450 = vld [vmem:[#allocation2 + $0x49] sm:$0xff]
      %v2451 = vld [vmem:[#allocation2 + $0x51] sm:$0xff]
      %v2452 = vld [vmem:[#allocation2 + $0x61] sm:$0xff]
      %v2453 = vld [vmem:[#allocation2 + $0x69] sm:$0xff]
      %v2454 = vld [vmem:[#allocation2 + $0x79] sm:$0xff]
      %v2455 = vld [vmem:[#allocation2 + $0x81] sm:$0xff]
      %v2456 = vld [vmem:[#allocation2 + $0x91] sm:$0xff]
      %v2457 = vld [vmem:[#allocation2 + $0x99] sm:$0xff]
      %v2458 = vld [vmem:[#allocation2 + $0xa9] sm:$0xff]
      %v2459 = vld [vmem:[#allocation2 + $0xb1] sm:$0xff]
      %v2460 = vld [vmem:[#allocation2 + $0xc1] sm:$0xff]
      %v2461 = vld [vmem:[#allocation2 + $0xc9] sm:$0xff]
      %v2462 = vld [vmem:[#allocation2 + $0xd9] sm:$0xff]
      %v2463 = vld [vmem:[#allocation2 + $0xe1] sm:$0xff]
      %v2464 = vld [vmem:[#allocation2 + $0xf1] sm:$0xff]
      %v2465 = vld [vmem:[#allocation2 + $0xf9] sm:$0xff]
      %v2466 = vld [vmem:[#allocation2 + $0x109] sm:$0xff]
      %v2467 = vld [vmem:[#allocation2 + $0x111] sm:$0xff]
      %v2468 = vld [vmem:[#allocation2 + $0x121] sm:$0xff]
      %v2469 = vld [vmem:[#allocation2 + $0x129] sm:$0xff]
      %v2470 = vld [vmem:[#allocation2 + $0x139] sm:$0xff]
      %v2471 = vld [vmem:[#allocation2 + $0x141] sm:$0xff]
      %v2472 = vld [vmem:[#allocation2 + $0x151] sm:$0xff]
      %v2473 = vld [vmem:[#allocation2 + $0x159] sm:$0xff]
      %v2474 = vld [vmem:[#allocation2 + $0x169] sm:$0xff]
      %v2475 = vld [vmem:[#allocation2 + $0x171] sm:$0xff]
      %v2476 = vld [vmem:[#allocation2 + $0x2] sm:$0xff]
      %v2477 = vld [vmem:[#allocation2 + $0xa] sm:$0xff]
      %v2478 = vld [vmem:[#allocation2 + $0x1a] sm:$0xff]
      %v2479 = vld [vmem:[#allocation2 + $0x22] sm:$0xff]
      %v2480 = vld [vmem:[#allocation2 + $0x32] sm:$0xff]
      %v2481 = vld [vmem:[#allocation2 + $0x3a] sm:$0xff]
      %v2482 = vld [vmem:[#allocation2 + $0x4a] sm:$0xff]
      %v2483 = vld [vmem:[#allocation2 + $0x52] sm:$0xff]
      %v2484 = vld [vmem:[#allocation2 + $0x62] sm:$0xff]
      %v2485 = vld [vmem:[#allocation2 + $0x6a] sm:$0xff]
      %v2486 = vld [vmem:[#allocation2 + $0x7a] sm:$0xff]
      %v2487 = vld [vmem:[#allocation2 + $0x82] sm:$0xff]
      %v2488 = vld [vmem:[#allocation2 + $0x92] sm:$0xff]
      %v2489 = vld [vmem:[#allocation2 + $0x9a] sm:$0xff]
      %v2490 = vld [vmem:[#allocation2 + $0xaa] sm:$0xff]
      %v2491 = vld [vmem:[#allocation2 + $0xb2] sm:$0xff]
      %v2492 = vld [vmem:[#allocation2 + $0xc2] sm:$0xff]
      %v2493 = vld [vmem:[#allocation2 + $0xca] sm:$0xff]
      %v2494 = vld [vmem:[#allocation2 + $0xda] sm:$0xff]
      %v2495 = vld [vmem:[#allocation2 + $0xe2] sm:$0xff]
      %v2496 = vld [vmem:[#allocation2 + $0xf2] sm:$0xff]
      %v2497 = vld [vmem:[#allocation2 + $0xfa] sm:$0xff]
      %v2498 = vld [vmem:[#allocation2 + $0x10a] sm:$0xff]
      %v2499 = vld [vmem:[#allocation2 + $0x112] sm:$0xff]
      %v2500 = vld [vmem:[#allocation2 + $0x122] sm:$0xff]
      %v2501 = vld [vmem:[#allocation2 + $0x12a] sm:$0xff]
      %v2502 = vld [vmem:[#allocation2 + $0x13a] sm:$0xff]
      %v2503 = vld [vmem:[#allocation2 + $0x142] sm:$0xff]
      %v2504 = vld [vmem:[#allocation2 + $0x152] sm:$0xff]
      %v2505 = vld [vmem:[#allocation2 + $0x15a] sm:$0xff]
      %v2506 = vld [vmem:[#allocation2 + $0x16a] sm:$0xff]
      %v2507 = vld [vmem:[#allocation2 + $0x172] sm:$0xff]
      %v2508 = vld [vmem:[%s394] sm:$0xff]
      %v2509 = vld [vmem:[%s394 + $0x8] sm:$0xff]
      %v2510 = vld [vmem:[%s394 + $0x18] sm:$0xff]
      %v2511 = vld [vmem:[%s394 + $0x20] sm:$0xff]
      %v2512 = vld [vmem:[%s394 + $0x30] sm:$0xff]
      %v2513 = vld [vmem:[%s394 + $0x38] sm:$0xff]
      %v2514 = vld [vmem:[%s394 + $0x48] sm:$0xff]
      %v2515 = vld [vmem:[%s394 + $0x50] sm:$0xff]
      %v2516 = vld [vmem:[%s394 + $0x60] sm:$0xff]
      %v2517 = vld [vmem:[%s394 + $0x68] sm:$0xff]
      %v2518 = vld [vmem:[%s394 + $0x78] sm:$0xff]
      %v2519 = vld [vmem:[%s394 + $0x80] sm:$0xff]
      %v2520 = vld [vmem:[%s394 + $0x90] sm:$0xff]
      %v2521 = vld [vmem:[%s394 + $0x98] sm:$0xff]
      %v2522 = vld [vmem:[%s394 + $0xa8] sm:$0xff]
      %v2523 = vld [vmem:[%s394 + $0xb0] sm:$0xff]
      %v2524 = vld [vmem:[%s394 + $0xc0] sm:$0xff]
      %v2525 = vld [vmem:[%s394 + $0xc8] sm:$0xff]
      %v2526 = vld [vmem:[%s394 + $0xd8] sm:$0xff]
      %v2527 = vld [vmem:[%s394 + $0xe0] sm:$0xff]
      %v2528 = vld [vmem:[%s394 + $0xf0] sm:$0xff]
      %v2529 = vld [vmem:[%s394 + $0xf8] sm:$0xff]
      %v2530 = vld [vmem:[%s394 + $0x108] sm:$0xff]
      %v2531 = vld [vmem:[%s394 + $0x110] sm:$0xff]
      %v2532 = vld [vmem:[%s394 + $0x120] sm:$0xff]
      %v2533 = vld [vmem:[%s394 + $0x128] sm:$0xff]
      %v2534 = vld [vmem:[%s394 + $0x138] sm:$0xff]
      %v2535 = vld [vmem:[%s394 + $0x140] sm:$0xff]
      %v2536 = vld [vmem:[%s394 + $0x150] sm:$0xff]
      %v2537 = vld [vmem:[%s394 + $0x158] sm:$0xff]
      %v2538 = vld [vmem:[%s394 + $0x168] sm:$0xff]
      %v2539 = vld [vmem:[%s394 + $0x170] sm:$0xff]
      %v2540 = vld [vmem:[%s394 + $0x1] sm:$0xff]
      %v2541 = vld [vmem:[%s394 + $0x9] sm:$0xff]
      %v2542 = vld [vmem:[%s394 + $0x19] sm:$0xff]
      %v2543 = vld [vmem:[%s394 + $0x21] sm:$0xff]
      %v2544 = vld [vmem:[%s394 + $0x31] sm:$0xff]
      %v2545 = vld [vmem:[%s394 + $0x39] sm:$0xff]
      %v2546 = vld [vmem:[%s394 + $0x49] sm:$0xff]
      %v2547 = vld [vmem:[%s394 + $0x51] sm:$0xff]
      %v2548 = vld [vmem:[%s394 + $0x61] sm:$0xff]
      %v2549 = vld [vmem:[%s394 + $0x69] sm:$0xff]
      %v2550 = vld [vmem:[%s394 + $0x79] sm:$0xff]
      %v2551 = vld [vmem:[%s394 + $0x81] sm:$0xff]
      %v2552 = vld [vmem:[%s394 + $0x91] sm:$0xff]
      %v2553 = vld [vmem:[%s394 + $0x99] sm:$0xff]
      %v2554 = vld [vmem:[%s394 + $0xa9] sm:$0xff]
      %v2555 = vld [vmem:[%s394 + $0xb1] sm:$0xff]
      %v2556 = vld [vmem:[%s394 + $0xc1] sm:$0xff]
      %v2557 = vld [vmem:[%s394 + $0xc9] sm:$0xff]
      %v2558 = vld [vmem:[%s394 + $0xd9] sm:$0xff]
      %v2559 = vld [vmem:[%s394 + $0xe1] sm:$0xff]
      %v2560 = vld [vmem:[%s394 + $0xf1] sm:$0xff]
      %v2561 = vld [vmem:[%s394 + $0xf9] sm:$0xff]
      %v2562 = vld [vmem:[%s394 + $0x109] sm:$0xff]
      %v2563 = vld [vmem:[%s394 + $0x111] sm:$0xff]
      %v2564 = vld [vmem:[%s394 + $0x121] sm:$0xff]
      %v2565 = vld [vmem:[%s394 + $0x129] sm:$0xff]
      %v2566 = vld [vmem:[%s394 + $0x139] sm:$0xff]
      %v2567 = vld [vmem:[%s394 + $0x141] sm:$0xff]
      %v2568 = vld [vmem:[%s394 + $0x151] sm:$0xff]
      %v2569 = vld [vmem:[%s394 + $0x159] sm:$0xff]
      %v2570 = vld [vmem:[%s394 + $0x169] sm:$0xff]
      %v2571 = vld [vmem:[%s394 + $0x171] sm:$0xff]
      %v2572 = vld [vmem:[%s394 + $0x2] sm:$0xff]
      %v2573 = vld [vmem:[%s394 + $0xa] sm:$0xff]
      %v2574 = vld [vmem:[%s394 + $0x1a] sm:$0xff]
      %v2575 = vld [vmem:[%s394 + $0x22] sm:$0xff]
      %v2576 = vld [vmem:[%s394 + $0x32] sm:$0xff]
      %v2577 = vld [vmem:[%s394 + $0x3a] sm:$0xff]
      %v2578 = vld [vmem:[%s394 + $0x4a] sm:$0xff]
      %v2579 = vld [vmem:[%s394 + $0x52] sm:$0xff]
      %v2580 = vld [vmem:[%s394 + $0x62] sm:$0xff]
      %v2581 = vld [vmem:[%s394 + $0x6a] sm:$0xff]
      %v2582 = vld [vmem:[%s394 + $0x7a] sm:$0xff]
      %v2583 = vld [vmem:[%s394 + $0x82] sm:$0xff]
      %v2584 = vld [vmem:[%s394 + $0x92] sm:$0xff]
      %v2585 = vld [vmem:[%s394 + $0x9a] sm:$0xff]
      %v2586 = vld [vmem:[%s394 + $0xaa] sm:$0xff]
      %v2587 = vld [vmem:[%s394 + $0xb2] sm:$0xff]
      %v2588 = vld [vmem:[%s394 + $0xc2] sm:$0xff]
      %v2589 = vld [vmem:[%s394 + $0xca] sm:$0xff]
      %v2590 = vld [vmem:[%s394 + $0xda] sm:$0xff]
      %v2591 = vld [vmem:[%s394 + $0xe2] sm:$0xff]
      %v2592 = vld [vmem:[%s394 + $0xf2] sm:$0xff]
      %v2593 = vld [vmem:[%s394 + $0xfa] sm:$0xff]
      %v2594 = vld [vmem:[%s394 + $0x10a] sm:$0xff]
      %v2595 = vld [vmem:[%s394 + $0x112] sm:$0xff]
      %v2596 = vld [vmem:[%s394 + $0x122] sm:$0xff]
      %v2597 = vld [vmem:[%s394 + $0x12a] sm:$0xff]
      %v2598 = vld [vmem:[%s394 + $0x13a] sm:$0xff]
      %v2599 = vld [vmem:[%s394 + $0x142] sm:$0xff]
      %v2600 = vld [vmem:[%s394 + $0x152] sm:$0xff]
      %v2601 = vld [vmem:[%s394 + $0x15a] sm:$0xff]
      %v2602 = vld [vmem:[%s394 + $0x16a] sm:$0xff]
      %v2603 = vld [vmem:[%s394 + $0x172] sm:$0xff]
      %v2604 = vld [vmem:[%s619] sm:$0xff]
      %v2605 = vld [vmem:[%s619 + $0x8] sm:$0xff]
      %v2606 = vld [vmem:[%s619 + $0x18] sm:$0xff]
      %v2607 = vld [vmem:[%s619 + $0x20] sm:$0xff]
      %v2608 = vld [vmem:[%s619 + $0x30] sm:$0xff]
      %v2609 = vld [vmem:[%s619 + $0x38] sm:$0xff]
      %v2610 = vld [vmem:[%s619 + $0x48] sm:$0xff]
      %v2611 = vld [vmem:[%s619 + $0x50] sm:$0xff]
      %v2612 = vld [vmem:[%s619 + $0x60] sm:$0xff]
      %v2613 = vld [vmem:[%s619 + $0x68] sm:$0xff]
      %v2614 = vld [vmem:[%s619 + $0x78] sm:$0xff]
      %v2615 = vld [vmem:[%s619 + $0x80] sm:$0xff]
      %v2616 = vld [vmem:[%s619 + $0x90] sm:$0xff]
      %v2617 = vld [vmem:[%s619 + $0x98] sm:$0xff]
      %v2618 = vld [vmem:[%s619 + $0xa8] sm:$0xff]
      %v2619 = vld [vmem:[%s619 + $0xb0] sm:$0xff]
      %v2620 = vld [vmem:[%s619 + $0xc0] sm:$0xff]
      %v2621 = vld [vmem:[%s619 + $0xc8] sm:$0xff]
      %v2622 = vld [vmem:[%s619 + $0xd8] sm:$0xff]
      %v2623 = vld [vmem:[%s619 + $0xe0] sm:$0xff]
      %v2624 = vld [vmem:[%s619 + $0xf0] sm:$0xff]
      %v2625 = vld [vmem:[%s619 + $0xf8] sm:$0xff]
      %v2626 = vld [vmem:[%s619 + $0x108] sm:$0xff]
      %v2627 = vld [vmem:[%s619 + $0x110] sm:$0xff]
      %v2628 = vld [vmem:[%s619 + $0x120] sm:$0xff]
      %v2629 = vld [vmem:[%s619 + $0x128] sm:$0xff]
      %v2630 = vld [vmem:[%s619 + $0x138] sm:$0xff]
      %v2631 = vld [vmem:[%s619 + $0x140] sm:$0xff]
      %v2632 = vld [vmem:[%s619 + $0x150] sm:$0xff]
      %v2633 = vld [vmem:[%s619 + $0x158] sm:$0xff]
      %v2634 = vld [vmem:[%s619 + $0x168] sm:$0xff]
      %v2635 = vld [vmem:[%s619 + $0x170] sm:$0xff]
      %v2636 = vld [vmem:[%s619 + $0x1] sm:$0xff]
      %v2637 = vld [vmem:[%s619 + $0x9] sm:$0xff]
      %v2638 = vld [vmem:[%s619 + $0x19] sm:$0xff]
      %v2639 = vld [vmem:[%s619 + $0x21] sm:$0xff]
      %v2640 = vld [vmem:[%s619 + $0x31] sm:$0xff]
      %v2641 = vld [vmem:[%s619 + $0x39] sm:$0xff]
      %v2642 = vld [vmem:[%s619 + $0x49] sm:$0xff]
      %v2643 = vld [vmem:[%s619 + $0x51] sm:$0xff]
      %v2644 = vld [vmem:[%s619 + $0x61] sm:$0xff]
      %v2645 = vld [vmem:[%s619 + $0x69] sm:$0xff]
      %v2646 = vld [vmem:[%s619 + $0x79] sm:$0xff]
      %v2647 = vld [vmem:[%s619 + $0x81] sm:$0xff]
      %v2648 = vld [vmem:[%s619 + $0x91] sm:$0xff]
      %v2649 = vld [vmem:[%s619 + $0x99] sm:$0xff]
      %v2650 = vld [vmem:[%s619 + $0xa9] sm:$0xff]
      %v2651 = vld [vmem:[%s619 + $0xb1] sm:$0xff]
      %v2652 = vld [vmem:[%s619 + $0xc1] sm:$0xff]
      %v2653 = vld [vmem:[%s619 + $0xc9] sm:$0xff]
      %v2654 = vld [vmem:[%s619 + $0xd9] sm:$0xff]
      %v2655 = vld [vmem:[%s619 + $0xe1] sm:$0xff]
      %v2656 = vld [vmem:[%s619 + $0xf1] sm:$0xff]
      %v2657 = vld [vmem:[%s619 + $0xf9] sm:$0xff]
      %v2658 = vld [vmem:[%s619 + $0x109] sm:$0xff]
      %v2659 = vld [vmem:[%s619 + $0x111] sm:$0xff]
      %v2660 = vld [vmem:[%s619 + $0x121] sm:$0xff]
      %v2661 = vld [vmem:[%s619 + $0x129] sm:$0xff]
      %v2662 = vld [vmem:[%s619 + $0x139] sm:$0xff]
      %v2663 = vld [vmem:[%s619 + $0x141] sm:$0xff]
      %v2664 = vld [vmem:[%s619 + $0x151] sm:$0xff]
      %v2665 = vld [vmem:[%s619 + $0x159] sm:$0xff]
      %v2666 = vld [vmem:[%s619 + $0x169] sm:$0xff]
      %v2667 = vld [vmem:[%s619 + $0x171] sm:$0xff]
      %v2668 = vld [vmem:[%s619 + $0x2] sm:$0xff]
      %v2669 = vld [vmem:[%s619 + $0xa] sm:$0xff]
      %v2670 = vld [vmem:[%s619 + $0x1a] sm:$0xff]
      %v2671 = vld [vmem:[%s619 + $0x22] sm:$0xff]
      %v2672 = vld [vmem:[%s619 + $0x32] sm:$0xff]
      %v2673 = vld [vmem:[%s619 + $0x3a] sm:$0xff]
      %v2674 = vld [vmem:[%s619 + $0x4a] sm:$0xff]
      %v2675 = vld [vmem:[%s619 + $0x52] sm:$0xff]
      %v2676 = vld [vmem:[%s619 + $0x62] sm:$0xff]
      %v2677 = vld [vmem:[%s619 + $0x6a] sm:$0xff]
      %v2678 = vld [vmem:[%s619 + $0x7a] sm:$0xff]
      %v2679 = vld [vmem:[%s619 + $0x82] sm:$0xff]
      %v2680 = vld [vmem:[%s619 + $0x92] sm:$0xff]
      %v2681 = vld [vmem:[%s619 + $0x9a] sm:$0xff]
      %v2682 = vld [vmem:[%s619 + $0xaa] sm:$0xff]
      %v2683 = vld [vmem:[%s619 + $0xb2] sm:$0xff]
      %v2684 = vld [vmem:[%s619 + $0xc2] sm:$0xff]
      %v2685 = vld [vmem:[%s619 + $0xca] sm:$0xff]
      %v2686 = vld [vmem:[%s619 + $0xda] sm:$0xff]
      %v2687 = vld [vmem:[%s619 + $0xe2] sm:$0xff]
      %v2688 = vld [vmem:[%s619 + $0xf2] sm:$0xff]
      %v2689 = vld [vmem:[%s619 + $0xfa] sm:$0xff]
      %v2690 = vld [vmem:[%s619 + $0x10a] sm:$0xff]
      %v2691 = vld [vmem:[%s619 + $0x112] sm:$0xff]
      %v2692 = vld [vmem:[%s619 + $0x122] sm:$0xff]
      %v2693 = vld [vmem:[%s619 + $0x12a] sm:$0xff]
      %v2694 = vld [vmem:[%s619 + $0x13a] sm:$0xff]
      %v2695 = vld [vmem:[%s619 + $0x142] sm:$0xff]
      %v2696 = vld [vmem:[%s619 + $0x152] sm:$0xff]
      %v2697 = vld [vmem:[%s619 + $0x15a] sm:$0xff]
      %v2698 = vld [vmem:[%s619 + $0x16a] sm:$0xff]
      %v2699 = vld [vmem:[%s619 + $0x172] sm:$0xff]
      %2732 = vrot.lane.b32.xlu0 %v2444, 16
      %v2733 = vpop.permute.xlu0 %2732
      %2734 = vrot.lane.b32.xlu0 %v2445, 16
      %v2735 = vpop.permute.xlu0 %2734
      %2736 = vrot.lane.b32.xlu0 %v2446, 16
      %v2737 = vpop.permute.xlu0 %2736
      %2738 = vrot.lane.b32.xlu0 %v2447, 16
      %v2739 = vpop.permute.xlu0 %2738
      %2740 = vrot.lane.b32.xlu0 %v2448, 16
      %v2741 = vpop.permute.xlu0 %2740
      %2742 = vrot.lane.b32.xlu0 %v2449, 16
      %v2743 = vpop.permute.xlu0 %2742
      %2744 = vrot.lane.b32.xlu0 %v2450, 16
      %v2745 = vpop.permute.xlu0 %2744
      %2746 = vrot.lane.b32.xlu0 %v2451, 16
      %v2747 = vpop.permute.xlu0 %2746
      %2748 = vrot.lane.b32.xlu0 %v2452, 16
      %v2749 = vpop.permute.xlu0 %2748
      %2750 = vrot.lane.b32.xlu0 %v2453, 16
      %v2751 = vpop.permute.xlu0 %2750
      %2752 = vrot.lane.b32.xlu0 %v2454, 16
      %v2753 = vpop.permute.xlu0 %2752
      %2754 = vrot.lane.b32.xlu0 %v2455, 16
      %v2755 = vpop.permute.xlu0 %2754
      %2756 = vrot.lane.b32.xlu0 %v2456, 16
      %v2757 = vpop.permute.xlu0 %2756
      %2758 = vrot.lane.b32.xlu0 %v2457, 16
      %v2759 = vpop.permute.xlu0 %2758
      %2760 = vrot.lane.b32.xlu0 %v2458, 16
      %v2761 = vpop.permute.xlu0 %2760
      %2762 = vrot.lane.b32.xlu0 %v2459, 16
      %v2763 = vpop.permute.xlu0 %2762
      %2764 = vrot.lane.b32.xlu0 %v2460, 16
      %v2765 = vpop.permute.xlu0 %2764
      %2766 = vrot.lane.b32.xlu0 %v2461, 16
      %v2767 = vpop.permute.xlu0 %2766
      %2768 = vrot.lane.b32.xlu0 %v2462, 16
      %v2769 = vpop.permute.xlu0 %2768
      %2770 = vrot.lane.b32.xlu0 %v2463, 16
      %v2771 = vpop.permute.xlu0 %2770
      %2772 = vrot.lane.b32.xlu0 %v2464, 16
      %v2773 = vpop.permute.xlu0 %2772
      %2774 = vrot.lane.b32.xlu0 %v2465, 16
      %v2775 = vpop.permute.xlu0 %2774
      %2776 = vrot.lane.b32.xlu0 %v2466, 16
      %v2777 = vpop.permute.xlu0 %2776
      %2778 = vrot.lane.b32.xlu0 %v2467, 16
      %v2779 = vpop.permute.xlu0 %2778
      %2780 = vrot.lane.b32.xlu0 %v2468, 16
      %v2781 = vpop.permute.xlu0 %2780
      %2782 = vrot.lane.b32.xlu0 %v2469, 16
      %v2783 = vpop.permute.xlu0 %2782
      %2784 = vrot.lane.b32.xlu0 %v2470, 16
      %v2785 = vpop.permute.xlu0 %2784
      %2786 = vrot.lane.b32.xlu0 %v2471, 16
      %v2787 = vpop.permute.xlu0 %2786
      %2788 = vrot.lane.b32.xlu0 %v2472, 16
      %v2789 = vpop.permute.xlu0 %2788
      %2790 = vrot.lane.b32.xlu0 %v2473, 16
      %v2791 = vpop.permute.xlu0 %2790
      %2792 = vrot.lane.b32.xlu0 %v2474, 16
      %v2793 = vpop.permute.xlu0 %2792
      %2794 = vrot.lane.b32.xlu0 %v2475, 16
      %v2795 = vpop.permute.xlu0 %2794
      %2860 = vrot.lane.b32.xlu0 %v2476, 32
      %v2861 = vpop.permute.xlu0 %2860
      %2862 = vrot.lane.b32.xlu0 %v2477, 32
      %v2863 = vpop.permute.xlu0 %2862
      %2864 = vrot.lane.b32.xlu0 %v2478, 32
      %v2865 = vpop.permute.xlu0 %2864
      %2866 = vrot.lane.b32.xlu0 %v2479, 32
      %v2867 = vpop.permute.xlu0 %2866
      %2868 = vrot.lane.b32.xlu0 %v2480, 32
      %v2869 = vpop.permute.xlu0 %2868
      %2870 = vrot.lane.b32.xlu0 %v2481, 32
      %v2871 = vpop.permute.xlu0 %2870
      %2872 = vrot.lane.b32.xlu0 %v2482, 32
      %v2873 = vpop.permute.xlu0 %2872
      %2874 = vrot.lane.b32.xlu0 %v2483, 32
      %v2875 = vpop.permute.xlu0 %2874
      %2876 = vrot.lane.b32.xlu0 %v2484, 32
      %v2877 = vpop.permute.xlu0 %2876
      %2878 = vrot.lane.b32.xlu0 %v2485, 32
      %v2879 = vpop.permute.xlu0 %2878
      %2880 = vrot.lane.b32.xlu0 %v2486, 32
      %v2881 = vpop.permute.xlu0 %2880
      %2882 = vrot.lane.b32.xlu0 %v2487, 32
      %v2883 = vpop.permute.xlu0 %2882
      %2884 = vrot.lane.b32.xlu0 %v2488, 32
      %v2885 = vpop.permute.xlu0 %2884
      %2886 = vrot.lane.b32.xlu0 %v2489, 32
      %v2887 = vpop.permute.xlu0 %2886
      %2888 = vrot.lane.b32.xlu0 %v2490, 32
      %v2889 = vpop.permute.xlu0 %2888
      %2890 = vrot.lane.b32.xlu0 %v2491, 32
      %v2891 = vpop.permute.xlu0 %2890
      %2892 = vrot.lane.b32.xlu0 %v2492, 32
      %v2893 = vpop.permute.xlu0 %2892
      %2894 = vrot.lane.b32.xlu0 %v2493, 32
      %v2895 = vpop.permute.xlu0 %2894
      %2896 = vrot.lane.b32.xlu0 %v2494, 32
      %v2897 = vpop.permute.xlu0 %2896
      %2898 = vrot.lane.b32.xlu0 %v2495, 32
      %v2899 = vpop.permute.xlu0 %2898
      %2900 = vrot.lane.b32.xlu0 %v2496, 32
      %v2901 = vpop.permute.xlu0 %2900
      %2902 = vrot.lane.b32.xlu0 %v2497, 32
      %v2903 = vpop.permute.xlu0 %2902
      %2904 = vrot.lane.b32.xlu0 %v2498, 32
      %v2905 = vpop.permute.xlu0 %2904
      %2906 = vrot.lane.b32.xlu0 %v2499, 32
      %v2907 = vpop.permute.xlu0 %2906
      %2908 = vrot.lane.b32.xlu0 %v2500, 32
      %v2909 = vpop.permute.xlu0 %2908
      %2910 = vrot.lane.b32.xlu0 %v2501, 32
      %v2911 = vpop.permute.xlu0 %2910
      %2912 = vrot.lane.b32.xlu0 %v2502, 32
      %v2913 = vpop.permute.xlu0 %2912
      %2914 = vrot.lane.b32.xlu0 %v2503, 32
      %v2915 = vpop.permute.xlu0 %2914
      %2916 = vrot.lane.b32.xlu0 %v2504, 32
      %v2917 = vpop.permute.xlu0 %2916
      %2918 = vrot.lane.b32.xlu0 %v2505, 32
      %v2919 = vpop.permute.xlu0 %2918
      %2920 = vrot.lane.b32.xlu0 %v2506, 32
      %v2921 = vpop.permute.xlu0 %2920
      %2922 = vrot.lane.b32.xlu0 %v2507, 32
      %v2923 = vpop.permute.xlu0 %2922
      %2988 = vrot.lane.b32.xlu0 %v2508, 48
      %v2989 = vpop.permute.xlu0 %2988
      %2990 = vrot.lane.b32.xlu0 %v2509, 48
      %v2991 = vpop.permute.xlu0 %2990
      %2992 = vrot.lane.b32.xlu0 %v2510, 48
      %v2993 = vpop.permute.xlu0 %2992
      %2994 = vrot.lane.b32.xlu0 %v2511, 48
      %v2995 = vpop.permute.xlu0 %2994
      %2996 = vrot.lane.b32.xlu0 %v2512, 48
      %v2997 = vpop.permute.xlu0 %2996
      %2998 = vrot.lane.b32.xlu0 %v2513, 48
      %v2999 = vpop.permute.xlu0 %2998
      %3000 = vrot.lane.b32.xlu0 %v2514, 48
      %v3001 = vpop.permute.xlu0 %3000
      %3002 = vrot.lane.b32.xlu0 %v2515, 48
      %v3003 = vpop.permute.xlu0 %3002
      %3004 = vrot.lane.b32.xlu0 %v2516, 48
      %v3005 = vpop.permute.xlu0 %3004
      %3006 = vrot.lane.b32.xlu0 %v2517, 48
      %v3007 = vpop.permute.xlu0 %3006
      %3008 = vrot.lane.b32.xlu0 %v2518, 48
      %v3009 = vpop.permute.xlu0 %3008
      %3010 = vrot.lane.b32.xlu0 %v2519, 48
      %v3011 = vpop.permute.xlu0 %3010
      %3012 = vrot.lane.b32.xlu0 %v2520, 48
      %v3013 = vpop.permute.xlu0 %3012
      %3014 = vrot.lane.b32.xlu0 %v2521, 48
      %v3015 = vpop.permute.xlu0 %3014
      %3016 = vrot.lane.b32.xlu0 %v2522, 48
      %v3017 = vpop.permute.xlu0 %3016
      %3018 = vrot.lane.b32.xlu0 %v2523, 48
      %v3019 = vpop.permute.xlu0 %3018
      %3020 = vrot.lane.b32.xlu0 %v2524, 48
      %v3021 = vpop.permute.xlu0 %3020
      %3022 = vrot.lane.b32.xlu0 %v2525, 48
      %v3023 = vpop.permute.xlu0 %3022
      %3024 = vrot.lane.b32.xlu0 %v2526, 48
      %v3025 = vpop.permute.xlu0 %3024
      %3026 = vrot.lane.b32.xlu0 %v2527, 48
      %v3027 = vpop.permute.xlu0 %3026
      %3028 = vrot.lane.b32.xlu0 %v2528, 48
      %v3029 = vpop.permute.xlu0 %3028
      %3030 = vrot.lane.b32.xlu0 %v2529, 48
      %v3031 = vpop.permute.xlu0 %3030
      %3032 = vrot.lane.b32.xlu0 %v2530, 48
      %v3033 = vpop.permute.xlu0 %3032
      %3034 = vrot.lane.b32.xlu0 %v2531, 48
      %v3035 = vpop.permute.xlu0 %3034
      %3036 = vrot.lane.b32.xlu0 %v2532, 48
      %v3037 = vpop.permute.xlu0 %3036
      %3038 = vrot.lane.b32.xlu0 %v2533, 48
      %v3039 = vpop.permute.xlu0 %3038
      %3040 = vrot.lane.b32.xlu0 %v2534, 48
      %v3041 = vpop.permute.xlu0 %3040
      %3042 = vrot.lane.b32.xlu0 %v2535, 48
      %v3043 = vpop.permute.xlu0 %3042
      %3044 = vrot.lane.b32.xlu0 %v2536, 48
      %v3045 = vpop.permute.xlu0 %3044
      %3046 = vrot.lane.b32.xlu0 %v2537, 48
      %v3047 = vpop.permute.xlu0 %3046
      %3048 = vrot.lane.b32.xlu0 %v2538, 48
      %v3049 = vpop.permute.xlu0 %3048
      %3050 = vrot.lane.b32.xlu0 %v2539, 48
      %v3051 = vpop.permute.xlu0 %3050
      %3116 = vrot.lane.b32.xlu0 %v2540, 64
      %v3117 = vpop.permute.xlu0 %3116
      %3118 = vrot.lane.b32.xlu0 %v2541, 64
      %v3119 = vpop.permute.xlu0 %3118
      %3120 = vrot.lane.b32.xlu0 %v2542, 64
      %v3121 = vpop.permute.xlu0 %3120
      %3122 = vrot.lane.b32.xlu0 %v2543, 64
      %v3123 = vpop.permute.xlu0 %3122
      %3124 = vrot.lane.b32.xlu0 %v2544, 64
      %v3125 = vpop.permute.xlu0 %3124
      %3126 = vrot.lane.b32.xlu0 %v2545, 64
      %v3127 = vpop.permute.xlu0 %3126
      %3128 = vrot.lane.b32.xlu0 %v2546, 64
      %v3129 = vpop.permute.xlu0 %3128
      %3130 = vrot.lane.b32.xlu0 %v2547, 64
      %v3131 = vpop.permute.xlu0 %3130
      %3132 = vrot.lane.b32.xlu0 %v2548, 64
      %v3133 = vpop.permute.xlu0 %3132
      %3134 = vrot.lane.b32.xlu0 %v2549, 64
      %v3135 = vpop.permute.xlu0 %3134
      %3136 = vrot.lane.b32.xlu0 %v2550, 64
      %v3137 = vpop.permute.xlu0 %3136
      %3138 = vrot.lane.b32.xlu0 %v2551, 64
      %v3139 = vpop.permute.xlu0 %3138
      %3140 = vrot.lane.b32.xlu0 %v2552, 64
      %v3141 = vpop.permute.xlu0 %3140
      %3142 = vrot.lane.b32.xlu0 %v2553, 64
      %v3143 = vpop.permute.xlu0 %3142
      %3144 = vrot.lane.b32.xlu0 %v2554, 64
      %v3145 = vpop.permute.xlu0 %3144
      %3146 = vrot.lane.b32.xlu0 %v2555, 64
      %v3147 = vpop.permute.xlu0 %3146
      %3148 = vrot.lane.b32.xlu0 %v2556, 64
      %v3149 = vpop.permute.xlu0 %3148
      %3150 = vrot.lane.b32.xlu0 %v2557, 64
      %v3151 = vpop.permute.xlu0 %3150
      %3152 = vrot.lane.b32.xlu0 %v2558, 64
      %v3153 = vpop.permute.xlu0 %3152
      %3154 = vrot.lane.b32.xlu0 %v2559, 64
      %v3155 = vpop.permute.xlu0 %3154
      %3156 = vrot.lane.b32.xlu0 %v2560, 64
      %v3157 = vpop.permute.xlu0 %3156
      %3158 = vrot.lane.b32.xlu0 %v2561, 64
      %v3159 = vpop.permute.xlu0 %3158
      %3160 = vrot.lane.b32.xlu0 %v2562, 64
      %v3161 = vpop.permute.xlu0 %3160
      %3162 = vrot.lane.b32.xlu0 %v2563, 64
      %v3163 = vpop.permute.xlu0 %3162
      %3164 = vrot.lane.b32.xlu0 %v2564, 64
      %v3165 = vpop.permute.xlu0 %3164
      %3166 = vrot.lane.b32.xlu0 %v2565, 64
      %v3167 = vpop.permute.xlu0 %3166
      %3168 = vrot.lane.b32.xlu0 %v2566, 64
      %v3169 = vpop.permute.xlu0 %3168
      %3170 = vrot.lane.b32.xlu0 %v2567, 64
      %v3171 = vpop.permute.xlu0 %3170
      %3172 = vrot.lane.b32.xlu0 %v2568, 64
      %v3173 = vpop.permute.xlu0 %3172
      %3174 = vrot.lane.b32.xlu0 %v2569, 64
      %v3175 = vpop.permute.xlu0 %3174
      %3176 = vrot.lane.b32.xlu0 %v2570, 64
      %v3177 = vpop.permute.xlu0 %3176
      %3178 = vrot.lane.b32.xlu0 %v2571, 64
      %v3179 = vpop.permute.xlu0 %3178
      %3244 = vrot.lane.b32.xlu0 %v2572, 80
      %v3245 = vpop.permute.xlu0 %3244
      %3246 = vrot.lane.b32.xlu0 %v2573, 80
      %v3247 = vpop.permute.xlu0 %3246
      %3248 = vrot.lane.b32.xlu0 %v2574, 80
      %v3249 = vpop.permute.xlu0 %3248
      %3250 = vrot.lane.b32.xlu0 %v2575, 80
      %v3251 = vpop.permute.xlu0 %3250
      %3252 = vrot.lane.b32.xlu0 %v2576, 80
      %v3253 = vpop.permute.xlu0 %3252
      %3254 = vrot.lane.b32.xlu0 %v2577, 80
      %v3255 = vpop.permute.xlu0 %3254
      %3256 = vrot.lane.b32.xlu0 %v2578, 80
      %v3257 = vpop.permute.xlu0 %3256
      %3258 = vrot.lane.b32.xlu0 %v2579, 80
      %v3259 = vpop.permute.xlu0 %3258
      %3260 = vrot.lane.b32.xlu0 %v2580, 80
      %v3261 = vpop.permute.xlu0 %3260
      %3262 = vrot.lane.b32.xlu0 %v2581, 80
      %v3263 = vpop.permute.xlu0 %3262
      %3264 = vrot.lane.b32.xlu0 %v2582, 80
      %v3265 = vpop.permute.xlu0 %3264
      %3266 = vrot.lane.b32.xlu0 %v2583, 80
      %v3267 = vpop.permute.xlu0 %3266
      %3268 = vrot.lane.b32.xlu0 %v2584, 80
      %v3269 = vpop.permute.xlu0 %3268
      %3270 = vrot.lane.b32.xlu0 %v2585, 80
      %v3271 = vpop.permute.xlu0 %3270
      %3272 = vrot.lane.b32.xlu0 %v2586, 80
      %v3273 = vpop.permute.xlu0 %3272
      %3274 = vrot.lane.b32.xlu0 %v2587, 80
      %v3275 = vpop.permute.xlu0 %3274
      %3276 = vrot.lane.b32.xlu0 %v2588, 80
      %v3277 = vpop.permute.xlu0 %3276
      %3278 = vrot.lane.b32.xlu0 %v2589, 80
      %v3279 = vpop.permute.xlu0 %3278
      %3280 = vrot.lane.b32.xlu0 %v2590, 80
      %v3281 = vpop.permute.xlu0 %3280
      %3282 = vrot.lane.b32.xlu0 %v2591, 80
      %v3283 = vpop.permute.xlu0 %3282
      %3284 = vrot.lane.b32.xlu0 %v2592, 80
      %v3285 = vpop.permute.xlu0 %3284
      %3286 = vrot.lane.b32.xlu0 %v2593, 80
      %v3287 = vpop.permute.xlu0 %3286
      %3288 = vrot.lane.b32.xlu0 %v2594, 80
      %v3289 = vpop.permute.xlu0 %3288
      %3290 = vrot.lane.b32.xlu0 %v2595, 80
      %v3291 = vpop.permute.xlu0 %3290
      %3292 = vrot.lane.b32.xlu0 %v2596, 80
      %v3293 = vpop.permute.xlu0 %3292
      %3294 = vrot.lane.b32.xlu0 %v2597, 80
      %v3295 = vpop.permute.xlu0 %3294
      %3296 = vrot.lane.b32.xlu0 %v2598, 80
      %v3297 = vpop.permute.xlu0 %3296
      %3298 = vrot.lane.b32.xlu0 %v2599, 80
      %v3299 = vpop.permute.xlu0 %3298
      %3300 = vrot.lane.b32.xlu0 %v2600, 80
      %v3301 = vpop.permute.xlu0 %3300
      %3302 = vrot.lane.b32.xlu0 %v2601, 80
      %v3303 = vpop.permute.xlu0 %3302
      %3304 = vrot.lane.b32.xlu0 %v2602, 80
      %v3305 = vpop.permute.xlu0 %3304
      %3306 = vrot.lane.b32.xlu0 %v2603, 80
      %v3307 = vpop.permute.xlu0 %3306
      %3372 = vrot.lane.b32.xlu0 %v2604, 96
      %v3373 = vpop.permute.xlu0 %3372
      %3374 = vrot.lane.b32.xlu0 %v2605, 96
      %v3375 = vpop.permute.xlu0 %3374
      %3376 = vrot.lane.b32.xlu0 %v2606, 96
      %v3377 = vpop.permute.xlu0 %3376
      %3378 = vrot.lane.b32.xlu0 %v2607, 96
      %v3379 = vpop.permute.xlu0 %3378
      %3380 = vrot.lane.b32.xlu0 %v2608, 96
      %v3381 = vpop.permute.xlu0 %3380
      %3382 = vrot.lane.b32.xlu0 %v2609, 96
      %v3383 = vpop.permute.xlu0 %3382
      %3384 = vrot.lane.b32.xlu0 %v2610, 96
      %v3385 = vpop.permute.xlu0 %3384
      %3386 = vrot.lane.b32.xlu0 %v2611, 96
      %v3387 = vpop.permute.xlu0 %3386
      %3388 = vrot.lane.b32.xlu0 %v2612, 96
      %v3389 = vpop.permute.xlu0 %3388
      %3390 = vrot.lane.b32.xlu0 %v2613, 96
      %v3391 = vpop.permute.xlu0 %3390
      %3392 = vrot.lane.b32.xlu0 %v2614, 96
      %v3393 = vpop.permute.xlu0 %3392
      %3394 = vrot.lane.b32.xlu0 %v2615, 96
      %v3395 = vpop.permute.xlu0 %3394
      %3396 = vrot.lane.b32.xlu0 %v2616, 96
      %v3397 = vpop.permute.xlu0 %3396
      %3398 = vrot.lane.b32.xlu0 %v2617, 96
      %v3399 = vpop.permute.xlu0 %3398
      %3400 = vrot.lane.b32.xlu0 %v2618, 96
      %v3401 = vpop.permute.xlu0 %3400
      %3402 = vrot.lane.b32.xlu0 %v2619, 96
      %v3403 = vpop.permute.xlu0 %3402
      %3404 = vrot.lane.b32.xlu0 %v2620, 96
      %v3405 = vpop.permute.xlu0 %3404
      %3406 = vrot.lane.b32.xlu0 %v2621, 96
      %v3407 = vpop.permute.xlu0 %3406
      %3408 = vrot.lane.b32.xlu0 %v2622, 96
      %v3409 = vpop.permute.xlu0 %3408
      %3410 = vrot.lane.b32.xlu0 %v2623, 96
      %v3411 = vpop.permute.xlu0 %3410
      %3412 = vrot.lane.b32.xlu0 %v2624, 96
      %v3413 = vpop.permute.xlu0 %3412
      %3414 = vrot.lane.b32.xlu0 %v2625, 96
      %v3415 = vpop.permute.xlu0 %3414
      %3416 = vrot.lane.b32.xlu0 %v2626, 96
      %v3417 = vpop.permute.xlu0 %3416
      %3418 = vrot.lane.b32.xlu0 %v2627, 96
      %v3419 = vpop.permute.xlu0 %3418
      %3420 = vrot.lane.b32.xlu0 %v2628, 96
      %v3421 = vpop.permute.xlu0 %3420
      %3422 = vrot.lane.b32.xlu0 %v2629, 96
      %v3423 = vpop.permute.xlu0 %3422
      %3424 = vrot.lane.b32.xlu0 %v2630, 96
      %v3425 = vpop.permute.xlu0 %3424
      %3426 = vrot.lane.b32.xlu0 %v2631, 96
      %v3427 = vpop.permute.xlu0 %3426
      %3428 = vrot.lane.b32.xlu0 %v2632, 96
      %v3429 = vpop.permute.xlu0 %3428
      %3430 = vrot.lane.b32.xlu0 %v2633, 96
      %v3431 = vpop.permute.xlu0 %3430
      %3432 = vrot.lane.b32.xlu0 %v2634, 96
      %v3433 = vpop.permute.xlu0 %3432
      %3434 = vrot.lane.b32.xlu0 %v2635, 96
      %v3435 = vpop.permute.xlu0 %3434
      %3500 = vrot.lane.b32.xlu0 %v2636, 112
      %v3501 = vpop.permute.xlu0 %3500
      %3502 = vrot.lane.b32.xlu0 %v2637, 112
      %v3503 = vpop.permute.xlu0 %3502
      %3504 = vrot.lane.b32.xlu0 %v2638, 112
      %v3505 = vpop.permute.xlu0 %3504
      %3506 = vrot.lane.b32.xlu0 %v2639, 112
      %v3507 = vpop.permute.xlu0 %3506
      %3508 = vrot.lane.b32.xlu0 %v2640, 112
      %v3509 = vpop.permute.xlu0 %3508
      %3510 = vrot.lane.b32.xlu0 %v2641, 112
      %v3511 = vpop.permute.xlu0 %3510
      %3512 = vrot.lane.b32.xlu0 %v2642, 112
      %v3513 = vpop.permute.xlu0 %3512
      %3514 = vrot.lane.b32.xlu0 %v2643, 112
      %v3515 = vpop.permute.xlu0 %3514
      %3516 = vrot.lane.b32.xlu0 %v2644, 112
      %v3517 = vpop.permute.xlu0 %3516
      %3518 = vrot.lane.b32.xlu0 %v2645, 112
      %v3519 = vpop.permute.xlu0 %3518
      %3520 = vrot.lane.b32.xlu0 %v2646, 112
      %v3521 = vpop.permute.xlu0 %3520
      %3522 = vrot.lane.b32.xlu0 %v2647, 112
      %v3523 = vpop.permute.xlu0 %3522
      %3524 = vrot.lane.b32.xlu0 %v2648, 112
      %v3525 = vpop.permute.xlu0 %3524
      %3526 = vrot.lane.b32.xlu0 %v2649, 112
      %v3527 = vpop.permute.xlu0 %3526
      %3528 = vrot.lane.b32.xlu0 %v2650, 112
      %v3529 = vpop.permute.xlu0 %3528
      %3530 = vrot.lane.b32.xlu0 %v2651, 112
      %v3531 = vpop.permute.xlu0 %3530
      %3532 = vrot.lane.b32.xlu0 %v2652, 112
      %v3533 = vpop.permute.xlu0 %3532
      %3534 = vrot.lane.b32.xlu0 %v2653, 112
      %v3535 = vpop.permute.xlu0 %3534
      %3536 = vrot.lane.b32.xlu0 %v2654, 112
      %v3537 = vpop.permute.xlu0 %3536
      %3538 = vrot.lane.b32.xlu0 %v2655, 112
      %v3539 = vpop.permute.xlu0 %3538
      %3540 = vrot.lane.b32.xlu0 %v2656, 112
      %v3541 = vpop.permute.xlu0 %3540
      %3542 = vrot.lane.b32.xlu0 %v2657, 112
      %v3543 = vpop.permute.xlu0 %3542
      %3544 = vrot.lane.b32.xlu0 %v2658, 112
      %v3545 = vpop.permute.xlu0 %3544
      %3546 = vrot.lane.b32.xlu0 %v2659, 112
      %v3547 = vpop.permute.xlu0 %3546
      %3548 = vrot.lane.b32.xlu0 %v2660, 112
      %v3549 = vpop.permute.xlu0 %3548
      %3550 = vrot.lane.b32.xlu0 %v2661, 112
      %v3551 = vpop.permute.xlu0 %3550
      %3552 = vrot.lane.b32.xlu0 %v2662, 112
      %v3553 = vpop.permute.xlu0 %3552
      %3554 = vrot.lane.b32.xlu0 %v2663, 112
      %v3555 = vpop.permute.xlu0 %3554
      %3556 = vrot.lane.b32.xlu0 %v2664, 112
      %v3557 = vpop.permute.xlu0 %3556
      %3558 = vrot.lane.b32.xlu0 %v2665, 112
      %v3559 = vpop.permute.xlu0 %3558
      %3560 = vrot.lane.b32.xlu0 %v2666, 112
      %v3561 = vpop.permute.xlu0 %3560
      %3562 = vrot.lane.b32.xlu0 %v2667, 112
      %v3563 = vpop.permute.xlu0 %3562
      %v3596 = vsel %vm306, %v2412, %v2733
      %v3597 = vsel %vm306, %v2413, %v2735
      %v3598 = vsel %vm306, %v2414, %v2737
      %v3599 = vsel %vm306, %v2415, %v2739
      %v3600 = vsel %vm306, %v2416, %v2741
      %v3601 = vsel %vm306, %v2417, %v2743
      %v3602 = vsel %vm306, %v2418, %v2745
      %v3603 = vsel %vm306, %v2419, %v2747
      %v3604 = vsel %vm306, %v2420, %v2749
      %v3605 = vsel %vm306, %v2421, %v2751
      %v3606 = vsel %vm306, %v2422, %v2753
      %v3607 = vsel %vm306, %v2423, %v2755
      %v3608 = vsel %vm306, %v2424, %v2757
      %v3609 = vsel %vm306, %v2425, %v2759
      %v3610 = vsel %vm306, %v2426, %v2761
      %v3611 = vsel %vm306, %v2427, %v2763
      %v3612 = vsel %vm306, %v2428, %v2765
      %v3613 = vsel %vm306, %v2429, %v2767
      %v3614 = vsel %vm306, %v2430, %v2769
      %v3615 = vsel %vm306, %v2431, %v2771
      %v3616 = vsel %vm306, %v2432, %v2773
      %v3617 = vsel %vm306, %v2433, %v2775
      %v3618 = vsel %vm306, %v2434, %v2777
      %v3619 = vsel %vm306, %v2435, %v2779
      %v3620 = vsel %vm306, %v2436, %v2781
      %v3621 = vsel %vm306, %v2437, %v2783
      %v3622 = vsel %vm306, %v2438, %v2785
      %v3623 = vsel %vm306, %v2439, %v2787
      %v3624 = vsel %vm306, %v2440, %v2789
      %v3625 = vsel %vm306, %v2441, %v2791
      %v3626 = vsel %vm306, %v2442, %v2793
      %v3627 = vsel %vm306, %v2443, %v2795
      %v3628 = vsel %vm1644, %v3596, %v2861
      %v3629 = vsel %vm1644, %v3597, %v2863
      %v3630 = vsel %vm1644, %v3598, %v2865
      %v3631 = vsel %vm1644, %v3599, %v2867
      %v3632 = vsel %vm1644, %v3600, %v2869
      %v3633 = vsel %vm1644, %v3601, %v2871
      %v3634 = vsel %vm1644, %v3602, %v2873
      %v3635 = vsel %vm1644, %v3603, %v2875
      %v3636 = vsel %vm1644, %v3604, %v2877
      %v3637 = vsel %vm1644, %v3605, %v2879
      %v3638 = vsel %vm1644, %v3606, %v2881
      %v3639 = vsel %vm1644, %v3607, %v2883
      %v3640 = vsel %vm1644, %v3608, %v2885
      %v3641 = vsel %vm1644, %v3609, %v2887
      %v3642 = vsel %vm1644, %v3610, %v2889
      %v3643 = vsel %vm1644, %v3611, %v2891
      %v3644 = vsel %vm1644, %v3612, %v2893
      %v3645 = vsel %vm1644, %v3613, %v2895
      %v3646 = vsel %vm1644, %v3614, %v2897
      %v3647 = vsel %vm1644, %v3615, %v2899
      %v3648 = vsel %vm1644, %v3616, %v2901
      %v3649 = vsel %vm1644, %v3617, %v2903
      %v3650 = vsel %vm1644, %v3618, %v2905
      %v3651 = vsel %vm1644, %v3619, %v2907
      %v3652 = vsel %vm1644, %v3620, %v2909
      %v3653 = vsel %vm1644, %v3621, %v2911
      %v3654 = vsel %vm1644, %v3622, %v2913
      %v3655 = vsel %vm1644, %v3623, %v2915
      %v3656 = vsel %vm1644, %v3624, %v2917
      %v3657 = vsel %vm1644, %v3625, %v2919
      %v3658 = vsel %vm1644, %v3626, %v2921
      %v3659 = vsel %vm1644, %v3627, %v2923
      %v3660 = vsel %vm1677, %v3628, %v2989
      %v3661 = vsel %vm1677, %v3629, %v2991
      %v3662 = vsel %vm1677, %v3630, %v2993
      %v3663 = vsel %vm1677, %v3631, %v2995
      %v3664 = vsel %vm1677, %v3632, %v2997
      %v3665 = vsel %vm1677, %v3633, %v2999
      %v3666 = vsel %vm1677, %v3634, %v3001
      %v3667 = vsel %vm1677, %v3635, %v3003
      %v3668 = vsel %vm1677, %v3636, %v3005
      %v3669 = vsel %vm1677, %v3637, %v3007
      %v3670 = vsel %vm1677, %v3638, %v3009
      %v3671 = vsel %vm1677, %v3639, %v3011
      %v3672 = vsel %vm1677, %v3640, %v3013
      %v3673 = vsel %vm1677, %v3641, %v3015
      %v3674 = vsel %vm1677, %v3642, %v3017
      %v3675 = vsel %vm1677, %v3643, %v3019
      %v3676 = vsel %vm1677, %v3644, %v3021
      %v3677 = vsel %vm1677, %v3645, %v3023
      %v3678 = vsel %vm1677, %v3646, %v3025
      %v3679 = vsel %vm1677, %v3647, %v3027
      %v3680 = vsel %vm1677, %v3648, %v3029
      %v3681 = vsel %vm1677, %v3649, %v3031
      %v3682 = vsel %vm1677, %v3650, %v3033
      %v3683 = vsel %vm1677, %v3651, %v3035
      %v3684 = vsel %vm1677, %v3652, %v3037
      %v3685 = vsel %vm1677, %v3653, %v3039
      %v3686 = vsel %vm1677, %v3654, %v3041
      %v3687 = vsel %vm1677, %v3655, %v3043
      %v3688 = vsel %vm1677, %v3656, %v3045
      %v3689 = vsel %vm1677, %v3657, %v3047
      %v3690 = vsel %vm1677, %v3658, %v3049
      %v3691 = vsel %vm1677, %v3659, %v3051
      %v3692 = vsel %vm1710, %v3660, %v3117
      %v3693 = vsel %vm1710, %v3661, %v3119
      %v3694 = vsel %vm1710, %v3662, %v3121
      %v3695 = vsel %vm1710, %v3663, %v3123
      %v3696 = vsel %vm1710, %v3664, %v3125
      %v3697 = vsel %vm1710, %v3665, %v3127
      %v3698 = vsel %vm1710, %v3666, %v3129
      %v3699 = vsel %vm1710, %v3667, %v3131
      %v3700 = vsel %vm1710, %v3668, %v3133
      %v3701 = vsel %vm1710, %v3669, %v3135
      %v3702 = vsel %vm1710, %v3670, %v3137
      %v3703 = vsel %vm1710, %v3671, %v3139
      %v3704 = vsel %vm1710, %v3672, %v3141
      %v3705 = vsel %vm1710, %v3673, %v3143
      %v3706 = vsel %vm1710, %v3674, %v3145
      %v3707 = vsel %vm1710, %v3675, %v3147
      %v3708 = vsel %vm1710, %v3676, %v3149
      %v3709 = vsel %vm1710, %v3677, %v3151
      %v3710 = vsel %vm1710, %v3678, %v3153
      %v3711 = vsel %vm1710, %v3679, %v3155
      %v3712 = vsel %vm1710, %v3680, %v3157
      %v3713 = vsel %vm1710, %v3681, %v3159
      %v3714 = vsel %vm1710, %v3682, %v3161
      %v3715 = vsel %vm1710, %v3683, %v3163
      %v3716 = vsel %vm1710, %v3684, %v3165
      %v3717 = vsel %vm1710, %v3685, %v3167
      %v3718 = vsel %vm1710, %v3686, %v3169
      %v3719 = vsel %vm1710, %v3687, %v3171
      %v3720 = vsel %vm1710, %v3688, %v3173
      %v3721 = vsel %vm1710, %v3689, %v3175
      %v3722 = vsel %vm1710, %v3690, %v3177
      %v3723 = vsel %vm1710, %v3691, %v3179
      %v3724 = vsel %vm1743, %v3692, %v3245
      %v3725 = vsel %vm1743, %v3693, %v3247
      %v3726 = vsel %vm1743, %v3694, %v3249
      %v3727 = vsel %vm1743, %v3695, %v3251
      %v3728 = vsel %vm1743, %v3696, %v3253
      %v3729 = vsel %vm1743, %v3697, %v3255
      %v3730 = vsel %vm1743, %v3698, %v3257
      %v3731 = vsel %vm1743, %v3699, %v3259
      %v3732 = vsel %vm1743, %v3700, %v3261
      %v3733 = vsel %vm1743, %v3701, %v3263
      %v3734 = vsel %vm1743, %v3702, %v3265
      %v3735 = vsel %vm1743, %v3703, %v3267
      %v3736 = vsel %vm1743, %v3704, %v3269
      %v3737 = vsel %vm1743, %v3705, %v3271
      %v3738 = vsel %vm1743, %v3706, %v3273
      %v3739 = vsel %vm1743, %v3707, %v3275
      %v3740 = vsel %vm1743, %v3708, %v3277
      %v3741 = vsel %vm1743, %v3709, %v3279
      %v3742 = vsel %vm1743, %v3710, %v3281
      %v3743 = vsel %vm1743, %v3711, %v3283
      %v3744 = vsel %vm1743, %v3712, %v3285
      %v3745 = vsel %vm1743, %v3713, %v3287
      %v3746 = vsel %vm1743, %v3714, %v3289
      %v3747 = vsel %vm1743, %v3715, %v3291
      %v3748 = vsel %vm1743, %v3716, %v3293
      %v3749 = vsel %vm1743, %v3717, %v3295
      %v3750 = vsel %vm1743, %v3718, %v3297
      %v3751 = vsel %vm1743, %v3719, %v3299
      %v3752 = vsel %vm1743, %v3720, %v3301
      %v3753 = vsel %vm1743, %v3721, %v3303
      %v3754 = vsel %vm1743, %v3722, %v3305
      %v3755 = vsel %vm1743, %v3723, %v3307
      %v3756 = vsel %vm1776, %v3724, %v3373
      %v3757 = vsel %vm1776, %v3725, %v3375
      %v3758 = vsel %vm1776, %v3726, %v3377
      %v3759 = vsel %vm1776, %v3727, %v3379
      %v3760 = vsel %vm1776, %v3728, %v3381
      %v3761 = vsel %vm1776, %v3729, %v3383
      %v3762 = vsel %vm1776, %v3730, %v3385
      %v3763 = vsel %vm1776, %v3731, %v3387
      %v3764 = vsel %vm1776, %v3732, %v3389
      %v3765 = vsel %vm1776, %v3733, %v3391
      %v3766 = vsel %vm1776, %v3734, %v3393
      %v3767 = vsel %vm1776, %v3735, %v3395
      %v3768 = vsel %vm1776, %v3736, %v3397
      %v3769 = vsel %vm1776, %v3737, %v3399
      %v3770 = vsel %vm1776, %v3738, %v3401
      %v3771 = vsel %vm1776, %v3739, %v3403
      %v3772 = vsel %vm1776, %v3740, %v3405
      %v3773 = vsel %vm1776, %v3741, %v3407
      %v3774 = vsel %vm1776, %v3742, %v3409
      %v3775 = vsel %vm1776, %v3743, %v3411
      %v3776 = vsel %vm1776, %v3744, %v3413
      %v3777 = vsel %vm1776, %v3745, %v3415
      %v3778 = vsel %vm1776, %v3746, %v3417
      %v3779 = vsel %vm1776, %v3747, %v3419
      %v3780 = vsel %vm1776, %v3748, %v3421
      %v3781 = vsel %vm1776, %v3749, %v3423
      %v3782 = vsel %vm1776, %v3750, %v3425
      %v3783 = vsel %vm1776, %v3751, %v3427
      %v3784 = vsel %vm1776, %v3752, %v3429
      %v3785 = vsel %vm1776, %v3753, %v3431
      %v3786 = vsel %vm1776, %v3754, %v3433
      %v3787 = vsel %vm1776, %v3755, %v3435
      %v3788 = vsel %vm1809, %v3756, %v3501
      %v3789 = vsel %vm1809, %v3757, %v3503
      %v3790 = vsel %vm1809, %v3758, %v3505
      %v3791 = vsel %vm1809, %v3759, %v3507
      %v3792 = vsel %vm1809, %v3760, %v3509
      %v3793 = vsel %vm1809, %v3761, %v3511
      %v3794 = vsel %vm1809, %v3762, %v3513
      %v3795 = vsel %vm1809, %v3763, %v3515
      %v3796 = vsel %vm1809, %v3764, %v3517
      %v3797 = vsel %vm1809, %v3765, %v3519
      %v3798 = vsel %vm1809, %v3766, %v3521
      %v3799 = vsel %vm1809, %v3767, %v3523
      %v3800 = vsel %vm1809, %v3768, %v3525
      %v3801 = vsel %vm1809, %v3769, %v3527
      %v3802 = vsel %vm1809, %v3770, %v3529
      %v3803 = vsel %vm1809, %v3771, %v3531
      %v3804 = vsel %vm1809, %v3772, %v3533
      %v3805 = vsel %vm1809, %v3773, %v3535
      %v3806 = vsel %vm1809, %v3774, %v3537
      %v3807 = vsel %vm1809, %v3775, %v3539
      %v3808 = vsel %vm1809, %v3776, %v3541
      %v3809 = vsel %vm1809, %v3777, %v3543
      %v3810 = vsel %vm1809, %v3778, %v3545
      %v3811 = vsel %vm1809, %v3779, %v3547
      %v3812 = vsel %vm1809, %v3780, %v3549
      %v3813 = vsel %vm1809, %v3781, %v3551
      %v3814 = vsel %vm1809, %v3782, %v3553
      %v3815 = vsel %vm1809, %v3783, %v3555
      %v3816 = vsel %vm1809, %v3784, %v3557
      %v3817 = vsel %vm1809, %v3785, %v3559
      %v3818 = vsel %vm1809, %v3786, %v3561
      %v3819 = vsel %vm1809, %v3787, %v3563
      %s3820 = scalar_lea.vmem %s1, 144
      %v3821 = vld [vmem:[%s3820] sm:$0xff]
      %v3822 = vld [vmem:[%s3820 + $0x8] sm:$0xff]
      %v3823 = vld [vmem:[%s3820 + $0x10] sm:$0xff]
      %v3824 = vld [vmem:[%s3820 + $0x18] sm:$0xff]
      %v3825 = vld [vmem:[%s3820 + $0x20] sm:$0xff]
      %v3826 = vld [vmem:[%s3820 + $0x28] sm:$0xff]
      %v3827 = vld [vmem:[%s3820 + $0x30] sm:$0xff]
      %v3828 = vld [vmem:[%s3820 + $0x38] sm:$0xff]
      %v3829 = vld [vmem:[%s3820 + $0x40] sm:$0xff]
      %v3830 = vld [vmem:[%s3820 + $0x48] sm:$0xff]
      %v3831 = vld [vmem:[%s3820 + $0x50] sm:$0xff]
      %v3832 = vld [vmem:[%s3820 + $0x58] sm:$0xff]
      %v3833 = vld [vmem:[%s3820 + $0x60] sm:$0xff]
      %v3834 = vld [vmem:[%s3820 + $0x68] sm:$0xff]
      %v3835 = vld [vmem:[%s3820 + $0x70] sm:$0xff]
      %v3836 = vld [vmem:[%s3820 + $0x78] sm:$0xff]
      %v3837 = vld [vmem:[%s3820 + $0x80] sm:$0xff]
      %v3838 = vld [vmem:[%s3820 + $0x88] sm:$0xff]
      %s3839 = scalar_lea.vmem %s2, 1
      %v3840 = vld [vmem:[%s3839] sm:$0x1]
      %v3842 = vlaneseq
      %v3843 = vshrl.u32 %v3842, 7
      %v3844 = vsub.s32 0, %v3843
      %v3845 = vrot.slane %v3840, %v3844
      %v3848 = vsel %vm306, %v2668, 0
      %v3851 = vsel %vm306, %v2669, 0
      %v3854 = vsel %vm306, %v2670, 0
      %v3857 = vsel %vm306, %v2671, 0
      %v3860 = vsel %vm306, %v2672, 0
      %v3863 = vsel %vm306, %v2673, 0
      %v3866 = vsel %vm306, %v2674, 0
      %v3869 = vsel %vm306, %v2675, 0
      %v3872 = vsel %vm306, %v2676, 0
      %v3875 = vsel %vm306, %v2677, 0
      %v3878 = vsel %vm306, %v2678, 0
      %v3881 = vsel %vm306, %v2679, 0
      %v3884 = vsel %vm306, %v2680, 0
      %v3887 = vsel %vm306, %v2681, 0
      %v3890 = vsel %vm306, %v2682, 0
      %v3893 = vsel %vm306, %v2683, 0
      %v3896 = vsel %vm306, %v2684, 0
      %v3899 = vsel %vm306, %v2685, 0
      %v3902 = vsel %vm306, %v2686, 0
      %v3905 = vsel %vm306, %v2687, 0
      %v3908 = vsel %vm306, %v2688, 0
      %v3911 = vsel %vm306, %v2689, 0
      %v3914 = vsel %vm306, %v2690, 0
      %v3917 = vsel %vm306, %v2691, 0
      %v3920 = vsel %vm306, %v2692, 0
      %v3923 = vsel %vm306, %v2693, 0
      %v3926 = vsel %vm306, %v2694, 0
      %v3929 = vsel %vm306, %v2695, 0
      %v3932 = vsel %vm306, %v2696, 0
      %v3935 = vsel %vm306, %v2697, 0
      %v3938 = vsel %vm306, %v2698, 0
      %v3941 = vsel %vm306, %v2699, 0
      %3943 = vmatprep.subr.mxu0 0.0
      %3944 = vmatpush1.msra.mxu0 %v3821
      %3945 = vmatprep.subr.mxu0 0.0
      %3946 = vmatpush1.msra.mxu0 %v3822
      %3947 = vmatprep.subr.mxu0 0.0
      %3948 = vmatpush1.msra.mxu0 %v3823
      %3949 = vmatprep.subr.mxu0 0.0
      %3950 = vmatpush1.msra.mxu0 %v3824
      %3951 = vmatprep.subr.mxu0 0.0
      %3952 = vmatpush1.msra.mxu0 %v3825
      %3953 = vmatprep.subr.mxu0 0.0
      %3954 = vmatpush1.msra.mxu0 %v3826
      %3955 = vmatprep.subr.mxu0 0.0
      %3956 = vmatpush1.msra.mxu0 %v3827
      %3957 = vmatprep.subr.mxu0 0.0
      %3958 = vmatpush1.msra.mxu0 %v3828
      %3959 = vmatprep.subr.mxu0 0.0
      %3960 = vmatpush1.msra.mxu0 %v3829
      %3961 = vmatprep.subr.mxu0 0.0
      %3962 = vmatpush1.msra.mxu0 %v3830
      %3963 = vmatprep.subr.mxu0 0.0
      %3964 = vmatpush1.msra.mxu0 %v3831
      %3965 = vmatprep.subr.mxu0 0.0
      %3966 = vmatpush1.msra.mxu0 %v3832
      %3967 = vmatprep.subr.mxu0 0.0
      %3968 = vmatpush1.msra.mxu0 %v3833
      %3969 = vmatprep.subr.mxu0 0.0
      %3970 = vmatpush1.msra.mxu0 %v3834
      %3971 = vmatprep.subr.mxu0 0.0
      %3972 = vmatpush1.msra.mxu0 %v3835
      %3973 = vmatprep.subr.mxu0 0.0
      %3974 = vmatpush1.msra.mxu0 %v3836
      %3975 = vmatprep.subr.mxu0 0.0
      %3976 = vmatpush1.msra.mxu0 %v3837
      %3977 = vmatprep.subr.mxu0 0.0
      %3978 = vmatpush1.msra.mxu0 %v3838
      %3979 = vmatprep.subr.mxu0 0.0
      %3980 = vmatpush1.msra.mxu0 0.0
      %3981 = vmatprep.subr.mxu0 0.0
      %3982 = vmatpush1.msra.mxu0 0.0
      %3983 = vmatprep.subr.mxu0 0.0
      %3984 = vmatpush1.msra.mxu0 0.0
      %3985 = vmatprep.subr.mxu0 0.0
      %3986 = vmatpush1.msra.mxu0 0.0
      %3987 = vmatprep.subr.mxu0 0.0
      %3988 = vmatpush1.msra.mxu0 0.0
      %3989 = vmatprep.subr.mxu0 0.0
      %3990 = vmatpush1.msra.mxu0 0.0
      %3991 = vmatprep.subr.mxu0 0.0
      %3992 = vmatpush1.msra.mxu0 0.0
      %3993 = vmatprep.subr.mxu0 0.0
      %3994 = vmatpush1.msra.mxu0 0.0
      %3995 = vmatprep.subr.mxu0 0.0
      %3996 = vmatpush1.msra.mxu0 0.0
      %3997 = vmatprep.subr.mxu0 0.0
      %3998 = vmatpush1.msra.mxu0 0.0
      %3999 = vmatprep.subr.mxu0 0.0
      %4000 = vmatpush1.msra.mxu0 0.0
      %4001 = vmatprep.subr.mxu0 0.0
      %4002 = vmatpush1.msra.mxu0 0.0
      %4003 = vmatprep.subr.mxu0 0.0
      %4004 = vmatpush1.msra.mxu0 0.0
      %4005 = vmatprep.subr.mxu0 0.0
      %4006 = vmatpush1.msra.mxu0 0.0
      %4007 = vmatprep.mubr.f32.mxu0 %v3848
      %4008 = vmatmul.mubr.f32.gmra.mrb[0].mxu0 %v3788
      %v4009 = vpop.f32.mrb[0].mxu0
      %v4010 = vadd.f32 %v3845, %v4009
      %v4011 = vpop.f32.mrb[0].mxu0
      %4012 = vmatprep.mubr.f32.mxu0 %v3851
      %4013 = vmatmul.mubr.f32.gmra.mrb[0].mxu0 %v3789
      %v4014 = vpop.f32.mrb[0].mxu0
      %v4015 = vadd.f32 %v3845, %v4014
      %v4016 = vpop.f32.mrb[0].mxu0
      %4017 = vmatprep.mubr.f32.mxu0 %v3854
      %4018 = vmatmul.mubr.f32.gmra.mrb[0].mxu0 %v3790
      %v4019 = vpop.f32.mrb[0].mxu0
      %v4020 = vadd.f32 %v3845, %v4019
      %v4021 = vpop.f32.mrb[0].mxu0
      %4022 = vmatprep.mubr.f32.mxu0 %v3857
      %4023 = vmatmul.mubr.f32.gmra.mrb[0].mxu0 %v3791
      %v4024 = vpop.f32.mrb[0].mxu0
      %v4025 = vadd.f32 %v3845, %v4024
      %v4026 = vpop.f32.mrb[0].mxu0
      %4027 = vmatprep.mubr.f32.mxu0 %v3860
      %4028 = vmatmul.mubr.f32.gmra.mrb[0].mxu0 %v3792
      %v4029 = vpop.f32.mrb[0].mxu0
      %v4030 = vadd.f32 %v3845, %v4029
      %v4031 = vpop.f32.mrb[0].mxu0
      %4032 = vmatprep.mubr.f32.mxu0 %v3863
      %4033 = vmatmul.mubr.f32.gmra.mrb[0].mxu0 %v3793
      %v4034 = vpop.f32.mrb[0].mxu0
      %v4035 = vadd.f32 %v3845, %v4034
      %v4036 = vpop.f32.mrb[0].mxu0
      %4037 = vmatprep.mubr.f32.mxu0 %v3866
      %4038 = vmatmul.mubr.f32.gmra.mrb[0].mxu0 %v3794
      %v4039 = vpop.f32.mrb[0].mxu0
      %v4040 = vadd.f32 %v3845, %v4039
      %v4041 = vpop.f32.mrb[0].mxu0
      %4042 = vmatprep.mubr.f32.mxu0 %v3869
      %4043 = vmatmul.mubr.f32.gmra.mrb[0].mxu0 %v3795
      %v4044 = vpop.f32.mrb[0].mxu0
      %v4045 = vadd.f32 %v3845, %v4044
      %v4046 = vpop.f32.mrb[0].mxu0
      %4047 = vmatprep.mubr.f32.mxu0 %v3872
      %4048 = vmatmul.mubr.f32.gmra.mrb[0].mxu0 %v3796
      %v4049 = vpop.f32.mrb[0].mxu0
      %v4050 = vadd.f32 %v3845, %v4049
      %v4051 = vpop.f32.mrb[0].mxu0
      %4052 = vmatprep.mubr.f32.mxu0 %v3875
      %4053 = vmatmul.mubr.f32.gmra.mrb[0].mxu0 %v3797
      %v4054 = vpop.f32.mrb[0].mxu0
      %v4055 = vadd.f32 %v3845, %v4054
      %v4056 = vpop.f32.mrb[0].mxu0
      %4057 = vmatprep.mubr.f32.mxu0 %v3878
      %4058 = vmatmul.mubr.f32.gmra.mrb[0].mxu0 %v3798
      %v4059 = vpop.f32.mrb[0].mxu0
      %v4060 = vadd.f32 %v3845, %v4059
      %v4061 = vpop.f32.mrb[0].mxu0
      %4062 = vmatprep.mubr.f32.mxu0 %v3881
      %4063 = vmatmul.mubr.f32.gmra.mrb[0].mxu0 %v3799
      %v4064 = vpop.f32.mrb[0].mxu0
      %v4065 = vadd.f32 %v3845, %v4064
      %v4066 = vpop.f32.mrb[0].mxu0
      %4067 = vmatprep.mubr.f32.mxu0 %v3884
      %4068 = vmatmul.mubr.f32.gmra.mrb[0].mxu0 %v3800
      %v4069 = vpop.f32.mrb[0].mxu0
      %v4070 = vadd.f32 %v3845, %v4069
      %v4071 = vpop.f32.mrb[0].mxu0
      %4072 = vmatprep.mubr.f32.mxu0 %v3887
      %4073 = vmatmul.mubr.f32.gmra.mrb[0].mxu0 %v3801
      %v4074 = vpop.f32.mrb[0].mxu0
      %v4075 = vadd.f32 %v3845, %v4074
      %v4076 = vpop.f32.mrb[0].mxu0
      %4077 = vmatprep.mubr.f32.mxu0 %v3890
      %4078 = vmatmul.mubr.f32.gmra.mrb[0].mxu0 %v3802
      %v4079 = vpop.f32.mrb[0].mxu0
      %v4080 = vadd.f32 %v3845, %v4079
      %v4081 = vpop.f32.mrb[0].mxu0
      %4082 = vmatprep.mubr.f32.mxu0 %v3893
      %4083 = vmatmul.mubr.f32.gmra.mrb[0].mxu0 %v3803
      %v4084 = vpop.f32.mrb[0].mxu0
      %v4085 = vadd.f32 %v3845, %v4084
      %v4086 = vpop.f32.mrb[0].mxu0
      %4087 = vmatprep.mubr.f32.mxu0 %v3896
      %4088 = vmatmul.mubr.f32.gmra.mrb[0].mxu0 %v3804
      %v4089 = vpop.f32.mrb[0].mxu0
      %v4090 = vadd.f32 %v3845, %v4089
      %v4091 = vpop.f32.mrb[0].mxu0
      %4092 = vmatprep.mubr.f32.mxu0 %v3899
      %4093 = vmatmul.mubr.f32.gmra.mrb[0].mxu0 %v3805
      %v4094 = vpop.f32.mrb[0].mxu0
      %v4095 = vadd.f32 %v3845, %v4094
      %v4096 = vpop.f32.mrb[0].mxu0
      %4097 = vmatprep.mubr.f32.mxu0 %v3902
      %4098 = vmatmul.mubr.f32.gmra.mrb[0].mxu0 %v3806
      %v4099 = vpop.f32.mrb[0].mxu0
      %v4100 = vadd.f32 %v3845, %v4099
      %v4101 = vpop.f32.mrb[0].mxu0
      %4102 = vmatprep.mubr.f32.mxu0 %v3905
      %4103 = vmatmul.mubr.f32.gmra.mrb[0].mxu0 %v3807
      %v4104 = vpop.f32.mrb[0].mxu0
      %v4105 = vadd.f32 %v3845, %v4104
      %v4106 = vpop.f32.mrb[0].mxu0
      %4107 = vmatprep.mubr.f32.mxu0 %v3908
      %4108 = vmatmul.mubr.f32.gmra.mrb[0].mxu0 %v3808
      %v4109 = vpop.f32.mrb[0].mxu0
      %v4110 = vadd.f32 %v3845, %v4109
      %v4111 = vpop.f32.mrb[0].mxu0
      %4112 = vmatprep.mubr.f32.mxu0 %v3911
      %4113 = vmatmul.mubr.f32.gmra.mrb[0].mxu0 %v3809
      %v4114 = vpop.f32.mrb[0].mxu0
      %v4115 = vadd.f32 %v3845, %v4114
      %v4116 = vpop.f32.mrb[0].mxu0
      %4117 = vmatprep.mubr.f32.mxu0 %v3914
      %4118 = vmatmul.mubr.f32.gmra.mrb[0].mxu0 %v3810
      %v4119 = vpop.f32.mrb[0].mxu0
      %v4120 = vadd.f32 %v3845, %v4119
      %v4121 = vpop.f32.mrb[0].mxu0
      %4122 = vmatprep.mubr.f32.mxu0 %v3917
      %4123 = vmatmul.mubr.f32.gmra.mrb[0].mxu0 %v3811
      %v4124 = vpop.f32.mrb[0].mxu0
      %v4125 = vadd.f32 %v3845, %v4124
      %v4126 = vpop.f32.mrb[0].mxu0
      %4127 = vmatprep.mubr.f32.mxu0 %v3920
      %4128 = vmatmul.mubr.f32.gmra.mrb[0].mxu0 %v3812
      %v4129 = vpop.f32.mrb[0].mxu0
      %v4130 = vadd.f32 %v3845, %v4129
      %v4131 = vpop.f32.mrb[0].mxu0
      %4132 = vmatprep.mubr.f32.mxu0 %v3923
      %4133 = vmatmul.mubr.f32.gmra.mrb[0].mxu0 %v3813
      %v4134 = vpop.f32.mrb[0].mxu0
      %v4135 = vadd.f32 %v3845, %v4134
      %v4136 = vpop.f32.mrb[0].mxu0
      %4137 = vmatprep.mubr.f32.mxu0 %v3926
      %4138 = vmatmul.mubr.f32.gmra.mrb[0].mxu0 %v3814
      %v4139 = vpop.f32.mrb[0].mxu0
      %v4140 = vadd.f32 %v3845, %v4139
      %v4141 = vpop.f32.mrb[0].mxu0
      %4142 = vmatprep.mubr.f32.mxu0 %v3929
      %4143 = vmatmul.mubr.f32.gmra.mrb[0].mxu0 %v3815
      %v4144 = vpop.f32.mrb[0].mxu0
      %v4145 = vadd.f32 %v3845, %v4144
      %v4146 = vpop.f32.mrb[0].mxu0
      %4147 = vmatprep.mubr.f32.mxu0 %v3932
      %4148 = vmatmul.mubr.f32.gmra.mrb[0].mxu0 %v3816
      %v4149 = vpop.f32.mrb[0].mxu0
      %v4150 = vadd.f32 %v3845, %v4149
      %v4151 = vpop.f32.mrb[0].mxu0
      %4152 = vmatprep.mubr.f32.mxu0 %v3935
      %4153 = vmatmul.mubr.f32.gmra.mrb[0].mxu0 %v3817
      %v4154 = vpop.f32.mrb[0].mxu0
      %v4155 = vadd.f32 %v3845, %v4154
      %v4156 = vpop.f32.mrb[0].mxu0
      %4157 = vmatprep.mubr.f32.mxu0 %v3938
      %4158 = vmatmul.mubr.f32.gmra.mrb[0].mxu0 %v3818
      %v4159 = vpop.f32.mrb[0].mxu0
      %v4160 = vadd.f32 %v3845, %v4159
      %v4161 = vpop.f32.mrb[0].mxu0
      %4162 = vmatprep.mubr.f32.mxu0 %v3941
      %4163 = vmatmul.mubr.f32.gmra.mrb[0].mxu0 %v3819
      %v4164 = vpop.f32.mrb[0].mxu0
      %v4165 = vadd.f32 %v3845, %v4164
      %v4166 = vpop.f32.mrb[0].mxu0
      %4167 = vdwg.mxu0
      %v4168 = vmax.f32 %v4010, 0.0
      %v4169 = vmax.f32 %v4015, 0.0
      %v4170 = vmax.f32 %v4020, 0.0
      %v4171 = vmax.f32 %v4025, 0.0
      %v4172 = vmax.f32 %v4030, 0.0
      %v4173 = vmax.f32 %v4035, 0.0
      %v4174 = vmax.f32 %v4040, 0.0
      %v4175 = vmax.f32 %v4045, 0.0
      %v4176 = vmax.f32 %v4050, 0.0
      %v4177 = vmax.f32 %v4055, 0.0
      %v4178 = vmax.f32 %v4060, 0.0
      %v4179 = vmax.f32 %v4065, 0.0
      %v4180 = vmax.f32 %v4070, 0.0
      %v4181 = vmax.f32 %v4075, 0.0
      %v4182 = vmax.f32 %v4080, 0.0
      %v4183 = vmax.f32 %v4085, 0.0
      %v4184 = vmax.f32 %v4090, 0.0
      %v4185 = vmax.f32 %v4095, 0.0
      %v4186 = vmax.f32 %v4100, 0.0
      %v4187 = vmax.f32 %v4105, 0.0
      %v4188 = vmax.f32 %v4110, 0.0
      %v4189 = vmax.f32 %v4115, 0.0
      %v4190 = vmax.f32 %v4120, 0.0
      %v4191 = vmax.f32 %v4125, 0.0
      %v4192 = vmax.f32 %v4130, 0.0
      %v4193 = vmax.f32 %v4135, 0.0
      %v4194 = vmax.f32 %v4140, 0.0
      %v4195 = vmax.f32 %v4145, 0.0
      %v4196 = vmax.f32 %v4150, 0.0
      %v4197 = vmax.f32 %v4155, 0.0
      %v4198 = vmax.f32 %v4160, 0.0
      %v4199 = vmax.f32 %v4165, 0.0
      %4232 = vrot.lane.b32.xlu0 %v4168, 112
      %v4233 = vpop.permute.xlu0 %4232
      %4234 = vrot.lane.b32.xlu0 %v4169, 112
      %v4235 = vpop.permute.xlu0 %4234
      %4236 = vrot.lane.b32.xlu0 %v4170, 112
      %v4237 = vpop.permute.xlu0 %4236
      %4238 = vrot.lane.b32.xlu0 %v4171, 112
      %v4239 = vpop.permute.xlu0 %4238
      %4240 = vrot.lane.b32.xlu0 %v4172, 112
      %v4241 = vpop.permute.xlu0 %4240
      %4242 = vrot.lane.b32.xlu0 %v4173, 112
      %v4243 = vpop.permute.xlu0 %4242
      %4244 = vrot.lane.b32.xlu0 %v4174, 112
      %v4245 = vpop.permute.xlu0 %4244
      %4246 = vrot.lane.b32.xlu0 %v4175, 112
      %v4247 = vpop.permute.xlu0 %4246
      %4248 = vrot.lane.b32.xlu0 %v4176, 112
      %v4249 = vpop.permute.xlu0 %4248
      %4250 = vrot.lane.b32.xlu0 %v4177, 112
      %v4251 = vpop.permute.xlu0 %4250
      %4252 = vrot.lane.b32.xlu0 %v4178, 112
      %v4253 = vpop.permute.xlu0 %4252
      %4254 = vrot.lane.b32.xlu0 %v4179, 112
      %v4255 = vpop.permute.xlu0 %4254
      %4256 = vrot.lane.b32.xlu0 %v4180, 112
      %v4257 = vpop.permute.xlu0 %4256
      %4258 = vrot.lane.b32.xlu0 %v4181, 112
      %v4259 = vpop.permute.xlu0 %4258
      %4260 = vrot.lane.b32.xlu0 %v4182, 112
      %v4261 = vpop.permute.xlu0 %4260
      %4262 = vrot.lane.b32.xlu0 %v4183, 112
      %v4263 = vpop.permute.xlu0 %4262
      %4264 = vrot.lane.b32.xlu0 %v4184, 112
      %v4265 = vpop.permute.xlu0 %4264
      %4266 = vrot.lane.b32.xlu0 %v4185, 112
      %v4267 = vpop.permute.xlu0 %4266
      %4268 = vrot.lane.b32.xlu0 %v4186, 112
      %v4269 = vpop.permute.xlu0 %4268
      %4270 = vrot.lane.b32.xlu0 %v4187, 112
      %v4271 = vpop.permute.xlu0 %4270
      %4272 = vrot.lane.b32.xlu0 %v4188, 112
      %v4273 = vpop.permute.xlu0 %4272
      %4274 = vrot.lane.b32.xlu0 %v4189, 112
      %v4275 = vpop.permute.xlu0 %4274
      %4276 = vrot.lane.b32.xlu0 %v4190, 112
      %v4277 = vpop.permute.xlu0 %4276
      %4278 = vrot.lane.b32.xlu0 %v4191, 112
      %v4279 = vpop.permute.xlu0 %4278
      %4280 = vrot.lane.b32.xlu0 %v4192, 112
      %v4281 = vpop.permute.xlu0 %4280
      %4282 = vrot.lane.b32.xlu0 %v4193, 112
      %v4283 = vpop.permute.xlu0 %4282
      %4284 = vrot.lane.b32.xlu0 %v4194, 112
      %v4285 = vpop.permute.xlu0 %4284
      %4286 = vrot.lane.b32.xlu0 %v4195, 112
      %v4287 = vpop.permute.xlu0 %4286
      %4288 = vrot.lane.b32.xlu0 %v4196, 112
      %v4289 = vpop.permute.xlu0 %4288
      %4290 = vrot.lane.b32.xlu0 %v4197, 112
      %v4291 = vpop.permute.xlu0 %4290
      %4292 = vrot.lane.b32.xlu0 %v4198, 112
      %v4293 = vpop.permute.xlu0 %4292
      %4294 = vrot.lane.b32.xlu0 %v4199, 112
      %v4295 = vpop.permute.xlu0 %4294
      %v4328 = vsel %vm306, %v4233, 0.0
      %4329 = vadd.xlane.f32.xlu0 %v4328
      %v4330 = vpop.xlane.xlu0 %4329
      %v4331 = vsel %vm306, %v4235, 0.0
      %4332 = vadd.xlane.f32.xlu0 %v4331
      %v4333 = vpop.xlane.xlu0 %4332
      %v4334 = vsel %vm306, %v4237, 0.0
      %4335 = vadd.xlane.f32.xlu0 %v4334
      %v4336 = vpop.xlane.xlu0 %4335
      %v4337 = vsel %vm306, %v4239, 0.0
      %4338 = vadd.xlane.f32.xlu0 %v4337
      %v4339 = vpop.xlane.xlu0 %4338
      %v4340 = vsel %vm306, %v4241, 0.0
      %4341 = vadd.xlane.f32.xlu0 %v4340
      %v4342 = vpop.xlane.xlu0 %4341
      %v4343 = vsel %vm306, %v4243, 0.0
      %4344 = vadd.xlane.f32.xlu0 %v4343
      %v4345 = vpop.xlane.xlu0 %4344
      %v4346 = vsel %vm306, %v4245, 0.0
      %4347 = vadd.xlane.f32.xlu0 %v4346
      %v4348 = vpop.xlane.xlu0 %4347
      %v4349 = vsel %vm306, %v4247, 0.0
      %4350 = vadd.xlane.f32.xlu0 %v4349
      %v4351 = vpop.xlane.xlu0 %4350
      %v4352 = vsel %vm306, %v4249, 0.0
      %4353 = vadd.xlane.f32.xlu0 %v4352
      %v4354 = vpop.xlane.xlu0 %4353
      %v4355 = vsel %vm306, %v4251, 0.0
      %4356 = vadd.xlane.f32.xlu0 %v4355
      %v4357 = vpop.xlane.xlu0 %4356
      %v4358 = vsel %vm306, %v4253, 0.0
      %4359 = vadd.xlane.f32.xlu0 %v4358
      %v4360 = vpop.xlane.xlu0 %4359
      %v4361 = vsel %vm306, %v4255, 0.0
      %4362 = vadd.xlane.f32.xlu0 %v4361
      %v4363 = vpop.xlane.xlu0 %4362
      %v4364 = vsel %vm306, %v4257, 0.0
      %4365 = vadd.xlane.f32.xlu0 %v4364
      %v4366 = vpop.xlane.xlu0 %4365
      %v4367 = vsel %vm306, %v4259, 0.0
      %4368 = vadd.xlane.f32.xlu0 %v4367
      %v4369 = vpop.xlane.xlu0 %4368
      %v4370 = vsel %vm306, %v4261, 0.0
      %4371 = vadd.xlane.f32.xlu0 %v4370
      %v4372 = vpop.xlane.xlu0 %4371
      %v4373 = vsel %vm306, %v4263, 0.0
      %4374 = vadd.xlane.f32.xlu0 %v4373
      %v4375 = vpop.xlane.xlu0 %4374
      %v4376 = vsel %vm306, %v4265, 0.0
      %4377 = vadd.xlane.f32.xlu0 %v4376
      %v4378 = vpop.xlane.xlu0 %4377
      %v4379 = vsel %vm306, %v4267, 0.0
      %4380 = vadd.xlane.f32.xlu0 %v4379
      %v4381 = vpop.xlane.xlu0 %4380
      %v4382 = vsel %vm306, %v4269, 0.0
      %4383 = vadd.xlane.f32.xlu0 %v4382
      %v4384 = vpop.xlane.xlu0 %4383
      %v4385 = vsel %vm306, %v4271, 0.0
      %4386 = vadd.xlane.f32.xlu0 %v4385
      %v4387 = vpop.xlane.xlu0 %4386
      %v4388 = vsel %vm306, %v4273, 0.0
      %4389 = vadd.xlane.f32.xlu0 %v4388
      %v4390 = vpop.xlane.xlu0 %4389
      %v4391 = vsel %vm306, %v4275, 0.0
      %4392 = vadd.xlane.f32.xlu0 %v4391
      %v4393 = vpop.xlane.xlu0 %4392
      %v4394 = vsel %vm306, %v4277, 0.0
      %4395 = vadd.xlane.f32.xlu0 %v4394
      %v4396 = vpop.xlane.xlu0 %4395
      %v4397 = vsel %vm306, %v4279, 0.0
      %4398 = vadd.xlane.f32.xlu0 %v4397
      %v4399 = vpop.xlane.xlu0 %4398
      %v4400 = vsel %vm306, %v4281, 0.0
      %4401 = vadd.xlane.f32.xlu0 %v4400
      %v4402 = vpop.xlane.xlu0 %4401
      %v4403 = vsel %vm306, %v4283, 0.0
      %4404 = vadd.xlane.f32.xlu0 %v4403
      %v4405 = vpop.xlane.xlu0 %4404
      %v4406 = vsel %vm306, %v4285, 0.0
      %4407 = vadd.xlane.f32.xlu0 %v4406
      %v4408 = vpop.xlane.xlu0 %4407
      %v4409 = vsel %vm306, %v4287, 0.0
      %4410 = vadd.xlane.f32.xlu0 %v4409
      %v4411 = vpop.xlane.xlu0 %4410
      %v4412 = vsel %vm306, %v4289, 0.0
      %4413 = vadd.xlane.f32.xlu0 %v4412
      %v4414 = vpop.xlane.xlu0 %4413
      %v4415 = vsel %vm306, %v4291, 0.0
      %4416 = vadd.xlane.f32.xlu0 %v4415
      %v4417 = vpop.xlane.xlu0 %4416
      %v4418 = vsel %vm306, %v4293, 0.0
      %4419 = vadd.xlane.f32.xlu0 %v4418
      %v4420 = vpop.xlane.xlu0 %4419
      %v4421 = vsel %vm306, %v4295, 0.0
      %4422 = vadd.xlane.f32.xlu0 %v4421
      %v4423 = vpop.xlane.xlu0 %4422
      %v4424 = vrcp.pop 16.0
      %v4425 = vmul.f32 %v4330, %v4424
      %v4426 = vmul.f32 %v4333, %v4424
      %v4427 = vmul.f32 %v4336, %v4424
      %v4428 = vmul.f32 %v4339, %v4424
      %v4429 = vmul.f32 %v4342, %v4424
      %v4430 = vmul.f32 %v4345, %v4424
      %v4431 = vmul.f32 %v4348, %v4424
      %v4432 = vmul.f32 %v4351, %v4424
      %v4433 = vmul.f32 %v4354, %v4424
      %v4434 = vmul.f32 %v4357, %v4424
      %v4435 = vmul.f32 %v4360, %v4424
      %v4436 = vmul.f32 %v4363, %v4424
      %v4437 = vmul.f32 %v4366, %v4424
      %v4438 = vmul.f32 %v4369, %v4424
      %v4439 = vmul.f32 %v4372, %v4424
      %v4440 = vmul.f32 %v4375, %v4424
      %v4441 = vmul.f32 %v4378, %v4424
      %v4442 = vmul.f32 %v4381, %v4424
      %v4443 = vmul.f32 %v4384, %v4424
      %v4444 = vmul.f32 %v4387, %v4424
      %v4445 = vmul.f32 %v4390, %v4424
      %v4446 = vmul.f32 %v4393, %v4424
      %v4447 = vmul.f32 %v4396, %v4424
      %v4448 = vmul.f32 %v4399, %v4424
      %v4449 = vmul.f32 %v4402, %v4424
      %v4450 = vmul.f32 %v4405, %v4424
      %v4451 = vmul.f32 %v4408, %v4424
      %v4452 = vmul.f32 %v4411, %v4424
      %v4453 = vmul.f32 %v4414, %v4424
      %v4454 = vmul.f32 %v4417, %v4424
      %v4455 = vmul.f32 %v4420, %v4424
      %v4456 = vmul.f32 %v4423, %v4424
      %vm4457 = vcmask 261248
      %v4458 = vsel %vm4457, %v4168, -inf
      %4459 = vmax.xlane.f32.xlu0 %v4458
      %v4460 = vpop.xlane.xlu0 %4459
      %v4461 = vsel %vm4457, %v4169, -inf
      %4462 = vmax.xlane.f32.xlu0 %v4461
      %v4463 = vpop.xlane.xlu0 %4462
      %v4464 = vsel %vm4457, %v4170, -inf
      %4465 = vmax.xlane.f32.xlu0 %v4464
      %v4466 = vpop.xlane.xlu0 %4465
      %v4467 = vsel %vm4457, %v4171, -inf
      %4468 = vmax.xlane.f32.xlu0 %v4467
      %v4469 = vpop.xlane.xlu0 %4468
      %v4470 = vsel %vm4457, %v4172, -inf
      %4471 = vmax.xlane.f32.xlu0 %v4470
      %v4472 = vpop.xlane.xlu0 %4471
      %v4473 = vsel %vm4457, %v4173, -inf
      %4474 = vmax.xlane.f32.xlu0 %v4473
      %v4475 = vpop.xlane.xlu0 %4474
      %v4476 = vsel %vm4457, %v4174, -inf
      %4477 = vmax.xlane.f32.xlu0 %v4476
      %v4478 = vpop.xlane.xlu0 %4477
      %v4479 = vsel %vm4457, %v4175, -inf
      %4480 = vmax.xlane.f32.xlu0 %v4479
      %v4481 = vpop.xlane.xlu0 %4480
      %v4482 = vsel %vm4457, %v4176, -inf
      %4483 = vmax.xlane.f32.xlu0 %v4482
      %v4484 = vpop.xlane.xlu0 %4483
      %v4485 = vsel %vm4457, %v4177, -inf
      %4486 = vmax.xlane.f32.xlu0 %v4485
      %v4487 = vpop.xlane.xlu0 %4486
      %v4488 = vsel %vm4457, %v4178, -inf
      %4489 = vmax.xlane.f32.xlu0 %v4488
      %v4490 = vpop.xlane.xlu0 %4489
      %v4491 = vsel %vm4457, %v4179, -inf
      %4492 = vmax.xlane.f32.xlu0 %v4491
      %v4493 = vpop.xlane.xlu0 %4492
      %v4494 = vsel %vm4457, %v4180, -inf
      %4495 = vmax.xlane.f32.xlu0 %v4494
      %v4496 = vpop.xlane.xlu0 %4495
      %v4497 = vsel %vm4457, %v4181, -inf
      %4498 = vmax.xlane.f32.xlu0 %v4497
      %v4499 = vpop.xlane.xlu0 %4498
      %v4500 = vsel %vm4457, %v4182, -inf
      %4501 = vmax.xlane.f32.xlu0 %v4500
      %v4502 = vpop.xlane.xlu0 %4501
      %v4503 = vsel %vm4457, %v4183, -inf
      %4504 = vmax.xlane.f32.xlu0 %v4503
      %v4505 = vpop.xlane.xlu0 %4504
      %v4506 = vsel %vm4457, %v4184, -inf
      %4507 = vmax.xlane.f32.xlu0 %v4506
      %v4508 = vpop.xlane.xlu0 %4507
      %v4509 = vsel %vm4457, %v4185, -inf
      %4510 = vmax.xlane.f32.xlu0 %v4509
      %v4511 = vpop.xlane.xlu0 %4510
      %v4512 = vsel %vm4457, %v4186, -inf
      %4513 = vmax.xlane.f32.xlu0 %v4512
      %v4514 = vpop.xlane.xlu0 %4513
      %v4515 = vsel %vm4457, %v4187, -inf
      %4516 = vmax.xlane.f32.xlu0 %v4515
      %v4517 = vpop.xlane.xlu0 %4516
      %v4518 = vsel %vm4457, %v4188, -inf
      %4519 = vmax.xlane.f32.xlu0 %v4518
      %v4520 = vpop.xlane.xlu0 %4519
      %v4521 = vsel %vm4457, %v4189, -inf
      %4522 = vmax.xlane.f32.xlu0 %v4521
      %v4523 = vpop.xlane.xlu0 %4522
      %v4524 = vsel %vm4457, %v4190, -inf
      %4525 = vmax.xlane.f32.xlu0 %v4524
      %v4526 = vpop.xlane.xlu0 %4525
      %v4527 = vsel %vm4457, %v4191, -inf
      %4528 = vmax.xlane.f32.xlu0 %v4527
      %v4529 = vpop.xlane.xlu0 %4528
      %v4530 = vsel %vm4457, %v4192, -inf
      %4531 = vmax.xlane.f32.xlu0 %v4530
      %v4532 = vpop.xlane.xlu0 %4531
      %v4533 = vsel %vm4457, %v4193, -inf
      %4534 = vmax.xlane.f32.xlu0 %v4533
      %v4535 = vpop.xlane.xlu0 %4534
      %v4536 = vsel %vm4457, %v4194, -inf
      %4537 = vmax.xlane.f32.xlu0 %v4536
      %v4538 = vpop.xlane.xlu0 %4537
      %v4539 = vsel %vm4457, %v4195, -inf
      %4540 = vmax.xlane.f32.xlu0 %v4539
      %v4541 = vpop.xlane.xlu0 %4540
      %v4542 = vsel %vm4457, %v4196, -inf
      %4543 = vmax.xlane.f32.xlu0 %v4542
      %v4544 = vpop.xlane.xlu0 %4543
      %v4545 = vsel %vm4457, %v4197, -inf
      %4546 = vmax.xlane.f32.xlu0 %v4545
      %v4547 = vpop.xlane.xlu0 %4546
      %v4548 = vsel %vm4457, %v4198, -inf
      %4549 = vmax.xlane.f32.xlu0 %v4548
      %v4550 = vpop.xlane.xlu0 %4549
      %v4551 = vsel %vm4457, %v4199, -inf
      %4552 = vmax.xlane.f32.xlu0 %v4551
      %v4553 = vpop.xlane.xlu0 %4552
      %v4554 = vsel %vm306, %v4168, 0.0
      %4555 = vadd.xlane.f32.xlu0 %v4554
      %v4556 = vpop.xlane.xlu0 %4555
      %v4557 = vsel %vm306, %v4169, 0.0
      %4558 = vadd.xlane.f32.xlu0 %v4557
      %v4559 = vpop.xlane.xlu0 %4558
      %v4560 = vsel %vm306, %v4170, 0.0
      %4561 = vadd.xlane.f32.xlu0 %v4560
      %v4562 = vpop.xlane.xlu0 %4561
      %v4563 = vsel %vm306, %v4171, 0.0
      %4564 = vadd.xlane.f32.xlu0 %v4563
      %v4565 = vpop.xlane.xlu0 %4564
      %v4566 = vsel %vm306, %v4172, 0.0
      %4567 = vadd.xlane.f32.xlu0 %v4566
      %v4568 = vpop.xlane.xlu0 %4567
      %v4569 = vsel %vm306, %v4173, 0.0
      %4570 = vadd.xlane.f32.xlu0 %v4569
      %v4571 = vpop.xlane.xlu0 %4570
      %v4572 = vsel %vm306, %v4174, 0.0
      %4573 = vadd.xlane.f32.xlu0 %v4572
      %v4574 = vpop.xlane.xlu0 %4573
      %v4575 = vsel %vm306, %v4175, 0.0
      %4576 = vadd.xlane.f32.xlu0 %v4575
      %v4577 = vpop.xlane.xlu0 %4576
      %v4578 = vsel %vm306, %v4176, 0.0
      %4579 = vadd.xlane.f32.xlu0 %v4578
      %v4580 = vpop.xlane.xlu0 %4579
      %v4581 = vsel %vm306, %v4177, 0.0
      %4582 = vadd.xlane.f32.xlu0 %v4581
      %v4583 = vpop.xlane.xlu0 %4582
      %v4584 = vsel %vm306, %v4178, 0.0
      %4585 = vadd.xlane.f32.xlu0 %v4584
      %v4586 = vpop.xlane.xlu0 %4585
      %v4587 = vsel %vm306, %v4179, 0.0
      %4588 = vadd.xlane.f32.xlu0 %v4587
      %v4589 = vpop.xlane.xlu0 %4588
      %v4590 = vsel %vm306, %v4180, 0.0
      %4591 = vadd.xlane.f32.xlu0 %v4590
      %v4592 = vpop.xlane.xlu0 %4591
      %v4593 = vsel %vm306, %v4181, 0.0
      %4594 = vadd.xlane.f32.xlu0 %v4593
      %v4595 = vpop.xlane.xlu0 %4594
      %v4596 = vsel %vm306, %v4182, 0.0
      %4597 = vadd.xlane.f32.xlu0 %v4596
      %v4598 = vpop.xlane.xlu0 %4597
      %v4599 = vsel %vm306, %v4183, 0.0
      %4600 = vadd.xlane.f32.xlu0 %v4599
      %v4601 = vpop.xlane.xlu0 %4600
      %v4602 = vsel %vm306, %v4184, 0.0
      %4603 = vadd.xlane.f32.xlu0 %v4602
      %v4604 = vpop.xlane.xlu0 %4603
      %v4605 = vsel %vm306, %v4185, 0.0
      %4606 = vadd.xlane.f32.xlu0 %v4605
      %v4607 = vpop.xlane.xlu0 %4606
      %v4608 = vsel %vm306, %v4186, 0.0
      %4609 = vadd.xlane.f32.xlu0 %v4608
      %v4610 = vpop.xlane.xlu0 %4609
      %v4611 = vsel %vm306, %v4187, 0.0
      %4612 = vadd.xlane.f32.xlu0 %v4611
      %v4613 = vpop.xlane.xlu0 %4612
      %v4614 = vsel %vm306, %v4188, 0.0
      %4615 = vadd.xlane.f32.xlu0 %v4614
      %v4616 = vpop.xlane.xlu0 %4615
      %v4617 = vsel %vm306, %v4189, 0.0
      %4618 = vadd.xlane.f32.xlu0 %v4617
      %v4619 = vpop.xlane.xlu0 %4618
      %v4620 = vsel %vm306, %v4190, 0.0
      %4621 = vadd.xlane.f32.xlu0 %v4620
      %v4622 = vpop.xlane.xlu0 %4621
      %v4623 = vsel %vm306, %v4191, 0.0
      %4624 = vadd.xlane.f32.xlu0 %v4623
      %v4625 = vpop.xlane.xlu0 %4624
      %v4626 = vsel %vm306, %v4192, 0.0
      %4627 = vadd.xlane.f32.xlu0 %v4626
      %v4628 = vpop.xlane.xlu0 %4627
      %v4629 = vsel %vm306, %v4193, 0.0
      %4630 = vadd.xlane.f32.xlu0 %v4629
      %v4631 = vpop.xlane.xlu0 %4630
      %v4632 = vsel %vm306, %v4194, 0.0
      %4633 = vadd.xlane.f32.xlu0 %v4632
      %v4634 = vpop.xlane.xlu0 %4633
      %v4635 = vsel %vm306, %v4195, 0.0
      %4636 = vadd.xlane.f32.xlu0 %v4635
      %v4637 = vpop.xlane.xlu0 %4636
      %v4638 = vsel %vm306, %v4196, 0.0
      %4639 = vadd.xlane.f32.xlu0 %v4638
      %v4640 = vpop.xlane.xlu0 %4639
      %v4641 = vsel %vm306, %v4197, 0.0
      %4642 = vadd.xlane.f32.xlu0 %v4641
      %v4643 = vpop.xlane.xlu0 %4642
      %v4644 = vsel %vm306, %v4198, 0.0
      %4645 = vadd.xlane.f32.xlu0 %v4644
      %v4646 = vpop.xlane.xlu0 %4645
      %v4647 = vsel %vm306, %v4199, 0.0
      %4648 = vadd.xlane.f32.xlu0 %v4647
      %v4649 = vpop.xlane.xlu0 %4648
      %v4650 = vmul.f32 %v4556, %v4424
      %v4651 = vmul.f32 %v4559, %v4424
      %v4652 = vmul.f32 %v4562, %v4424
      %v4653 = vmul.f32 %v4565, %v4424
      %v4654 = vmul.f32 %v4568, %v4424
      %v4655 = vmul.f32 %v4571, %v4424
      %v4656 = vmul.f32 %v4574, %v4424
      %v4657 = vmul.f32 %v4577, %v4424
      %v4658 = vmul.f32 %v4580, %v4424
      %v4659 = vmul.f32 %v4583, %v4424
      %v4660 = vmul.f32 %v4586, %v4424
      %v4661 = vmul.f32 %v4589, %v4424
      %v4662 = vmul.f32 %v4592, %v4424
      %v4663 = vmul.f32 %v4595, %v4424
      %v4664 = vmul.f32 %v4598, %v4424
      %v4665 = vmul.f32 %v4601, %v4424
      %v4666 = vmul.f32 %v4604, %v4424
      %v4667 = vmul.f32 %v4607, %v4424
      %v4668 = vmul.f32 %v4610, %v4424
      %v4669 = vmul.f32 %v4613, %v4424
      %v4670 = vmul.f32 %v4616, %v4424
      %v4671 = vmul.f32 %v4619, %v4424
      %v4672 = vmul.f32 %v4622, %v4424
      %v4673 = vmul.f32 %v4625, %v4424
      %v4674 = vmul.f32 %v4628, %v4424
      %v4675 = vmul.f32 %v4631, %v4424
      %v4676 = vmul.f32 %v4634, %v4424
      %v4677 = vmul.f32 %v4637, %v4424
      %v4678 = vmul.f32 %v4640, %v4424
      %v4679 = vmul.f32 %v4643, %v4424
      %v4680 = vmul.f32 %v4646, %v4424
      %v4681 = vmul.f32 %v4649, %v4424
      %v4682 = vsel %vm306, %v4168, -inf
      %4683 = vmax.xlane.f32.xlu0 %v4682
      %v4684 = vpop.xlane.xlu0 %4683
      %v4685 = vsel %vm306, %v4169, -inf
      %4686 = vmax.xlane.f32.xlu0 %v4685
      %v4687 = vpop.xlane.xlu0 %4686
      %v4688 = vsel %vm306, %v4170, -inf
      %4689 = vmax.xlane.f32.xlu0 %v4688
      %v4690 = vpop.xlane.xlu0 %4689
      %v4691 = vsel %vm306, %v4171, -inf
      %4692 = vmax.xlane.f32.xlu0 %v4691
      %v4693 = vpop.xlane.xlu0 %4692
      %v4694 = vsel %vm306, %v4172, -inf
      %4695 = vmax.xlane.f32.xlu0 %v4694
      %v4696 = vpop.xlane.xlu0 %4695
      %v4697 = vsel %vm306, %v4173, -inf
      %4698 = vmax.xlane.f32.xlu0 %v4697
      %v4699 = vpop.xlane.xlu0 %4698
      %v4700 = vsel %vm306, %v4174, -inf
      %4701 = vmax.xlane.f32.xlu0 %v4700
      %v4702 = vpop.xlane.xlu0 %4701
      %v4703 = vsel %vm306, %v4175, -inf
      %4704 = vmax.xlane.f32.xlu0 %v4703
      %v4705 = vpop.xlane.xlu0 %4704
      %v4706 = vsel %vm306, %v4176, -inf
      %4707 = vmax.xlane.f32.xlu0 %v4706
      %v4708 = vpop.xlane.xlu0 %4707
      %v4709 = vsel %vm306, %v4177, -inf
      %4710 = vmax.xlane.f32.xlu0 %v4709
      %v4711 = vpop.xlane.xlu0 %4710
      %v4712 = vsel %vm306, %v4178, -inf
      %4713 = vmax.xlane.f32.xlu0 %v4712
      %v4714 = vpop.xlane.xlu0 %4713
      %v4715 = vsel %vm306, %v4179, -inf
      %4716 = vmax.xlane.f32.xlu0 %v4715
      %v4717 = vpop.xlane.xlu0 %4716
      %v4718 = vsel %vm306, %v4180, -inf
      %4719 = vmax.xlane.f32.xlu0 %v4718
      %v4720 = vpop.xlane.xlu0 %4719
      %v4721 = vsel %vm306, %v4181, -inf
      %4722 = vmax.xlane.f32.xlu0 %v4721
      %v4723 = vpop.xlane.xlu0 %4722
      %v4724 = vsel %vm306, %v4182, -inf
      %4725 = vmax.xlane.f32.xlu0 %v4724
      %v4726 = vpop.xlane.xlu0 %4725
      %v4727 = vsel %vm306, %v4183, -inf
      %4728 = vmax.xlane.f32.xlu0 %v4727
      %v4729 = vpop.xlane.xlu0 %4728
      %v4730 = vsel %vm306, %v4184, -inf
      %4731 = vmax.xlane.f32.xlu0 %v4730
      %v4732 = vpop.xlane.xlu0 %4731
      %v4733 = vsel %vm306, %v4185, -inf
      %4734 = vmax.xlane.f32.xlu0 %v4733
      %v4735 = vpop.xlane.xlu0 %4734
      %v4736 = vsel %vm306, %v4186, -inf
      %4737 = vmax.xlane.f32.xlu0 %v4736
      %v4738 = vpop.xlane.xlu0 %4737
      %v4739 = vsel %vm306, %v4187, -inf
      %4740 = vmax.xlane.f32.xlu0 %v4739
      %v4741 = vpop.xlane.xlu0 %4740
      %v4742 = vsel %vm306, %v4188, -inf
      %4743 = vmax.xlane.f32.xlu0 %v4742
      %v4744 = vpop.xlane.xlu0 %4743
      %v4745 = vsel %vm306, %v4189, -inf
      %4746 = vmax.xlane.f32.xlu0 %v4745
      %v4747 = vpop.xlane.xlu0 %4746
      %v4748 = vsel %vm306, %v4190, -inf
      %4749 = vmax.xlane.f32.xlu0 %v4748
      %v4750 = vpop.xlane.xlu0 %4749
      %v4751 = vsel %vm306, %v4191, -inf
      %4752 = vmax.xlane.f32.xlu0 %v4751
      %v4753 = vpop.xlane.xlu0 %4752
      %v4754 = vsel %vm306, %v4192, -inf
      %4755 = vmax.xlane.f32.xlu0 %v4754
      %v4756 = vpop.xlane.xlu0 %4755
      %v4757 = vsel %vm306, %v4193, -inf
      %4758 = vmax.xlane.f32.xlu0 %v4757
      %v4759 = vpop.xlane.xlu0 %4758
      %v4760 = vsel %vm306, %v4194, -inf
      %4761 = vmax.xlane.f32.xlu0 %v4760
      %v4762 = vpop.xlane.xlu0 %4761
      %v4763 = vsel %vm306, %v4195, -inf
      %4764 = vmax.xlane.f32.xlu0 %v4763
      %v4765 = vpop.xlane.xlu0 %4764
      %v4766 = vsel %vm306, %v4196, -inf
      %4767 = vmax.xlane.f32.xlu0 %v4766
      %v4768 = vpop.xlane.xlu0 %4767
      %v4769 = vsel %vm306, %v4197, -inf
      %4770 = vmax.xlane.f32.xlu0 %v4769
      %v4771 = vpop.xlane.xlu0 %4770
      %v4772 = vsel %vm306, %v4198, -inf
      %4773 = vmax.xlane.f32.xlu0 %v4772
      %v4774 = vpop.xlane.xlu0 %4773
      %v4775 = vsel %vm306, %v4199, -inf
      %4776 = vmax.xlane.f32.xlu0 %v4775
      %v4777 = vpop.xlane.xlu0 %4776
      %v4810 = vlaneseq
      %v4811 = vand.u32 %v4810, 127
      %v4812 = vlaneseq
      %v4813 = vshrl.u32 %v4812, 7
      %v4814 = vsub.s32 %v4811, %v4813
      %v4815 = vrot.slane %v4425, %v4814
      %v4816 = vadd.s32 %v4811, 4294967288
      %v4817 = vlaneseq
      %v4818 = vshrl.u32 %v4817, 7
      %v4819 = vsub.s32 %v4816, %v4818
      %v4820 = vrot.slane %v4426, %v4819
      %vm4821 = vcmask 130112
      %v4822 = vsel %vm4821, %v4820, %v4815
      %v4823 = vlaneseq
      %v4824 = vshrl.u32 %v4823, 7
      %v4825 = vsub.s32 %v4811, %v4824
      %v4826 = vrot.slane %v4427, %v4825
      %v4827 = vlaneseq
      %v4828 = vshrl.u32 %v4827, 7
      %v4829 = vsub.s32 %v4816, %v4828
      %v4830 = vrot.slane %v4428, %v4829
      %v4831 = vsel %vm4821, %v4830, %v4826
      %v4832 = vlaneseq
      %v4833 = vshrl.u32 %v4832, 7
      %v4834 = vsub.s32 %v4811, %v4833
      %v4835 = vrot.slane %v4429, %v4834
      %v4836 = vlaneseq
      %v4837 = vshrl.u32 %v4836, 7
      %v4838 = vsub.s32 %v4816, %v4837
      %v4839 = vrot.slane %v4430, %v4838
      %v4840 = vsel %vm4821, %v4839, %v4835
      %v4841 = vlaneseq
      %v4842 = vshrl.u32 %v4841, 7
      %v4843 = vsub.s32 %v4811, %v4842
      %v4844 = vrot.slane %v4431, %v4843
      %v4845 = vlaneseq
      %v4846 = vshrl.u32 %v4845, 7
      %v4847 = vsub.s32 %v4816, %v4846
      %v4848 = vrot.slane %v4432, %v4847
      %v4849 = vsel %vm4821, %v4848, %v4844
      %v4850 = vlaneseq
      %v4851 = vshrl.u32 %v4850, 7
      %v4852 = vsub.s32 %v4811, %v4851
      %v4853 = vrot.slane %v4433, %v4852
      %v4854 = vlaneseq
      %v4855 = vshrl.u32 %v4854, 7
      %v4856 = vsub.s32 %v4816, %v4855
      %v4857 = vrot.slane %v4434, %v4856
      %v4858 = vsel %vm4821, %v4857, %v4853
      %v4859 = vlaneseq
      %v4860 = vshrl.u32 %v4859, 7
      %v4861 = vsub.s32 %v4811, %v4860
      %v4862 = vrot.slane %v4435, %v4861
      %v4863 = vlaneseq
      %v4864 = vshrl.u32 %v4863, 7
      %v4865 = vsub.s32 %v4816, %v4864
      %v4866 = vrot.slane %v4436, %v4865
      %v4867 = vsel %vm4821, %v4866, %v4862
      %v4868 = vlaneseq
      %v4869 = vshrl.u32 %v4868, 7
      %v4870 = vsub.s32 %v4811, %v4869
      %v4871 = vrot.slane %v4437, %v4870
      %v4872 = vlaneseq
      %v4873 = vshrl.u32 %v4872, 7
      %v4874 = vsub.s32 %v4816, %v4873
      %v4875 = vrot.slane %v4438, %v4874
      %v4876 = vsel %vm4821, %v4875, %v4871
      %v4877 = vlaneseq
      %v4878 = vshrl.u32 %v4877, 7
      %v4879 = vsub.s32 %v4811, %v4878
      %v4880 = vrot.slane %v4439, %v4879
      %v4881 = vlaneseq
      %v4882 = vshrl.u32 %v4881, 7
      %v4883 = vsub.s32 %v4816, %v4882
      %v4884 = vrot.slane %v4440, %v4883
      %v4885 = vsel %vm4821, %v4884, %v4880
      %v4886 = vlaneseq
      %v4887 = vshrl.u32 %v4886, 7
      %v4888 = vsub.s32 %v4811, %v4887
      %v4889 = vrot.slane %v4441, %v4888
      %v4890 = vlaneseq
      %v4891 = vshrl.u32 %v4890, 7
      %v4892 = vsub.s32 %v4816, %v4891
      %v4893 = vrot.slane %v4442, %v4892
      %v4894 = vsel %vm4821, %v4893, %v4889
      %v4895 = vlaneseq
      %v4896 = vshrl.u32 %v4895, 7
      %v4897 = vsub.s32 %v4811, %v4896
      %v4898 = vrot.slane %v4443, %v4897
      %v4899 = vlaneseq
      %v4900 = vshrl.u32 %v4899, 7
      %v4901 = vsub.s32 %v4816, %v4900
      %v4902 = vrot.slane %v4444, %v4901
      %v4903 = vsel %vm4821, %v4902, %v4898
      %v4904 = vlaneseq
      %v4905 = vshrl.u32 %v4904, 7
      %v4906 = vsub.s32 %v4811, %v4905
      %v4907 = vrot.slane %v4445, %v4906
      %v4908 = vlaneseq
      %v4909 = vshrl.u32 %v4908, 7
      %v4910 = vsub.s32 %v4816, %v4909
      %v4911 = vrot.slane %v4446, %v4910
      %v4912 = vsel %vm4821, %v4911, %v4907
      %v4913 = vlaneseq
      %v4914 = vshrl.u32 %v4913, 7
      %v4915 = vsub.s32 %v4811, %v4914
      %v4916 = vrot.slane %v4447, %v4915
      %v4917 = vlaneseq
      %v4918 = vshrl.u32 %v4917, 7
      %v4919 = vsub.s32 %v4816, %v4918
      %v4920 = vrot.slane %v4448, %v4919
      %v4921 = vsel %vm4821, %v4920, %v4916
      %v4922 = vlaneseq
      %v4923 = vshrl.u32 %v4922, 7
      %v4924 = vsub.s32 %v4811, %v4923
      %v4925 = vrot.slane %v4449, %v4924
      %v4926 = vlaneseq
      %v4927 = vshrl.u32 %v4926, 7
      %v4928 = vsub.s32 %v4816, %v4927
      %v4929 = vrot.slane %v4450, %v4928
      %v4930 = vsel %vm4821, %v4929, %v4925
      %v4931 = vlaneseq
      %v4932 = vshrl.u32 %v4931, 7
      %v4933 = vsub.s32 %v4811, %v4932
      %v4934 = vrot.slane %v4451, %v4933
      %v4935 = vlaneseq
      %v4936 = vshrl.u32 %v4935, 7
      %v4937 = vsub.s32 %v4816, %v4936
      %v4938 = vrot.slane %v4452, %v4937
      %v4939 = vsel %vm4821, %v4938, %v4934
      %v4940 = vlaneseq
      %v4941 = vshrl.u32 %v4940, 7
      %v4942 = vsub.s32 %v4811, %v4941
      %v4943 = vrot.slane %v4453, %v4942
      %v4944 = vlaneseq
      %v4945 = vshrl.u32 %v4944, 7
      %v4946 = vsub.s32 %v4816, %v4945
      %v4947 = vrot.slane %v4454, %v4946
      %v4948 = vsel %vm4821, %v4947, %v4943
      %v4949 = vlaneseq
      %v4950 = vshrl.u32 %v4949, 7
      %v4951 = vsub.s32 %v4811, %v4950
      %v4952 = vrot.slane %v4455, %v4951
      %v4953 = vlaneseq
      %v4954 = vshrl.u32 %v4953, 7
      %v4955 = vsub.s32 %v4816, %v4954
      %v4956 = vrot.slane %v4456, %v4955
      %v4957 = vsel %vm4821, %v4956, %v4952
      %vm4958 = vcmask 1041409
      %v4959 = vsel %vm4958, %v4831, %v4822
      %vm4960 = vcmask 1042434
      %v4961 = vsel %vm4960, %v4840, %v4959
      %vm4962 = vcmask 1043459
      %v4963 = vsel %vm4962, %v4849, %v4961
      %vm4964 = vcmask 1044484
      %v4965 = vsel %vm4964, %v4858, %v4963
      %vm4966 = vcmask 1045509
      %v4967 = vsel %vm4966, %v4867, %v4965
      %vm4968 = vcmask 1046534
      %v4969 = vsel %vm4968, %v4876, %v4967
      %vm4970 = vcmask 1047559
      %v4971 = vsel %vm4970, %v4885, %v4969
      %v4972 = vsel %vm4958, %v4903, %v4894
      %v4973 = vsel %vm4960, %v4912, %v4972
      %v4974 = vsel %vm4962, %v4921, %v4973
      %v4975 = vsel %vm4964, %v4930, %v4974
      %v4976 = vsel %vm4966, %v4939, %v4975
      %v4977 = vsel %vm4968, %v4948, %v4976
      %v4978 = vsel %vm4970, %v4957, %v4977
      %v5013 = vadd.s32 %v4811, 4294967280
      %v5014 = vlaneseq
      %v5015 = vshrl.u32 %v5014, 7
      %v5016 = vsub.s32 %v5013, %v5015
      %v5017 = vrot.slane %v4460, %v5016
      %v5018 = vadd.s32 %v4811, 4294967272
      %v5019 = vlaneseq
      %v5020 = vshrl.u32 %v5019, 7
      %v5021 = vsub.s32 %v5018, %v5020
      %v5022 = vrot.slane %v4463, %v5021
      %vm5023 = vcmask 261312
      %v5024 = vsel %vm5023, %v5022, %v5017
      %v5025 = vlaneseq
      %v5026 = vshrl.u32 %v5025, 7
      %v5027 = vsub.s32 %v5013, %v5026
      %v5028 = vrot.slane %v4466, %v5027
      %v5029 = vlaneseq
      %v5030 = vshrl.u32 %v5029, 7
      %v5031 = vsub.s32 %v5018, %v5030
      %v5032 = vrot.slane %v4469, %v5031
      %v5033 = vsel %vm5023, %v5032, %v5028
      %v5034 = vlaneseq
      %v5035 = vshrl.u32 %v5034, 7
      %v5036 = vsub.s32 %v5013, %v5035
      %v5037 = vrot.slane %v4472, %v5036
      %v5038 = vlaneseq
      %v5039 = vshrl.u32 %v5038, 7
      %v5040 = vsub.s32 %v5018, %v5039
      %v5041 = vrot.slane %v4475, %v5040
      %v5042 = vsel %vm5023, %v5041, %v5037
      %v5043 = vlaneseq
      %v5044 = vshrl.u32 %v5043, 7
      %v5045 = vsub.s32 %v5013, %v5044
      %v5046 = vrot.slane %v4478, %v5045
      %v5047 = vlaneseq
      %v5048 = vshrl.u32 %v5047, 7
      %v5049 = vsub.s32 %v5018, %v5048
      %v5050 = vrot.slane %v4481, %v5049
      %v5051 = vsel %vm5023, %v5050, %v5046
      %v5052 = vlaneseq
      %v5053 = vshrl.u32 %v5052, 7
      %v5054 = vsub.s32 %v5013, %v5053
      %v5055 = vrot.slane %v4484, %v5054
      %v5056 = vlaneseq
      %v5057 = vshrl.u32 %v5056, 7
      %v5058 = vsub.s32 %v5018, %v5057
      %v5059 = vrot.slane %v4487, %v5058
      %v5060 = vsel %vm5023, %v5059, %v5055
      %v5061 = vlaneseq
      %v5062 = vshrl.u32 %v5061, 7
      %v5063 = vsub.s32 %v5013, %v5062
      %v5064 = vrot.slane %v4490, %v5063
      %v5065 = vlaneseq
      %v5066 = vshrl.u32 %v5065, 7
      %v5067 = vsub.s32 %v5018, %v5066
      %v5068 = vrot.slane %v4493, %v5067
      %v5069 = vsel %vm5023, %v5068, %v5064
      %v5070 = vlaneseq
      %v5071 = vshrl.u32 %v5070, 7
      %v5072 = vsub.s32 %v5013, %v5071
      %v5073 = vrot.slane %v4496, %v5072
      %v5074 = vlaneseq
      %v5075 = vshrl.u32 %v5074, 7
      %v5076 = vsub.s32 %v5018, %v5075
      %v5077 = vrot.slane %v4499, %v5076
      %v5078 = vsel %vm5023, %v5077, %v5073
      %v5079 = vlaneseq
      %v5080 = vshrl.u32 %v5079, 7
      %v5081 = vsub.s32 %v5013, %v5080
      %v5082 = vrot.slane %v4502, %v5081
      %v5083 = vlaneseq
      %v5084 = vshrl.u32 %v5083, 7
      %v5085 = vsub.s32 %v5018, %v5084
      %v5086 = vrot.slane %v4505, %v5085
      %v5087 = vsel %vm5023, %v5086, %v5082
      %v5088 = vlaneseq
      %v5089 = vshrl.u32 %v5088, 7
      %v5090 = vsub.s32 %v5013, %v5089
      %v5091 = vrot.slane %v4508, %v5090
      %v5092 = vlaneseq
      %v5093 = vshrl.u32 %v5092, 7
      %v5094 = vsub.s32 %v5018, %v5093
      %v5095 = vrot.slane %v4511, %v5094
      %v5096 = vsel %vm5023, %v5095, %v5091
      %v5097 = vlaneseq
      %v5098 = vshrl.u32 %v5097, 7
      %v5099 = vsub.s32 %v5013, %v5098
      %v5100 = vrot.slane %v4514, %v5099
      %v5101 = vlaneseq
      %v5102 = vshrl.u32 %v5101, 7
      %v5103 = vsub.s32 %v5018, %v5102
      %v5104 = vrot.slane %v4517, %v5103
      %v5105 = vsel %vm5023, %v5104, %v5100
      %v5106 = vlaneseq
      %v5107 = vshrl.u32 %v5106, 7
      %v5108 = vsub.s32 %v5013, %v5107
      %v5109 = vrot.slane %v4520, %v5108
      %v5110 = vlaneseq
      %v5111 = vshrl.u32 %v5110, 7
      %v5112 = vsub.s32 %v5018, %v5111
      %v5113 = vrot.slane %v4523, %v5112
      %v5114 = vsel %vm5023, %v5113, %v5109
      %v5115 = vlaneseq
      %v5116 = vshrl.u32 %v5115, 7
      %v5117 = vsub.s32 %v5013, %v5116
      %v5118 = vrot.slane %v4526, %v5117
      %v5119 = vlaneseq
      %v5120 = vshrl.u32 %v5119, 7
      %v5121 = vsub.s32 %v5018, %v5120
      %v5122 = vrot.slane %v4529, %v5121
      %v5123 = vsel %vm5023, %v5122, %v5118
      %v5124 = vlaneseq
      %v5125 = vshrl.u32 %v5124, 7
      %v5126 = vsub.s32 %v5013, %v5125
      %v5127 = vrot.slane %v4532, %v5126
      %v5128 = vlaneseq
      %v5129 = vshrl.u32 %v5128, 7
      %v5130 = vsub.s32 %v5018, %v5129
      %v5131 = vrot.slane %v4535, %v5130
      %v5132 = vsel %vm5023, %v5131, %v5127
      %v5133 = vlaneseq
      %v5134 = vshrl.u32 %v5133, 7
      %v5135 = vsub.s32 %v5013, %v5134
      %v5136 = vrot.slane %v4538, %v5135
      %v5137 = vlaneseq
      %v5138 = vshrl.u32 %v5137, 7
      %v5139 = vsub.s32 %v5018, %v5138
      %v5140 = vrot.slane %v4541, %v5139
      %v5141 = vsel %vm5023, %v5140, %v5136
      %v5142 = vlaneseq
      %v5143 = vshrl.u32 %v5142, 7
      %v5144 = vsub.s32 %v5013, %v5143
      %v5145 = vrot.slane %v4544, %v5144
      %v5146 = vlaneseq
      %v5147 = vshrl.u32 %v5146, 7
      %v5148 = vsub.s32 %v5018, %v5147
      %v5149 = vrot.slane %v4547, %v5148
      %v5150 = vsel %vm5023, %v5149, %v5145
      %v5151 = vlaneseq
      %v5152 = vshrl.u32 %v5151, 7
      %v5153 = vsub.s32 %v5013, %v5152
      %v5154 = vrot.slane %v4550, %v5153
      %v5155 = vlaneseq
      %v5156 = vshrl.u32 %v5155, 7
      %v5157 = vsub.s32 %v5018, %v5156
      %v5158 = vrot.slane %v4553, %v5157
      %v5159 = vsel %vm5023, %v5158, %v5154
      %v5160 = vsel %vm4958, %v5033, %v5024
      %v5161 = vsel %vm4960, %v5042, %v5160
      %v5162 = vsel %vm4962, %v5051, %v5161
      %v5163 = vsel %vm4964, %v5060, %v5162
      %v5164 = vsel %vm4966, %v5069, %v5163
      %v5165 = vsel %vm4968, %v5078, %v5164
      %v5166 = vsel %vm4970, %v5087, %v5165
      %v5167 = vsel %vm4958, %v5105, %v5096
      %v5168 = vsel %vm4960, %v5114, %v5167
      %v5169 = vsel %vm4962, %v5123, %v5168
      %v5170 = vsel %vm4964, %v5132, %v5169
      %v5171 = vsel %vm4966, %v5141, %v5170
      %v5172 = vsel %vm4968, %v5150, %v5171
      %v5173 = vsel %vm4970, %v5159, %v5172
      %v5208 = vadd.s32 %v4811, 4294967264
      %v5209 = vlaneseq
      %v5210 = vshrl.u32 %v5209, 7
      %v5211 = vsub.s32 %v5208, %v5210
      %v5212 = vrot.slane %v4650, %v5211
      %v5213 = vadd.s32 %v4811, 4294967256
      %v5214 = vlaneseq
      %v5215 = vshrl.u32 %v5214, 7
      %v5216 = vsub.s32 %v5213, %v5215
      %v5217 = vrot.slane %v4651, %v5216
      %vm5218 = vcmask 392512
      %v5219 = vsel %vm5218, %v5217, %v5212
      %v5220 = vlaneseq
      %v5221 = vshrl.u32 %v5220, 7
      %v5222 = vsub.s32 %v5208, %v5221
      %v5223 = vrot.slane %v4652, %v5222
      %v5224 = vlaneseq
      %v5225 = vshrl.u32 %v5224, 7
      %v5226 = vsub.s32 %v5213, %v5225
      %v5227 = vrot.slane %v4653, %v5226
      %v5228 = vsel %vm5218, %v5227, %v5223
      %v5229 = vlaneseq
      %v5230 = vshrl.u32 %v5229, 7
      %v5231 = vsub.s32 %v5208, %v5230
      %v5232 = vrot.slane %v4654, %v5231
      %v5233 = vlaneseq
      %v5234 = vshrl.u32 %v5233, 7
      %v5235 = vsub.s32 %v5213, %v5234
      %v5236 = vrot.slane %v4655, %v5235
      %v5237 = vsel %vm5218, %v5236, %v5232
      %v5238 = vlaneseq
      %v5239 = vshrl.u32 %v5238, 7
      %v5240 = vsub.s32 %v5208, %v5239
      %v5241 = vrot.slane %v4656, %v5240
      %v5242 = vlaneseq
      %v5243 = vshrl.u32 %v5242, 7
      %v5244 = vsub.s32 %v5213, %v5243
      %v5245 = vrot.slane %v4657, %v5244
      %v5246 = vsel %vm5218, %v5245, %v5241
      %v5247 = vlaneseq
      %v5248 = vshrl.u32 %v5247, 7
      %v5249 = vsub.s32 %v5208, %v5248
      %v5250 = vrot.slane %v4658, %v5249
      %v5251 = vlaneseq
      %v5252 = vshrl.u32 %v5251, 7
      %v5253 = vsub.s32 %v5213, %v5252
      %v5254 = vrot.slane %v4659, %v5253
      %v5255 = vsel %vm5218, %v5254, %v5250
      %v5256 = vlaneseq
      %v5257 = vshrl.u32 %v5256, 7
      %v5258 = vsub.s32 %v5208, %v5257
      %v5259 = vrot.slane %v4660, %v5258
      %v5260 = vlaneseq
      %v5261 = vshrl.u32 %v5260, 7
      %v5262 = vsub.s32 %v5213, %v5261
      %v5263 = vrot.slane %v4661, %v5262
      %v5264 = vsel %vm5218, %v5263, %v5259
      %v5265 = vlaneseq
      %v5266 = vshrl.u32 %v5265, 7
      %v5267 = vsub.s32 %v5208, %v5266
      %v5268 = vrot.slane %v4662, %v5267
      %v5269 = vlaneseq
      %v5270 = vshrl.u32 %v5269, 7
      %v5271 = vsub.s32 %v5213, %v5270
      %v5272 = vrot.slane %v4663, %v5271
      %v5273 = vsel %vm5218, %v5272, %v5268
      %v5274 = vlaneseq
      %v5275 = vshrl.u32 %v5274, 7
      %v5276 = vsub.s32 %v5208, %v5275
      %v5277 = vrot.slane %v4664, %v5276
      %v5278 = vlaneseq
      %v5279 = vshrl.u32 %v5278, 7
      %v5280 = vsub.s32 %v5213, %v5279
      %v5281 = vrot.slane %v4665, %v5280
      %v5282 = vsel %vm5218, %v5281, %v5277
      %v5283 = vlaneseq
      %v5284 = vshrl.u32 %v5283, 7
      %v5285 = vsub.s32 %v5208, %v5284
      %v5286 = vrot.slane %v4666, %v5285
      %v5287 = vlaneseq
      %v5288 = vshrl.u32 %v5287, 7
      %v5289 = vsub.s32 %v5213, %v5288
      %v5290 = vrot.slane %v4667, %v5289
      %v5291 = vsel %vm5218, %v5290, %v5286
      %v5292 = vlaneseq
      %v5293 = vshrl.u32 %v5292, 7
      %v5294 = vsub.s32 %v5208, %v5293
      %v5295 = vrot.slane %v4668, %v5294
      %v5296 = vlaneseq
      %v5297 = vshrl.u32 %v5296, 7
      %v5298 = vsub.s32 %v5213, %v5297
      %v5299 = vrot.slane %v4669, %v5298
      %v5300 = vsel %vm5218, %v5299, %v5295
      %v5301 = vlaneseq
      %v5302 = vshrl.u32 %v5301, 7
      %v5303 = vsub.s32 %v5208, %v5302
      %v5304 = vrot.slane %v4670, %v5303
      %v5305 = vlaneseq
      %v5306 = vshrl.u32 %v5305, 7
      %v5307 = vsub.s32 %v5213, %v5306
      %v5308 = vrot.slane %v4671, %v5307
      %v5309 = vsel %vm5218, %v5308, %v5304
      %v5310 = vlaneseq
      %v5311 = vshrl.u32 %v5310, 7
      %v5312 = vsub.s32 %v5208, %v5311
      %v5313 = vrot.slane %v4672, %v5312
      %v5314 = vlaneseq
      %v5315 = vshrl.u32 %v5314, 7
      %v5316 = vsub.s32 %v5213, %v5315
      %v5317 = vrot.slane %v4673, %v5316
      %v5318 = vsel %vm5218, %v5317, %v5313
      %v5319 = vlaneseq
      %v5320 = vshrl.u32 %v5319, 7
      %v5321 = vsub.s32 %v5208, %v5320
      %v5322 = vrot.slane %v4674, %v5321
      %v5323 = vlaneseq
      %v5324 = vshrl.u32 %v5323, 7
      %v5325 = vsub.s32 %v5213, %v5324
      %v5326 = vrot.slane %v4675, %v5325
      %v5327 = vsel %vm5218, %v5326, %v5322
      %v5328 = vlaneseq
      %v5329 = vshrl.u32 %v5328, 7
      %v5330 = vsub.s32 %v5208, %v5329
      %v5331 = vrot.slane %v4676, %v5330
      %v5332 = vlaneseq
      %v5333 = vshrl.u32 %v5332, 7
      %v5334 = vsub.s32 %v5213, %v5333
      %v5335 = vrot.slane %v4677, %v5334
      %v5336 = vsel %vm5218, %v5335, %v5331
      %v5337 = vlaneseq
      %v5338 = vshrl.u32 %v5337, 7
      %v5339 = vsub.s32 %v5208, %v5338
      %v5340 = vrot.slane %v4678, %v5339
      %v5341 = vlaneseq
      %v5342 = vshrl.u32 %v5341, 7
      %v5343 = vsub.s32 %v5213, %v5342
      %v5344 = vrot.slane %v4679, %v5343
      %v5345 = vsel %vm5218, %v5344, %v5340
      %v5346 = vlaneseq
      %v5347 = vshrl.u32 %v5346, 7
      %v5348 = vsub.s32 %v5208, %v5347
      %v5349 = vrot.slane %v4680, %v5348
      %v5350 = vlaneseq
      %v5351 = vshrl.u32 %v5350, 7
      %v5352 = vsub.s32 %v5213, %v5351
      %v5353 = vrot.slane %v4681, %v5352
      %v5354 = vsel %vm5218, %v5353, %v5349
      %v5355 = vsel %vm4958, %v5228, %v5219
      %v5356 = vsel %vm4960, %v5237, %v5355
      %v5357 = vsel %vm4962, %v5246, %v5356
      %v5358 = vsel %vm4964, %v5255, %v5357
      %v5359 = vsel %vm4966, %v5264, %v5358
      %v5360 = vsel %vm4968, %v5273, %v5359
      %v5361 = vsel %vm4970, %v5282, %v5360
      %v5362 = vsel %vm4958, %v5300, %v5291
      %v5363 = vsel %vm4960, %v5309, %v5362
      %v5364 = vsel %vm4962, %v5318, %v5363
      %v5365 = vsel %vm4964, %v5327, %v5364
      %v5366 = vsel %vm4966, %v5336, %v5365
      %v5367 = vsel %vm4968, %v5345, %v5366
      %v5368 = vsel %vm4970, %v5354, %v5367
      %v5403 = vadd.s32 %v4811, 4294967248
      %v5404 = vlaneseq
      %v5405 = vshrl.u32 %v5404, 7
      %v5406 = vsub.s32 %v5403, %v5405
      %v5407 = vrot.slane %v4684, %v5406
      %v5408 = vadd.s32 %v4811, 4294967240
      %v5409 = vlaneseq
      %v5410 = vshrl.u32 %v5409, 7
      %v5411 = vsub.s32 %v5408, %v5410
      %v5412 = vrot.slane %v4687, %v5411
      %vm5413 = vcmask 523712
      %v5414 = vsel %vm5413, %v5412, %v5407
      %v5415 = vlaneseq
      %v5416 = vshrl.u32 %v5415, 7
      %v5417 = vsub.s32 %v5403, %v5416
      %v5418 = vrot.slane %v4690, %v5417
      %v5419 = vlaneseq
      %v5420 = vshrl.u32 %v5419, 7
      %v5421 = vsub.s32 %v5408, %v5420
      %v5422 = vrot.slane %v4693, %v5421
      %v5423 = vsel %vm5413, %v5422, %v5418
      %v5424 = vlaneseq
      %v5425 = vshrl.u32 %v5424, 7
      %v5426 = vsub.s32 %v5403, %v5425
      %v5427 = vrot.slane %v4696, %v5426
      %v5428 = vlaneseq
      %v5429 = vshrl.u32 %v5428, 7
      %v5430 = vsub.s32 %v5408, %v5429
      %v5431 = vrot.slane %v4699, %v5430
      %v5432 = vsel %vm5413, %v5431, %v5427
      %v5433 = vlaneseq
      %v5434 = vshrl.u32 %v5433, 7
      %v5435 = vsub.s32 %v5403, %v5434
      %v5436 = vrot.slane %v4702, %v5435
      %v5437 = vlaneseq
      %v5438 = vshrl.u32 %v5437, 7
      %v5439 = vsub.s32 %v5408, %v5438
      %v5440 = vrot.slane %v4705, %v5439
      %v5441 = vsel %vm5413, %v5440, %v5436
      %v5442 = vlaneseq
      %v5443 = vshrl.u32 %v5442, 7
      %v5444 = vsub.s32 %v5403, %v5443
      %v5445 = vrot.slane %v4708, %v5444
      %v5446 = vlaneseq
      %v5447 = vshrl.u32 %v5446, 7
      %v5448 = vsub.s32 %v5408, %v5447
      %v5449 = vrot.slane %v4711, %v5448
      %v5450 = vsel %vm5413, %v5449, %v5445
      %v5451 = vlaneseq
      %v5452 = vshrl.u32 %v5451, 7
      %v5453 = vsub.s32 %v5403, %v5452
      %v5454 = vrot.slane %v4714, %v5453
      %v5455 = vlaneseq
      %v5456 = vshrl.u32 %v5455, 7
      %v5457 = vsub.s32 %v5408, %v5456
      %v5458 = vrot.slane %v4717, %v5457
      %v5459 = vsel %vm5413, %v5458, %v5454
      %v5460 = vlaneseq
      %v5461 = vshrl.u32 %v5460, 7
      %v5462 = vsub.s32 %v5403, %v5461
      %v5463 = vrot.slane %v4720, %v5462
      %v5464 = vlaneseq
      %v5465 = vshrl.u32 %v5464, 7
      %v5466 = vsub.s32 %v5408, %v5465
      %v5467 = vrot.slane %v4723, %v5466
      %v5468 = vsel %vm5413, %v5467, %v5463
      %v5469 = vlaneseq
      %v5470 = vshrl.u32 %v5469, 7
      %v5471 = vsub.s32 %v5403, %v5470
      %v5472 = vrot.slane %v4726, %v5471
      %v5473 = vlaneseq
      %v5474 = vshrl.u32 %v5473, 7
      %v5475 = vsub.s32 %v5408, %v5474
      %v5476 = vrot.slane %v4729, %v5475
      %v5477 = vsel %vm5413, %v5476, %v5472
      %v5478 = vlaneseq
      %v5479 = vshrl.u32 %v5478, 7
      %v5480 = vsub.s32 %v5403, %v5479
      %v5481 = vrot.slane %v4732, %v5480
      %v5482 = vlaneseq
      %v5483 = vshrl.u32 %v5482, 7
      %v5484 = vsub.s32 %v5408, %v5483
      %v5485 = vrot.slane %v4735, %v5484
      %v5486 = vsel %vm5413, %v5485, %v5481
      %v5487 = vlaneseq
      %v5488 = vshrl.u32 %v5487, 7
      %v5489 = vsub.s32 %v5403, %v5488
      %v5490 = vrot.slane %v4738, %v5489
      %v5491 = vlaneseq
      %v5492 = vshrl.u32 %v5491, 7
      %v5493 = vsub.s32 %v5408, %v5492
      %v5494 = vrot.slane %v4741, %v5493
      %v5495 = vsel %vm5413, %v5494, %v5490
      %v5496 = vlaneseq
      %v5497 = vshrl.u32 %v5496, 7
      %v5498 = vsub.s32 %v5403, %v5497
      %v5499 = vrot.slane %v4744, %v5498
      %v5500 = vlaneseq
      %v5501 = vshrl.u32 %v5500, 7
      %v5502 = vsub.s32 %v5408, %v5501
      %v5503 = vrot.slane %v4747, %v5502
      %v5504 = vsel %vm5413, %v5503, %v5499
      %v5505 = vlaneseq
      %v5506 = vshrl.u32 %v5505, 7
      %v5507 = vsub.s32 %v5403, %v5506
      %v5508 = vrot.slane %v4750, %v5507
      %v5509 = vlaneseq
      %v5510 = vshrl.u32 %v5509, 7
      %v5511 = vsub.s32 %v5408, %v5510
      %v5512 = vrot.slane %v4753, %v5511
      %v5513 = vsel %vm5413, %v5512, %v5508
      %v5514 = vlaneseq
      %v5515 = vshrl.u32 %v5514, 7
      %v5516 = vsub.s32 %v5403, %v5515
      %v5517 = vrot.slane %v4756, %v5516
      %v5518 = vlaneseq
      %v5519 = vshrl.u32 %v5518, 7
      %v5520 = vsub.s32 %v5408, %v5519
      %v5521 = vrot.slane %v4759, %v5520
      %v5522 = vsel %vm5413, %v5521, %v5517
      %v5523 = vlaneseq
      %v5524 = vshrl.u32 %v5523, 7
      %v5525 = vsub.s32 %v5403, %v5524
      %v5526 = vrot.slane %v4762, %v5525
      %v5527 = vlaneseq
      %v5528 = vshrl.u32 %v5527, 7
      %v5529 = vsub.s32 %v5408, %v5528
      %v5530 = vrot.slane %v4765, %v5529
      %v5531 = vsel %vm5413, %v5530, %v5526
      %v5532 = vlaneseq
      %v5533 = vshrl.u32 %v5532, 7
      %v5534 = vsub.s32 %v5403, %v5533
      %v5535 = vrot.slane %v4768, %v5534
      %v5536 = vlaneseq
      %v5537 = vshrl.u32 %v5536, 7
      %v5538 = vsub.s32 %v5408, %v5537
      %v5539 = vrot.slane %v4771, %v5538
      %v5540 = vsel %vm5413, %v5539, %v5535
      %v5541 = vlaneseq
      %v5542 = vshrl.u32 %v5541, 7
      %v5543 = vsub.s32 %v5403, %v5542
      %v5544 = vrot.slane %v4774, %v5543
      %v5545 = vlaneseq
      %v5546 = vshrl.u32 %v5545, 7
      %v5547 = vsub.s32 %v5408, %v5546
      %v5548 = vrot.slane %v4777, %v5547
      %v5549 = vsel %vm5413, %v5548, %v5544
      %v5550 = vsel %vm4958, %v5423, %v5414
      %v5551 = vsel %vm4960, %v5432, %v5550
      %v5552 = vsel %vm4962, %v5441, %v5551
      %v5553 = vsel %vm4964, %v5450, %v5552
      %v5554 = vsel %vm4966, %v5459, %v5553
      %v5555 = vsel %vm4968, %v5468, %v5554
      %v5556 = vsel %vm4970, %v5477, %v5555
      %v5557 = vsel %vm4958, %v5495, %v5486
      %v5558 = vsel %vm4960, %v5504, %v5557
      %v5559 = vsel %vm4962, %v5513, %v5558
      %v5560 = vsel %vm4964, %v5522, %v5559
      %v5561 = vsel %vm4966, %v5531, %v5560
      %v5562 = vsel %vm4968, %v5540, %v5561
      %v5563 = vsel %vm4970, %v5549, %v5562
      %v5566 = vsel %vm306, %v4971, %v5166
      %v5567 = vsel %vm306, %v4978, %v5173
      %v5568 = vsel %vm1644, %v5566, %v5361
      %v5569 = vsel %vm1644, %v5567, %v5368
      %v5570 = vsel %vm1677, %v5568, %v5556
      %v5571 = vsel %vm1677, %v5569, %v5563
      %vm5574 = vcmask 1042432
      %v5575 = vrot.slane %v5570, 5
      %v5576 = vrot.slane %v5571, 5
      %v5577 = vsel %vm5574, %v5575, %v5576
      %v5580 = vsel %vm5574, 0.0, %v5575
      %v5581 = vsel %vm5574, %v5576, 0.0
      %v5582 = vld [vmem:[%s3] sm:$0xff]
      %v5583 = vld [vmem:[%s3 + $0x8] sm:$0xff]
      %v5584 = vld [vmem:[%s3 + $0x10] sm:$0xff]
      %v5585 = vld [vmem:[%s3 + $0x18] sm:$0xff]
      %v5586 = vld [vmem:[%s3 + $0x20] sm:$0xff]
      %v5587 = vld [vmem:[%s3 + $0x28] sm:$0xff]
      %v5588 = vld [vmem:[%s3 + $0x30] sm:$0xff]
      %v5589 = vld [vmem:[%s3 + $0x38] sm:$0xff]
      %s5590 = scalar_lea.vmem %s3, 64
      %v5591 = vld [vmem:[%s5590] sm:$0xff]
      %v5592 = vld [vmem:[%s5590 + $0x8] sm:$0xff]
      %v5593 = vld [vmem:[%s5590 + $0x10] sm:$0xff]
      %v5594 = vld [vmem:[%s5590 + $0x18] sm:$0xff]
      %v5595 = vld [vmem:[%s5590 + $0x20] sm:$0xff]
      %v5596 = vld [vmem:[%s5590 + $0x28] sm:$0xff]
      %v5597 = vld [vmem:[%s5590 + $0x30] sm:$0xff]
      %v5598 = vld [vmem:[%s5590 + $0x38] sm:$0xff]
      %vm5601 = vcmask 1046528
      %v5602 = vrot.slane %v5580, 1
      %v5603 = vrot.slane %v5577, 1
      %v5604 = vsel %vm5601, %v5602, %v5603
      %v5605 = vrot.slane %v5581, 1
      %v5606 = vsel %vm5601, %v5603, %v5605
      %v5607 = vsel %vm1710, %v5604, 0
      %v5609 = vsel %vm1710, %v5606, 0
      %5611 = vmatprep.subr.mxu0 0.0
      %5612 = vmatpush1.msra.mxu0 %v5591
      %5613 = vmatprep.subr.mxu0 0.0
      %5614 = vmatpush1.msra.mxu0 %v5592
      %5615 = vmatprep.subr.mxu0 0.0
      %5616 = vmatpush1.msra.mxu0 %v5593
      %5617 = vmatprep.subr.mxu0 0.0
      %5618 = vmatpush1.msra.mxu0 %v5594
      %5619 = vmatprep.subr.mxu0 0.0
      %5620 = vmatpush1.msra.mxu0 %v5595
      %5621 = vmatprep.subr.mxu0 0.0
      %5622 = vmatpush1.msra.mxu0 %v5596
      %5623 = vmatprep.subr.mxu0 0.0
      %5624 = vmatpush1.msra.mxu0 %v5597
      %5625 = vmatprep.subr.mxu0 0.0
      %5626 = vmatpush1.msra.mxu0 %v5598
      %5627 = vmatprep.subr.mxu0 0.0
      %5628 = vmatpush1.msra.mxu0 0.0
      %5629 = vmatprep.subr.mxu0 0.0
      %5630 = vmatpush1.msra.mxu0 0.0
      %5631 = vmatprep.subr.mxu0 0.0
      %5632 = vmatpush1.msra.mxu0 0.0
      %5633 = vmatprep.subr.mxu0 0.0
      %5634 = vmatpush1.msra.mxu0 0.0
      %5635 = vmatprep.subr.mxu0 0.0
      %5636 = vmatpush1.msra.mxu0 0.0
      %5637 = vmatprep.subr.mxu0 0.0
      %5638 = vmatpush1.msra.mxu0 0.0
      %5639 = vmatprep.subr.mxu0 0.0
      %5640 = vmatpush1.msra.mxu0 0.0
      %5641 = vmatprep.subr.mxu0 0.0
      %5642 = vmatpush1.msra.mxu0 0.0
      %5643 = vmatprep.subr.mxu0 0.0
      %5644 = vmatpush1.msra.mxu0 0.0
      %5645 = vmatprep.subr.mxu0 0.0
      %5646 = vmatpush1.msra.mxu0 0.0
      %5647 = vmatprep.subr.mxu0 0.0
      %5648 = vmatpush1.msra.mxu0 0.0
      %5649 = vmatprep.subr.mxu0 0.0
      %5650 = vmatpush1.msra.mxu0 0.0
      %5651 = vmatprep.subr.mxu0 0.0
      %5652 = vmatpush1.msra.mxu0 0.0
      %5653 = vmatprep.subr.mxu0 0.0
      %5654 = vmatpush1.msra.mxu0 0.0
      %5655 = vmatprep.subr.mxu0 0.0
      %5656 = vmatpush1.msra.mxu0 0.0
      %5657 = vmatprep.subr.mxu0 0.0
      %5658 = vmatpush1.msra.mxu0 0.0
      %5659 = vmatprep.subr.mxu0 0.0
      %5660 = vmatpush1.msra.mxu0 0.0
      %5661 = vmatprep.subr.mxu0 0.0
      %5662 = vmatpush1.msra.mxu0 0.0
      %5663 = vmatprep.subr.mxu0 0.0
      %5664 = vmatpush1.msra.mxu0 0.0
      %5665 = vmatprep.subr.mxu0 0.0
      %5666 = vmatpush1.msra.mxu0 0.0
      %5667 = vmatprep.subr.mxu0 0.0
      %5668 = vmatpush1.msra.mxu0 0.0
      %5669 = vmatprep.subr.mxu0 0.0
      %5670 = vmatpush1.msra.mxu0 0.0
      %5671 = vmatprep.subr.mxu0 0.0
      %5672 = vmatpush1.msra.mxu0 0.0
      %5673 = vmatprep.subr.mxu0 0.0
      %5674 = vmatpush1.msra.mxu0 0.0
      %5675 = vmatprep.mubr.f32.mxu0 0.0
      %5676 = vmatmul.mubr.f32.gmra.mrb[0].mxu0 %v5607
      %v5677 = vpop.f32.mrb[0].mxu0
      %v5678 = vadd.f32 0.0, %v5677
      %v5679 = vpop.f32.mrb[0].mxu0
      %5680 = vmatprep.mubr.f32.mxu0 0.0
      %5681 = vmatmul.mubr.f32.gmra.mrb[0].mxu0 %v5609
      %v5682 = vpop.f32.mrb[0].mxu0
      %v5683 = vadd.f32 0.0, %v5682
      %v5684 = vpop.f32.mrb[0].mxu0
      %5685 = vdwg.mxu0
      %v5686 = vsel %vm1710, %v5580, 0
      %v5688 = vsel %vm1710, %v5577, 0
      %5690 = vmatprep.subr.mxu0 0.0
      %5691 = vmatpush1.msra.mxu0 %v5582
      %5692 = vmatprep.subr.mxu0 0.0
      %5693 = vmatpush1.msra.mxu0 %v5583
      %5694 = vmatprep.subr.mxu0 0.0
      %5695 = vmatpush1.msra.mxu0 %v5584
      %5696 = vmatprep.subr.mxu0 0.0
      %5697 = vmatpush1.msra.mxu0 %v5585
      %5698 = vmatprep.subr.mxu0 0.0
      %5699 = vmatpush1.msra.mxu0 %v5586
      %5700 = vmatprep.subr.mxu0 0.0
      %5701 = vmatpush1.msra.mxu0 %v5587
      %5702 = vmatprep.subr.mxu0 0.0
      %5703 = vmatpush1.msra.mxu0 %v5588
      %5704 = vmatprep.subr.mxu0 0.0
      %5705 = vmatpush1.msra.mxu0 %v5589
      %5706 = vmatprep.subr.mxu0 0.0
      %5707 = vmatpush1.msra.mxu0 0.0
      %5708 = vmatprep.subr.mxu0 0.0
      %5709 = vmatpush1.msra.mxu0 0.0
      %5710 = vmatprep.subr.mxu0 0.0
      %5711 = vmatpush1.msra.mxu0 0.0
      %5712 = vmatprep.subr.mxu0 0.0
      %5713 = vmatpush1.msra.mxu0 0.0
      %5714 = vmatprep.subr.mxu0 0.0
      %5715 = vmatpush1.msra.mxu0 0.0
      %5716 = vmatprep.subr.mxu0 0.0
      %5717 = vmatpush1.msra.mxu0 0.0
      %5718 = vmatprep.subr.mxu0 0.0
      %5719 = vmatpush1.msra.mxu0 0.0
      %5720 = vmatprep.subr.mxu0 0.0
      %5721 = vmatpush1.msra.mxu0 0.0
      %5722 = vmatprep.subr.mxu0 0.0
      %5723 = vmatpush1.msra.mxu0 0.0
      %5724 = vmatprep.subr.mxu0 0.0
      %5725 = vmatpush1.msra.mxu0 0.0
      %5726 = vmatprep.subr.mxu0 0.0
      %5727 = vmatpush1.msra.mxu0 0.0
      %5728 = vmatprep.subr.mxu0 0.0
      %5729 = vmatpush1.msra.mxu0 0.0
      %5730 = vmatprep.subr.mxu0 0.0
      %5731 = vmatpush1.msra.mxu0 0.0
      %5732 = vmatprep.subr.mxu0 0.0
      %5733 = vmatpush1.msra.mxu0 0.0
      %5734 = vmatprep.subr.mxu0 0.0
      %5735 = vmatpush1.msra.mxu0 0.0
      %5736 = vmatprep.subr.mxu0 0.0
      %5737 = vmatpush1.msra.mxu0 0.0
      %5738 = vmatprep.subr.mxu0 0.0
      %5739 = vmatpush1.msra.mxu0 0.0
      %5740 = vmatprep.subr.mxu0 0.0
      %5741 = vmatpush1.msra.mxu0 0.0
      %5742 = vmatprep.subr.mxu0 0.0
      %5743 = vmatpush1.msra.mxu0 0.0
      %5744 = vmatprep.subr.mxu0 0.0
      %5745 = vmatpush1.msra.mxu0 0.0
      %5746 = vmatprep.subr.mxu0 0.0
      %5747 = vmatpush1.msra.mxu0 0.0
      %5748 = vmatprep.subr.mxu0 0.0
      %5749 = vmatpush1.msra.mxu0 0.0
      %5750 = vmatprep.subr.mxu0 0.0
      %5751 = vmatpush1.msra.mxu0 0.0
      %5752 = vmatprep.subr.mxu0 0.0
      %5753 = vmatpush1.msra.mxu0 0.0
      %5754 = vmatprep.mubr.f32.mxu0 0.0
      %5755 = vmatmul.mubr.f32.gmra.mrb[0].mxu0 %v5686
      %v5756 = vpop.f32.mrb[0].mxu0
      %v5757 = vadd.f32 %v5678, %v5756
      %v5758 = vpop.f32.mrb[0].mxu0
      %5759 = vmatprep.mubr.f32.mxu0 0.0
      %5760 = vmatmul.mubr.f32.gmra.mrb[0].mxu0 %v5688
      %v5761 = vpop.f32.mrb[0].mxu0
      %v5762 = vadd.f32 %v5683, %v5761
      %v5763 = vpop.f32.mrb[0].mxu0
      %5764 = vdwg.mxu0
      %s5765 = scalar_lea.vmem %s3, 128
      %v5766 = vld [vmem:[%s5765] sm:$0xff]
      %v5767 = vld [vmem:[%s5765 + $0x8] sm:$0xff]
      %v5768 = vld [vmem:[%s5765 + $0x10] sm:$0xff]
      %v5769 = vld [vmem:[%s5765 + $0x18] sm:$0xff]
      %v5770 = vld [vmem:[%s5765 + $0x20] sm:$0xff]
      %v5771 = vld [vmem:[%s5765 + $0x28] sm:$0xff]
      %v5772 = vld [vmem:[%s5765 + $0x30] sm:$0xff]
      %v5773 = vld [vmem:[%s5765 + $0x38] sm:$0xff]
      %vm5774 = vcmask 1045504
      %v5775 = vrot.slane %v5580, 2
      %v5776 = vrot.slane %v5577, 2
      %v5777 = vsel %vm5774, %v5775, %v5776
      %v5778 = vrot.slane %v5581, 2
      %v5779 = vsel %vm5774, %v5776, %v5778
      %v5780 = vsel %vm1710, %v5777, 0
      %v5782 = vsel %vm1710, %v5779, 0
      %5784 = vmatprep.subr.mxu0 0.0
      %5785 = vmatpush1.msra.mxu0 %v5766
      %5786 = vmatprep.subr.mxu0 0.0
      %5787 = vmatpush1.msra.mxu0 %v5767
      %5788 = vmatprep.subr.mxu0 0.0
      %5789 = vmatpush1.msra.mxu0 %v5768
      %5790 = vmatprep.subr.mxu0 0.0
      %5791 = vmatpush1.msra.mxu0 %v5769
      %5792 = vmatprep.subr.mxu0 0.0
      %5793 = vmatpush1.msra.mxu0 %v5770
      %5794 = vmatprep.subr.mxu0 0.0
      %5795 = vmatpush1.msra.mxu0 %v5771
      %5796 = vmatprep.subr.mxu0 0.0
      %5797 = vmatpush1.msra.mxu0 %v5772
      %5798 = vmatprep.subr.mxu0 0.0
      %5799 = vmatpush1.msra.mxu0 %v5773
      %5800 = vmatprep.subr.mxu0 0.0
      %5801 = vmatpush1.msra.mxu0 0.0
      %5802 = vmatprep.subr.mxu0 0.0
      %5803 = vmatpush1.msra.mxu0 0.0
      %5804 = vmatprep.subr.mxu0 0.0
      %5805 = vmatpush1.msra.mxu0 0.0
      %5806 = vmatprep.subr.mxu0 0.0
      %5807 = vmatpush1.msra.mxu0 0.0
      %5808 = vmatprep.subr.mxu0 0.0
      %5809 = vmatpush1.msra.mxu0 0.0
      %5810 = vmatprep.subr.mxu0 0.0
      %5811 = vmatpush1.msra.mxu0 0.0
      %5812 = vmatprep.subr.mxu0 0.0
      %5813 = vmatpush1.msra.mxu0 0.0
      %5814 = vmatprep.subr.mxu0 0.0
      %5815 = vmatpush1.msra.mxu0 0.0
      %5816 = vmatprep.subr.mxu0 0.0
      %5817 = vmatpush1.msra.mxu0 0.0
      %5818 = vmatprep.subr.mxu0 0.0
      %5819 = vmatpush1.msra.mxu0 0.0
      %5820 = vmatprep.subr.mxu0 0.0
      %5821 = vmatpush1.msra.mxu0 0.0
      %5822 = vmatprep.subr.mxu0 0.0
      %5823 = vmatpush1.msra.mxu0 0.0
      %5824 = vmatprep.subr.mxu0 0.0
      %5825 = vmatpush1.msra.mxu0 0.0
      %5826 = vmatprep.subr.mxu0 0.0
      %5827 = vmatpush1.msra.mxu0 0.0
      %5828 = vmatprep.subr.mxu0 0.0
      %5829 = vmatpush1.msra.mxu0 0.0
      %5830 = vmatprep.subr.mxu0 0.0
      %5831 = vmatpush1.msra.mxu0 0.0
      %5832 = vmatprep.subr.mxu0 0.0
      %5833 = vmatpush1.msra.mxu0 0.0
      %5834 = vmatprep.subr.mxu0 0.0
      %5835 = vmatpush1.msra.mxu0 0.0
      %5836 = vmatprep.subr.mxu0 0.0
      %5837 = vmatpush1.msra.mxu0 0.0
      %5838 = vmatprep.subr.mxu0 0.0
      %5839 = vmatpush1.msra.mxu0 0.0
      %5840 = vmatprep.subr.mxu0 0.0
      %5841 = vmatpush1.msra.mxu0 0.0
      %5842 = vmatprep.subr.mxu0 0.0
      %5843 = vmatpush1.msra.mxu0 0.0
      %5844 = vmatprep.subr.mxu0 0.0
      %5845 = vmatpush1.msra.mxu0 0.0
      %5846 = vmatprep.subr.mxu0 0.0
      %5847 = vmatpush1.msra.mxu0 0.0
      %5848 = vmatprep.mubr.f32.mxu0 0.0
      %5849 = vmatmul.mubr.f32.gmra.mrb[0].mxu0 %v5780
      %v5850 = vpop.f32.mrb[0].mxu0
      %v5851 = vadd.f32 0.0, %v5850
      %v5852 = vpop.f32.mrb[0].mxu0
      %5853 = vmatprep.mubr.f32.mxu0 0.0
      %5854 = vmatmul.mubr.f32.gmra.mrb[0].mxu0 %v5782
      %v5855 = vpop.f32.mrb[0].mxu0
      %v5856 = vadd.f32 0.0, %v5855
      %v5857 = vpop.f32.mrb[0].mxu0
      %5858 = vdwg.mxu0
      %v5859 = vadd.f32 %v5757, %v5851
      %v5860 = vadd.f32 %v5762, %v5856
      %s5861 = scalar_lea.vmem %s3, 192
      %v5862 = vld [vmem:[%s5861] sm:$0xff]
      %v5863 = vld [vmem:[%s5861 + $0x8] sm:$0xff]
      %v5864 = vld [vmem:[%s5861 + $0x10] sm:$0xff]
      %v5865 = vld [vmem:[%s5861 + $0x18] sm:$0xff]
      %v5866 = vld [vmem:[%s5861 + $0x20] sm:$0xff]
      %v5867 = vld [vmem:[%s5861 + $0x28] sm:$0xff]
      %v5868 = vld [vmem:[%s5861 + $0x30] sm:$0xff]
      %v5869 = vld [vmem:[%s5861 + $0x38] sm:$0xff]
      %vm5870 = vcmask 1044480
      %v5871 = vrot.slane %v5580, 3
      %v5872 = vrot.slane %v5577, 3
      %v5873 = vsel %vm5870, %v5871, %v5872
      %v5874 = vrot.slane %v5581, 3
      %v5875 = vsel %vm5870, %v5872, %v5874
      %v5876 = vsel %vm1710, %v5873, 0
      %v5878 = vsel %vm1710, %v5875, 0
      %5880 = vmatprep.subr.mxu0 0.0
      %5881 = vmatpush1.msra.mxu0 %v5862
      %5882 = vmatprep.subr.mxu0 0.0
      %5883 = vmatpush1.msra.mxu0 %v5863
      %5884 = vmatprep.subr.mxu0 0.0
      %5885 = vmatpush1.msra.mxu0 %v5864
      %5886 = vmatprep.subr.mxu0 0.0
      %5887 = vmatpush1.msra.mxu0 %v5865
      %5888 = vmatprep.subr.mxu0 0.0
      %5889 = vmatpush1.msra.mxu0 %v5866
      %5890 = vmatprep.subr.mxu0 0.0
      %5891 = vmatpush1.msra.mxu0 %v5867
      %5892 = vmatprep.subr.mxu0 0.0
      %5893 = vmatpush1.msra.mxu0 %v5868
      %5894 = vmatprep.subr.mxu0 0.0
      %5895 = vmatpush1.msra.mxu0 %v5869
      %5896 = vmatprep.subr.mxu0 0.0
      %5897 = vmatpush1.msra.mxu0 0.0
      %5898 = vmatprep.subr.mxu0 0.0
      %5899 = vmatpush1.msra.mxu0 0.0
      %5900 = vmatprep.subr.mxu0 0.0
      %5901 = vmatpush1.msra.mxu0 0.0
      %5902 = vmatprep.subr.mxu0 0.0
      %5903 = vmatpush1.msra.mxu0 0.0
      %5904 = vmatprep.subr.mxu0 0.0
      %5905 = vmatpush1.msra.mxu0 0.0
      %5906 = vmatprep.subr.mxu0 0.0
      %5907 = vmatpush1.msra.mxu0 0.0
      %5908 = vmatprep.subr.mxu0 0.0
      %5909 = vmatpush1.msra.mxu0 0.0
      %5910 = vmatprep.subr.mxu0 0.0
      %5911 = vmatpush1.msra.mxu0 0.0
      %5912 = vmatprep.subr.mxu0 0.0
      %5913 = vmatpush1.msra.mxu0 0.0
      %5914 = vmatprep.subr.mxu0 0.0
      %5915 = vmatpush1.msra.mxu0 0.0
      %5916 = vmatprep.subr.mxu0 0.0
      %5917 = vmatpush1.msra.mxu0 0.0
      %5918 = vmatprep.subr.mxu0 0.0
      %5919 = vmatpush1.msra.mxu0 0.0
      %5920 = vmatprep.subr.mxu0 0.0
      %5921 = vmatpush1.msra.mxu0 0.0
      %5922 = vmatprep.subr.mxu0 0.0
      %5923 = vmatpush1.msra.mxu0 0.0
      %5924 = vmatprep.subr.mxu0 0.0
      %5925 = vmatpush1.msra.mxu0 0.0
      %5926 = vmatprep.subr.mxu0 0.0
      %5927 = vmatpush1.msra.mxu0 0.0
      %5928 = vmatprep.subr.mxu0 0.0
      %5929 = vmatpush1.msra.mxu0 0.0
      %5930 = vmatprep.subr.mxu0 0.0
      %5931 = vmatpush1.msra.mxu0 0.0
      %5932 = vmatprep.subr.mxu0 0.0
      %5933 = vmatpush1.msra.mxu0 0.0
      %5934 = vmatprep.subr.mxu0 0.0
      %5935 = vmatpush1.msra.mxu0 0.0
      %5936 = vmatprep.subr.mxu0 0.0
      %5937 = vmatpush1.msra.mxu0 0.0
      %5938 = vmatprep.subr.mxu0 0.0
      %5939 = vmatpush1.msra.mxu0 0.0
      %5940 = vmatprep.subr.mxu0 0.0
      %5941 = vmatpush1.msra.mxu0 0.0
      %5942 = vmatprep.subr.mxu0 0.0
      %5943 = vmatpush1.msra.mxu0 0.0
      %5944 = vmatprep.mubr.f32.mxu0 0.0
      %5945 = vmatmul.mubr.f32.gmra.mrb[0].mxu0 %v5876
      %v5946 = vpop.f32.mrb[0].mxu0
      %v5947 = vadd.f32 0.0, %v5946
      %v5948 = vpop.f32.mrb[0].mxu0
      %5949 = vmatprep.mubr.f32.mxu0 0.0
      %5950 = vmatmul.mubr.f32.gmra.mrb[0].mxu0 %v5878
      %v5951 = vpop.f32.mrb[0].mxu0
      %v5952 = vadd.f32 0.0, %v5951
      %v5953 = vpop.f32.mrb[0].mxu0
      %5954 = vdwg.mxu0
      %v5955 = vadd.f32 %v5859, %v5947
      %v5956 = vadd.f32 %v5860, %v5952
      %s5957 = scalar_lea.vmem %s3, 256
      %v5958 = vld [vmem:[%s5957] sm:$0xff]
      %v5959 = vld [vmem:[%s5957 + $0x8] sm:$0xff]
      %v5960 = vld [vmem:[%s5957 + $0x10] sm:$0xff]
      %v5961 = vld [vmem:[%s5957 + $0x18] sm:$0xff]
      %v5962 = vld [vmem:[%s5957 + $0x20] sm:$0xff]
      %v5963 = vld [vmem:[%s5957 + $0x28] sm:$0xff]
      %v5964 = vld [vmem:[%s5957 + $0x30] sm:$0xff]
      %v5965 = vld [vmem:[%s5957 + $0x38] sm:$0xff]
      %vm5966 = vcmask 1043456
      %v5967 = vrot.slane %v5580, 4
      %v5968 = vrot.slane %v5577, 4
      %v5969 = vsel %vm5966, %v5967, %v5968
      %v5970 = vrot.slane %v5581, 4
      %v5971 = vsel %vm5966, %v5968, %v5970
      %v5972 = vsel %vm1710, %v5969, 0
      %v5974 = vsel %vm1710, %v5971, 0
      %5976 = vmatprep.subr.mxu0 0.0
      %5977 = vmatpush1.msra.mxu0 %v5958
      %5978 = vmatprep.subr.mxu0 0.0
      %5979 = vmatpush1.msra.mxu0 %v5959
      %5980 = vmatprep.subr.mxu0 0.0
      %5981 = vmatpush1.msra.mxu0 %v5960
      %5982 = vmatprep.subr.mxu0 0.0
      %5983 = vmatpush1.msra.mxu0 %v5961
      %5984 = vmatprep.subr.mxu0 0.0
      %5985 = vmatpush1.msra.mxu0 %v5962
      %5986 = vmatprep.subr.mxu0 0.0
      %5987 = vmatpush1.msra.mxu0 %v5963
      %5988 = vmatprep.subr.mxu0 0.0
      %5989 = vmatpush1.msra.mxu0 %v5964
      %5990 = vmatprep.subr.mxu0 0.0
      %5991 = vmatpush1.msra.mxu0 %v5965
      %5992 = vmatprep.subr.mxu0 0.0
      %5993 = vmatpush1.msra.mxu0 0.0
      %5994 = vmatprep.subr.mxu0 0.0
      %5995 = vmatpush1.msra.mxu0 0.0
      %5996 = vmatprep.subr.mxu0 0.0
      %5997 = vmatpush1.msra.mxu0 0.0
      %5998 = vmatprep.subr.mxu0 0.0
      %5999 = vmatpush1.msra.mxu0 0.0
      %6000 = vmatprep.subr.mxu0 0.0
      %6001 = vmatpush1.msra.mxu0 0.0
      %6002 = vmatprep.subr.mxu0 0.0
      %6003 = vmatpush1.msra.mxu0 0.0
      %6004 = vmatprep.subr.mxu0 0.0
      %6005 = vmatpush1.msra.mxu0 0.0
      %6006 = vmatprep.subr.mxu0 0.0
      %6007 = vmatpush1.msra.mxu0 0.0
      %6008 = vmatprep.subr.mxu0 0.0
      %6009 = vmatpush1.msra.mxu0 0.0
      %6010 = vmatprep.subr.mxu0 0.0
      %6011 = vmatpush1.msra.mxu0 0.0
      %6012 = vmatprep.subr.mxu0 0.0
      %6013 = vmatpush1.msra.mxu0 0.0
      %6014 = vmatprep.subr.mxu0 0.0
      %6015 = vmatpush1.msra.mxu0 0.0
      %6016 = vmatprep.subr.mxu0 0.0
      %6017 = vmatpush1.msra.mxu0 0.0
      %6018 = vmatprep.subr.mxu0 0.0
      %6019 = vmatpush1.msra.mxu0 0.0
      %6020 = vmatprep.subr.mxu0 0.0
      %6021 = vmatpush1.msra.mxu0 0.0
      %6022 = vmatprep.subr.mxu0 0.0
      %6023 = vmatpush1.msra.mxu0 0.0
      %6024 = vmatprep.subr.mxu0 0.0
      %6025 = vmatpush1.msra.mxu0 0.0
      %6026 = vmatprep.subr.mxu0 0.0
      %6027 = vmatpush1.msra.mxu0 0.0
      %6028 = vmatprep.subr.mxu0 0.0
      %6029 = vmatpush1.msra.mxu0 0.0
      %6030 = vmatprep.subr.mxu0 0.0
      %6031 = vmatpush1.msra.mxu0 0.0
      %6032 = vmatprep.subr.mxu0 0.0
      %6033 = vmatpush1.msra.mxu0 0.0
      %6034 = vmatprep.subr.mxu0 0.0
      %6035 = vmatpush1.msra.mxu0 0.0
      %6036 = vmatprep.subr.mxu0 0.0
      %6037 = vmatpush1.msra.mxu0 0.0
      %6038 = vmatprep.subr.mxu0 0.0
      %6039 = vmatpush1.msra.mxu0 0.0
      %6040 = vmatprep.mubr.f32.mxu0 0.0
      %6041 = vmatmul.mubr.f32.gmra.mrb[0].mxu0 %v5972
      %v6042 = vpop.f32.mrb[0].mxu0
      %v6043 = vadd.f32 0.0, %v6042
      %v6044 = vpop.f32.mrb[0].mxu0
      %6045 = vmatprep.mubr.f32.mxu0 0.0
      %6046 = vmatmul.mubr.f32.gmra.mrb[0].mxu0 %v5974
      %v6047 = vpop.f32.mrb[0].mxu0
      %v6048 = vadd.f32 0.0, %v6047
      %v6049 = vpop.f32.mrb[0].mxu0
      %6050 = vdwg.mxu0
      %v6051 = vadd.f32 %v5955, %v6043
      %v6052 = vadd.f32 %v5956, %v6048
      %s6053 = scalar_lea.vmem %s3, 320
      %v6054 = vld [vmem:[%s6053] sm:$0xff]
      %v6055 = vld [vmem:[%s6053 + $0x8] sm:$0xff]
      %v6056 = vld [vmem:[%s6053 + $0x10] sm:$0xff]
      %v6057 = vld [vmem:[%s6053 + $0x18] sm:$0xff]
      %v6058 = vld [vmem:[%s6053 + $0x20] sm:$0xff]
      %v6059 = vld [vmem:[%s6053 + $0x28] sm:$0xff]
      %v6060 = vld [vmem:[%s6053 + $0x30] sm:$0xff]
      %v6061 = vld [vmem:[%s6053 + $0x38] sm:$0xff]
      %v6062 = vrot.slane %v5580, 5
      %v6063 = vrot.slane %v5577, 5
      %v6064 = vsel %vm5574, %v6062, %v6063
      %v6065 = vrot.slane %v5581, 5
      %v6066 = vsel %vm5574, %v6063, %v6065
      %v6067 = vsel %vm1710, %v6064, 0
      %v6069 = vsel %vm1710, %v6066, 0
      %6071 = vmatprep.subr.mxu0 0.0
      %6072 = vmatpush1.msra.mxu0 %v6054
      %6073 = vmatprep.subr.mxu0 0.0
      %6074 = vmatpush1.msra.mxu0 %v6055
      %6075 = vmatprep.subr.mxu0 0.0
      %6076 = vmatpush1.msra.mxu0 %v6056
      %6077 = vmatprep.subr.mxu0 0.0
      %6078 = vmatpush1.msra.mxu0 %v6057
      %6079 = vmatprep.subr.mxu0 0.0
      %6080 = vmatpush1.msra.mxu0 %v6058
      %6081 = vmatprep.subr.mxu0 0.0
      %6082 = vmatpush1.msra.mxu0 %v6059
      %6083 = vmatprep.subr.mxu0 0.0
      %6084 = vmatpush1.msra.mxu0 %v6060
      %6085 = vmatprep.subr.mxu0 0.0
      %6086 = vmatpush1.msra.mxu0 %v6061
      %6087 = vmatprep.subr.mxu0 0.0
      %6088 = vmatpush1.msra.mxu0 0.0
      %6089 = vmatprep.subr.mxu0 0.0
      %6090 = vmatpush1.msra.mxu0 0.0
      %6091 = vmatprep.subr.mxu0 0.0
      %6092 = vmatpush1.msra.mxu0 0.0
      %6093 = vmatprep.subr.mxu0 0.0
      %6094 = vmatpush1.msra.mxu0 0.0
      %6095 = vmatprep.subr.mxu0 0.0
      %6096 = vmatpush1.msra.mxu0 0.0
      %6097 = vmatprep.subr.mxu0 0.0
      %6098 = vmatpush1.msra.mxu0 0.0
      %6099 = vmatprep.subr.mxu0 0.0
      %6100 = vmatpush1.msra.mxu0 0.0
      %6101 = vmatprep.subr.mxu0 0.0
      %6102 = vmatpush1.msra.mxu0 0.0
      %6103 = vmatprep.subr.mxu0 0.0
      %6104 = vmatpush1.msra.mxu0 0.0
      %6105 = vmatprep.subr.mxu0 0.0
      %6106 = vmatpush1.msra.mxu0 0.0
      %6107 = vmatprep.subr.mxu0 0.0
      %6108 = vmatpush1.msra.mxu0 0.0
      %6109 = vmatprep.subr.mxu0 0.0
      %6110 = vmatpush1.msra.mxu0 0.0
      %6111 = vmatprep.subr.mxu0 0.0
      %6112 = vmatpush1.msra.mxu0 0.0
      %6113 = vmatprep.subr.mxu0 0.0
      %6114 = vmatpush1.msra.mxu0 0.0
      %6115 = vmatprep.subr.mxu0 0.0
      %6116 = vmatpush1.msra.mxu0 0.0
      %6117 = vmatprep.subr.mxu0 0.0
      %6118 = vmatpush1.msra.mxu0 0.0
      %6119 = vmatprep.subr.mxu0 0.0
      %6120 = vmatpush1.msra.mxu0 0.0
      %6121 = vmatprep.subr.mxu0 0.0
      %6122 = vmatpush1.msra.mxu0 0.0
      %6123 = vmatprep.subr.mxu0 0.0
      %6124 = vmatpush1.msra.mxu0 0.0
      %6125 = vmatprep.subr.mxu0 0.0
      %6126 = vmatpush1.msra.mxu0 0.0
      %6127 = vmatprep.subr.mxu0 0.0
      %6128 = vmatpush1.msra.mxu0 0.0
      %6129 = vmatprep.subr.mxu0 0.0
      %6130 = vmatpush1.msra.mxu0 0.0
      %6131 = vmatprep.subr.mxu0 0.0
      %6132 = vmatpush1.msra.mxu0 0.0
      %6133 = vmatprep.subr.mxu0 0.0
      %6134 = vmatpush1.msra.mxu0 0.0
      %6135 = vmatprep.mubr.f32.mxu0 0.0
      %6136 = vmatmul.mubr.f32.gmra.mrb[0].mxu0 %v6067
      %v6137 = vpop.f32.mrb[0].mxu0
      %v6138 = vadd.f32 0.0, %v6137
      %v6139 = vpop.f32.mrb[0].mxu0
      %6140 = vmatprep.mubr.f32.mxu0 0.0
      %6141 = vmatmul.mubr.f32.gmra.mrb[0].mxu0 %v6069
      %v6142 = vpop.f32.mrb[0].mxu0
      %v6143 = vadd.f32 0.0, %v6142
      %v6144 = vpop.f32.mrb[0].mxu0
      %6145 = vdwg.mxu0
      %v6146 = vadd.f32 %v6051, %v6138
      %v6147 = vadd.f32 %v6052, %v6143
      %s6148 = scalar_lea.vmem %s3, 384
      %v6149 = vld [vmem:[%s6148] sm:$0xff]
      %v6150 = vld [vmem:[%s6148 + $0x8] sm:$0xff]
      %v6151 = vld [vmem:[%s6148 + $0x10] sm:$0xff]
      %v6152 = vld [vmem:[%s6148 + $0x18] sm:$0xff]
      %v6153 = vld [vmem:[%s6148 + $0x20] sm:$0xff]
      %v6154 = vld [vmem:[%s6148 + $0x28] sm:$0xff]
      %v6155 = vld [vmem:[%s6148 + $0x30] sm:$0xff]
      %v6156 = vld [vmem:[%s6148 + $0x38] sm:$0xff]
      %vm6157 = vcmask 1041408
      %v6158 = vrot.slane %v5580, 6
      %v6159 = vrot.slane %v5577, 6
      %v6160 = vsel %vm6157, %v6158, %v6159
      %v6161 = vrot.slane %v5581, 6
      %v6162 = vsel %vm6157, %v6159, %v6161
      %v6163 = vsel %vm1710, %v6160, 0
      %v6165 = vsel %vm1710, %v6162, 0
      %6167 = vmatprep.subr.mxu0 0.0
      %6168 = vmatpush1.msra.mxu0 %v6149
      %6169 = vmatprep.subr.mxu0 0.0
      %6170 = vmatpush1.msra.mxu0 %v6150
      %6171 = vmatprep.subr.mxu0 0.0
      %6172 = vmatpush1.msra.mxu0 %v6151
      %6173 = vmatprep.subr.mxu0 0.0
      %6174 = vmatpush1.msra.mxu0 %v6152
      %6175 = vmatprep.subr.mxu0 0.0
      %6176 = vmatpush1.msra.mxu0 %v6153
      %6177 = vmatprep.subr.mxu0 0.0
      %6178 = vmatpush1.msra.mxu0 %v6154
      %6179 = vmatprep.subr.mxu0 0.0
      %6180 = vmatpush1.msra.mxu0 %v6155
      %6181 = vmatprep.subr.mxu0 0.0
      %6182 = vmatpush1.msra.mxu0 %v6156
      %6183 = vmatprep.subr.mxu0 0.0
      %6184 = vmatpush1.msra.mxu0 0.0
      %6185 = vmatprep.subr.mxu0 0.0
      %6186 = vmatpush1.msra.mxu0 0.0
      %6187 = vmatprep.subr.mxu0 0.0
      %6188 = vmatpush1.msra.mxu0 0.0
      %6189 = vmatprep.subr.mxu0 0.0
      %6190 = vmatpush1.msra.mxu0 0.0
      %6191 = vmatprep.subr.mxu0 0.0
      %6192 = vmatpush1.msra.mxu0 0.0
      %6193 = vmatprep.subr.mxu0 0.0
      %6194 = vmatpush1.msra.mxu0 0.0
      %6195 = vmatprep.subr.mxu0 0.0
      %6196 = vmatpush1.msra.mxu0 0.0
      %6197 = vmatprep.subr.mxu0 0.0
      %6198 = vmatpush1.msra.mxu0 0.0
      %6199 = vmatprep.subr.mxu0 0.0
      %6200 = vmatpush1.msra.mxu0 0.0
      %6201 = vmatprep.subr.mxu0 0.0
      %6202 = vmatpush1.msra.mxu0 0.0
      %6203 = vmatprep.subr.mxu0 0.0
      %6204 = vmatpush1.msra.mxu0 0.0
      %6205 = vmatprep.subr.mxu0 0.0
      %6206 = vmatpush1.msra.mxu0 0.0
      %6207 = vmatprep.subr.mxu0 0.0
      %6208 = vmatpush1.msra.mxu0 0.0
      %6209 = vmatprep.subr.mxu0 0.0
      %6210 = vmatpush1.msra.mxu0 0.0
      %6211 = vmatprep.subr.mxu0 0.0
      %6212 = vmatpush1.msra.mxu0 0.0
      %6213 = vmatprep.subr.mxu0 0.0
      %6214 = vmatpush1.msra.mxu0 0.0
      %6215 = vmatprep.subr.mxu0 0.0
      %6216 = vmatpush1.msra.mxu0 0.0
      %6217 = vmatprep.subr.mxu0 0.0
      %6218 = vmatpush1.msra.mxu0 0.0
      %6219 = vmatprep.subr.mxu0 0.0
      %6220 = vmatpush1.msra.mxu0 0.0
      %6221 = vmatprep.subr.mxu0 0.0
      %6222 = vmatpush1.msra.mxu0 0.0
      %6223 = vmatprep.subr.mxu0 0.0
      %6224 = vmatpush1.msra.mxu0 0.0
      %6225 = vmatprep.subr.mxu0 0.0
      %6226 = vmatpush1.msra.mxu0 0.0
      %6227 = vmatprep.subr.mxu0 0.0
      %6228 = vmatpush1.msra.mxu0 0.0
      %6229 = vmatprep.subr.mxu0 0.0
      %6230 = vmatpush1.msra.mxu0 0.0
      %6231 = vmatprep.mubr.f32.mxu0 0.0
      %6232 = vmatmul.mubr.f32.gmra.mrb[0].mxu0 %v6163
      %v6233 = vpop.f32.mrb[0].mxu0
      %v6234 = vadd.f32 0.0, %v6233
      %v6235 = vpop.f32.mrb[0].mxu0
      %6236 = vmatprep.mubr.f32.mxu0 0.0
      %6237 = vmatmul.mubr.f32.gmra.mrb[0].mxu0 %v6165
      %v6238 = vpop.f32.mrb[0].mxu0
      %v6239 = vadd.f32 0.0, %v6238
      %v6240 = vpop.f32.mrb[0].mxu0
      %6241 = vdwg.mxu0
      %v6242 = vadd.f32 %v6146, %v6234
      %v6243 = vadd.f32 %v6147, %v6239
      %v6244 = vxor.u32 %v6242, 2147483648
      %v6245 = vxor.u32 %v6243, 2147483648
      %v6246 = vmul.f32 %v6244, 1.442695
      %v6247 = vpow.pop %v6246
      %v6248 = vmul.f32 %v6245, 1.442695
      %v6249 = vpow.pop %v6248
      %v6250 = vadd.f32 %v6247, 1.0
      %v6251 = vadd.f32 %v6249, 1.0
      %v6252 = vrcp.pop %v6250
      %v6253 = vmul.f32 1.0, %v6252
      %v6254 = vrcp.pop %v6251
      %v6255 = vmul.f32 1.0, %v6254
      %v6256 = vlaneseq
      %v6257 = vshrl.u32 %v6256, 7
      %v6258 = vsub.s32 0, %v6257
      %v6259 = vrot.slane %v6253, %v6258
      %6261 = vbcast.lane.b32.xlu0 %v6259, 256
      %v6262 = vpop.permute.xlu0 %6261
      %s6264 = sor.u32 256, 8
      %6265 = vbcast.lane.b32.xlu0 %v6259, %s6264
      %v6266 = vpop.permute.xlu0 %6265
      %v6267 = vlaneseq
      %v6268 = vshrl.u32 %v6267, 7
      %v6269 = vsub.s32 1, %v6268
      %v6270 = vrot.slane %v6253, %v6269
      %6272 = vbcast.lane.b32.xlu0 %v6270, 256
      %v6273 = vpop.permute.xlu0 %6272
      %s6275 = sor.u32 256, 8
      %6276 = vbcast.lane.b32.xlu0 %v6270, %s6275
      %v6277 = vpop.permute.xlu0 %6276
      %v6278 = vlaneseq
      %v6279 = vshrl.u32 %v6278, 7
      %v6280 = vsub.s32 2, %v6279
      %v6281 = vrot.slane %v6253, %v6280
      %6283 = vbcast.lane.b32.xlu0 %v6281, 256
      %v6284 = vpop.permute.xlu0 %6283
      %s6286 = sor.u32 256, 8
      %6287 = vbcast.lane.b32.xlu0 %v6281, %s6286
      %v6288 = vpop.permute.xlu0 %6287
      %v6289 = vlaneseq
      %v6290 = vshrl.u32 %v6289, 7
      %v6291 = vsub.s32 3, %v6290
      %v6292 = vrot.slane %v6253, %v6291
      %6294 = vbcast.lane.b32.xlu0 %v6292, 256
      %v6295 = vpop.permute.xlu0 %6294
      %s6297 = sor.u32 256, 8
      %6298 = vbcast.lane.b32.xlu0 %v6292, %s6297
      %v6299 = vpop.permute.xlu0 %6298
      %v6300 = vlaneseq
      %v6301 = vshrl.u32 %v6300, 7
      %v6302 = vsub.s32 4, %v6301
      %v6303 = vrot.slane %v6253, %v6302
      %6305 = vbcast.lane.b32.xlu0 %v6303, 256
      %v6306 = vpop.permute.xlu0 %6305
      %s6308 = sor.u32 256, 8
      %6309 = vbcast.lane.b32.xlu0 %v6303, %s6308
      %v6310 = vpop.permute.xlu0 %6309
      %v6311 = vlaneseq
      %v6312 = vshrl.u32 %v6311, 7
      %v6313 = vsub.s32 5, %v6312
      %v6314 = vrot.slane %v6253, %v6313
      %6316 = vbcast.lane.b32.xlu0 %v6314, 256
      %v6317 = vpop.permute.xlu0 %6316
      %s6319 = sor.u32 256, 8
      %6320 = vbcast.lane.b32.xlu0 %v6314, %s6319
      %v6321 = vpop.permute.xlu0 %6320
      %v6322 = vlaneseq
      %v6323 = vshrl.u32 %v6322, 7
      %v6324 = vsub.s32 6, %v6323
      %v6325 = vrot.slane %v6253, %v6324
      %6327 = vbcast.lane.b32.xlu0 %v6325, 256
      %v6328 = vpop.permute.xlu0 %6327
      %s6330 = sor.u32 256, 8
      %6331 = vbcast.lane.b32.xlu0 %v6325, %s6330
      %v6332 = vpop.permute.xlu0 %6331
      %v6333 = vlaneseq
      %v6334 = vshrl.u32 %v6333, 7
      %v6335 = vsub.s32 7, %v6334
      %v6336 = vrot.slane %v6253, %v6335
      %6338 = vbcast.lane.b32.xlu0 %v6336, 256
      %v6339 = vpop.permute.xlu0 %6338
      %s6341 = sor.u32 256, 8
      %6342 = vbcast.lane.b32.xlu0 %v6336, %s6341
      %v6343 = vpop.permute.xlu0 %6342
      %v6344 = vlaneseq
      %v6345 = vshrl.u32 %v6344, 7
      %v6346 = vsub.s32 0, %v6345
      %v6347 = vrot.slane %v6255, %v6346
      %6349 = vbcast.lane.b32.xlu0 %v6347, 256
      %v6350 = vpop.permute.xlu0 %6349
      %s6352 = sor.u32 256, 8
      %6353 = vbcast.lane.b32.xlu0 %v6347, %s6352
      %v6354 = vpop.permute.xlu0 %6353
      %v6355 = vlaneseq
      %v6356 = vshrl.u32 %v6355, 7
      %v6357 = vsub.s32 1, %v6356
      %v6358 = vrot.slane %v6255, %v6357
      %6360 = vbcast.lane.b32.xlu0 %v6358, 256
      %v6361 = vpop.permute.xlu0 %6360
      %s6363 = sor.u32 256, 8
      %6364 = vbcast.lane.b32.xlu0 %v6358, %s6363
      %v6365 = vpop.permute.xlu0 %6364
      %v6366 = vlaneseq
      %v6367 = vshrl.u32 %v6366, 7
      %v6368 = vsub.s32 2, %v6367
      %v6369 = vrot.slane %v6255, %v6368
      %6371 = vbcast.lane.b32.xlu0 %v6369, 256
      %v6372 = vpop.permute.xlu0 %6371
      %s6374 = sor.u32 256, 8
      %6375 = vbcast.lane.b32.xlu0 %v6369, %s6374
      %v6376 = vpop.permute.xlu0 %6375
      %v6377 = vlaneseq
      %v6378 = vshrl.u32 %v6377, 7
      %v6379 = vsub.s32 3, %v6378
      %v6380 = vrot.slane %v6255, %v6379
      %6382 = vbcast.lane.b32.xlu0 %v6380, 256
      %v6383 = vpop.permute.xlu0 %6382
      %s6385 = sor.u32 256, 8
      %6386 = vbcast.lane.b32.xlu0 %v6380, %s6385
      %v6387 = vpop.permute.xlu0 %6386
      %v6388 = vlaneseq
      %v6389 = vshrl.u32 %v6388, 7
      %v6390 = vsub.s32 4, %v6389
      %v6391 = vrot.slane %v6255, %v6390
      %6393 = vbcast.lane.b32.xlu0 %v6391, 256
      %v6394 = vpop.permute.xlu0 %6393
      %s6396 = sor.u32 256, 8
      %6397 = vbcast.lane.b32.xlu0 %v6391, %s6396
      %v6398 = vpop.permute.xlu0 %6397
      %v6399 = vlaneseq
      %v6400 = vshrl.u32 %v6399, 7
      %v6401 = vsub.s32 5, %v6400
      %v6402 = vrot.slane %v6255, %v6401
      %6404 = vbcast.lane.b32.xlu0 %v6402, 256
      %v6405 = vpop.permute.xlu0 %6404
      %s6407 = sor.u32 256, 8
      %6408 = vbcast.lane.b32.xlu0 %v6402, %s6407
      %v6409 = vpop.permute.xlu0 %6408
      %v6410 = vlaneseq
      %v6411 = vshrl.u32 %v6410, 7
      %v6412 = vsub.s32 6, %v6411
      %v6413 = vrot.slane %v6255, %v6412
      %6415 = vbcast.lane.b32.xlu0 %v6413, 256
      %v6416 = vpop.permute.xlu0 %6415
      %s6418 = sor.u32 256, 8
      %6419 = vbcast.lane.b32.xlu0 %v6413, %s6418
      %v6420 = vpop.permute.xlu0 %6419
      %v6421 = vlaneseq
      %v6422 = vshrl.u32 %v6421, 7
      %v6423 = vsub.s32 7, %v6422
      %v6424 = vrot.slane %v6255, %v6423
      %6426 = vbcast.lane.b32.xlu0 %v6424, 256
      %v6427 = vpop.permute.xlu0 %6426
      %s6429 = sor.u32 256, 8
      %6430 = vbcast.lane.b32.xlu0 %v6424, %s6429
      %v6431 = vpop.permute.xlu0 %6430
      %v6432 = vmul.f32 %v4168, %v6262
      %v6433 = vmul.f32 %v4169, %v6266
      %v6434 = vmul.f32 %v4170, %v6273
      %v6435 = vmul.f32 %v4171, %v6277
      %v6436 = vmul.f32 %v4172, %v6284
      %v6437 = vmul.f32 %v4173, %v6288
      %v6438 = vmul.f32 %v4174, %v6295
      %v6439 = vmul.f32 %v4175, %v6299
      %v6440 = vmul.f32 %v4176, %v6306
      %v6441 = vmul.f32 %v4177, %v6310
      %v6442 = vmul.f32 %v4178, %v6317
      %v6443 = vmul.f32 %v4179, %v6321
      %v6444 = vmul.f32 %v4180, %v6328
      %v6445 = vmul.f32 %v4181, %v6332
      %v6446 = vmul.f32 %v4182, %v6339
      %v6447 = vmul.f32 %v4183, %v6343
      %v6448 = vmul.f32 %v4184, %v6350
      %v6449 = vmul.f32 %v4185, %v6354
      %v6450 = vmul.f32 %v4186, %v6361
      %v6451 = vmul.f32 %v4187, %v6365
      %v6452 = vmul.f32 %v4188, %v6372
      %v6453 = vmul.f32 %v4189, %v6376
      %v6454 = vmul.f32 %v4190, %v6383
      %v6455 = vmul.f32 %v4191, %v6387
      %v6456 = vmul.f32 %v4192, %v6394
      %v6457 = vmul.f32 %v4193, %v6398
      %v6458 = vmul.f32 %v4194, %v6405
      %v6459 = vmul.f32 %v4195, %v6409
      %v6460 = vmul.f32 %v4196, %v6416
      %v6461 = vmul.f32 %v4197, %v6420
      %v6462 = vmul.f32 %v4198, %v6427
      %v6463 = vmul.f32 %v4199, %v6431
      %s6465 = sor.u32 256, 16
      %6466 = vbcast.lane.b32.xlu0 %v6259, %s6465
      %v6467 = vpop.permute.xlu0 %6466
      %s6469 = sor.u32 256, 24
      %6470 = vbcast.lane.b32.xlu0 %v6259, %s6469
      %v6471 = vpop.permute.xlu0 %6470
      %s6473 = sor.u32 256, 16
      %6474 = vbcast.lane.b32.xlu0 %v6270, %s6473
      %v6475 = vpop.permute.xlu0 %6474
      %s6477 = sor.u32 256, 24
      %6478 = vbcast.lane.b32.xlu0 %v6270, %s6477
      %v6479 = vpop.permute.xlu0 %6478
      %s6481 = sor.u32 256, 16
      %6482 = vbcast.lane.b32.xlu0 %v6281, %s6481
      %v6483 = vpop.permute.xlu0 %6482
      %s6485 = sor.u32 256, 24
      %6486 = vbcast.lane.b32.xlu0 %v6281, %s6485
      %v6487 = vpop.permute.xlu0 %6486
      %s6489 = sor.u32 256, 16
      %6490 = vbcast.lane.b32.xlu0 %v6292, %s6489
      %v6491 = vpop.permute.xlu0 %6490
      %s6493 = sor.u32 256, 24
      %6494 = vbcast.lane.b32.xlu0 %v6292, %s6493
      %v6495 = vpop.permute.xlu0 %6494
      %s6497 = sor.u32 256, 16
      %6498 = vbcast.lane.b32.xlu0 %v6303, %s6497
      %v6499 = vpop.permute.xlu0 %6498
      %s6501 = sor.u32 256, 24
      %6502 = vbcast.lane.b32.xlu0 %v6303, %s6501
      %v6503 = vpop.permute.xlu0 %6502
      %s6505 = sor.u32 256, 16
      %6506 = vbcast.lane.b32.xlu0 %v6314, %s6505
      %v6507 = vpop.permute.xlu0 %6506
      %s6509 = sor.u32 256, 24
      %6510 = vbcast.lane.b32.xlu0 %v6314, %s6509
      %v6511 = vpop.permute.xlu0 %6510
      %s6513 = sor.u32 256, 16
      %6514 = vbcast.lane.b32.xlu0 %v6325, %s6513
      %v6515 = vpop.permute.xlu0 %6514
      %s6517 = sor.u32 256, 24
      %6518 = vbcast.lane.b32.xlu0 %v6325, %s6517
      %v6519 = vpop.permute.xlu0 %6518
      %s6521 = sor.u32 256, 16
      %6522 = vbcast.lane.b32.xlu0 %v6336, %s6521
      %v6523 = vpop.permute.xlu0 %6522
      %s6525 = sor.u32 256, 24
      %6526 = vbcast.lane.b32.xlu0 %v6336, %s6525
      %v6527 = vpop.permute.xlu0 %6526
      %s6529 = sor.u32 256, 16
      %6530 = vbcast.lane.b32.xlu0 %v6347, %s6529
      %v6531 = vpop.permute.xlu0 %6530
      %s6533 = sor.u32 256, 24
      %6534 = vbcast.lane.b32.xlu0 %v6347, %s6533
      %v6535 = vpop.permute.xlu0 %6534
      %s6537 = sor.u32 256, 16
      %6538 = vbcast.lane.b32.xlu0 %v6358, %s6537
      %v6539 = vpop.permute.xlu0 %6538
      %s6541 = sor.u32 256, 24
      %6542 = vbcast.lane.b32.xlu0 %v6358, %s6541
      %v6543 = vpop.permute.xlu0 %6542
      %s6545 = sor.u32 256, 16
      %6546 = vbcast.lane.b32.xlu0 %v6369, %s6545
      %v6547 = vpop.permute.xlu0 %6546
      %s6549 = sor.u32 256, 24
      %6550 = vbcast.lane.b32.xlu0 %v6369, %s6549
      %v6551 = vpop.permute.xlu0 %6550
      %s6553 = sor.u32 256, 16
      %6554 = vbcast.lane.b32.xlu0 %v6380, %s6553
      %v6555 = vpop.permute.xlu0 %6554
      %s6557 = sor.u32 256, 24
      %6558 = vbcast.lane.b32.xlu0 %v6380, %s6557
      %v6559 = vpop.permute.xlu0 %6558
      %s6561 = sor.u32 256, 16
      %6562 = vbcast.lane.b32.xlu0 %v6391, %s6561
      %v6563 = vpop.permute.xlu0 %6562
      %s6565 = sor.u32 256, 24
      %6566 = vbcast.lane.b32.xlu0 %v6391, %s6565
      %v6567 = vpop.permute.xlu0 %6566
      %s6569 = sor.u32 256, 16
      %6570 = vbcast.lane.b32.xlu0 %v6402, %s6569
      %v6571 = vpop.permute.xlu0 %6570
      %s6573 = sor.u32 256, 24
      %6574 = vbcast.lane.b32.xlu0 %v6402, %s6573
      %v6575 = vpop.permute.xlu0 %6574
      %s6577 = sor.u32 256, 16
      %6578 = vbcast.lane.b32.xlu0 %v6413, %s6577
      %v6579 = vpop.permute.xlu0 %6578
      %s6581 = sor.u32 256, 24
      %6582 = vbcast.lane.b32.xlu0 %v6413, %s6581
      %v6583 = vpop.permute.xlu0 %6582
      %s6585 = sor.u32 256, 16
      %6586 = vbcast.lane.b32.xlu0 %v6424, %s6585
      %v6587 = vpop.permute.xlu0 %6586
      %s6589 = sor.u32 256, 24
      %6590 = vbcast.lane.b32.xlu0 %v6424, %s6589
      %v6591 = vpop.permute.xlu0 %6590
      %v6592 = vmul.f32 %v4168, %v6467
      %v6593 = vmul.f32 %v4169, %v6471
      %v6594 = vmul.f32 %v4170, %v6475
      %v6595 = vmul.f32 %v4171, %v6479
      %v6596 = vmul.f32 %v4172, %v6483
      %v6597 = vmul.f32 %v4173, %v6487
      %v6598 = vmul.f32 %v4174, %v6491
      %v6599 = vmul.f32 %v4175, %v6495
      %v6600 = vmul.f32 %v4176, %v6499
      %v6601 = vmul.f32 %v4177, %v6503
      %v6602 = vmul.f32 %v4178, %v6507
      %v6603 = vmul.f32 %v4179, %v6511
      %v6604 = vmul.f32 %v4180, %v6515
      %v6605 = vmul.f32 %v4181, %v6519
      %v6606 = vmul.f32 %v4182, %v6523
      %v6607 = vmul.f32 %v4183, %v6527
      %v6608 = vmul.f32 %v4184, %v6531
      %v6609 = vmul.f32 %v4185, %v6535
      %v6610 = vmul.f32 %v4186, %v6539
      %v6611 = vmul.f32 %v4187, %v6543
      %v6612 = vmul.f32 %v4188, %v6547
      %v6613 = vmul.f32 %v4189, %v6551
      %v6614 = vmul.f32 %v4190, %v6555
      %v6615 = vmul.f32 %v4191, %v6559
      %v6616 = vmul.f32 %v4192, %v6563
      %v6617 = vmul.f32 %v4193, %v6567
      %v6618 = vmul.f32 %v4194, %v6571
      %v6619 = vmul.f32 %v4195, %v6575
      %v6620 = vmul.f32 %v4196, %v6579
      %v6621 = vmul.f32 %v4197, %v6583
      %v6622 = vmul.f32 %v4198, %v6587
      %v6623 = vmul.f32 %v4199, %v6591
      %6656 = vrot.lane.b32.xlu0 %v6592, 112
      %v6657 = vpop.permute.xlu0 %6656
      %6658 = vrot.lane.b32.xlu0 %v6593, 112
      %v6659 = vpop.permute.xlu0 %6658
      %6660 = vrot.lane.b32.xlu0 %v6594, 112
      %v6661 = vpop.permute.xlu0 %6660
      %6662 = vrot.lane.b32.xlu0 %v6595, 112
      %v6663 = vpop.permute.xlu0 %6662
      %6664 = vrot.lane.b32.xlu0 %v6596, 112
      %v6665 = vpop.permute.xlu0 %6664
      %6666 = vrot.lane.b32.xlu0 %v6597, 112
      %v6667 = vpop.permute.xlu0 %6666
      %6668 = vrot.lane.b32.xlu0 %v6598, 112
      %v6669 = vpop.permute.xlu0 %6668
      %6670 = vrot.lane.b32.xlu0 %v6599, 112
      %v6671 = vpop.permute.xlu0 %6670
      %6672 = vrot.lane.b32.xlu0 %v6600, 112
      %v6673 = vpop.permute.xlu0 %6672
      %6674 = vrot.lane.b32.xlu0 %v6601, 112
      %v6675 = vpop.permute.xlu0 %6674
      %6676 = vrot.lane.b32.xlu0 %v6602, 112
      %v6677 = vpop.permute.xlu0 %6676
      %6678 = vrot.lane.b32.xlu0 %v6603, 112
      %v6679 = vpop.permute.xlu0 %6678
      %6680 = vrot.lane.b32.xlu0 %v6604, 112
      %v6681 = vpop.permute.xlu0 %6680
      %6682 = vrot.lane.b32.xlu0 %v6605, 112
      %v6683 = vpop.permute.xlu0 %6682
      %6684 = vrot.lane.b32.xlu0 %v6606, 112
      %v6685 = vpop.permute.xlu0 %6684
      %6686 = vrot.lane.b32.xlu0 %v6607, 112
      %v6687 = vpop.permute.xlu0 %6686
      %6688 = vrot.lane.b32.xlu0 %v6608, 112
      %v6689 = vpop.permute.xlu0 %6688
      %6690 = vrot.lane.b32.xlu0 %v6609, 112
      %v6691 = vpop.permute.xlu0 %6690
      %6692 = vrot.lane.b32.xlu0 %v6610, 112
      %v6693 = vpop.permute.xlu0 %6692
      %6694 = vrot.lane.b32.xlu0 %v6611, 112
      %v6695 = vpop.permute.xlu0 %6694
      %6696 = vrot.lane.b32.xlu0 %v6612, 112
      %v6697 = vpop.permute.xlu0 %6696
      %6698 = vrot.lane.b32.xlu0 %v6613, 112
      %v6699 = vpop.permute.xlu0 %6698
      %6700 = vrot.lane.b32.xlu0 %v6614, 112
      %v6701 = vpop.permute.xlu0 %6700
      %6702 = vrot.lane.b32.xlu0 %v6615, 112
      %v6703 = vpop.permute.xlu0 %6702
      %6704 = vrot.lane.b32.xlu0 %v6616, 112
      %v6705 = vpop.permute.xlu0 %6704
      %6706 = vrot.lane.b32.xlu0 %v6617, 112
      %v6707 = vpop.permute.xlu0 %6706
      %6708 = vrot.lane.b32.xlu0 %v6618, 112
      %v6709 = vpop.permute.xlu0 %6708
      %6710 = vrot.lane.b32.xlu0 %v6619, 112
      %v6711 = vpop.permute.xlu0 %6710
      %6712 = vrot.lane.b32.xlu0 %v6620, 112
      %v6713 = vpop.permute.xlu0 %6712
      %6714 = vrot.lane.b32.xlu0 %v6621, 112
      %v6715 = vpop.permute.xlu0 %6714
      %6716 = vrot.lane.b32.xlu0 %v6622, 112
      %v6717 = vpop.permute.xlu0 %6716
      %6718 = vrot.lane.b32.xlu0 %v6623, 112
      %v6719 = vpop.permute.xlu0 %6718
      %v6752 = vadd.f32 %v6432, %v6657
      %v6753 = vadd.f32 %v6433, %v6659
      %v6754 = vadd.f32 %v6434, %v6661
      %v6755 = vadd.f32 %v6435, %v6663
      %v6756 = vadd.f32 %v6436, %v6665
      %v6757 = vadd.f32 %v6437, %v6667
      %v6758 = vadd.f32 %v6438, %v6669
      %v6759 = vadd.f32 %v6439, %v6671
      %v6760 = vadd.f32 %v6440, %v6673
      %v6761 = vadd.f32 %v6441, %v6675
      %v6762 = vadd.f32 %v6442, %v6677
      %v6763 = vadd.f32 %v6443, %v6679
      %v6764 = vadd.f32 %v6444, %v6681
      %v6765 = vadd.f32 %v6445, %v6683
      %v6766 = vadd.f32 %v6446, %v6685
      %v6767 = vadd.f32 %v6447, %v6687
      %v6768 = vadd.f32 %v6448, %v6689
      %v6769 = vadd.f32 %v6449, %v6691
      %v6770 = vadd.f32 %v6450, %v6693
      %v6771 = vadd.f32 %v6451, %v6695
      %v6772 = vadd.f32 %v6452, %v6697
      %v6773 = vadd.f32 %v6453, %v6699
      %v6774 = vadd.f32 %v6454, %v6701
      %v6775 = vadd.f32 %v6455, %v6703
      %v6776 = vadd.f32 %v6456, %v6705
      %v6777 = vadd.f32 %v6457, %v6707
      %v6778 = vadd.f32 %v6458, %v6709
      %v6779 = vadd.f32 %v6459, %v6711
      %v6780 = vadd.f32 %v6460, %v6713
      %v6781 = vadd.f32 %v6461, %v6715
      %v6782 = vadd.f32 %v6462, %v6717
      %v6783 = vadd.f32 %v6463, %v6719
      %6784 = vst.msk [vmem:[%s394 + $0x1] sm:$0xff] %vm306, %v6752
      %6785 = vst.msk [vmem:[%s394 + $0x9] sm:$0xff] %vm306, %v6753
      %6786 = vst.msk [vmem:[%s394 + $0x19] sm:$0xff] %vm306, %v6754
      %6787 = vst.msk [vmem:[%s394 + $0x21] sm:$0xff] %vm306, %v6755
      %6788 = vst.msk [vmem:[%s394 + $0x31] sm:$0xff] %vm306, %v6756
      %6789 = vst.msk [vmem:[%s394 + $0x39] sm:$0xff] %vm306, %v6757
      %6790 = vst.msk [vmem:[%s394 + $0x49] sm:$0xff] %vm306, %v6758
      %6791 = vst.msk [vmem:[%s394 + $0x51] sm:$0xff] %vm306, %v6759
      %6792 = vst.msk [vmem:[%s394 + $0x61] sm:$0xff] %vm306, %v6760
      %6793 = vst.msk [vmem:[%s394 + $0x69] sm:$0xff] %vm306, %v6761
      %6794 = vst.msk [vmem:[%s394 + $0x79] sm:$0xff] %vm306, %v6762
      %6795 = vst.msk [vmem:[%s394 + $0x81] sm:$0xff] %vm306, %v6763
      %6796 = vst.msk [vmem:[%s394 + $0x91] sm:$0xff] %vm306, %v6764
      %6797 = vst.msk [vmem:[%s394 + $0x99] sm:$0xff] %vm306, %v6765
      %6798 = vst.msk [vmem:[%s394 + $0xa9] sm:$0xff] %vm306, %v6766
      %6799 = vst.msk [vmem:[%s394 + $0xb1] sm:$0xff] %vm306, %v6767
      %6800 = vst.msk [vmem:[%s394 + $0xc1] sm:$0xff] %vm306, %v6768
      %6801 = vst.msk [vmem:[%s394 + $0xc9] sm:$0xff] %vm306, %v6769
      %6802 = vst.msk [vmem:[%s394 + $0xd9] sm:$0xff] %vm306, %v6770
      %6803 = vst.msk [vmem:[%s394 + $0xe1] sm:$0xff] %vm306, %v6771
      %6804 = vst.msk [vmem:[%s394 + $0xf1] sm:$0xff] %vm306, %v6772
      %6805 = vst.msk [vmem:[%s394 + $0xf9] sm:$0xff] %vm306, %v6773
      %6806 = vst.msk [vmem:[%s394 + $0x109] sm:$0xff] %vm306, %v6774
      %6807 = vst.msk [vmem:[%s394 + $0x111] sm:$0xff] %vm306, %v6775
      %6808 = vst.msk [vmem:[%s394 + $0x121] sm:$0xff] %vm306, %v6776
      %6809 = vst.msk [vmem:[%s394 + $0x129] sm:$0xff] %vm306, %v6777
      %6810 = vst.msk [vmem:[%s394 + $0x139] sm:$0xff] %vm306, %v6778
      %6811 = vst.msk [vmem:[%s394 + $0x141] sm:$0xff] %vm306, %v6779
      %6812 = vst.msk [vmem:[%s394 + $0x151] sm:$0xff] %vm306, %v6780
      %6813 = vst.msk [vmem:[%s394 + $0x159] sm:$0xff] %vm306, %v6781
      %6814 = vst.msk [vmem:[%s394 + $0x169] sm:$0xff] %vm306, %v6782
      %6815 = vst.msk [vmem:[%s394 + $0x171] sm:$0xff] %vm306, %v6783
      %v6816 = vld [vmem:[#allocation2] sm:$0xff]
      %v6817 = vld [vmem:[#allocation2 + $0x8] sm:$0xff]
      %v6818 = vld [vmem:[#allocation2 + $0x18] sm:$0xff]
      %v6819 = vld [vmem:[#allocation2 + $0x20] sm:$0xff]
      %v6820 = vld [vmem:[#allocation2 + $0x30] sm:$0xff]
      %v6821 = vld [vmem:[#allocation2 + $0x38] sm:$0xff]
      %v6822 = vld [vmem:[#allocation2 + $0x48] sm:$0xff]
      %v6823 = vld [vmem:[#allocation2 + $0x50] sm:$0xff]
      %v6824 = vld [vmem:[#allocation2 + $0x60] sm:$0xff]
      %v6825 = vld [vmem:[#allocation2 + $0x68] sm:$0xff]
      %v6826 = vld [vmem:[#allocation2 + $0x78] sm:$0xff]
      %v6827 = vld [vmem:[#allocation2 + $0x80] sm:$0xff]
      %v6828 = vld [vmem:[#allocation2 + $0x90] sm:$0xff]
      %v6829 = vld [vmem:[#allocation2 + $0x98] sm:$0xff]
      %v6830 = vld [vmem:[#allocation2 + $0xa8] sm:$0xff]
      %v6831 = vld [vmem:[#allocation2 + $0xb0] sm:$0xff]
      %v6832 = vld [vmem:[#allocation2 + $0xc0] sm:$0xff]
      %v6833 = vld [vmem:[#allocation2 + $0xc8] sm:$0xff]
      %v6834 = vld [vmem:[#allocation2 + $0xd8] sm:$0xff]
      %v6835 = vld [vmem:[#allocation2 + $0xe0] sm:$0xff]
      %v6836 = vld [vmem:[#allocation2 + $0xf0] sm:$0xff]
      %v6837 = vld [vmem:[#allocation2 + $0xf8] sm:$0xff]
      %v6838 = vld [vmem:[#allocation2 + $0x108] sm:$0xff]
      %v6839 = vld [vmem:[#allocation2 + $0x110] sm:$0xff]
      %v6840 = vld [vmem:[#allocation2 + $0x120] sm:$0xff]
      %v6841 = vld [vmem:[#allocation2 + $0x128] sm:$0xff]
      %v6842 = vld [vmem:[#allocation2 + $0x138] sm:$0xff]
      %v6843 = vld [vmem:[#allocation2 + $0x140] sm:$0xff]
      %v6844 = vld [vmem:[#allocation2 + $0x150] sm:$0xff]
      %v6845 = vld [vmem:[#allocation2 + $0x158] sm:$0xff]
      %v6846 = vld [vmem:[#allocation2 + $0x168] sm:$0xff]
      %v6847 = vld [vmem:[#allocation2 + $0x170] sm:$0xff]
      %v6848 = vld [vmem:[#allocation2 + $0x1] sm:$0xff]
      %v6849 = vld [vmem:[#allocation2 + $0x9] sm:$0xff]
      %v6850 = vld [vmem:[#allocation2 + $0x19] sm:$0xff]
      %v6851 = vld [vmem:[#allocation2 + $0x21] sm:$0xff]
      %v6852 = vld [vmem:[#allocation2 + $0x31] sm:$0xff]
      %v6853 = vld [vmem:[#allocation2 + $0x39] sm:$0xff]
      %v6854 = vld [vmem:[#allocation2 + $0x49] sm:$0xff]
      %v6855 = vld [vmem:[#allocation2 + $0x51] sm:$0xff]
      %v6856 = vld [vmem:[#allocation2 + $0x61] sm:$0xff]
      %v6857 = vld [vmem:[#allocation2 + $0x69] sm:$0xff]
      %v6858 = vld [vmem:[#allocation2 + $0x79] sm:$0xff]
      %v6859 = vld [vmem:[#allocation2 + $0x81] sm:$0xff]
      %v6860 = vld [vmem:[#allocation2 + $0x91] sm:$0xff]
      %v6861 = vld [vmem:[#allocation2 + $0x99] sm:$0xff]
      %v6862 = vld [vmem:[#allocation2 + $0xa9] sm:$0xff]
      %v6863 = vld [vmem:[#allocation2 + $0xb1] sm:$0xff]
      %v6864 = vld [vmem:[#allocation2 + $0xc1] sm:$0xff]
      %v6865 = vld [vmem:[#allocation2 + $0xc9] sm:$0xff]
      %v6866 = vld [vmem:[#allocation2 + $0xd9] sm:$0xff]
      %v6867 = vld [vmem:[#allocation2 + $0xe1] sm:$0xff]
      %v6868 = vld [vmem:[#allocation2 + $0xf1] sm:$0xff]
      %v6869 = vld [vmem:[#allocation2 + $0xf9] sm:$0xff]
      %v6870 = vld [vmem:[#allocation2 + $0x109] sm:$0xff]
      %v6871 = vld [vmem:[#allocation2 + $0x111] sm:$0xff]
      %v6872 = vld [vmem:[#allocation2 + $0x121] sm:$0xff]
      %v6873 = vld [vmem:[#allocation2 + $0x129] sm:$0xff]
      %v6874 = vld [vmem:[#allocation2 + $0x139] sm:$0xff]
      %v6875 = vld [vmem:[#allocation2 + $0x141] sm:$0xff]
      %v6876 = vld [vmem:[#allocation2 + $0x151] sm:$0xff]
      %v6877 = vld [vmem:[#allocation2 + $0x159] sm:$0xff]
      %v6878 = vld [vmem:[#allocation2 + $0x169] sm:$0xff]
      %v6879 = vld [vmem:[#allocation2 + $0x171] sm:$0xff]
      %v6880 = vld [vmem:[#allocation2 + $0x2] sm:$0xff]
      %v6881 = vld [vmem:[#allocation2 + $0xa] sm:$0xff]
      %v6882 = vld [vmem:[#allocation2 + $0x1a] sm:$0xff]
      %v6883 = vld [vmem:[#allocation2 + $0x22] sm:$0xff]
      %v6884 = vld [vmem:[#allocation2 + $0x32] sm:$0xff]
      %v6885 = vld [vmem:[#allocation2 + $0x3a] sm:$0xff]
      %v6886 = vld [vmem:[#allocation2 + $0x4a] sm:$0xff]
      %v6887 = vld [vmem:[#allocation2 + $0x52] sm:$0xff]
      %v6888 = vld [vmem:[#allocation2 + $0x62] sm:$0xff]
      %v6889 = vld [vmem:[#allocation2 + $0x6a] sm:$0xff]
      %v6890 = vld [vmem:[#allocation2 + $0x7a] sm:$0xff]
      %v6891 = vld [vmem:[#allocation2 + $0x82] sm:$0xff]
      %v6892 = vld [vmem:[#allocation2 + $0x92] sm:$0xff]
      %v6893 = vld [vmem:[#allocation2 + $0x9a] sm:$0xff]
      %v6894 = vld [vmem:[#allocation2 + $0xaa] sm:$0xff]
      %v6895 = vld [vmem:[#allocation2 + $0xb2] sm:$0xff]
      %v6896 = vld [vmem:[#allocation2 + $0xc2] sm:$0xff]
      %v6897 = vld [vmem:[#allocation2 + $0xca] sm:$0xff]
      %v6898 = vld [vmem:[#allocation2 + $0xda] sm:$0xff]
      %v6899 = vld [vmem:[#allocation2 + $0xe2] sm:$0xff]
      %v6900 = vld [vmem:[#allocation2 + $0xf2] sm:$0xff]
      %v6901 = vld [vmem:[#allocation2 + $0xfa] sm:$0xff]
      %v6902 = vld [vmem:[#allocation2 + $0x10a] sm:$0xff]
      %v6903 = vld [vmem:[#allocation2 + $0x112] sm:$0xff]
      %v6904 = vld [vmem:[#allocation2 + $0x122] sm:$0xff]
      %v6905 = vld [vmem:[#allocation2 + $0x12a] sm:$0xff]
      %v6906 = vld [vmem:[#allocation2 + $0x13a] sm:$0xff]
      %v6907 = vld [vmem:[#allocation2 + $0x142] sm:$0xff]
      %v6908 = vld [vmem:[#allocation2 + $0x152] sm:$0xff]
      %v6909 = vld [vmem:[#allocation2 + $0x15a] sm:$0xff]
      %v6910 = vld [vmem:[#allocation2 + $0x16a] sm:$0xff]
      %v6911 = vld [vmem:[#allocation2 + $0x172] sm:$0xff]
      %v6912 = vld [vmem:[%s394] sm:$0xff]
      %v6913 = vld [vmem:[%s394 + $0x8] sm:$0xff]
      %v6914 = vld [vmem:[%s394 + $0x18] sm:$0xff]
      %v6915 = vld [vmem:[%s394 + $0x20] sm:$0xff]
      %v6916 = vld [vmem:[%s394 + $0x30] sm:$0xff]
      %v6917 = vld [vmem:[%s394 + $0x38] sm:$0xff]
      %v6918 = vld [vmem:[%s394 + $0x48] sm:$0xff]
      %v6919 = vld [vmem:[%s394 + $0x50] sm:$0xff]
      %v6920 = vld [vmem:[%s394 + $0x60] sm:$0xff]
      %v6921 = vld [vmem:[%s394 + $0x68] sm:$0xff]
      %v6922 = vld [vmem:[%s394 + $0x78] sm:$0xff]
      %v6923 = vld [vmem:[%s394 + $0x80] sm:$0xff]
      %v6924 = vld [vmem:[%s394 + $0x90] sm:$0xff]
      %v6925 = vld [vmem:[%s394 + $0x98] sm:$0xff]
      %v6926 = vld [vmem:[%s394 + $0xa8] sm:$0xff]
      %v6927 = vld [vmem:[%s394 + $0xb0] sm:$0xff]
      %v6928 = vld [vmem:[%s394 + $0xc0] sm:$0xff]
      %v6929 = vld [vmem:[%s394 + $0xc8] sm:$0xff]
      %v6930 = vld [vmem:[%s394 + $0xd8] sm:$0xff]
      %v6931 = vld [vmem:[%s394 + $0xe0] sm:$0xff]
      %v6932 = vld [vmem:[%s394 + $0xf0] sm:$0xff]
      %v6933 = vld [vmem:[%s394 + $0xf8] sm:$0xff]
      %v6934 = vld [vmem:[%s394 + $0x108] sm:$0xff]
      %v6935 = vld [vmem:[%s394 + $0x110] sm:$0xff]
      %v6936 = vld [vmem:[%s394 + $0x120] sm:$0xff]
      %v6937 = vld [vmem:[%s394 + $0x128] sm:$0xff]
      %v6938 = vld [vmem:[%s394 + $0x138] sm:$0xff]
      %v6939 = vld [vmem:[%s394 + $0x140] sm:$0xff]
      %v6940 = vld [vmem:[%s394 + $0x150] sm:$0xff]
      %v6941 = vld [vmem:[%s394 + $0x158] sm:$0xff]
      %v6942 = vld [vmem:[%s394 + $0x168] sm:$0xff]
      %v6943 = vld [vmem:[%s394 + $0x170] sm:$0xff]
      %v6944 = vld [vmem:[%s394 + $0x1] sm:$0xff]
      %v6945 = vld [vmem:[%s394 + $0x9] sm:$0xff]
      %v6946 = vld [vmem:[%s394 + $0x19] sm:$0xff]
      %v6947 = vld [vmem:[%s394 + $0x21] sm:$0xff]
      %v6948 = vld [vmem:[%s394 + $0x31] sm:$0xff]
      %v6949 = vld [vmem:[%s394 + $0x39] sm:$0xff]
      %v6950 = vld [vmem:[%s394 + $0x49] sm:$0xff]
      %v6951 = vld [vmem:[%s394 + $0x51] sm:$0xff]
      %v6952 = vld [vmem:[%s394 + $0x61] sm:$0xff]
      %v6953 = vld [vmem:[%s394 + $0x69] sm:$0xff]
      %v6954 = vld [vmem:[%s394 + $0x79] sm:$0xff]
      %v6955 = vld [vmem:[%s394 + $0x81] sm:$0xff]
      %v6956 = vld [vmem:[%s394 + $0x91] sm:$0xff]
      %v6957 = vld [vmem:[%s394 + $0x99] sm:$0xff]
      %v6958 = vld [vmem:[%s394 + $0xa9] sm:$0xff]
      %v6959 = vld [vmem:[%s394 + $0xb1] sm:$0xff]
      %v6960 = vld [vmem:[%s394 + $0xc1] sm:$0xff]
      %v6961 = vld [vmem:[%s394 + $0xc9] sm:$0xff]
      %v6962 = vld [vmem:[%s394 + $0xd9] sm:$0xff]
      %v6963 = vld [vmem:[%s394 + $0xe1] sm:$0xff]
      %v6964 = vld [vmem:[%s394 + $0xf1] sm:$0xff]
      %v6965 = vld [vmem:[%s394 + $0xf9] sm:$0xff]
      %v6966 = vld [vmem:[%s394 + $0x109] sm:$0xff]
      %v6967 = vld [vmem:[%s394 + $0x111] sm:$0xff]
      %v6968 = vld [vmem:[%s394 + $0x121] sm:$0xff]
      %v6969 = vld [vmem:[%s394 + $0x129] sm:$0xff]
      %v6970 = vld [vmem:[%s394 + $0x139] sm:$0xff]
      %v6971 = vld [vmem:[%s394 + $0x141] sm:$0xff]
      %v6972 = vld [vmem:[%s394 + $0x151] sm:$0xff]
      %v6973 = vld [vmem:[%s394 + $0x159] sm:$0xff]
      %v6974 = vld [vmem:[%s394 + $0x169] sm:$0xff]
      %v6975 = vld [vmem:[%s394 + $0x171] sm:$0xff]
      %v6976 = vld [vmem:[%s394 + $0x2] sm:$0xff]
      %v6977 = vld [vmem:[%s394 + $0xa] sm:$0xff]
      %v6978 = vld [vmem:[%s394 + $0x1a] sm:$0xff]
      %v6979 = vld [vmem:[%s394 + $0x22] sm:$0xff]
      %v6980 = vld [vmem:[%s394 + $0x32] sm:$0xff]
      %v6981 = vld [vmem:[%s394 + $0x3a] sm:$0xff]
      %v6982 = vld [vmem:[%s394 + $0x4a] sm:$0xff]
      %v6983 = vld [vmem:[%s394 + $0x52] sm:$0xff]
      %v6984 = vld [vmem:[%s394 + $0x62] sm:$0xff]
      %v6985 = vld [vmem:[%s394 + $0x6a] sm:$0xff]
      %v6986 = vld [vmem:[%s394 + $0x7a] sm:$0xff]
      %v6987 = vld [vmem:[%s394 + $0x82] sm:$0xff]
      %v6988 = vld [vmem:[%s394 + $0x92] sm:$0xff]
      %v6989 = vld [vmem:[%s394 + $0x9a] sm:$0xff]
      %v6990 = vld [vmem:[%s394 + $0xaa] sm:$0xff]
      %v6991 = vld [vmem:[%s394 + $0xb2] sm:$0xff]
      %v6992 = vld [vmem:[%s394 + $0xc2] sm:$0xff]
      %v6993 = vld [vmem:[%s394 + $0xca] sm:$0xff]
      %v6994 = vld [vmem:[%s394 + $0xda] sm:$0xff]
      %v6995 = vld [vmem:[%s394 + $0xe2] sm:$0xff]
      %v6996 = vld [vmem:[%s394 + $0xf2] sm:$0xff]
      %v6997 = vld [vmem:[%s394 + $0xfa] sm:$0xff]
      %v6998 = vld [vmem:[%s394 + $0x10a] sm:$0xff]
      %v6999 = vld [vmem:[%s394 + $0x112] sm:$0xff]
      %v7000 = vld [vmem:[%s394 + $0x122] sm:$0xff]
      %v7001 = vld [vmem:[%s394 + $0x12a] sm:$0xff]
      %v7002 = vld [vmem:[%s394 + $0x13a] sm:$0xff]
      %v7003 = vld [vmem:[%s394 + $0x142] sm:$0xff]
      %v7004 = vld [vmem:[%s394 + $0x152] sm:$0xff]
      %v7005 = vld [vmem:[%s394 + $0x15a] sm:$0xff]
      %v7006 = vld [vmem:[%s394 + $0x16a] sm:$0xff]
      %v7007 = vld [vmem:[%s394 + $0x172] sm:$0xff]
      %v7008 = vld [vmem:[%s619] sm:$0xff]
      %v7009 = vld [vmem:[%s619 + $0x8] sm:$0xff]
      %v7010 = vld [vmem:[%s619 + $0x18] sm:$0xff]
      %v7011 = vld [vmem:[%s619 + $0x20] sm:$0xff]
      %v7012 = vld [vmem:[%s619 + $0x30] sm:$0xff]
      %v7013 = vld [vmem:[%s619 + $0x38] sm:$0xff]
      %v7014 = vld [vmem:[%s619 + $0x48] sm:$0xff]
      %v7015 = vld [vmem:[%s619 + $0x50] sm:$0xff]
      %v7016 = vld [vmem:[%s619 + $0x60] sm:$0xff]
      %v7017 = vld [vmem:[%s619 + $0x68] sm:$0xff]
      %v7018 = vld [vmem:[%s619 + $0x78] sm:$0xff]
      %v7019 = vld [vmem:[%s619 + $0x80] sm:$0xff]
      %v7020 = vld [vmem:[%s619 + $0x90] sm:$0xff]
      %v7021 = vld [vmem:[%s619 + $0x98] sm:$0xff]
      %v7022 = vld [vmem:[%s619 + $0xa8] sm:$0xff]
      %v7023 = vld [vmem:[%s619 + $0xb0] sm:$0xff]
      %v7024 = vld [vmem:[%s619 + $0xc0] sm:$0xff]
      %v7025 = vld [vmem:[%s619 + $0xc8] sm:$0xff]
      %v7026 = vld [vmem:[%s619 + $0xd8] sm:$0xff]
      %v7027 = vld [vmem:[%s619 + $0xe0] sm:$0xff]
      %v7028 = vld [vmem:[%s619 + $0xf0] sm:$0xff]
      %v7029 = vld [vmem:[%s619 + $0xf8] sm:$0xff]
      %v7030 = vld [vmem:[%s619 + $0x108] sm:$0xff]
      %v7031 = vld [vmem:[%s619 + $0x110] sm:$0xff]
      %v7032 = vld [vmem:[%s619 + $0x120] sm:$0xff]
      %v7033 = vld [vmem:[%s619 + $0x128] sm:$0xff]
      %v7034 = vld [vmem:[%s619 + $0x138] sm:$0xff]
      %v7035 = vld [vmem:[%s619 + $0x140] sm:$0xff]
      %v7036 = vld [vmem:[%s619 + $0x150] sm:$0xff]
      %v7037 = vld [vmem:[%s619 + $0x158] sm:$0xff]
      %v7038 = vld [vmem:[%s619 + $0x168] sm:$0xff]
      %v7039 = vld [vmem:[%s619 + $0x170] sm:$0xff]
      %v7040 = vld [vmem:[%s619 + $0x1] sm:$0xff]
      %v7041 = vld [vmem:[%s619 + $0x9] sm:$0xff]
      %v7042 = vld [vmem:[%s619 + $0x19] sm:$0xff]
      %v7043 = vld [vmem:[%s619 + $0x21] sm:$0xff]
      %v7044 = vld [vmem:[%s619 + $0x31] sm:$0xff]
      %v7045 = vld [vmem:[%s619 + $0x39] sm:$0xff]
      %v7046 = vld [vmem:[%s619 + $0x49] sm:$0xff]
      %v7047 = vld [vmem:[%s619 + $0x51] sm:$0xff]
      %v7048 = vld [vmem:[%s619 + $0x61] sm:$0xff]
      %v7049 = vld [vmem:[%s619 + $0x69] sm:$0xff]
      %v7050 = vld [vmem:[%s619 + $0x79] sm:$0xff]
      %v7051 = vld [vmem:[%s619 + $0x81] sm:$0xff]
      %v7052 = vld [vmem:[%s619 + $0x91] sm:$0xff]
      %v7053 = vld [vmem:[%s619 + $0x99] sm:$0xff]
      %v7054 = vld [vmem:[%s619 + $0xa9] sm:$0xff]
      %v7055 = vld [vmem:[%s619 + $0xb1] sm:$0xff]
      %v7056 = vld [vmem:[%s619 + $0xc1] sm:$0xff]
      %v7057 = vld [vmem:[%s619 + $0xc9] sm:$0xff]
      %v7058 = vld [vmem:[%s619 + $0xd9] sm:$0xff]
      %v7059 = vld [vmem:[%s619 + $0xe1] sm:$0xff]
      %v7060 = vld [vmem:[%s619 + $0xf1] sm:$0xff]
      %v7061 = vld [vmem:[%s619 + $0xf9] sm:$0xff]
      %v7062 = vld [vmem:[%s619 + $0x109] sm:$0xff]
      %v7063 = vld [vmem:[%s619 + $0x111] sm:$0xff]
      %v7064 = vld [vmem:[%s619 + $0x121] sm:$0xff]
      %v7065 = vld [vmem:[%s619 + $0x129] sm:$0xff]
      %v7066 = vld [vmem:[%s619 + $0x139] sm:$0xff]
      %v7067 = vld [vmem:[%s619 + $0x141] sm:$0xff]
      %v7068 = vld [vmem:[%s619 + $0x151] sm:$0xff]
      %v7069 = vld [vmem:[%s619 + $0x159] sm:$0xff]
      %v7070 = vld [vmem:[%s619 + $0x169] sm:$0xff]
      %v7071 = vld [vmem:[%s619 + $0x171] sm:$0xff]
      %v7072 = vld [vmem:[%s619 + $0x2] sm:$0xff]
      %v7073 = vld [vmem:[%s619 + $0xa] sm:$0xff]
      %v7074 = vld [vmem:[%s619 + $0x1a] sm:$0xff]
      %v7075 = vld [vmem:[%s619 + $0x22] sm:$0xff]
      %v7076 = vld [vmem:[%s619 + $0x32] sm:$0xff]
      %v7077 = vld [vmem:[%s619 + $0x3a] sm:$0xff]
      %v7078 = vld [vmem:[%s619 + $0x4a] sm:$0xff]
      %v7079 = vld [vmem:[%s619 + $0x52] sm:$0xff]
      %v7080 = vld [vmem:[%s619 + $0x62] sm:$0xff]
      %v7081 = vld [vmem:[%s619 + $0x6a] sm:$0xff]
      %v7082 = vld [vmem:[%s619 + $0x7a] sm:$0xff]
      %v7083 = vld [vmem:[%s619 + $0x82] sm:$0xff]
      %v7084 = vld [vmem:[%s619 + $0x92] sm:$0xff]
      %v7085 = vld [vmem:[%s619 + $0x9a] sm:$0xff]
      %v7086 = vld [vmem:[%s619 + $0xaa] sm:$0xff]
      %v7087 = vld [vmem:[%s619 + $0xb2] sm:$0xff]
      %v7088 = vld [vmem:[%s619 + $0xc2] sm:$0xff]
      %v7089 = vld [vmem:[%s619 + $0xca] sm:$0xff]
      %v7090 = vld [vmem:[%s619 + $0xda] sm:$0xff]
      %v7091 = vld [vmem:[%s619 + $0xe2] sm:$0xff]
      %v7092 = vld [vmem:[%s619 + $0xf2] sm:$0xff]
      %v7093 = vld [vmem:[%s619 + $0xfa] sm:$0xff]
      %v7094 = vld [vmem:[%s619 + $0x10a] sm:$0xff]
      %v7095 = vld [vmem:[%s619 + $0x112] sm:$0xff]
      %v7096 = vld [vmem:[%s619 + $0x122] sm:$0xff]
      %v7097 = vld [vmem:[%s619 + $0x12a] sm:$0xff]
      %v7098 = vld [vmem:[%s619 + $0x13a] sm:$0xff]
      %v7099 = vld [vmem:[%s619 + $0x142] sm:$0xff]
      %v7100 = vld [vmem:[%s619 + $0x152] sm:$0xff]
      %v7101 = vld [vmem:[%s619 + $0x15a] sm:$0xff]
      %v7102 = vld [vmem:[%s619 + $0x16a] sm:$0xff]
      %v7103 = vld [vmem:[%s619 + $0x172] sm:$0xff]
      %7136 = vrot.lane.b32.xlu0 %v6848, 16
      %v7137 = vpop.permute.xlu0 %7136
      %7138 = vrot.lane.b32.xlu0 %v6849, 16
      %v7139 = vpop.permute.xlu0 %7138
      %7140 = vrot.lane.b32.xlu0 %v6850, 16
      %v7141 = vpop.permute.xlu0 %7140
      %7142 = vrot.lane.b32.xlu0 %v6851, 16
      %v7143 = vpop.permute.xlu0 %7142
      %7144 = vrot.lane.b32.xlu0 %v6852, 16
      %v7145 = vpop.permute.xlu0 %7144
      %7146 = vrot.lane.b32.xlu0 %v6853, 16
      %v7147 = vpop.permute.xlu0 %7146
      %7148 = vrot.lane.b32.xlu0 %v6854, 16
      %v7149 = vpop.permute.xlu0 %7148
      %7150 = vrot.lane.b32.xlu0 %v6855, 16
      %v7151 = vpop.permute.xlu0 %7150
      %7152 = vrot.lane.b32.xlu0 %v6856, 16
      %v7153 = vpop.permute.xlu0 %7152
      %7154 = vrot.lane.b32.xlu0 %v6857, 16
      %v7155 = vpop.permute.xlu0 %7154
      %7156 = vrot.lane.b32.xlu0 %v6858, 16
      %v7157 = vpop.permute.xlu0 %7156
      %7158 = vrot.lane.b32.xlu0 %v6859, 16
      %v7159 = vpop.permute.xlu0 %7158
      %7160 = vrot.lane.b32.xlu0 %v6860, 16
      %v7161 = vpop.permute.xlu0 %7160
      %7162 = vrot.lane.b32.xlu0 %v6861, 16
      %v7163 = vpop.permute.xlu0 %7162
      %7164 = vrot.lane.b32.xlu0 %v6862, 16
      %v7165 = vpop.permute.xlu0 %7164
      %7166 = vrot.lane.b32.xlu0 %v6863, 16
      %v7167 = vpop.permute.xlu0 %7166
      %7168 = vrot.lane.b32.xlu0 %v6864, 16
      %v7169 = vpop.permute.xlu0 %7168
      %7170 = vrot.lane.b32.xlu0 %v6865, 16
      %v7171 = vpop.permute.xlu0 %7170
      %7172 = vrot.lane.b32.xlu0 %v6866, 16
      %v7173 = vpop.permute.xlu0 %7172
      %7174 = vrot.lane.b32.xlu0 %v6867, 16
      %v7175 = vpop.permute.xlu0 %7174
      %7176 = vrot.lane.b32.xlu0 %v6868, 16
      %v7177 = vpop.permute.xlu0 %7176
      %7178 = vrot.lane.b32.xlu0 %v6869, 16
      %v7179 = vpop.permute.xlu0 %7178
      %7180 = vrot.lane.b32.xlu0 %v6870, 16
      %v7181 = vpop.permute.xlu0 %7180
      %7182 = vrot.lane.b32.xlu0 %v6871, 16
      %v7183 = vpop.permute.xlu0 %7182
      %7184 = vrot.lane.b32.xlu0 %v6872, 16
      %v7185 = vpop.permute.xlu0 %7184
      %7186 = vrot.lane.b32.xlu0 %v6873, 16
      %v7187 = vpop.permute.xlu0 %7186
      %7188 = vrot.lane.b32.xlu0 %v6874, 16
      %v7189 = vpop.permute.xlu0 %7188
      %7190 = vrot.lane.b32.xlu0 %v6875, 16
      %v7191 = vpop.permute.xlu0 %7190
      %7192 = vrot.lane.b32.xlu0 %v6876, 16
      %v7193 = vpop.permute.xlu0 %7192
      %7194 = vrot.lane.b32.xlu0 %v6877, 16
      %v7195 = vpop.permute.xlu0 %7194
      %7196 = vrot.lane.b32.xlu0 %v6878, 16
      %v7197 = vpop.permute.xlu0 %7196
      %7198 = vrot.lane.b32.xlu0 %v6879, 16
      %v7199 = vpop.permute.xlu0 %7198
      %7264 = vrot.lane.b32.xlu0 %v6880, 32
      %v7265 = vpop.permute.xlu0 %7264
      %7266 = vrot.lane.b32.xlu0 %v6881, 32
      %v7267 = vpop.permute.xlu0 %7266
      %7268 = vrot.lane.b32.xlu0 %v6882, 32
      %v7269 = vpop.permute.xlu0 %7268
      %7270 = vrot.lane.b32.xlu0 %v6883, 32
      %v7271 = vpop.permute.xlu0 %7270
      %7272 = vrot.lane.b32.xlu0 %v6884, 32
      %v7273 = vpop.permute.xlu0 %7272
      %7274 = vrot.lane.b32.xlu0 %v6885, 32
      %v7275 = vpop.permute.xlu0 %7274
      %7276 = vrot.lane.b32.xlu0 %v6886, 32
      %v7277 = vpop.permute.xlu0 %7276
      %7278 = vrot.lane.b32.xlu0 %v6887, 32
      %v7279 = vpop.permute.xlu0 %7278
      %7280 = vrot.lane.b32.xlu0 %v6888, 32
      %v7281 = vpop.permute.xlu0 %7280
      %7282 = vrot.lane.b32.xlu0 %v6889, 32
      %v7283 = vpop.permute.xlu0 %7282
      %7284 = vrot.lane.b32.xlu0 %v6890, 32
      %v7285 = vpop.permute.xlu0 %7284
      %7286 = vrot.lane.b32.xlu0 %v6891, 32
      %v7287 = vpop.permute.xlu0 %7286
      %7288 = vrot.lane.b32.xlu0 %v6892, 32
      %v7289 = vpop.permute.xlu0 %7288
      %7290 = vrot.lane.b32.xlu0 %v6893, 32
      %v7291 = vpop.permute.xlu0 %7290
      %7292 = vrot.lane.b32.xlu0 %v6894, 32
      %v7293 = vpop.permute.xlu0 %7292
      %7294 = vrot.lane.b32.xlu0 %v6895, 32
      %v7295 = vpop.permute.xlu0 %7294
      %7296 = vrot.lane.b32.xlu0 %v6896, 32
      %v7297 = vpop.permute.xlu0 %7296
      %7298 = vrot.lane.b32.xlu0 %v6897, 32
      %v7299 = vpop.permute.xlu0 %7298
      %7300 = vrot.lane.b32.xlu0 %v6898, 32
      %v7301 = vpop.permute.xlu0 %7300
      %7302 = vrot.lane.b32.xlu0 %v6899, 32
      %v7303 = vpop.permute.xlu0 %7302
      %7304 = vrot.lane.b32.xlu0 %v6900, 32
      %v7305 = vpop.permute.xlu0 %7304
      %7306 = vrot.lane.b32.xlu0 %v6901, 32
      %v7307 = vpop.permute.xlu0 %7306
      %7308 = vrot.lane.b32.xlu0 %v6902, 32
      %v7309 = vpop.permute.xlu0 %7308
      %7310 = vrot.lane.b32.xlu0 %v6903, 32
      %v7311 = vpop.permute.xlu0 %7310
      %7312 = vrot.lane.b32.xlu0 %v6904, 32
      %v7313 = vpop.permute.xlu0 %7312
      %7314 = vrot.lane.b32.xlu0 %v6905, 32
      %v7315 = vpop.permute.xlu0 %7314
      %7316 = vrot.lane.b32.xlu0 %v6906, 32
      %v7317 = vpop.permute.xlu0 %7316
      %7318 = vrot.lane.b32.xlu0 %v6907, 32
      %v7319 = vpop.permute.xlu0 %7318
      %7320 = vrot.lane.b32.xlu0 %v6908, 32
      %v7321 = vpop.permute.xlu0 %7320
      %7322 = vrot.lane.b32.xlu0 %v6909, 32
      %v7323 = vpop.permute.xlu0 %7322
      %7324 = vrot.lane.b32.xlu0 %v6910, 32
      %v7325 = vpop.permute.xlu0 %7324
      %7326 = vrot.lane.b32.xlu0 %v6911, 32
      %v7327 = vpop.permute.xlu0 %7326
      %7392 = vrot.lane.b32.xlu0 %v6912, 48
      %v7393 = vpop.permute.xlu0 %7392
      %7394 = vrot.lane.b32.xlu0 %v6913, 48
      %v7395 = vpop.permute.xlu0 %7394
      %7396 = vrot.lane.b32.xlu0 %v6914, 48
      %v7397 = vpop.permute.xlu0 %7396
      %7398 = vrot.lane.b32.xlu0 %v6915, 48
      %v7399 = vpop.permute.xlu0 %7398
      %7400 = vrot.lane.b32.xlu0 %v6916, 48
      %v7401 = vpop.permute.xlu0 %7400
      %7402 = vrot.lane.b32.xlu0 %v6917, 48
      %v7403 = vpop.permute.xlu0 %7402
      %7404 = vrot.lane.b32.xlu0 %v6918, 48
      %v7405 = vpop.permute.xlu0 %7404
      %7406 = vrot.lane.b32.xlu0 %v6919, 48
      %v7407 = vpop.permute.xlu0 %7406
      %7408 = vrot.lane.b32.xlu0 %v6920, 48
      %v7409 = vpop.permute.xlu0 %7408
      %7410 = vrot.lane.b32.xlu0 %v6921, 48
      %v7411 = vpop.permute.xlu0 %7410
      %7412 = vrot.lane.b32.xlu0 %v6922, 48
      %v7413 = vpop.permute.xlu0 %7412
      %7414 = vrot.lane.b32.xlu0 %v6923, 48
      %v7415 = vpop.permute.xlu0 %7414
      %7416 = vrot.lane.b32.xlu0 %v6924, 48
      %v7417 = vpop.permute.xlu0 %7416
      %7418 = vrot.lane.b32.xlu0 %v6925, 48
      %v7419 = vpop.permute.xlu0 %7418
      %7420 = vrot.lane.b32.xlu0 %v6926, 48
      %v7421 = vpop.permute.xlu0 %7420
      %7422 = vrot.lane.b32.xlu0 %v6927, 48
      %v7423 = vpop.permute.xlu0 %7422
      %7424 = vrot.lane.b32.xlu0 %v6928, 48
      %v7425 = vpop.permute.xlu0 %7424
      %7426 = vrot.lane.b32.xlu0 %v6929, 48
      %v7427 = vpop.permute.xlu0 %7426
      %7428 = vrot.lane.b32.xlu0 %v6930, 48
      %v7429 = vpop.permute.xlu0 %7428
      %7430 = vrot.lane.b32.xlu0 %v6931, 48
      %v7431 = vpop.permute.xlu0 %7430
      %7432 = vrot.lane.b32.xlu0 %v6932, 48
      %v7433 = vpop.permute.xlu0 %7432
      %7434 = vrot.lane.b32.xlu0 %v6933, 48
      %v7435 = vpop.permute.xlu0 %7434
      %7436 = vrot.lane.b32.xlu0 %v6934, 48
      %v7437 = vpop.permute.xlu0 %7436
      %7438 = vrot.lane.b32.xlu0 %v6935, 48
      %v7439 = vpop.permute.xlu0 %7438
      %7440 = vrot.lane.b32.xlu0 %v6936, 48
      %v7441 = vpop.permute.xlu0 %7440
      %7442 = vrot.lane.b32.xlu0 %v6937, 48
      %v7443 = vpop.permute.xlu0 %7442
      %7444 = vrot.lane.b32.xlu0 %v6938, 48
      %v7445 = vpop.permute.xlu0 %7444
      %7446 = vrot.lane.b32.xlu0 %v6939, 48
      %v7447 = vpop.permute.xlu0 %7446
      %7448 = vrot.lane.b32.xlu0 %v6940, 48
      %v7449 = vpop.permute.xlu0 %7448
      %7450 = vrot.lane.b32.xlu0 %v6941, 48
      %v7451 = vpop.permute.xlu0 %7450
      %7452 = vrot.lane.b32.xlu0 %v6942, 48
      %v7453 = vpop.permute.xlu0 %7452
      %7454 = vrot.lane.b32.xlu0 %v6943, 48
      %v7455 = vpop.permute.xlu0 %7454
      %7520 = vrot.lane.b32.xlu0 %v6944, 64
      %v7521 = vpop.permute.xlu0 %7520
      %7522 = vrot.lane.b32.xlu0 %v6945, 64
      %v7523 = vpop.permute.xlu0 %7522
      %7524 = vrot.lane.b32.xlu0 %v6946, 64
      %v7525 = vpop.permute.xlu0 %7524
      %7526 = vrot.lane.b32.xlu0 %v6947, 64
      %v7527 = vpop.permute.xlu0 %7526
      %7528 = vrot.lane.b32.xlu0 %v6948, 64
      %v7529 = vpop.permute.xlu0 %7528
      %7530 = vrot.lane.b32.xlu0 %v6949, 64
      %v7531 = vpop.permute.xlu0 %7530
      %7532 = vrot.lane.b32.xlu0 %v6950, 64
      %v7533 = vpop.permute.xlu0 %7532
      %7534 = vrot.lane.b32.xlu0 %v6951, 64
      %v7535 = vpop.permute.xlu0 %7534
      %7536 = vrot.lane.b32.xlu0 %v6952, 64
      %v7537 = vpop.permute.xlu0 %7536
      %7538 = vrot.lane.b32.xlu0 %v6953, 64
      %v7539 = vpop.permute.xlu0 %7538
      %7540 = vrot.lane.b32.xlu0 %v6954, 64
      %v7541 = vpop.permute.xlu0 %7540
      %7542 = vrot.lane.b32.xlu0 %v6955, 64
      %v7543 = vpop.permute.xlu0 %7542
      %7544 = vrot.lane.b32.xlu0 %v6956, 64
      %v7545 = vpop.permute.xlu0 %7544
      %7546 = vrot.lane.b32.xlu0 %v6957, 64
      %v7547 = vpop.permute.xlu0 %7546
      %7548 = vrot.lane.b32.xlu0 %v6958, 64
      %v7549 = vpop.permute.xlu0 %7548
      %7550 = vrot.lane.b32.xlu0 %v6959, 64
      %v7551 = vpop.permute.xlu0 %7550
      %7552 = vrot.lane.b32.xlu0 %v6960, 64
      %v7553 = vpop.permute.xlu0 %7552
      %7554 = vrot.lane.b32.xlu0 %v6961, 64
      %v7555 = vpop.permute.xlu0 %7554
      %7556 = vrot.lane.b32.xlu0 %v6962, 64
      %v7557 = vpop.permute.xlu0 %7556
      %7558 = vrot.lane.b32.xlu0 %v6963, 64
      %v7559 = vpop.permute.xlu0 %7558
      %7560 = vrot.lane.b32.xlu0 %v6964, 64
      %v7561 = vpop.permute.xlu0 %7560
      %7562 = vrot.lane.b32.xlu0 %v6965, 64
      %v7563 = vpop.permute.xlu0 %7562
      %7564 = vrot.lane.b32.xlu0 %v6966, 64
      %v7565 = vpop.permute.xlu0 %7564
      %7566 = vrot.lane.b32.xlu0 %v6967, 64
      %v7567 = vpop.permute.xlu0 %7566
      %7568 = vrot.lane.b32.xlu0 %v6968, 64
      %v7569 = vpop.permute.xlu0 %7568
      %7570 = vrot.lane.b32.xlu0 %v6969, 64
      %v7571 = vpop.permute.xlu0 %7570
      %7572 = vrot.lane.b32.xlu0 %v6970, 64
      %v7573 = vpop.permute.xlu0 %7572
      %7574 = vrot.lane.b32.xlu0 %v6971, 64
      %v7575 = vpop.permute.xlu0 %7574
      %7576 = vrot.lane.b32.xlu0 %v6972, 64
      %v7577 = vpop.permute.xlu0 %7576
      %7578 = vrot.lane.b32.xlu0 %v6973, 64
      %v7579 = vpop.permute.xlu0 %7578
      %7580 = vrot.lane.b32.xlu0 %v6974, 64
      %v7581 = vpop.permute.xlu0 %7580
      %7582 = vrot.lane.b32.xlu0 %v6975, 64
      %v7583 = vpop.permute.xlu0 %7582
      %7648 = vrot.lane.b32.xlu0 %v6976, 80
      %v7649 = vpop.permute.xlu0 %7648
      %7650 = vrot.lane.b32.xlu0 %v6977, 80
      %v7651 = vpop.permute.xlu0 %7650
      %7652 = vrot.lane.b32.xlu0 %v6978, 80
      %v7653 = vpop.permute.xlu0 %7652
      %7654 = vrot.lane.b32.xlu0 %v6979, 80
      %v7655 = vpop.permute.xlu0 %7654
      %7656 = vrot.lane.b32.xlu0 %v6980, 80
      %v7657 = vpop.permute.xlu0 %7656
      %7658 = vrot.lane.b32.xlu0 %v6981, 80
      %v7659 = vpop.permute.xlu0 %7658
      %7660 = vrot.lane.b32.xlu0 %v6982, 80
      %v7661 = vpop.permute.xlu0 %7660
      %7662 = vrot.lane.b32.xlu0 %v6983, 80
      %v7663 = vpop.permute.xlu0 %7662
      %7664 = vrot.lane.b32.xlu0 %v6984, 80
      %v7665 = vpop.permute.xlu0 %7664
      %7666 = vrot.lane.b32.xlu0 %v6985, 80
      %v7667 = vpop.permute.xlu0 %7666
      %7668 = vrot.lane.b32.xlu0 %v6986, 80
      %v7669 = vpop.permute.xlu0 %7668
      %7670 = vrot.lane.b32.xlu0 %v6987, 80
      %v7671 = vpop.permute.xlu0 %7670
      %7672 = vrot.lane.b32.xlu0 %v6988, 80
      %v7673 = vpop.permute.xlu0 %7672
      %7674 = vrot.lane.b32.xlu0 %v6989, 80
      %v7675 = vpop.permute.xlu0 %7674
      %7676 = vrot.lane.b32.xlu0 %v6990, 80
      %v7677 = vpop.permute.xlu0 %7676
      %7678 = vrot.lane.b32.xlu0 %v6991, 80
      %v7679 = vpop.permute.xlu0 %7678
      %7680 = vrot.lane.b32.xlu0 %v6992, 80
      %v7681 = vpop.permute.xlu0 %7680
      %7682 = vrot.lane.b32.xlu0 %v6993, 80
      %v7683 = vpop.permute.xlu0 %7682
      %7684 = vrot.lane.b32.xlu0 %v6994, 80
      %v7685 = vpop.permute.xlu0 %7684
      %7686 = vrot.lane.b32.xlu0 %v6995, 80
      %v7687 = vpop.permute.xlu0 %7686
      %7688 = vrot.lane.b32.xlu0 %v6996, 80
      %v7689 = vpop.permute.xlu0 %7688
      %7690 = vrot.lane.b32.xlu0 %v6997, 80
      %v7691 = vpop.permute.xlu0 %7690
      %7692 = vrot.lane.b32.xlu0 %v6998, 80
      %v7693 = vpop.permute.xlu0 %7692
      %7694 = vrot.lane.b32.xlu0 %v6999, 80
      %v7695 = vpop.permute.xlu0 %7694
      %7696 = vrot.lane.b32.xlu0 %v7000, 80
      %v7697 = vpop.permute.xlu0 %7696
      %7698 = vrot.lane.b32.xlu0 %v7001, 80
      %v7699 = vpop.permute.xlu0 %7698
      %7700 = vrot.lane.b32.xlu0 %v7002, 80
      %v7701 = vpop.permute.xlu0 %7700
      %7702 = vrot.lane.b32.xlu0 %v7003, 80
      %v7703 = vpop.permute.xlu0 %7702
      %7704 = vrot.lane.b32.xlu0 %v7004, 80
      %v7705 = vpop.permute.xlu0 %7704
      %7706 = vrot.lane.b32.xlu0 %v7005, 80
      %v7707 = vpop.permute.xlu0 %7706
      %7708 = vrot.lane.b32.xlu0 %v7006, 80
      %v7709 = vpop.permute.xlu0 %7708
      %7710 = vrot.lane.b32.xlu0 %v7007, 80
      %v7711 = vpop.permute.xlu0 %7710
      %7776 = vrot.lane.b32.xlu0 %v7008, 96
      %v7777 = vpop.permute.xlu0 %7776
      %7778 = vrot.lane.b32.xlu0 %v7009, 96
      %v7779 = vpop.permute.xlu0 %7778
      %7780 = vrot.lane.b32.xlu0 %v7010, 96
      %v7781 = vpop.permute.xlu0 %7780
      %7782 = vrot.lane.b32.xlu0 %v7011, 96
      %v7783 = vpop.permute.xlu0 %7782
      %7784 = vrot.lane.b32.xlu0 %v7012, 96
      %v7785 = vpop.permute.xlu0 %7784
      %7786 = vrot.lane.b32.xlu0 %v7013, 96
      %v7787 = vpop.permute.xlu0 %7786
      %7788 = vrot.lane.b32.xlu0 %v7014, 96
      %v7789 = vpop.permute.xlu0 %7788
      %7790 = vrot.lane.b32.xlu0 %v7015, 96
      %v7791 = vpop.permute.xlu0 %7790
      %7792 = vrot.lane.b32.xlu0 %v7016, 96
      %v7793 = vpop.permute.xlu0 %7792
      %7794 = vrot.lane.b32.xlu0 %v7017, 96
      %v7795 = vpop.permute.xlu0 %7794
      %7796 = vrot.lane.b32.xlu0 %v7018, 96
      %v7797 = vpop.permute.xlu0 %7796
      %7798 = vrot.lane.b32.xlu0 %v7019, 96
      %v7799 = vpop.permute.xlu0 %7798
      %7800 = vrot.lane.b32.xlu0 %v7020, 96
      %v7801 = vpop.permute.xlu0 %7800
      %7802 = vrot.lane.b32.xlu0 %v7021, 96
      %v7803 = vpop.permute.xlu0 %7802
      %7804 = vrot.lane.b32.xlu0 %v7022, 96
      %v7805 = vpop.permute.xlu0 %7804
      %7806 = vrot.lane.b32.xlu0 %v7023, 96
      %v7807 = vpop.permute.xlu0 %7806
      %7808 = vrot.lane.b32.xlu0 %v7024, 96
      %v7809 = vpop.permute.xlu0 %7808
      %7810 = vrot.lane.b32.xlu0 %v7025, 96
      %v7811 = vpop.permute.xlu0 %7810
      %7812 = vrot.lane.b32.xlu0 %v7026, 96
      %v7813 = vpop.permute.xlu0 %7812
      %7814 = vrot.lane.b32.xlu0 %v7027, 96
      %v7815 = vpop.permute.xlu0 %7814
      %7816 = vrot.lane.b32.xlu0 %v7028, 96
      %v7817 = vpop.permute.xlu0 %7816
      %7818 = vrot.lane.b32.xlu0 %v7029, 96
      %v7819 = vpop.permute.xlu0 %7818
      %7820 = vrot.lane.b32.xlu0 %v7030, 96
      %v7821 = vpop.permute.xlu0 %7820
      %7822 = vrot.lane.b32.xlu0 %v7031, 96
      %v7823 = vpop.permute.xlu0 %7822
      %7824 = vrot.lane.b32.xlu0 %v7032, 96
      %v7825 = vpop.permute.xlu0 %7824
      %7826 = vrot.lane.b32.xlu0 %v7033, 96
      %v7827 = vpop.permute.xlu0 %7826
      %7828 = vrot.lane.b32.xlu0 %v7034, 96
      %v7829 = vpop.permute.xlu0 %7828
      %7830 = vrot.lane.b32.xlu0 %v7035, 96
      %v7831 = vpop.permute.xlu0 %7830
      %7832 = vrot.lane.b32.xlu0 %v7036, 96
      %v7833 = vpop.permute.xlu0 %7832
      %7834 = vrot.lane.b32.xlu0 %v7037, 96
      %v7835 = vpop.permute.xlu0 %7834
      %7836 = vrot.lane.b32.xlu0 %v7038, 96
      %v7837 = vpop.permute.xlu0 %7836
      %7838 = vrot.lane.b32.xlu0 %v7039, 96
      %v7839 = vpop.permute.xlu0 %7838
      %7904 = vrot.lane.b32.xlu0 %v7040, 112
      %v7905 = vpop.permute.xlu0 %7904
      %7906 = vrot.lane.b32.xlu0 %v7041, 112
      %v7907 = vpop.permute.xlu0 %7906
      %7908 = vrot.lane.b32.xlu0 %v7042, 112
      %v7909 = vpop.permute.xlu0 %7908
      %7910 = vrot.lane.b32.xlu0 %v7043, 112
      %v7911 = vpop.permute.xlu0 %7910
      %7912 = vrot.lane.b32.xlu0 %v7044, 112
      %v7913 = vpop.permute.xlu0 %7912
      %7914 = vrot.lane.b32.xlu0 %v7045, 112
      %v7915 = vpop.permute.xlu0 %7914
      %7916 = vrot.lane.b32.xlu0 %v7046, 112
      %v7917 = vpop.permute.xlu0 %7916
      %7918 = vrot.lane.b32.xlu0 %v7047, 112
      %v7919 = vpop.permute.xlu0 %7918
      %7920 = vrot.lane.b32.xlu0 %v7048, 112
      %v7921 = vpop.permute.xlu0 %7920
      %7922 = vrot.lane.b32.xlu0 %v7049, 112
      %v7923 = vpop.permute.xlu0 %7922
      %7924 = vrot.lane.b32.xlu0 %v7050, 112
      %v7925 = vpop.permute.xlu0 %7924
      %7926 = vrot.lane.b32.xlu0 %v7051, 112
      %v7927 = vpop.permute.xlu0 %7926
      %7928 = vrot.lane.b32.xlu0 %v7052, 112
      %v7929 = vpop.permute.xlu0 %7928
      %7930 = vrot.lane.b32.xlu0 %v7053, 112
      %v7931 = vpop.permute.xlu0 %7930
      %7932 = vrot.lane.b32.xlu0 %v7054, 112
      %v7933 = vpop.permute.xlu0 %7932
      %7934 = vrot.lane.b32.xlu0 %v7055, 112
      %v7935 = vpop.permute.xlu0 %7934
      %7936 = vrot.lane.b32.xlu0 %v7056, 112
      %v7937 = vpop.permute.xlu0 %7936
      %7938 = vrot.lane.b32.xlu0 %v7057, 112
      %v7939 = vpop.permute.xlu0 %7938
      %7940 = vrot.lane.b32.xlu0 %v7058, 112
      %v7941 = vpop.permute.xlu0 %7940
      %7942 = vrot.lane.b32.xlu0 %v7059, 112
      %v7943 = vpop.permute.xlu0 %7942
      %7944 = vrot.lane.b32.xlu0 %v7060, 112
      %v7945 = vpop.permute.xlu0 %7944
      %7946 = vrot.lane.b32.xlu0 %v7061, 112
      %v7947 = vpop.permute.xlu0 %7946
      %7948 = vrot.lane.b32.xlu0 %v7062, 112
      %v7949 = vpop.permute.xlu0 %7948
      %7950 = vrot.lane.b32.xlu0 %v7063, 112
      %v7951 = vpop.permute.xlu0 %7950
      %7952 = vrot.lane.b32.xlu0 %v7064, 112
      %v7953 = vpop.permute.xlu0 %7952
      %7954 = vrot.lane.b32.xlu0 %v7065, 112
      %v7955 = vpop.permute.xlu0 %7954
      %7956 = vrot.lane.b32.xlu0 %v7066, 112
      %v7957 = vpop.permute.xlu0 %7956
      %7958 = vrot.lane.b32.xlu0 %v7067, 112
      %v7959 = vpop.permute.xlu0 %7958
      %7960 = vrot.lane.b32.xlu0 %v7068, 112
      %v7961 = vpop.permute.xlu0 %7960
      %7962 = vrot.lane.b32.xlu0 %v7069, 112
      %v7963 = vpop.permute.xlu0 %7962
      %7964 = vrot.lane.b32.xlu0 %v7070, 112
      %v7965 = vpop.permute.xlu0 %7964
      %7966 = vrot.lane.b32.xlu0 %v7071, 112
      %v7967 = vpop.permute.xlu0 %7966
      %v8000 = vsel %vm306, %v6816, %v7137
      %v8001 = vsel %vm306, %v6817, %v7139
      %v8002 = vsel %vm306, %v6818, %v7141
      %v8003 = vsel %vm306, %v6819, %v7143
      %v8004 = vsel %vm306, %v6820, %v7145
      %v8005 = vsel %vm306, %v6821, %v7147
      %v8006 = vsel %vm306, %v6822, %v7149
      %v8007 = vsel %vm306, %v6823, %v7151
      %v8008 = vsel %vm306, %v6824, %v7153
      %v8009 = vsel %vm306, %v6825, %v7155
      %v8010 = vsel %vm306, %v6826, %v7157
      %v8011 = vsel %vm306, %v6827, %v7159
      %v8012 = vsel %vm306, %v6828, %v7161
      %v8013 = vsel %vm306, %v6829, %v7163
      %v8014 = vsel %vm306, %v6830, %v7165
      %v8015 = vsel %vm306, %v6831, %v7167
      %v8016 = vsel %vm306, %v6832, %v7169
      %v8017 = vsel %vm306, %v6833, %v7171
      %v8018 = vsel %vm306, %v6834, %v7173
      %v8019 = vsel %vm306, %v6835, %v7175
      %v8020 = vsel %vm306, %v6836, %v7177
      %v8021 = vsel %vm306, %v6837, %v7179
      %v8022 = vsel %vm306, %v6838, %v7181
      %v8023 = vsel %vm306, %v6839, %v7183
      %v8024 = vsel %vm306, %v6840, %v7185
      %v8025 = vsel %vm306, %v6841, %v7187
      %v8026 = vsel %vm306, %v6842, %v7189
      %v8027 = vsel %vm306, %v6843, %v7191
      %v8028 = vsel %vm306, %v6844, %v7193
      %v8029 = vsel %vm306, %v6845, %v7195
      %v8030 = vsel %vm306, %v6846, %v7197
      %v8031 = vsel %vm306, %v6847, %v7199
      %v8032 = vsel %vm1644, %v8000, %v7265
      %v8033 = vsel %vm1644, %v8001, %v7267
      %v8034 = vsel %vm1644, %v8002, %v7269
      %v8035 = vsel %vm1644, %v8003, %v7271
      %v8036 = vsel %vm1644, %v8004, %v7273
      %v8037 = vsel %vm1644, %v8005, %v7275
      %v8038 = vsel %vm1644, %v8006, %v7277
      %v8039 = vsel %vm1644, %v8007, %v7279
      %v8040 = vsel %vm1644, %v8008, %v7281
      %v8041 = vsel %vm1644, %v8009, %v7283
      %v8042 = vsel %vm1644, %v8010, %v7285
      %v8043 = vsel %vm1644, %v8011, %v7287
      %v8044 = vsel %vm1644, %v8012, %v7289
      %v8045 = vsel %vm1644, %v8013, %v7291
      %v8046 = vsel %vm1644, %v8014, %v7293
      %v8047 = vsel %vm1644, %v8015, %v7295
      %v8048 = vsel %vm1644, %v8016, %v7297
      %v8049 = vsel %vm1644, %v8017, %v7299
      %v8050 = vsel %vm1644, %v8018, %v7301
      %v8051 = vsel %vm1644, %v8019, %v7303
      %v8052 = vsel %vm1644, %v8020, %v7305
      %v8053 = vsel %vm1644, %v8021, %v7307
      %v8054 = vsel %vm1644, %v8022, %v7309
      %v8055 = vsel %vm1644, %v8023, %v7311
      %v8056 = vsel %vm1644, %v8024, %v7313
      %v8057 = vsel %vm1644, %v8025, %v7315
      %v8058 = vsel %vm1644, %v8026, %v7317
      %v8059 = vsel %vm1644, %v8027, %v7319
      %v8060 = vsel %vm1644, %v8028, %v7321
      %v8061 = vsel %vm1644, %v8029, %v7323
      %v8062 = vsel %vm1644, %v8030, %v7325
      %v8063 = vsel %vm1644, %v8031, %v7327
      %v8064 = vsel %vm1677, %v8032, %v7393
      %v8065 = vsel %vm1677, %v8033, %v7395
      %v8066 = vsel %vm1677, %v8034, %v7397
      %v8067 = vsel %vm1677, %v8035, %v7399
      %v8068 = vsel %vm1677, %v8036, %v7401
      %v8069 = vsel %vm1677, %v8037, %v7403
      %v8070 = vsel %vm1677, %v8038, %v7405
      %v8071 = vsel %vm1677, %v8039, %v7407
      %v8072 = vsel %vm1677, %v8040, %v7409
      %v8073 = vsel %vm1677, %v8041, %v7411
      %v8074 = vsel %vm1677, %v8042, %v7413
      %v8075 = vsel %vm1677, %v8043, %v7415
      %v8076 = vsel %vm1677, %v8044, %v7417
      %v8077 = vsel %vm1677, %v8045, %v7419
      %v8078 = vsel %vm1677, %v8046, %v7421
      %v8079 = vsel %vm1677, %v8047, %v7423
      %v8080 = vsel %vm1677, %v8048, %v7425
      %v8081 = vsel %vm1677, %v8049, %v7427
      %v8082 = vsel %vm1677, %v8050, %v7429
      %v8083 = vsel %vm1677, %v8051, %v7431
      %v8084 = vsel %vm1677, %v8052, %v7433
      %v8085 = vsel %vm1677, %v8053, %v7435
      %v8086 = vsel %vm1677, %v8054, %v7437
      %v8087 = vsel %vm1677, %v8055, %v7439
      %v8088 = vsel %vm1677, %v8056, %v7441
      %v8089 = vsel %vm1677, %v8057, %v7443
      %v8090 = vsel %vm1677, %v8058, %v7445
      %v8091 = vsel %vm1677, %v8059, %v7447
      %v8092 = vsel %vm1677, %v8060, %v7449
      %v8093 = vsel %vm1677, %v8061, %v7451
      %v8094 = vsel %vm1677, %v8062, %v7453
      %v8095 = vsel %vm1677, %v8063, %v7455
      %v8096 = vsel %vm1710, %v8064, %v7521
      %v8097 = vsel %vm1710, %v8065, %v7523
      %v8098 = vsel %vm1710, %v8066, %v7525
      %v8099 = vsel %vm1710, %v8067, %v7527
      %v8100 = vsel %vm1710, %v8068, %v7529
      %v8101 = vsel %vm1710, %v8069, %v7531
      %v8102 = vsel %vm1710, %v8070, %v7533
      %v8103 = vsel %vm1710, %v8071, %v7535
      %v8104 = vsel %vm1710, %v8072, %v7537
      %v8105 = vsel %vm1710, %v8073, %v7539
      %v8106 = vsel %vm1710, %v8074, %v7541
      %v8107 = vsel %vm1710, %v8075, %v7543
      %v8108 = vsel %vm1710, %v8076, %v7545
      %v8109 = vsel %vm1710, %v8077, %v7547
      %v8110 = vsel %vm1710, %v8078, %v7549
      %v8111 = vsel %vm1710, %v8079, %v7551
      %v8112 = vsel %vm1710, %v8080, %v7553
      %v8113 = vsel %vm1710, %v8081, %v7555
      %v8114 = vsel %vm1710, %v8082, %v7557
      %v8115 = vsel %vm1710, %v8083, %v7559
      %v8116 = vsel %vm1710, %v8084, %v7561
      %v8117 = vsel %vm1710, %v8085, %v7563
      %v8118 = vsel %vm1710, %v8086, %v7565
      %v8119 = vsel %vm1710, %v8087, %v7567
      %v8120 = vsel %vm1710, %v8088, %v7569
      %v8121 = vsel %vm1710, %v8089, %v7571
      %v8122 = vsel %vm1710, %v8090, %v7573
      %v8123 = vsel %vm1710, %v8091, %v7575
      %v8124 = vsel %vm1710, %v8092, %v7577
      %v8125 = vsel %vm1710, %v8093, %v7579
      %v8126 = vsel %vm1710, %v8094, %v7581
      %v8127 = vsel %vm1710, %v8095, %v7583
      %v8128 = vsel %vm1743, %v8096, %v7649
      %v8129 = vsel %vm1743, %v8097, %v7651
      %v8130 = vsel %vm1743, %v8098, %v7653
      %v8131 = vsel %vm1743, %v8099, %v7655
      %v8132 = vsel %vm1743, %v8100, %v7657
      %v8133 = vsel %vm1743, %v8101, %v7659
      %v8134 = vsel %vm1743, %v8102, %v7661
      %v8135 = vsel %vm1743, %v8103, %v7663
      %v8136 = vsel %vm1743, %v8104, %v7665
      %v8137 = vsel %vm1743, %v8105, %v7667
      %v8138 = vsel %vm1743, %v8106, %v7669
      %v8139 = vsel %vm1743, %v8107, %v7671
      %v8140 = vsel %vm1743, %v8108, %v7673
      %v8141 = vsel %vm1743, %v8109, %v7675
      %v8142 = vsel %vm1743, %v8110, %v7677
      %v8143 = vsel %vm1743, %v8111, %v7679
      %v8144 = vsel %vm1743, %v8112, %v7681
      %v8145 = vsel %vm1743, %v8113, %v7683
      %v8146 = vsel %vm1743, %v8114, %v7685
      %v8147 = vsel %vm1743, %v8115, %v7687
      %v8148 = vsel %vm1743, %v8116, %v7689
      %v8149 = vsel %vm1743, %v8117, %v7691
      %v8150 = vsel %vm1743, %v8118, %v7693
      %v8151 = vsel %vm1743, %v8119, %v7695
      %v8152 = vsel %vm1743, %v8120, %v7697
      %v8153 = vsel %vm1743, %v8121, %v7699
      %v8154 = vsel %vm1743, %v8122, %v7701
      %v8155 = vsel %vm1743, %v8123, %v7703
      %v8156 = vsel %vm1743, %v8124, %v7705
      %v8157 = vsel %vm1743, %v8125, %v7707
      %v8158 = vsel %vm1743, %v8126, %v7709
      %v8159 = vsel %vm1743, %v8127, %v7711
      %v8160 = vsel %vm1776, %v8128, %v7777
      %v8161 = vsel %vm1776, %v8129, %v7779
      %v8162 = vsel %vm1776, %v8130, %v7781
      %v8163 = vsel %vm1776, %v8131, %v7783
      %v8164 = vsel %vm1776, %v8132, %v7785
      %v8165 = vsel %vm1776, %v8133, %v7787
      %v8166 = vsel %vm1776, %v8134, %v7789
      %v8167 = vsel %vm1776, %v8135, %v7791
      %v8168 = vsel %vm1776, %v8136, %v7793
      %v8169 = vsel %vm1776, %v8137, %v7795
      %v8170 = vsel %vm1776, %v8138, %v7797
      %v8171 = vsel %vm1776, %v8139, %v7799
      %v8172 = vsel %vm1776, %v8140, %v7801
      %v8173 = vsel %vm1776, %v8141, %v7803
      %v8174 = vsel %vm1776, %v8142, %v7805
      %v8175 = vsel %vm1776, %v8143, %v7807
      %v8176 = vsel %vm1776, %v8144, %v7809
      %v8177 = vsel %vm1776, %v8145, %v7811
      %v8178 = vsel %vm1776, %v8146, %v7813
      %v8179 = vsel %vm1776, %v8147, %v7815
      %v8180 = vsel %vm1776, %v8148, %v7817
      %v8181 = vsel %vm1776, %v8149, %v7819
      %v8182 = vsel %vm1776, %v8150, %v7821
      %v8183 = vsel %vm1776, %v8151, %v7823
      %v8184 = vsel %vm1776, %v8152, %v7825
      %v8185 = vsel %vm1776, %v8153, %v7827
      %v8186 = vsel %vm1776, %v8154, %v7829
      %v8187 = vsel %vm1776, %v8155, %v7831
      %v8188 = vsel %vm1776, %v8156, %v7833
      %v8189 = vsel %vm1776, %v8157, %v7835
      %v8190 = vsel %vm1776, %v8158, %v7837
      %v8191 = vsel %vm1776, %v8159, %v7839
      %v8192 = vsel %vm1809, %v8160, %v7905
      %v8193 = vsel %vm1809, %v8161, %v7907
      %v8194 = vsel %vm1809, %v8162, %v7909
      %v8195 = vsel %vm1809, %v8163, %v7911
      %v8196 = vsel %vm1809, %v8164, %v7913
      %v8197 = vsel %vm1809, %v8165, %v7915
      %v8198 = vsel %vm1809, %v8166, %v7917
      %v8199 = vsel %vm1809, %v8167, %v7919
      %v8200 = vsel %vm1809, %v8168, %v7921
      %v8201 = vsel %vm1809, %v8169, %v7923
      %v8202 = vsel %vm1809, %v8170, %v7925
      %v8203 = vsel %vm1809, %v8171, %v7927
      %v8204 = vsel %vm1809, %v8172, %v7929
      %v8205 = vsel %vm1809, %v8173, %v7931
      %v8206 = vsel %vm1809, %v8174, %v7933
      %v8207 = vsel %vm1809, %v8175, %v7935
      %v8208 = vsel %vm1809, %v8176, %v7937
      %v8209 = vsel %vm1809, %v8177, %v7939
      %v8210 = vsel %vm1809, %v8178, %v7941
      %v8211 = vsel %vm1809, %v8179, %v7943
      %v8212 = vsel %vm1809, %v8180, %v7945
      %v8213 = vsel %vm1809, %v8181, %v7947
      %v8214 = vsel %vm1809, %v8182, %v7949
      %v8215 = vsel %vm1809, %v8183, %v7951
      %v8216 = vsel %vm1809, %v8184, %v7953
      %v8217 = vsel %vm1809, %v8185, %v7955
      %v8218 = vsel %vm1809, %v8186, %v7957
      %v8219 = vsel %vm1809, %v8187, %v7959
      %v8220 = vsel %vm1809, %v8188, %v7961
      %v8221 = vsel %vm1809, %v8189, %v7963
      %v8222 = vsel %vm1809, %v8190, %v7965
      %v8223 = vsel %vm1809, %v8191, %v7967
      %s8224 = scalar_lea.vmem %s1, 288
      %v8225 = vld [vmem:[%s8224] sm:$0xff]
      %v8226 = vld [vmem:[%s8224 + $0x8] sm:$0xff]
      %v8227 = vld [vmem:[%s8224 + $0x10] sm:$0xff]
      %v8228 = vld [vmem:[%s8224 + $0x18] sm:$0xff]
      %v8229 = vld [vmem:[%s8224 + $0x20] sm:$0xff]
      %v8230 = vld [vmem:[%s8224 + $0x28] sm:$0xff]
      %v8231 = vld [vmem:[%s8224 + $0x30] sm:$0xff]
      %v8232 = vld [vmem:[%s8224 + $0x38] sm:$0xff]
      %v8233 = vld [vmem:[%s8224 + $0x40] sm:$0xff]
      %v8234 = vld [vmem:[%s8224 + $0x48] sm:$0xff]
      %v8235 = vld [vmem:[%s8224 + $0x50] sm:$0xff]
      %v8236 = vld [vmem:[%s8224 + $0x58] sm:$0xff]
      %v8237 = vld [vmem:[%s8224 + $0x60] sm:$0xff]
      %v8238 = vld [vmem:[%s8224 + $0x68] sm:$0xff]
      %v8239 = vld [vmem:[%s8224 + $0x70] sm:$0xff]
      %v8240 = vld [vmem:[%s8224 + $0x78] sm:$0xff]
      %v8241 = vld [vmem:[%s8224 + $0x80] sm:$0xff]
      %v8242 = vld [vmem:[%s8224 + $0x88] sm:$0xff]
      %s8243 = scalar_lea.vmem %s2, 2
      %v8244 = vld [vmem:[%s8243] sm:$0x1]
      %v8246 = vlaneseq
      %v8247 = vshrl.u32 %v8246, 7
      %v8248 = vsub.s32 0, %v8247
      %v8249 = vrot.slane %v8244, %v8248
      %v8252 = vsel %vm306, %v7072, 0
      %v8255 = vsel %vm306, %v7073, 0
      %v8258 = vsel %vm306, %v7074, 0
      %v8261 = vsel %vm306, %v7075, 0
      %v8264 = vsel %vm306, %v7076, 0
      %v8267 = vsel %vm306, %v7077, 0
      %v8270 = vsel %vm306, %v7078, 0
      %v8273 = vsel %vm306, %v7079, 0
      %v8276 = vsel %vm306, %v7080, 0
      %v8279 = vsel %vm306, %v7081, 0
      %v8282 = vsel %vm306, %v7082, 0
      %v8285 = vsel %vm306, %v7083, 0
      %v8288 = vsel %vm306, %v7084, 0
      %v8291 = vsel %vm306, %v7085, 0
      %v8294 = vsel %vm306, %v7086, 0
      %v8297 = vsel %vm306, %v7087, 0
      %v8300 = vsel %vm306, %v7088, 0
      %v8303 = vsel %vm306, %v7089, 0
      %v8306 = vsel %vm306, %v7090, 0
      %v8309 = vsel %vm306, %v7091, 0
      %v8312 = vsel %vm306, %v7092, 0
      %v8315 = vsel %vm306, %v7093, 0
      %v8318 = vsel %vm306, %v7094, 0
      %v8321 = vsel %vm306, %v7095, 0
      %v8324 = vsel %vm306, %v7096, 0
      %v8327 = vsel %vm306, %v7097, 0
      %v8330 = vsel %vm306, %v7098, 0
      %v8333 = vsel %vm306, %v7099, 0
      %v8336 = vsel %vm306, %v7100, 0
      %v8339 = vsel %vm306, %v7101, 0
      %v8342 = vsel %vm306, %v7102, 0
      %v8345 = vsel %vm306, %v7103, 0
      %8347 = vmatprep.subr.mxu0 0.0
      %8348 = vmatpush1.msra.mxu0 %v8225
      %8349 = vmatprep.subr.mxu0 0.0
      %8350 = vmatpush1.msra.mxu0 %v8226
      %8351 = vmatprep.subr.mxu0 0.0
      %8352 = vmatpush1.msra.mxu0 %v8227
      %8353 = vmatprep.subr.mxu0 0.0
      %8354 = vmatpush1.msra.mxu0 %v8228
      %8355 = vmatprep.subr.mxu0 0.0
      %8356 = vmatpush1.msra.mxu0 %v8229
      %8357 = vmatprep.subr.mxu0 0.0
      %8358 = vmatpush1.msra.mxu0 %v8230
      %8359 = vmatprep.subr.mxu0 0.0
      %8360 = vmatpush1.msra.mxu0 %v8231
      %8361 = vmatprep.subr.mxu0 0.0
      %8362 = vmatpush1.msra.mxu0 %v8232
      %8363 = vmatprep.subr.mxu0 0.0
      %8364 = vmatpush1.msra.mxu0 %v8233
      %8365 = vmatprep.subr.mxu0 0.0
      %8366 = vmatpush1.msra.mxu0 %v8234
      %8367 = vmatprep.subr.mxu0 0.0
      %8368 = vmatpush1.msra.mxu0 %v8235
      %8369 = vmatprep.subr.mxu0 0.0
      %8370 = vmatpush1.msra.mxu0 %v8236
      %8371 = vmatprep.subr.mxu0 0.0
      %8372 = vmatpush1.msra.mxu0 %v8237
      %8373 = vmatprep.subr.mxu0 0.0
      %8374 = vmatpush1.msra.mxu0 %v8238
      %8375 = vmatprep.subr.mxu0 0.0
      %8376 = vmatpush1.msra.mxu0 %v8239
      %8377 = vmatprep.subr.mxu0 0.0
      %8378 = vmatpush1.msra.mxu0 %v8240
      %8379 = vmatprep.subr.mxu0 0.0
      %8380 = vmatpush1.msra.mxu0 %v8241
      %8381 = vmatprep.subr.mxu0 0.0
      %8382 = vmatpush1.msra.mxu0 %v8242
      %8383 = vmatprep.subr.mxu0 0.0
      %8384 = vmatpush1.msra.mxu0 0.0
      %8385 = vmatprep.subr.mxu0 0.0
      %8386 = vmatpush1.msra.mxu0 0.0
      %8387 = vmatprep.subr.mxu0 0.0
      %8388 = vmatpush1.msra.mxu0 0.0
      %8389 = vmatprep.subr.mxu0 0.0
      %8390 = vmatpush1.msra.mxu0 0.0
      %8391 = vmatprep.subr.mxu0 0.0
      %8392 = vmatpush1.msra.mxu0 0.0
      %8393 = vmatprep.subr.mxu0 0.0
      %8394 = vmatpush1.msra.mxu0 0.0
      %8395 = vmatprep.subr.mxu0 0.0
      %8396 = vmatpush1.msra.mxu0 0.0
      %8397 = vmatprep.subr.mxu0 0.0
      %8398 = vmatpush1.msra.mxu0 0.0
      %8399 = vmatprep.subr.mxu0 0.0
      %8400 = vmatpush1.msra.mxu0 0.0
      %8401 = vmatprep.subr.mxu0 0.0
      %8402 = vmatpush1.msra.mxu0 0.0
      %8403 = vmatprep.subr.mxu0 0.0
      %8404 = vmatpush1.msra.mxu0 0.0
      %8405 = vmatprep.subr.mxu0 0.0
      %8406 = vmatpush1.msra.mxu0 0.0
      %8407 = vmatprep.subr.mxu0 0.0
      %8408 = vmatpush1.msra.mxu0 0.0
      %8409 = vmatprep.subr.mxu0 0.0
      %8410 = vmatpush1.msra.mxu0 0.0
      %8411 = vmatprep.mubr.f32.mxu0 %v8252
      %8412 = vmatmul.mubr.f32.gmra.mrb[0].mxu0 %v8192
      %v8413 = vpop.f32.mrb[0].mxu0
      %v8414 = vadd.f32 %v8249, %v8413
      %v8415 = vpop.f32.mrb[0].mxu0
      %8416 = vmatprep.mubr.f32.mxu0 %v8255
      %8417 = vmatmul.mubr.f32.gmra.mrb[0].mxu0 %v8193
      %v8418 = vpop.f32.mrb[0].mxu0
      %v8419 = vadd.f32 %v8249, %v8418
      %v8420 = vpop.f32.mrb[0].mxu0
      %8421 = vmatprep.mubr.f32.mxu0 %v8258
      %8422 = vmatmul.mubr.f32.gmra.mrb[0].mxu0 %v8194
      %v8423 = vpop.f32.mrb[0].mxu0
      %v8424 = vadd.f32 %v8249, %v8423
      %v8425 = vpop.f32.mrb[0].mxu0
      %8426 = vmatprep.mubr.f32.mxu0 %v8261
      %8427 = vmatmul.mubr.f32.gmra.mrb[0].mxu0 %v8195
      %v8428 = vpop.f32.mrb[0].mxu0
      %v8429 = vadd.f32 %v8249, %v8428
      %v8430 = vpop.f32.mrb[0].mxu0
      %8431 = vmatprep.mubr.f32.mxu0 %v8264
      %8432 = vmatmul.mubr.f32.gmra.mrb[0].mxu0 %v8196
      %v8433 = vpop.f32.mrb[0].mxu0
      %v8434 = vadd.f32 %v8249, %v8433
      %v8435 = vpop.f32.mrb[0].mxu0
      %8436 = vmatprep.mubr.f32.mxu0 %v8267
      %8437 = vmatmul.mubr.f32.gmra.mrb[0].mxu0 %v8197
      %v8438 = vpop.f32.mrb[0].mxu0
      %v8439 = vadd.f32 %v8249, %v8438
      %v8440 = vpop.f32.mrb[0].mxu0
      %8441 = vmatprep.mubr.f32.mxu0 %v8270
      %8442 = vmatmul.mubr.f32.gmra.mrb[0].mxu0 %v8198
      %v8443 = vpop.f32.mrb[0].mxu0
      %v8444 = vadd.f32 %v8249, %v8443
      %v8445 = vpop.f32.mrb[0].mxu0
      %8446 = vmatprep.mubr.f32.mxu0 %v8273
      %8447 = vmatmul.mubr.f32.gmra.mrb[0].mxu0 %v8199
      %v8448 = vpop.f32.mrb[0].mxu0
      %v8449 = vadd.f32 %v8249, %v8448
      %v8450 = vpop.f32.mrb[0].mxu0
      %8451 = vmatprep.mubr.f32.mxu0 %v8276
      %8452 = vmatmul.mubr.f32.gmra.mrb[0].mxu0 %v8200
      %v8453 = vpop.f32.mrb[0].mxu0
      %v8454 = vadd.f32 %v8249, %v8453
      %v8455 = vpop.f32.mrb[0].mxu0
      %8456 = vmatprep.mubr.f32.mxu0 %v8279
      %8457 = vmatmul.mubr.f32.gmra.mrb[0].mxu0 %v8201
      %v8458 = vpop.f32.mrb[0].mxu0
      %v8459 = vadd.f32 %v8249, %v8458
      %v8460 = vpop.f32.mrb[0].mxu0
      %8461 = vmatprep.mubr.f32.mxu0 %v8282
      %8462 = vmatmul.mubr.f32.gmra.mrb[0].mxu0 %v8202
      %v8463 = vpop.f32.mrb[0].mxu0
      %v8464 = vadd.f32 %v8249, %v8463
      %v8465 = vpop.f32.mrb[0].mxu0
      %8466 = vmatprep.mubr.f32.mxu0 %v8285
      %8467 = vmatmul.mubr.f32.gmra.mrb[0].mxu0 %v8203
      %v8468 = vpop.f32.mrb[0].mxu0
      %v8469 = vadd.f32 %v8249, %v8468
      %v8470 = vpop.f32.mrb[0].mxu0
      %8471 = vmatprep.mubr.f32.mxu0 %v8288
      %8472 = vmatmul.mubr.f32.gmra.mrb[0].mxu0 %v8204
      %v8473 = vpop.f32.mrb[0].mxu0
      %v8474 = vadd.f32 %v8249, %v8473
      %v8475 = vpop.f32.mrb[0].mxu0
      %8476 = vmatprep.mubr.f32.mxu0 %v8291
      %8477 = vmatmul.mubr.f32.gmra.mrb[0].mxu0 %v8205
      %v8478 = vpop.f32.mrb[0].mxu0
      %v8479 = vadd.f32 %v8249, %v8478
      %v8480 = vpop.f32.mrb[0].mxu0
      %8481 = vmatprep.mubr.f32.mxu0 %v8294
      %8482 = vmatmul.mubr.f32.gmra.mrb[0].mxu0 %v8206
      %v8483 = vpop.f32.mrb[0].mxu0
      %v8484 = vadd.f32 %v8249, %v8483
      %v8485 = vpop.f32.mrb[0].mxu0
      %8486 = vmatprep.mubr.f32.mxu0 %v8297
      %8487 = vmatmul.mubr.f32.gmra.mrb[0].mxu0 %v8207
      %v8488 = vpop.f32.mrb[0].mxu0
      %v8489 = vadd.f32 %v8249, %v8488
      %v8490 = vpop.f32.mrb[0].mxu0
      %8491 = vmatprep.mubr.f32.mxu0 %v8300
      %8492 = vmatmul.mubr.f32.gmra.mrb[0].mxu0 %v8208
      %v8493 = vpop.f32.mrb[0].mxu0
      %v8494 = vadd.f32 %v8249, %v8493
      %v8495 = vpop.f32.mrb[0].mxu0
      %8496 = vmatprep.mubr.f32.mxu0 %v8303
      %8497 = vmatmul.mubr.f32.gmra.mrb[0].mxu0 %v8209
      %v8498 = vpop.f32.mrb[0].mxu0
      %v8499 = vadd.f32 %v8249, %v8498
      %v8500 = vpop.f32.mrb[0].mxu0
      %8501 = vmatprep.mubr.f32.mxu0 %v8306
      %8502 = vmatmul.mubr.f32.gmra.mrb[0].mxu0 %v8210
      %v8503 = vpop.f32.mrb[0].mxu0
      %v8504 = vadd.f32 %v8249, %v8503
      %v8505 = vpop.f32.mrb[0].mxu0
      %8506 = vmatprep.mubr.f32.mxu0 %v8309
      %8507 = vmatmul.mubr.f32.gmra.mrb[0].mxu0 %v8211
      %v8508 = vpop.f32.mrb[0].mxu0
      %v8509 = vadd.f32 %v8249, %v8508
      %v8510 = vpop.f32.mrb[0].mxu0
      %8511 = vmatprep.mubr.f32.mxu0 %v8312
      %8512 = vmatmul.mubr.f32.gmra.mrb[0].mxu0 %v8212
      %v8513 = vpop.f32.mrb[0].mxu0
      %v8514 = vadd.f32 %v8249, %v8513
      %v8515 = vpop.f32.mrb[0].mxu0
      %8516 = vmatprep.mubr.f32.mxu0 %v8315
      %8517 = vmatmul.mubr.f32.gmra.mrb[0].mxu0 %v8213
      %v8518 = vpop.f32.mrb[0].mxu0
      %v8519 = vadd.f32 %v8249, %v8518
      %v8520 = vpop.f32.mrb[0].mxu0
      %8521 = vmatprep.mubr.f32.mxu0 %v8318
      %8522 = vmatmul.mubr.f32.gmra.mrb[0].mxu0 %v8214
      %v8523 = vpop.f32.mrb[0].mxu0
      %v8524 = vadd.f32 %v8249, %v8523
      %v8525 = vpop.f32.mrb[0].mxu0
      %8526 = vmatprep.mubr.f32.mxu0 %v8321
      %8527 = vmatmul.mubr.f32.gmra.mrb[0].mxu0 %v8215
      %v8528 = vpop.f32.mrb[0].mxu0
      %v8529 = vadd.f32 %v8249, %v8528
      %v8530 = vpop.f32.mrb[0].mxu0
      %8531 = vmatprep.mubr.f32.mxu0 %v8324
      %8532 = vmatmul.mubr.f32.gmra.mrb[0].mxu0 %v8216
      %v8533 = vpop.f32.mrb[0].mxu0
      %v8534 = vadd.f32 %v8249, %v8533
      %v8535 = vpop.f32.mrb[0].mxu0
      %8536 = vmatprep.mubr.f32.mxu0 %v8327
      %8537 = vmatmul.mubr.f32.gmra.mrb[0].mxu0 %v8217
      %v8538 = vpop.f32.mrb[0].mxu0
      %v8539 = vadd.f32 %v8249, %v8538
      %v8540 = vpop.f32.mrb[0].mxu0
      %8541 = vmatprep.mubr.f32.mxu0 %v8330
      %8542 = vmatmul.mubr.f32.gmra.mrb[0].mxu0 %v8218
      %v8543 = vpop.f32.mrb[0].mxu0
      %v8544 = vadd.f32 %v8249, %v8543
      %v8545 = vpop.f32.mrb[0].mxu0
      %8546 = vmatprep.mubr.f32.mxu0 %v8333
      %8547 = vmatmul.mubr.f32.gmra.mrb[0].mxu0 %v8219
      %v8548 = vpop.f32.mrb[0].mxu0
      %v8549 = vadd.f32 %v8249, %v8548
      %v8550 = vpop.f32.mrb[0].mxu0
      %8551 = vmatprep.mubr.f32.mxu0 %v8336
      %8552 = vmatmul.mubr.f32.gmra.mrb[0].mxu0 %v8220
      %v8553 = vpop.f32.mrb[0].mxu0
      %v8554 = vadd.f32 %v8249, %v8553
      %v8555 = vpop.f32.mrb[0].mxu0
      %8556 = vmatprep.mubr.f32.mxu0 %v8339
      %8557 = vmatmul.mubr.f32.gmra.mrb[0].mxu0 %v8221
      %v8558 = vpop.f32.mrb[0].mxu0
      %v8559 = vadd.f32 %v8249, %v8558
      %v8560 = vpop.f32.mrb[0].mxu0
      %8561 = vmatprep.mubr.f32.mxu0 %v8342
      %8562 = vmatmul.mubr.f32.gmra.mrb[0].mxu0 %v8222
      %v8563 = vpop.f32.mrb[0].mxu0
      %v8564 = vadd.f32 %v8249, %v8563
      %v8565 = vpop.f32.mrb[0].mxu0
      %8566 = vmatprep.mubr.f32.mxu0 %v8345
      %8567 = vmatmul.mubr.f32.gmra.mrb[0].mxu0 %v8223
      %v8568 = vpop.f32.mrb[0].mxu0
      %v8569 = vadd.f32 %v8249, %v8568
      %v8570 = vpop.f32.mrb[0].mxu0
      %8571 = vdwg.mxu0
      %v8572 = vmax.f32 %v8414, 0.0
      %v8573 = vmax.f32 %v8419, 0.0
      %v8574 = vmax.f32 %v8424, 0.0
      %v8575 = vmax.f32 %v8429, 0.0
      %v8576 = vmax.f32 %v8434, 0.0
      %v8577 = vmax.f32 %v8439, 0.0
      %v8578 = vmax.f32 %v8444, 0.0
      %v8579 = vmax.f32 %v8449, 0.0
      %v8580 = vmax.f32 %v8454, 0.0
      %v8581 = vmax.f32 %v8459, 0.0
      %v8582 = vmax.f32 %v8464, 0.0
      %v8583 = vmax.f32 %v8469, 0.0
      %v8584 = vmax.f32 %v8474, 0.0
      %v8585 = vmax.f32 %v8479, 0.0
      %v8586 = vmax.f32 %v8484, 0.0
      %v8587 = vmax.f32 %v8489, 0.0
      %v8588 = vmax.f32 %v8494, 0.0
      %v8589 = vmax.f32 %v8499, 0.0
      %v8590 = vmax.f32 %v8504, 0.0
      %v8591 = vmax.f32 %v8509, 0.0
      %v8592 = vmax.f32 %v8514, 0.0
      %v8593 = vmax.f32 %v8519, 0.0
      %v8594 = vmax.f32 %v8524, 0.0
      %v8595 = vmax.f32 %v8529, 0.0
      %v8596 = vmax.f32 %v8534, 0.0
      %v8597 = vmax.f32 %v8539, 0.0
      %v8598 = vmax.f32 %v8544, 0.0
      %v8599 = vmax.f32 %v8549, 0.0
      %v8600 = vmax.f32 %v8554, 0.0
      %v8601 = vmax.f32 %v8559, 0.0
      %v8602 = vmax.f32 %v8564, 0.0
      %v8603 = vmax.f32 %v8569, 0.0
      %8636 = vrot.lane.b32.xlu0 %v8572, 112
      %v8637 = vpop.permute.xlu0 %8636
      %8638 = vrot.lane.b32.xlu0 %v8573, 112
      %v8639 = vpop.permute.xlu0 %8638
      %8640 = vrot.lane.b32.xlu0 %v8574, 112
      %v8641 = vpop.permute.xlu0 %8640
      %8642 = vrot.lane.b32.xlu0 %v8575, 112
      %v8643 = vpop.permute.xlu0 %8642
      %8644 = vrot.lane.b32.xlu0 %v8576, 112
      %v8645 = vpop.permute.xlu0 %8644
      %8646 = vrot.lane.b32.xlu0 %v8577, 112
      %v8647 = vpop.permute.xlu0 %8646
      %8648 = vrot.lane.b32.xlu0 %v8578, 112
      %v8649 = vpop.permute.xlu0 %8648
      %8650 = vrot.lane.b32.xlu0 %v8579, 112
      %v8651 = vpop.permute.xlu0 %8650
      %8652 = vrot.lane.b32.xlu0 %v8580, 112
      %v8653 = vpop.permute.xlu0 %8652
      %8654 = vrot.lane.b32.xlu0 %v8581, 112
      %v8655 = vpop.permute.xlu0 %8654
      %8656 = vrot.lane.b32.xlu0 %v8582, 112
      %v8657 = vpop.permute.xlu0 %8656
      %8658 = vrot.lane.b32.xlu0 %v8583, 112
      %v8659 = vpop.permute.xlu0 %8658
      %8660 = vrot.lane.b32.xlu0 %v8584, 112
      %v8661 = vpop.permute.xlu0 %8660
      %8662 = vrot.lane.b32.xlu0 %v8585, 112
      %v8663 = vpop.permute.xlu0 %8662
      %8664 = vrot.lane.b32.xlu0 %v8586, 112
      %v8665 = vpop.permute.xlu0 %8664
      %8666 = vrot.lane.b32.xlu0 %v8587, 112
      %v8667 = vpop.permute.xlu0 %8666
      %8668 = vrot.lane.b32.xlu0 %v8588, 112
      %v8669 = vpop.permute.xlu0 %8668
      %8670 = vrot.lane.b32.xlu0 %v8589, 112
      %v8671 = vpop.permute.xlu0 %8670
      %8672 = vrot.lane.b32.xlu0 %v8590, 112
      %v8673 = vpop.permute.xlu0 %8672
      %8674 = vrot.lane.b32.xlu0 %v8591, 112
      %v8675 = vpop.permute.xlu0 %8674
      %8676 = vrot.lane.b32.xlu0 %v8592, 112
      %v8677 = vpop.permute.xlu0 %8676
      %8678 = vrot.lane.b32.xlu0 %v8593, 112
      %v8679 = vpop.permute.xlu0 %8678
      %8680 = vrot.lane.b32.xlu0 %v8594, 112
      %v8681 = vpop.permute.xlu0 %8680
      %8682 = vrot.lane.b32.xlu0 %v8595, 112
      %v8683 = vpop.permute.xlu0 %8682
      %8684 = vrot.lane.b32.xlu0 %v8596, 112
      %v8685 = vpop.permute.xlu0 %8684
      %8686 = vrot.lane.b32.xlu0 %v8597, 112
      %v8687 = vpop.permute.xlu0 %8686
      %8688 = vrot.lane.b32.xlu0 %v8598, 112
      %v8689 = vpop.permute.xlu0 %8688
      %8690 = vrot.lane.b32.xlu0 %v8599, 112
      %v8691 = vpop.permute.xlu0 %8690
      %8692 = vrot.lane.b32.xlu0 %v8600, 112
      %v8693 = vpop.permute.xlu0 %8692
      %8694 = vrot.lane.b32.xlu0 %v8601, 112
      %v8695 = vpop.permute.xlu0 %8694
      %8696 = vrot.lane.b32.xlu0 %v8602, 112
      %v8697 = vpop.permute.xlu0 %8696
      %8698 = vrot.lane.b32.xlu0 %v8603, 112
      %v8699 = vpop.permute.xlu0 %8698
      %v8732 = vadd.f32 %v8572, %v8637
      %v8733 = vadd.f32 %v8573, %v8639
      %v8734 = vadd.f32 %v8574, %v8641
      %v8735 = vadd.f32 %v8575, %v8643
      %v8736 = vadd.f32 %v8576, %v8645
      %v8737 = vadd.f32 %v8577, %v8647
      %v8738 = vadd.f32 %v8578, %v8649
      %v8739 = vadd.f32 %v8579, %v8651
      %v8740 = vadd.f32 %v8580, %v8653
      %v8741 = vadd.f32 %v8581, %v8655
      %v8742 = vadd.f32 %v8582, %v8657
      %v8743 = vadd.f32 %v8583, %v8659
      %v8744 = vadd.f32 %v8584, %v8661
      %v8745 = vadd.f32 %v8585, %v8663
      %v8746 = vadd.f32 %v8586, %v8665
      %v8747 = vadd.f32 %v8587, %v8667
      %v8748 = vadd.f32 %v8588, %v8669
      %v8749 = vadd.f32 %v8589, %v8671
      %v8750 = vadd.f32 %v8590, %v8673
      %v8751 = vadd.f32 %v8591, %v8675
      %v8752 = vadd.f32 %v8592, %v8677
      %v8753 = vadd.f32 %v8593, %v8679
      %v8754 = vadd.f32 %v8594, %v8681
      %v8755 = vadd.f32 %v8595, %v8683
      %v8756 = vadd.f32 %v8596, %v8685
      %v8757 = vadd.f32 %v8597, %v8687
      %v8758 = vadd.f32 %v8598, %v8689
      %v8759 = vadd.f32 %v8599, %v8691
      %v8760 = vadd.f32 %v8600, %v8693
      %v8761 = vadd.f32 %v8601, %v8695
      %v8762 = vadd.f32 %v8602, %v8697
      %v8763 = vadd.f32 %v8603, %v8699
      %8764 = vst.msk [vmem:[%s394 + $0x1] sm:$0xff] %vm306, %v8732
      %8765 = vst.msk [vmem:[%s394 + $0x9] sm:$0xff] %vm306, %v8733
      %8766 = vst.msk [vmem:[%s394 + $0x19] sm:$0xff] %vm306, %v8734
      %8767 = vst.msk [vmem:[%s394 + $0x21] sm:$0xff] %vm306, %v8735
      %8768 = vst.msk [vmem:[%s394 + $0x31] sm:$0xff] %vm306, %v8736
      %8769 = vst.msk [vmem:[%s394 + $0x39] sm:$0xff] %vm306, %v8737
      %8770 = vst.msk [vmem:[%s394 + $0x49] sm:$0xff] %vm306, %v8738
      %8771 = vst.msk [vmem:[%s394 + $0x51] sm:$0xff] %vm306, %v8739
      %8772 = vst.msk [vmem:[%s394 + $0x61] sm:$0xff] %vm306, %v8740
      %8773 = vst.msk [vmem:[%s394 + $0x69] sm:$0xff] %vm306, %v8741
      %8774 = vst.msk [vmem:[%s394 + $0x79] sm:$0xff] %vm306, %v8742
      %8775 = vst.msk [vmem:[%s394 + $0x81] sm:$0xff] %vm306, %v8743
      %8776 = vst.msk [vmem:[%s394 + $0x91] sm:$0xff] %vm306, %v8744
      %8777 = vst.msk [vmem:[%s394 + $0x99] sm:$0xff] %vm306, %v8745
      %8778 = vst.msk [vmem:[%s394 + $0xa9] sm:$0xff] %vm306, %v8746
      %8779 = vst.msk [vmem:[%s394 + $0xb1] sm:$0xff] %vm306, %v8747
      %8780 = vst.msk [vmem:[%s394 + $0xc1] sm:$0xff] %vm306, %v8748
      %8781 = vst.msk [vmem:[%s394 + $0xc9] sm:$0xff] %vm306, %v8749
      %8782 = vst.msk [vmem:[%s394 + $0xd9] sm:$0xff] %vm306, %v8750
      %8783 = vst.msk [vmem:[%s394 + $0xe1] sm:$0xff] %vm306, %v8751
      %8784 = vst.msk [vmem:[%s394 + $0xf1] sm:$0xff] %vm306, %v8752
      %8785 = vst.msk [vmem:[%s394 + $0xf9] sm:$0xff] %vm306, %v8753
      %8786 = vst.msk [vmem:[%s394 + $0x109] sm:$0xff] %vm306, %v8754
      %8787 = vst.msk [vmem:[%s394 + $0x111] sm:$0xff] %vm306, %v8755
      %8788 = vst.msk [vmem:[%s394 + $0x121] sm:$0xff] %vm306, %v8756
      %8789 = vst.msk [vmem:[%s394 + $0x129] sm:$0xff] %vm306, %v8757
      %8790 = vst.msk [vmem:[%s394 + $0x139] sm:$0xff] %vm306, %v8758
      %8791 = vst.msk [vmem:[%s394 + $0x141] sm:$0xff] %vm306, %v8759
      %8792 = vst.msk [vmem:[%s394 + $0x151] sm:$0xff] %vm306, %v8760
      %8793 = vst.msk [vmem:[%s394 + $0x159] sm:$0xff] %vm306, %v8761
      %8794 = vst.msk [vmem:[%s394 + $0x169] sm:$0xff] %vm306, %v8762
      %8795 = vst.msk [vmem:[%s394 + $0x171] sm:$0xff] %vm306, %v8763
      %v8796 = vld [vmem:[#allocation2] sm:$0xff]
      %v8797 = vld [vmem:[#allocation2 + $0x8] sm:$0xff]
      %v8798 = vld [vmem:[#allocation2 + $0x18] sm:$0xff]
      %v8799 = vld [vmem:[#allocation2 + $0x20] sm:$0xff]
      %v8800 = vld [vmem:[#allocation2 + $0x30] sm:$0xff]
      %v8801 = vld [vmem:[#allocation2 + $0x38] sm:$0xff]
      %v8802 = vld [vmem:[#allocation2 + $0x48] sm:$0xff]
      %v8803 = vld [vmem:[#allocation2 + $0x50] sm:$0xff]
      %v8804 = vld [vmem:[#allocation2 + $0x60] sm:$0xff]
      %v8805 = vld [vmem:[#allocation2 + $0x68] sm:$0xff]
      %v8806 = vld [vmem:[#allocation2 + $0x78] sm:$0xff]
      %v8807 = vld [vmem:[#allocation2 + $0x80] sm:$0xff]
      %v8808 = vld [vmem:[#allocation2 + $0x90] sm:$0xff]
      %v8809 = vld [vmem:[#allocation2 + $0x98] sm:$0xff]
      %v8810 = vld [vmem:[#allocation2 + $0xa8] sm:$0xff]
      %v8811 = vld [vmem:[#allocation2 + $0xb0] sm:$0xff]
      %v8812 = vld [vmem:[#allocation2 + $0xc0] sm:$0xff]
      %v8813 = vld [vmem:[#allocation2 + $0xc8] sm:$0xff]
      %v8814 = vld [vmem:[#allocation2 + $0xd8] sm:$0xff]
      %v8815 = vld [vmem:[#allocation2 + $0xe0] sm:$0xff]
      %v8816 = vld [vmem:[#allocation2 + $0xf0] sm:$0xff]
      %v8817 = vld [vmem:[#allocation2 + $0xf8] sm:$0xff]
      %v8818 = vld [vmem:[#allocation2 + $0x108] sm:$0xff]
      %v8819 = vld [vmem:[#allocation2 + $0x110] sm:$0xff]
      %v8820 = vld [vmem:[#allocation2 + $0x120] sm:$0xff]
      %v8821 = vld [vmem:[#allocation2 + $0x128] sm:$0xff]
      %v8822 = vld [vmem:[#allocation2 + $0x138] sm:$0xff]
      %v8823 = vld [vmem:[#allocation2 + $0x140] sm:$0xff]
      %v8824 = vld [vmem:[#allocation2 + $0x150] sm:$0xff]
      %v8825 = vld [vmem:[#allocation2 + $0x158] sm:$0xff]
      %v8826 = vld [vmem:[#allocation2 + $0x168] sm:$0xff]
      %v8827 = vld [vmem:[#allocation2 + $0x170] sm:$0xff]
      %v8828 = vld [vmem:[#allocation2 + $0x1] sm:$0xff]
      %v8829 = vld [vmem:[#allocation2 + $0x9] sm:$0xff]
      %v8830 = vld [vmem:[#allocation2 + $0x19] sm:$0xff]
      %v8831 = vld [vmem:[#allocation2 + $0x21] sm:$0xff]
      %v8832 = vld [vmem:[#allocation2 + $0x31] sm:$0xff]
      %v8833 = vld [vmem:[#allocation2 + $0x39] sm:$0xff]
      %v8834 = vld [vmem:[#allocation2 + $0x49] sm:$0xff]
      %v8835 = vld [vmem:[#allocation2 + $0x51] sm:$0xff]
      %v8836 = vld [vmem:[#allocation2 + $0x61] sm:$0xff]
      %v8837 = vld [vmem:[#allocation2 + $0x69] sm:$0xff]
      %v8838 = vld [vmem:[#allocation2 + $0x79] sm:$0xff]
      %v8839 = vld [vmem:[#allocation2 + $0x81] sm:$0xff]
      %v8840 = vld [vmem:[#allocation2 + $0x91] sm:$0xff]
      %v8841 = vld [vmem:[#allocation2 + $0x99] sm:$0xff]
      %v8842 = vld [vmem:[#allocation2 + $0xa9] sm:$0xff]
      %v8843 = vld [vmem:[#allocation2 + $0xb1] sm:$0xff]
      %v8844 = vld [vmem:[#allocation2 + $0xc1] sm:$0xff]
      %v8845 = vld [vmem:[#allocation2 + $0xc9] sm:$0xff]
      %v8846 = vld [vmem:[#allocation2 + $0xd9] sm:$0xff]
      %v8847 = vld [vmem:[#allocation2 + $0xe1] sm:$0xff]
      %v8848 = vld [vmem:[#allocation2 + $0xf1] sm:$0xff]
      %v8849 = vld [vmem:[#allocation2 + $0xf9] sm:$0xff]
      %v8850 = vld [vmem:[#allocation2 + $0x109] sm:$0xff]
      %v8851 = vld [vmem:[#allocation2 + $0x111] sm:$0xff]
      %v8852 = vld [vmem:[#allocation2 + $0x121] sm:$0xff]
      %v8853 = vld [vmem:[#allocation2 + $0x129] sm:$0xff]
      %v8854 = vld [vmem:[#allocation2 + $0x139] sm:$0xff]
      %v8855 = vld [vmem:[#allocation2 + $0x141] sm:$0xff]
      %v8856 = vld [vmem:[#allocation2 + $0x151] sm:$0xff]
      %v8857 = vld [vmem:[#allocation2 + $0x159] sm:$0xff]
      %v8858 = vld [vmem:[#allocation2 + $0x169] sm:$0xff]
      %v8859 = vld [vmem:[#allocation2 + $0x171] sm:$0xff]
      %v8860 = vld [vmem:[#allocation2 + $0x2] sm:$0xff]
      %v8861 = vld [vmem:[#allocation2 + $0xa] sm:$0xff]
      %v8862 = vld [vmem:[#allocation2 + $0x1a] sm:$0xff]
      %v8863 = vld [vmem:[#allocation2 + $0x22] sm:$0xff]
      %v8864 = vld [vmem:[#allocation2 + $0x32] sm:$0xff]
      %v8865 = vld [vmem:[#allocation2 + $0x3a] sm:$0xff]
      %v8866 = vld [vmem:[#allocation2 + $0x4a] sm:$0xff]
      %v8867 = vld [vmem:[#allocation2 + $0x52] sm:$0xff]
      %v8868 = vld [vmem:[#allocation2 + $0x62] sm:$0xff]
      %v8869 = vld [vmem:[#allocation2 + $0x6a] sm:$0xff]
      %v8870 = vld [vmem:[#allocation2 + $0x7a] sm:$0xff]
      %v8871 = vld [vmem:[#allocation2 + $0x82] sm:$0xff]
      %v8872 = vld [vmem:[#allocation2 + $0x92] sm:$0xff]
      %v8873 = vld [vmem:[#allocation2 + $0x9a] sm:$0xff]
      %v8874 = vld [vmem:[#allocation2 + $0xaa] sm:$0xff]
      %v8875 = vld [vmem:[#allocation2 + $0xb2] sm:$0xff]
      %v8876 = vld [vmem:[#allocation2 + $0xc2] sm:$0xff]
      %v8877 = vld [vmem:[#allocation2 + $0xca] sm:$0xff]
      %v8878 = vld [vmem:[#allocation2 + $0xda] sm:$0xff]
      %v8879 = vld [vmem:[#allocation2 + $0xe2] sm:$0xff]
      %v8880 = vld [vmem:[#allocation2 + $0xf2] sm:$0xff]
      %v8881 = vld [vmem:[#allocation2 + $0xfa] sm:$0xff]
      %v8882 = vld [vmem:[#allocation2 + $0x10a] sm:$0xff]
      %v8883 = vld [vmem:[#allocation2 + $0x112] sm:$0xff]
      %v8884 = vld [vmem:[#allocation2 + $0x122] sm:$0xff]
      %v8885 = vld [vmem:[#allocation2 + $0x12a] sm:$0xff]
      %v8886 = vld [vmem:[#allocation2 + $0x13a] sm:$0xff]
      %v8887 = vld [vmem:[#allocation2 + $0x142] sm:$0xff]
      %v8888 = vld [vmem:[#allocation2 + $0x152] sm:$0xff]
      %v8889 = vld [vmem:[#allocation2 + $0x15a] sm:$0xff]
      %v8890 = vld [vmem:[#allocation2 + $0x16a] sm:$0xff]
      %v8891 = vld [vmem:[#allocation2 + $0x172] sm:$0xff]
      %v8892 = vld [vmem:[%s394] sm:$0xff]
      %v8893 = vld [vmem:[%s394 + $0x8] sm:$0xff]
      %v8894 = vld [vmem:[%s394 + $0x18] sm:$0xff]
      %v8895 = vld [vmem:[%s394 + $0x20] sm:$0xff]
      %v8896 = vld [vmem:[%s394 + $0x30] sm:$0xff]
      %v8897 = vld [vmem:[%s394 + $0x38] sm:$0xff]
      %v8898 = vld [vmem:[%s394 + $0x48] sm:$0xff]
      %v8899 = vld [vmem:[%s394 + $0x50] sm:$0xff]
      %v8900 = vld [vmem:[%s394 + $0x60] sm:$0xff]
      %v8901 = vld [vmem:[%s394 + $0x68] sm:$0xff]
      %v8902 = vld [vmem:[%s394 + $0x78] sm:$0xff]
      %v8903 = vld [vmem:[%s394 + $0x80] sm:$0xff]
      %v8904 = vld [vmem:[%s394 + $0x90] sm:$0xff]
      %v8905 = vld [vmem:[%s394 + $0x98] sm:$0xff]
      %v8906 = vld [vmem:[%s394 + $0xa8] sm:$0xff]
      %v8907 = vld [vmem:[%s394 + $0xb0] sm:$0xff]
      %v8908 = vld [vmem:[%s394 + $0xc0] sm:$0xff]
      %v8909 = vld [vmem:[%s394 + $0xc8] sm:$0xff]
      %v8910 = vld [vmem:[%s394 + $0xd8] sm:$0xff]
      %v8911 = vld [vmem:[%s394 + $0xe0] sm:$0xff]
      %v8912 = vld [vmem:[%s394 + $0xf0] sm:$0xff]
      %v8913 = vld [vmem:[%s394 + $0xf8] sm:$0xff]
      %v8914 = vld [vmem:[%s394 + $0x108] sm:$0xff]
      %v8915 = vld [vmem:[%s394 + $0x110] sm:$0xff]
      %v8916 = vld [vmem:[%s394 + $0x120] sm:$0xff]
      %v8917 = vld [vmem:[%s394 + $0x128] sm:$0xff]
      %v8918 = vld [vmem:[%s394 + $0x138] sm:$0xff]
      %v8919 = vld [vmem:[%s394 + $0x140] sm:$0xff]
      %v8920 = vld [vmem:[%s394 + $0x150] sm:$0xff]
      %v8921 = vld [vmem:[%s394 + $0x158] sm:$0xff]
      %v8922 = vld [vmem:[%s394 + $0x168] sm:$0xff]
      %v8923 = vld [vmem:[%s394 + $0x170] sm:$0xff]
      %v8924 = vld [vmem:[%s394 + $0x1] sm:$0xff]
      %v8925 = vld [vmem:[%s394 + $0x9] sm:$0xff]
      %v8926 = vld [vmem:[%s394 + $0x19] sm:$0xff]
      %v8927 = vld [vmem:[%s394 + $0x21] sm:$0xff]
      %v8928 = vld [vmem:[%s394 + $0x31] sm:$0xff]
      %v8929 = vld [vmem:[%s394 + $0x39] sm:$0xff]
      %v8930 = vld [vmem:[%s394 + $0x49] sm:$0xff]
      %v8931 = vld [vmem:[%s394 + $0x51] sm:$0xff]
      %v8932 = vld [vmem:[%s394 + $0x61] sm:$0xff]
      %v8933 = vld [vmem:[%s394 + $0x69] sm:$0xff]
      %v8934 = vld [vmem:[%s394 + $0x79] sm:$0xff]
      %v8935 = vld [vmem:[%s394 + $0x81] sm:$0xff]
      %v8936 = vld [vmem:[%s394 + $0x91] sm:$0xff]
      %v8937 = vld [vmem:[%s394 + $0x99] sm:$0xff]
      %v8938 = vld [vmem:[%s394 + $0xa9] sm:$0xff]
      %v8939 = vld [vmem:[%s394 + $0xb1] sm:$0xff]
      %v8940 = vld [vmem:[%s394 + $0xc1] sm:$0xff]
      %v8941 = vld [vmem:[%s394 + $0xc9] sm:$0xff]
      %v8942 = vld [vmem:[%s394 + $0xd9] sm:$0xff]
      %v8943 = vld [vmem:[%s394 + $0xe1] sm:$0xff]
      %v8944 = vld [vmem:[%s394 + $0xf1] sm:$0xff]
      %v8945 = vld [vmem:[%s394 + $0xf9] sm:$0xff]
      %v8946 = vld [vmem:[%s394 + $0x109] sm:$0xff]
      %v8947 = vld [vmem:[%s394 + $0x111] sm:$0xff]
      %v8948 = vld [vmem:[%s394 + $0x121] sm:$0xff]
      %v8949 = vld [vmem:[%s394 + $0x129] sm:$0xff]
      %v8950 = vld [vmem:[%s394 + $0x139] sm:$0xff]
      %v8951 = vld [vmem:[%s394 + $0x141] sm:$0xff]
      %v8952 = vld [vmem:[%s394 + $0x151] sm:$0xff]
      %v8953 = vld [vmem:[%s394 + $0x159] sm:$0xff]
      %v8954 = vld [vmem:[%s394 + $0x169] sm:$0xff]
      %v8955 = vld [vmem:[%s394 + $0x171] sm:$0xff]
      %v8956 = vld [vmem:[%s394 + $0x2] sm:$0xff]
      %v8957 = vld [vmem:[%s394 + $0xa] sm:$0xff]
      %v8958 = vld [vmem:[%s394 + $0x1a] sm:$0xff]
      %v8959 = vld [vmem:[%s394 + $0x22] sm:$0xff]
      %v8960 = vld [vmem:[%s394 + $0x32] sm:$0xff]
      %v8961 = vld [vmem:[%s394 + $0x3a] sm:$0xff]
      %v8962 = vld [vmem:[%s394 + $0x4a] sm:$0xff]
      %v8963 = vld [vmem:[%s394 + $0x52] sm:$0xff]
      %v8964 = vld [vmem:[%s394 + $0x62] sm:$0xff]
      %v8965 = vld [vmem:[%s394 + $0x6a] sm:$0xff]
      %v8966 = vld [vmem:[%s394 + $0x7a] sm:$0xff]
      %v8967 = vld [vmem:[%s394 + $0x82] sm:$0xff]
      %v8968 = vld [vmem:[%s394 + $0x92] sm:$0xff]
      %v8969 = vld [vmem:[%s394 + $0x9a] sm:$0xff]
      %v8970 = vld [vmem:[%s394 + $0xaa] sm:$0xff]
      %v8971 = vld [vmem:[%s394 + $0xb2] sm:$0xff]
      %v8972 = vld [vmem:[%s394 + $0xc2] sm:$0xff]
      %v8973 = vld [vmem:[%s394 + $0xca] sm:$0xff]
      %v8974 = vld [vmem:[%s394 + $0xda] sm:$0xff]
      %v8975 = vld [vmem:[%s394 + $0xe2] sm:$0xff]
      %v8976 = vld [vmem:[%s394 + $0xf2] sm:$0xff]
      %v8977 = vld [vmem:[%s394 + $0xfa] sm:$0xff]
      %v8978 = vld [vmem:[%s394 + $0x10a] sm:$0xff]
      %v8979 = vld [vmem:[%s394 + $0x112] sm:$0xff]
      %v8980 = vld [vmem:[%s394 + $0x122] sm:$0xff]
      %v8981 = vld [vmem:[%s394 + $0x12a] sm:$0xff]
      %v8982 = vld [vmem:[%s394 + $0x13a] sm:$0xff]
      %v8983 = vld [vmem:[%s394 + $0x142] sm:$0xff]
      %v8984 = vld [vmem:[%s394 + $0x152] sm:$0xff]
      %v8985 = vld [vmem:[%s394 + $0x15a] sm:$0xff]
      %v8986 = vld [vmem:[%s394 + $0x16a] sm:$0xff]
      %v8987 = vld [vmem:[%s394 + $0x172] sm:$0xff]
      %v8988 = vld [vmem:[%s619] sm:$0xff]
      %v8989 = vld [vmem:[%s619 + $0x8] sm:$0xff]
      %v8990 = vld [vmem:[%s619 + $0x18] sm:$0xff]
      %v8991 = vld [vmem:[%s619 + $0x20] sm:$0xff]
      %v8992 = vld [vmem:[%s619 + $0x30] sm:$0xff]
      %v8993 = vld [vmem:[%s619 + $0x38] sm:$0xff]
      %v8994 = vld [vmem:[%s619 + $0x48] sm:$0xff]
      %v8995 = vld [vmem:[%s619 + $0x50] sm:$0xff]
      %v8996 = vld [vmem:[%s619 + $0x60] sm:$0xff]
      %v8997 = vld [vmem:[%s619 + $0x68] sm:$0xff]
      %v8998 = vld [vmem:[%s619 + $0x78] sm:$0xff]
      %v8999 = vld [vmem:[%s619 + $0x80] sm:$0xff]
      %v9000 = vld [vmem:[%s619 + $0x90] sm:$0xff]
      %v9001 = vld [vmem:[%s619 + $0x98] sm:$0xff]
      %v9002 = vld [vmem:[%s619 + $0xa8] sm:$0xff]
      %v9003 = vld [vmem:[%s619 + $0xb0] sm:$0xff]
      %v9004 = vld [vmem:[%s619 + $0xc0] sm:$0xff]
      %v9005 = vld [vmem:[%s619 + $0xc8] sm:$0xff]
      %v9006 = vld [vmem:[%s619 + $0xd8] sm:$0xff]
      %v9007 = vld [vmem:[%s619 + $0xe0] sm:$0xff]
      %v9008 = vld [vmem:[%s619 + $0xf0] sm:$0xff]
      %v9009 = vld [vmem:[%s619 + $0xf8] sm:$0xff]
      %v9010 = vld [vmem:[%s619 + $0x108] sm:$0xff]
      %v9011 = vld [vmem:[%s619 + $0x110] sm:$0xff]
      %v9012 = vld [vmem:[%s619 + $0x120] sm:$0xff]
      %v9013 = vld [vmem:[%s619 + $0x128] sm:$0xff]
      %v9014 = vld [vmem:[%s619 + $0x138] sm:$0xff]
      %v9015 = vld [vmem:[%s619 + $0x140] sm:$0xff]
      %v9016 = vld [vmem:[%s619 + $0x150] sm:$0xff]
      %v9017 = vld [vmem:[%s619 + $0x158] sm:$0xff]
      %v9018 = vld [vmem:[%s619 + $0x168] sm:$0xff]
      %v9019 = vld [vmem:[%s619 + $0x170] sm:$0xff]
      %v9020 = vld [vmem:[%s619 + $0x1] sm:$0xff]
      %v9021 = vld [vmem:[%s619 + $0x9] sm:$0xff]
      %v9022 = vld [vmem:[%s619 + $0x19] sm:$0xff]
      %v9023 = vld [vmem:[%s619 + $0x21] sm:$0xff]
      %v9024 = vld [vmem:[%s619 + $0x31] sm:$0xff]
      %v9025 = vld [vmem:[%s619 + $0x39] sm:$0xff]
      %v9026 = vld [vmem:[%s619 + $0x49] sm:$0xff]
      %v9027 = vld [vmem:[%s619 + $0x51] sm:$0xff]
      %v9028 = vld [vmem:[%s619 + $0x61] sm:$0xff]
      %v9029 = vld [vmem:[%s619 + $0x69] sm:$0xff]
      %v9030 = vld [vmem:[%s619 + $0x79] sm:$0xff]
      %v9031 = vld [vmem:[%s619 + $0x81] sm:$0xff]
      %v9032 = vld [vmem:[%s619 + $0x91] sm:$0xff]
      %v9033 = vld [vmem:[%s619 + $0x99] sm:$0xff]
      %v9034 = vld [vmem:[%s619 + $0xa9] sm:$0xff]
      %v9035 = vld [vmem:[%s619 + $0xb1] sm:$0xff]
      %v9036 = vld [vmem:[%s619 + $0xc1] sm:$0xff]
      %v9037 = vld [vmem:[%s619 + $0xc9] sm:$0xff]
      %v9038 = vld [vmem:[%s619 + $0xd9] sm:$0xff]
      %v9039 = vld [vmem:[%s619 + $0xe1] sm:$0xff]
      %v9040 = vld [vmem:[%s619 + $0xf1] sm:$0xff]
      %v9041 = vld [vmem:[%s619 + $0xf9] sm:$0xff]
      %v9042 = vld [vmem:[%s619 + $0x109] sm:$0xff]
      %v9043 = vld [vmem:[%s619 + $0x111] sm:$0xff]
      %v9044 = vld [vmem:[%s619 + $0x121] sm:$0xff]
      %v9045 = vld [vmem:[%s619 + $0x129] sm:$0xff]
      %v9046 = vld [vmem:[%s619 + $0x139] sm:$0xff]
      %v9047 = vld [vmem:[%s619 + $0x141] sm:$0xff]
      %v9048 = vld [vmem:[%s619 + $0x151] sm:$0xff]
      %v9049 = vld [vmem:[%s619 + $0x159] sm:$0xff]
      %v9050 = vld [vmem:[%s619 + $0x169] sm:$0xff]
      %v9051 = vld [vmem:[%s619 + $0x171] sm:$0xff]
      %v9052 = vld [vmem:[%s619 + $0x2] sm:$0xff]
      %v9053 = vld [vmem:[%s619 + $0xa] sm:$0xff]
      %v9054 = vld [vmem:[%s619 + $0x1a] sm:$0xff]
      %v9055 = vld [vmem:[%s619 + $0x22] sm:$0xff]
      %v9056 = vld [vmem:[%s619 + $0x32] sm:$0xff]
      %v9057 = vld [vmem:[%s619 + $0x3a] sm:$0xff]
      %v9058 = vld [vmem:[%s619 + $0x4a] sm:$0xff]
      %v9059 = vld [vmem:[%s619 + $0x52] sm:$0xff]
      %v9060 = vld [vmem:[%s619 + $0x62] sm:$0xff]
      %v9061 = vld [vmem:[%s619 + $0x6a] sm:$0xff]
      %v9062 = vld [vmem:[%s619 + $0x7a] sm:$0xff]
      %v9063 = vld [vmem:[%s619 + $0x82] sm:$0xff]
      %v9064 = vld [vmem:[%s619 + $0x92] sm:$0xff]
      %v9065 = vld [vmem:[%s619 + $0x9a] sm:$0xff]
      %v9066 = vld [vmem:[%s619 + $0xaa] sm:$0xff]
      %v9067 = vld [vmem:[%s619 + $0xb2] sm:$0xff]
      %v9068 = vld [vmem:[%s619 + $0xc2] sm:$0xff]
      %v9069 = vld [vmem:[%s619 + $0xca] sm:$0xff]
      %v9070 = vld [vmem:[%s619 + $0xda] sm:$0xff]
      %v9071 = vld [vmem:[%s619 + $0xe2] sm:$0xff]
      %v9072 = vld [vmem:[%s619 + $0xf2] sm:$0xff]
      %v9073 = vld [vmem:[%s619 + $0xfa] sm:$0xff]
      %v9074 = vld [vmem:[%s619 + $0x10a] sm:$0xff]
      %v9075 = vld [vmem:[%s619 + $0x112] sm:$0xff]
      %v9076 = vld [vmem:[%s619 + $0x122] sm:$0xff]
      %v9077 = vld [vmem:[%s619 + $0x12a] sm:$0xff]
      %v9078 = vld [vmem:[%s619 + $0x13a] sm:$0xff]
      %v9079 = vld [vmem:[%s619 + $0x142] sm:$0xff]
      %v9080 = vld [vmem:[%s619 + $0x152] sm:$0xff]
      %v9081 = vld [vmem:[%s619 + $0x15a] sm:$0xff]
      %v9082 = vld [vmem:[%s619 + $0x16a] sm:$0xff]
      %v9083 = vld [vmem:[%s619 + $0x172] sm:$0xff]
      %9116 = vrot.lane.b32.xlu0 %v8828, 16
      %v9117 = vpop.permute.xlu0 %9116
      %9118 = vrot.lane.b32.xlu0 %v8829, 16
      %v9119 = vpop.permute.xlu0 %9118
      %9120 = vrot.lane.b32.xlu0 %v8830, 16
      %v9121 = vpop.permute.xlu0 %9120
      %9122 = vrot.lane.b32.xlu0 %v8831, 16
      %v9123 = vpop.permute.xlu0 %9122
      %9124 = vrot.lane.b32.xlu0 %v8832, 16
      %v9125 = vpop.permute.xlu0 %9124
      %9126 = vrot.lane.b32.xlu0 %v8833, 16
      %v9127 = vpop.permute.xlu0 %9126
      %9128 = vrot.lane.b32.xlu0 %v8834, 16
      %v9129 = vpop.permute.xlu0 %9128
      %9130 = vrot.lane.b32.xlu0 %v8835, 16
      %v9131 = vpop.permute.xlu0 %9130
      %9132 = vrot.lane.b32.xlu0 %v8836, 16
      %v9133 = vpop.permute.xlu0 %9132
      %9134 = vrot.lane.b32.xlu0 %v8837, 16
      %v9135 = vpop.permute.xlu0 %9134
      %9136 = vrot.lane.b32.xlu0 %v8838, 16
      %v9137 = vpop.permute.xlu0 %9136
      %9138 = vrot.lane.b32.xlu0 %v8839, 16
      %v9139 = vpop.permute.xlu0 %9138
      %9140 = vrot.lane.b32.xlu0 %v8840, 16
      %v9141 = vpop.permute.xlu0 %9140
      %9142 = vrot.lane.b32.xlu0 %v8841, 16
      %v9143 = vpop.permute.xlu0 %9142
      %9144 = vrot.lane.b32.xlu0 %v8842, 16
      %v9145 = vpop.permute.xlu0 %9144
      %9146 = vrot.lane.b32.xlu0 %v8843, 16
      %v9147 = vpop.permute.xlu0 %9146
      %9148 = vrot.lane.b32.xlu0 %v8844, 16
      %v9149 = vpop.permute.xlu0 %9148
      %9150 = vrot.lane.b32.xlu0 %v8845, 16
      %v9151 = vpop.permute.xlu0 %9150
      %9152 = vrot.lane.b32.xlu0 %v8846, 16
      %v9153 = vpop.permute.xlu0 %9152
      %9154 = vrot.lane.b32.xlu0 %v8847, 16
      %v9155 = vpop.permute.xlu0 %9154
      %9156 = vrot.lane.b32.xlu0 %v8848, 16
      %v9157 = vpop.permute.xlu0 %9156
      %9158 = vrot.lane.b32.xlu0 %v8849, 16
      %v9159 = vpop.permute.xlu0 %9158
      %9160 = vrot.lane.b32.xlu0 %v8850, 16
      %v9161 = vpop.permute.xlu0 %9160
      %9162 = vrot.lane.b32.xlu0 %v8851, 16
      %v9163 = vpop.permute.xlu0 %9162
      %9164 = vrot.lane.b32.xlu0 %v8852, 16
      %v9165 = vpop.permute.xlu0 %9164
      %9166 = vrot.lane.b32.xlu0 %v8853, 16
      %v9167 = vpop.permute.xlu0 %9166
      %9168 = vrot.lane.b32.xlu0 %v8854, 16
      %v9169 = vpop.permute.xlu0 %9168
      %9170 = vrot.lane.b32.xlu0 %v8855, 16
      %v9171 = vpop.permute.xlu0 %9170
      %9172 = vrot.lane.b32.xlu0 %v8856, 16
      %v9173 = vpop.permute.xlu0 %9172
      %9174 = vrot.lane.b32.xlu0 %v8857, 16
      %v9175 = vpop.permute.xlu0 %9174
      %9176 = vrot.lane.b32.xlu0 %v8858, 16
      %v9177 = vpop.permute.xlu0 %9176
      %9178 = vrot.lane.b32.xlu0 %v8859, 16
      %v9179 = vpop.permute.xlu0 %9178
      %9244 = vrot.lane.b32.xlu0 %v8860, 32
      %v9245 = vpop.permute.xlu0 %9244
      %9246 = vrot.lane.b32.xlu0 %v8861, 32
      %v9247 = vpop.permute.xlu0 %9246
      %9248 = vrot.lane.b32.xlu0 %v8862, 32
      %v9249 = vpop.permute.xlu0 %9248
      %9250 = vrot.lane.b32.xlu0 %v8863, 32
      %v9251 = vpop.permute.xlu0 %9250
      %9252 = vrot.lane.b32.xlu0 %v8864, 32
      %v9253 = vpop.permute.xlu0 %9252
      %9254 = vrot.lane.b32.xlu0 %v8865, 32
      %v9255 = vpop.permute.xlu0 %9254
      %9256 = vrot.lane.b32.xlu0 %v8866, 32
      %v9257 = vpop.permute.xlu0 %9256
      %9258 = vrot.lane.b32.xlu0 %v8867, 32
      %v9259 = vpop.permute.xlu0 %9258
      %9260 = vrot.lane.b32.xlu0 %v8868, 32
      %v9261 = vpop.permute.xlu0 %9260
      %9262 = vrot.lane.b32.xlu0 %v8869, 32
      %v9263 = vpop.permute.xlu0 %9262
      %9264 = vrot.lane.b32.xlu0 %v8870, 32
      %v9265 = vpop.permute.xlu0 %9264
      %9266 = vrot.lane.b32.xlu0 %v8871, 32
      %v9267 = vpop.permute.xlu0 %9266
      %9268 = vrot.lane.b32.xlu0 %v8872, 32
      %v9269 = vpop.permute.xlu0 %9268
      %9270 = vrot.lane.b32.xlu0 %v8873, 32
      %v9271 = vpop.permute.xlu0 %9270
      %9272 = vrot.lane.b32.xlu0 %v8874, 32
      %v9273 = vpop.permute.xlu0 %9272
      %9274 = vrot.lane.b32.xlu0 %v8875, 32
      %v9275 = vpop.permute.xlu0 %9274
      %9276 = vrot.lane.b32.xlu0 %v8876, 32
      %v9277 = vpop.permute.xlu0 %9276
      %9278 = vrot.lane.b32.xlu0 %v8877, 32
      %v9279 = vpop.permute.xlu0 %9278
      %9280 = vrot.lane.b32.xlu0 %v8878, 32
      %v9281 = vpop.permute.xlu0 %9280
      %9282 = vrot.lane.b32.xlu0 %v8879, 32
      %v9283 = vpop.permute.xlu0 %9282
      %9284 = vrot.lane.b32.xlu0 %v8880, 32
      %v9285 = vpop.permute.xlu0 %9284
      %9286 = vrot.lane.b32.xlu0 %v8881, 32
      %v9287 = vpop.permute.xlu0 %9286
      %9288 = vrot.lane.b32.xlu0 %v8882, 32
      %v9289 = vpop.permute.xlu0 %9288
      %9290 = vrot.lane.b32.xlu0 %v8883, 32
      %v9291 = vpop.permute.xlu0 %9290
      %9292 = vrot.lane.b32.xlu0 %v8884, 32
      %v9293 = vpop.permute.xlu0 %9292
      %9294 = vrot.lane.b32.xlu0 %v8885, 32
      %v9295 = vpop.permute.xlu0 %9294
      %9296 = vrot.lane.b32.xlu0 %v8886, 32
      %v9297 = vpop.permute.xlu0 %9296
      %9298 = vrot.lane.b32.xlu0 %v8887, 32
      %v9299 = vpop.permute.xlu0 %9298
      %9300 = vrot.lane.b32.xlu0 %v8888, 32
      %v9301 = vpop.permute.xlu0 %9300
      %9302 = vrot.lane.b32.xlu0 %v8889, 32
      %v9303 = vpop.permute.xlu0 %9302
      %9304 = vrot.lane.b32.xlu0 %v8890, 32
      %v9305 = vpop.permute.xlu0 %9304
      %9306 = vrot.lane.b32.xlu0 %v8891, 32
      %v9307 = vpop.permute.xlu0 %9306
      %9372 = vrot.lane.b32.xlu0 %v8892, 48
      %v9373 = vpop.permute.xlu0 %9372
      %9374 = vrot.lane.b32.xlu0 %v8893, 48
      %v9375 = vpop.permute.xlu0 %9374
      %9376 = vrot.lane.b32.xlu0 %v8894, 48
      %v9377 = vpop.permute.xlu0 %9376
      %9378 = vrot.lane.b32.xlu0 %v8895, 48
      %v9379 = vpop.permute.xlu0 %9378
      %9380 = vrot.lane.b32.xlu0 %v8896, 48
      %v9381 = vpop.permute.xlu0 %9380
      %9382 = vrot.lane.b32.xlu0 %v8897, 48
      %v9383 = vpop.permute.xlu0 %9382
      %9384 = vrot.lane.b32.xlu0 %v8898, 48
      %v9385 = vpop.permute.xlu0 %9384
      %9386 = vrot.lane.b32.xlu0 %v8899, 48
      %v9387 = vpop.permute.xlu0 %9386
      %9388 = vrot.lane.b32.xlu0 %v8900, 48
      %v9389 = vpop.permute.xlu0 %9388
      %9390 = vrot.lane.b32.xlu0 %v8901, 48
      %v9391 = vpop.permute.xlu0 %9390
      %9392 = vrot.lane.b32.xlu0 %v8902, 48
      %v9393 = vpop.permute.xlu0 %9392
      %9394 = vrot.lane.b32.xlu0 %v8903, 48
      %v9395 = vpop.permute.xlu0 %9394
      %9396 = vrot.lane.b32.xlu0 %v8904, 48
      %v9397 = vpop.permute.xlu0 %9396
      %9398 = vrot.lane.b32.xlu0 %v8905, 48
      %v9399 = vpop.permute.xlu0 %9398
      %9400 = vrot.lane.b32.xlu0 %v8906, 48
      %v9401 = vpop.permute.xlu0 %9400
      %9402 = vrot.lane.b32.xlu0 %v8907, 48
      %v9403 = vpop.permute.xlu0 %9402
      %9404 = vrot.lane.b32.xlu0 %v8908, 48
      %v9405 = vpop.permute.xlu0 %9404
      %9406 = vrot.lane.b32.xlu0 %v8909, 48
      %v9407 = vpop.permute.xlu0 %9406
      %9408 = vrot.lane.b32.xlu0 %v8910, 48
      %v9409 = vpop.permute.xlu0 %9408
      %9410 = vrot.lane.b32.xlu0 %v8911, 48
      %v9411 = vpop.permute.xlu0 %9410
      %9412 = vrot.lane.b32.xlu0 %v8912, 48
      %v9413 = vpop.permute.xlu0 %9412
      %9414 = vrot.lane.b32.xlu0 %v8913, 48
      %v9415 = vpop.permute.xlu0 %9414
      %9416 = vrot.lane.b32.xlu0 %v8914, 48
      %v9417 = vpop.permute.xlu0 %9416
      %9418 = vrot.lane.b32.xlu0 %v8915, 48
      %v9419 = vpop.permute.xlu0 %9418
      %9420 = vrot.lane.b32.xlu0 %v8916, 48
      %v9421 = vpop.permute.xlu0 %9420
      %9422 = vrot.lane.b32.xlu0 %v8917, 48
      %v9423 = vpop.permute.xlu0 %9422
      %9424 = vrot.lane.b32.xlu0 %v8918, 48
      %v9425 = vpop.permute.xlu0 %9424
      %9426 = vrot.lane.b32.xlu0 %v8919, 48
      %v9427 = vpop.permute.xlu0 %9426
      %9428 = vrot.lane.b32.xlu0 %v8920, 48
      %v9429 = vpop.permute.xlu0 %9428
      %9430 = vrot.lane.b32.xlu0 %v8921, 48
      %v9431 = vpop.permute.xlu0 %9430
      %9432 = vrot.lane.b32.xlu0 %v8922, 48
      %v9433 = vpop.permute.xlu0 %9432
      %9434 = vrot.lane.b32.xlu0 %v8923, 48
      %v9435 = vpop.permute.xlu0 %9434
      %9500 = vrot.lane.b32.xlu0 %v8924, 64
      %v9501 = vpop.permute.xlu0 %9500
      %9502 = vrot.lane.b32.xlu0 %v8925, 64
      %v9503 = vpop.permute.xlu0 %9502
      %9504 = vrot.lane.b32.xlu0 %v8926, 64
      %v9505 = vpop.permute.xlu0 %9504
      %9506 = vrot.lane.b32.xlu0 %v8927, 64
      %v9507 = vpop.permute.xlu0 %9506
      %9508 = vrot.lane.b32.xlu0 %v8928, 64
      %v9509 = vpop.permute.xlu0 %9508
      %9510 = vrot.lane.b32.xlu0 %v8929, 64
      %v9511 = vpop.permute.xlu0 %9510
      %9512 = vrot.lane.b32.xlu0 %v8930, 64
      %v9513 = vpop.permute.xlu0 %9512
      %9514 = vrot.lane.b32.xlu0 %v8931, 64
      %v9515 = vpop.permute.xlu0 %9514
      %9516 = vrot.lane.b32.xlu0 %v8932, 64
      %v9517 = vpop.permute.xlu0 %9516
      %9518 = vrot.lane.b32.xlu0 %v8933, 64
      %v9519 = vpop.permute.xlu0 %9518
      %9520 = vrot.lane.b32.xlu0 %v8934, 64
      %v9521 = vpop.permute.xlu0 %9520
      %9522 = vrot.lane.b32.xlu0 %v8935, 64
      %v9523 = vpop.permute.xlu0 %9522
      %9524 = vrot.lane.b32.xlu0 %v8936, 64
      %v9525 = vpop.permute.xlu0 %9524
      %9526 = vrot.lane.b32.xlu0 %v8937, 64
      %v9527 = vpop.permute.xlu0 %9526
      %9528 = vrot.lane.b32.xlu0 %v8938, 64
      %v9529 = vpop.permute.xlu0 %9528
      %9530 = vrot.lane.b32.xlu0 %v8939, 64
      %v9531 = vpop.permute.xlu0 %9530
      %9532 = vrot.lane.b32.xlu0 %v8940, 64
      %v9533 = vpop.permute.xlu0 %9532
      %9534 = vrot.lane.b32.xlu0 %v8941, 64
      %v9535 = vpop.permute.xlu0 %9534
      %9536 = vrot.lane.b32.xlu0 %v8942, 64
      %v9537 = vpop.permute.xlu0 %9536
      %9538 = vrot.lane.b32.xlu0 %v8943, 64
      %v9539 = vpop.permute.xlu0 %9538
      %9540 = vrot.lane.b32.xlu0 %v8944, 64
      %v9541 = vpop.permute.xlu0 %9540
      %9542 = vrot.lane.b32.xlu0 %v8945, 64
      %v9543 = vpop.permute.xlu0 %9542
      %9544 = vrot.lane.b32.xlu0 %v8946, 64
      %v9545 = vpop.permute.xlu0 %9544
      %9546 = vrot.lane.b32.xlu0 %v8947, 64
      %v9547 = vpop.permute.xlu0 %9546
      %9548 = vrot.lane.b32.xlu0 %v8948, 64
      %v9549 = vpop.permute.xlu0 %9548
      %9550 = vrot.lane.b32.xlu0 %v8949, 64
      %v9551 = vpop.permute.xlu0 %9550
      %9552 = vrot.lane.b32.xlu0 %v8950, 64
      %v9553 = vpop.permute.xlu0 %9552
      %9554 = vrot.lane.b32.xlu0 %v8951, 64
      %v9555 = vpop.permute.xlu0 %9554
      %9556 = vrot.lane.b32.xlu0 %v8952, 64
      %v9557 = vpop.permute.xlu0 %9556
      %9558 = vrot.lane.b32.xlu0 %v8953, 64
      %v9559 = vpop.permute.xlu0 %9558
      %9560 = vrot.lane.b32.xlu0 %v8954, 64
      %v9561 = vpop.permute.xlu0 %9560
      %9562 = vrot.lane.b32.xlu0 %v8955, 64
      %v9563 = vpop.permute.xlu0 %9562
      %9628 = vrot.lane.b32.xlu0 %v8956, 80
      %v9629 = vpop.permute.xlu0 %9628
      %9630 = vrot.lane.b32.xlu0 %v8957, 80
      %v9631 = vpop.permute.xlu0 %9630
      %9632 = vrot.lane.b32.xlu0 %v8958, 80
      %v9633 = vpop.permute.xlu0 %9632
      %9634 = vrot.lane.b32.xlu0 %v8959, 80
      %v9635 = vpop.permute.xlu0 %9634
      %9636 = vrot.lane.b32.xlu0 %v8960, 80
      %v9637 = vpop.permute.xlu0 %9636
      %9638 = vrot.lane.b32.xlu0 %v8961, 80
      %v9639 = vpop.permute.xlu0 %9638
      %9640 = vrot.lane.b32.xlu0 %v8962, 80
      %v9641 = vpop.permute.xlu0 %9640
      %9642 = vrot.lane.b32.xlu0 %v8963, 80
      %v9643 = vpop.permute.xlu0 %9642
      %9644 = vrot.lane.b32.xlu0 %v8964, 80
      %v9645 = vpop.permute.xlu0 %9644
      %9646 = vrot.lane.b32.xlu0 %v8965, 80
      %v9647 = vpop.permute.xlu0 %9646
      %9648 = vrot.lane.b32.xlu0 %v8966, 80
      %v9649 = vpop.permute.xlu0 %9648
      %9650 = vrot.lane.b32.xlu0 %v8967, 80
      %v9651 = vpop.permute.xlu0 %9650
      %9652 = vrot.lane.b32.xlu0 %v8968, 80
      %v9653 = vpop.permute.xlu0 %9652
      %9654 = vrot.lane.b32.xlu0 %v8969, 80
      %v9655 = vpop.permute.xlu0 %9654
      %9656 = vrot.lane.b32.xlu0 %v8970, 80
      %v9657 = vpop.permute.xlu0 %9656
      %9658 = vrot.lane.b32.xlu0 %v8971, 80
      %v9659 = vpop.permute.xlu0 %9658
      %9660 = vrot.lane.b32.xlu0 %v8972, 80
      %v9661 = vpop.permute.xlu0 %9660
      %9662 = vrot.lane.b32.xlu0 %v8973, 80
      %v9663 = vpop.permute.xlu0 %9662
      %9664 = vrot.lane.b32.xlu0 %v8974, 80
      %v9665 = vpop.permute.xlu0 %9664
      %9666 = vrot.lane.b32.xlu0 %v8975, 80
      %v9667 = vpop.permute.xlu0 %9666
      %9668 = vrot.lane.b32.xlu0 %v8976, 80
      %v9669 = vpop.permute.xlu0 %9668
      %9670 = vrot.lane.b32.xlu0 %v8977, 80
      %v9671 = vpop.permute.xlu0 %9670
      %9672 = vrot.lane.b32.xlu0 %v8978, 80
      %v9673 = vpop.permute.xlu0 %9672
      %9674 = vrot.lane.b32.xlu0 %v8979, 80
      %v9675 = vpop.permute.xlu0 %9674
      %9676 = vrot.lane.b32.xlu0 %v8980, 80
      %v9677 = vpop.permute.xlu0 %9676
      %9678 = vrot.lane.b32.xlu0 %v8981, 80
      %v9679 = vpop.permute.xlu0 %9678
      %9680 = vrot.lane.b32.xlu0 %v8982, 80
      %v9681 = vpop.permute.xlu0 %9680
      %9682 = vrot.lane.b32.xlu0 %v8983, 80
      %v9683 = vpop.permute.xlu0 %9682
      %9684 = vrot.lane.b32.xlu0 %v8984, 80
      %v9685 = vpop.permute.xlu0 %9684
      %9686 = vrot.lane.b32.xlu0 %v8985, 80
      %v9687 = vpop.permute.xlu0 %9686
      %9688 = vrot.lane.b32.xlu0 %v8986, 80
      %v9689 = vpop.permute.xlu0 %9688
      %9690 = vrot.lane.b32.xlu0 %v8987, 80
      %v9691 = vpop.permute.xlu0 %9690
      %9756 = vrot.lane.b32.xlu0 %v8988, 96
      %v9757 = vpop.permute.xlu0 %9756
      %9758 = vrot.lane.b32.xlu0 %v8989, 96
      %v9759 = vpop.permute.xlu0 %9758
      %9760 = vrot.lane.b32.xlu0 %v8990, 96
      %v9761 = vpop.permute.xlu0 %9760
      %9762 = vrot.lane.b32.xlu0 %v8991, 96
      %v9763 = vpop.permute.xlu0 %9762
      %9764 = vrot.lane.b32.xlu0 %v8992, 96
      %v9765 = vpop.permute.xlu0 %9764
      %9766 = vrot.lane.b32.xlu0 %v8993, 96
      %v9767 = vpop.permute.xlu0 %9766
      %9768 = vrot.lane.b32.xlu0 %v8994, 96
      %v9769 = vpop.permute.xlu0 %9768
      %9770 = vrot.lane.b32.xlu0 %v8995, 96
      %v9771 = vpop.permute.xlu0 %9770
      %9772 = vrot.lane.b32.xlu0 %v8996, 96
      %v9773 = vpop.permute.xlu0 %9772
      %9774 = vrot.lane.b32.xlu0 %v8997, 96
      %v9775 = vpop.permute.xlu0 %9774
      %9776 = vrot.lane.b32.xlu0 %v8998, 96
      %v9777 = vpop.permute.xlu0 %9776
      %9778 = vrot.lane.b32.xlu0 %v8999, 96
      %v9779 = vpop.permute.xlu0 %9778
      %9780 = vrot.lane.b32.xlu0 %v9000, 96
      %v9781 = vpop.permute.xlu0 %9780
      %9782 = vrot.lane.b32.xlu0 %v9001, 96
      %v9783 = vpop.permute.xlu0 %9782
      %9784 = vrot.lane.b32.xlu0 %v9002, 96
      %v9785 = vpop.permute.xlu0 %9784
      %9786 = vrot.lane.b32.xlu0 %v9003, 96
      %v9787 = vpop.permute.xlu0 %9786
      %9788 = vrot.lane.b32.xlu0 %v9004, 96
      %v9789 = vpop.permute.xlu0 %9788
      %9790 = vrot.lane.b32.xlu0 %v9005, 96
      %v9791 = vpop.permute.xlu0 %9790
      %9792 = vrot.lane.b32.xlu0 %v9006, 96
      %v9793 = vpop.permute.xlu0 %9792
      %9794 = vrot.lane.b32.xlu0 %v9007, 96
      %v9795 = vpop.permute.xlu0 %9794
      %9796 = vrot.lane.b32.xlu0 %v9008, 96
      %v9797 = vpop.permute.xlu0 %9796
      %9798 = vrot.lane.b32.xlu0 %v9009, 96
      %v9799 = vpop.permute.xlu0 %9798
      %9800 = vrot.lane.b32.xlu0 %v9010, 96
      %v9801 = vpop.permute.xlu0 %9800
      %9802 = vrot.lane.b32.xlu0 %v9011, 96
      %v9803 = vpop.permute.xlu0 %9802
      %9804 = vrot.lane.b32.xlu0 %v9012, 96
      %v9805 = vpop.permute.xlu0 %9804
      %9806 = vrot.lane.b32.xlu0 %v9013, 96
      %v9807 = vpop.permute.xlu0 %9806
      %9808 = vrot.lane.b32.xlu0 %v9014, 96
      %v9809 = vpop.permute.xlu0 %9808
      %9810 = vrot.lane.b32.xlu0 %v9015, 96
      %v9811 = vpop.permute.xlu0 %9810
      %9812 = vrot.lane.b32.xlu0 %v9016, 96
      %v9813 = vpop.permute.xlu0 %9812
      %9814 = vrot.lane.b32.xlu0 %v9017, 96
      %v9815 = vpop.permute.xlu0 %9814
      %9816 = vrot.lane.b32.xlu0 %v9018, 96
      %v9817 = vpop.permute.xlu0 %9816
      %9818 = vrot.lane.b32.xlu0 %v9019, 96
      %v9819 = vpop.permute.xlu0 %9818
      %9884 = vrot.lane.b32.xlu0 %v9020, 112
      %v9885 = vpop.permute.xlu0 %9884
      %9886 = vrot.lane.b32.xlu0 %v9021, 112
      %v9887 = vpop.permute.xlu0 %9886
      %9888 = vrot.lane.b32.xlu0 %v9022, 112
      %v9889 = vpop.permute.xlu0 %9888
      %9890 = vrot.lane.b32.xlu0 %v9023, 112
      %v9891 = vpop.permute.xlu0 %9890
      %9892 = vrot.lane.b32.xlu0 %v9024, 112
      %v9893 = vpop.permute.xlu0 %9892
      %9894 = vrot.lane.b32.xlu0 %v9025, 112
      %v9895 = vpop.permute.xlu0 %9894
      %9896 = vrot.lane.b32.xlu0 %v9026, 112
      %v9897 = vpop.permute.xlu0 %9896
      %9898 = vrot.lane.b32.xlu0 %v9027, 112
      %v9899 = vpop.permute.xlu0 %9898
      %9900 = vrot.lane.b32.xlu0 %v9028, 112
      %v9901 = vpop.permute.xlu0 %9900
      %9902 = vrot.lane.b32.xlu0 %v9029, 112
      %v9903 = vpop.permute.xlu0 %9902
      %9904 = vrot.lane.b32.xlu0 %v9030, 112
      %v9905 = vpop.permute.xlu0 %9904
      %9906 = vrot.lane.b32.xlu0 %v9031, 112
      %v9907 = vpop.permute.xlu0 %9906
      %9908 = vrot.lane.b32.xlu0 %v9032, 112
      %v9909 = vpop.permute.xlu0 %9908
      %9910 = vrot.lane.b32.xlu0 %v9033, 112
      %v9911 = vpop.permute.xlu0 %9910
      %9912 = vrot.lane.b32.xlu0 %v9034, 112
      %v9913 = vpop.permute.xlu0 %9912
      %9914 = vrot.lane.b32.xlu0 %v9035, 112
      %v9915 = vpop.permute.xlu0 %9914
      %9916 = vrot.lane.b32.xlu0 %v9036, 112
      %v9917 = vpop.permute.xlu0 %9916
      %9918 = vrot.lane.b32.xlu0 %v9037, 112
      %v9919 = vpop.permute.xlu0 %9918
      %9920 = vrot.lane.b32.xlu0 %v9038, 112
      %v9921 = vpop.permute.xlu0 %9920
      %9922 = vrot.lane.b32.xlu0 %v9039, 112
      %v9923 = vpop.permute.xlu0 %9922
      %9924 = vrot.lane.b32.xlu0 %v9040, 112
      %v9925 = vpop.permute.xlu0 %9924
      %9926 = vrot.lane.b32.xlu0 %v9041, 112
      %v9927 = vpop.permute.xlu0 %9926
      %9928 = vrot.lane.b32.xlu0 %v9042, 112
      %v9929 = vpop.permute.xlu0 %9928
      %9930 = vrot.lane.b32.xlu0 %v9043, 112
      %v9931 = vpop.permute.xlu0 %9930
      %9932 = vrot.lane.b32.xlu0 %v9044, 112
      %v9933 = vpop.permute.xlu0 %9932
      %9934 = vrot.lane.b32.xlu0 %v9045, 112
      %v9935 = vpop.permute.xlu0 %9934
      %9936 = vrot.lane.b32.xlu0 %v9046, 112
      %v9937 = vpop.permute.xlu0 %9936
      %9938 = vrot.lane.b32.xlu0 %v9047, 112
      %v9939 = vpop.permute.xlu0 %9938
      %9940 = vrot.lane.b32.xlu0 %v9048, 112
      %v9941 = vpop.permute.xlu0 %9940
      %9942 = vrot.lane.b32.xlu0 %v9049, 112
      %v9943 = vpop.permute.xlu0 %9942
      %9944 = vrot.lane.b32.xlu0 %v9050, 112
      %v9945 = vpop.permute.xlu0 %9944
      %9946 = vrot.lane.b32.xlu0 %v9051, 112
      %v9947 = vpop.permute.xlu0 %9946
      %v9980 = vsel %vm306, %v8796, %v9117
      %v9981 = vsel %vm306, %v8797, %v9119
      %v9982 = vsel %vm306, %v8798, %v9121
      %v9983 = vsel %vm306, %v8799, %v9123
      %v9984 = vsel %vm306, %v8800, %v9125
      %v9985 = vsel %vm306, %v8801, %v9127
      %v9986 = vsel %vm306, %v8802, %v9129
      %v9987 = vsel %vm306, %v8803, %v9131
      %v9988 = vsel %vm306, %v8804, %v9133
      %v9989 = vsel %vm306, %v8805, %v9135
      %v9990 = vsel %vm306, %v8806, %v9137
      %v9991 = vsel %vm306, %v8807, %v9139
      %v9992 = vsel %vm306, %v8808, %v9141
      %v9993 = vsel %vm306, %v8809, %v9143
      %v9994 = vsel %vm306, %v8810, %v9145
      %v9995 = vsel %vm306, %v8811, %v9147
      %v9996 = vsel %vm306, %v8812, %v9149
      %v9997 = vsel %vm306, %v8813, %v9151
      %v9998 = vsel %vm306, %v8814, %v9153
      %v9999 = vsel %vm306, %v8815, %v9155
      %v10000 = vsel %vm306, %v8816, %v9157
      %v10001 = vsel %vm306, %v8817, %v9159
      %v10002 = vsel %vm306, %v8818, %v9161
      %v10003 = vsel %vm306, %v8819, %v9163
      %v10004 = vsel %vm306, %v8820, %v9165
      %v10005 = vsel %vm306, %v8821, %v9167
      %v10006 = vsel %vm306, %v8822, %v9169
      %v10007 = vsel %vm306, %v8823, %v9171
      %v10008 = vsel %vm306, %v8824, %v9173
      %v10009 = vsel %vm306, %v8825, %v9175
      %v10010 = vsel %vm306, %v8826, %v9177
      %v10011 = vsel %vm306, %v8827, %v9179
      %v10012 = vsel %vm1644, %v9980, %v9245
      %v10013 = vsel %vm1644, %v9981, %v9247
      %v10014 = vsel %vm1644, %v9982, %v9249
      %v10015 = vsel %vm1644, %v9983, %v9251
      %v10016 = vsel %vm1644, %v9984, %v9253
      %v10017 = vsel %vm1644, %v9985, %v9255
      %v10018 = vsel %vm1644, %v9986, %v9257
      %v10019 = vsel %vm1644, %v9987, %v9259
      %v10020 = vsel %vm1644, %v9988, %v9261
      %v10021 = vsel %vm1644, %v9989, %v9263
      %v10022 = vsel %vm1644, %v9990, %v9265
      %v10023 = vsel %vm1644, %v9991, %v9267
      %v10024 = vsel %vm1644, %v9992, %v9269
      %v10025 = vsel %vm1644, %v9993, %v9271
      %v10026 = vsel %vm1644, %v9994, %v9273
      %v10027 = vsel %vm1644, %v9995, %v9275
      %v10028 = vsel %vm1644, %v9996, %v9277
      %v10029 = vsel %vm1644, %v9997, %v9279
      %v10030 = vsel %vm1644, %v9998, %v9281
      %v10031 = vsel %vm1644, %v9999, %v9283
      %v10032 = vsel %vm1644, %v10000, %v9285
      %v10033 = vsel %vm1644, %v10001, %v9287
      %v10034 = vsel %vm1644, %v10002, %v9289
      %v10035 = vsel %vm1644, %v10003, %v9291
      %v10036 = vsel %vm1644, %v10004, %v9293
      %v10037 = vsel %vm1644, %v10005, %v9295
      %v10038 = vsel %vm1644, %v10006, %v9297
      %v10039 = vsel %vm1644, %v10007, %v9299
      %v10040 = vsel %vm1644, %v10008, %v9301
      %v10041 = vsel %vm1644, %v10009, %v9303
      %v10042 = vsel %vm1644, %v10010, %v9305
      %v10043 = vsel %vm1644, %v10011, %v9307
      %v10044 = vsel %vm1677, %v10012, %v9373
      %v10045 = vsel %vm1677, %v10013, %v9375
      %v10046 = vsel %vm1677, %v10014, %v9377
      %v10047 = vsel %vm1677, %v10015, %v9379
      %v10048 = vsel %vm1677, %v10016, %v9381
      %v10049 = vsel %vm1677, %v10017, %v9383
      %v10050 = vsel %vm1677, %v10018, %v9385
      %v10051 = vsel %vm1677, %v10019, %v9387
      %v10052 = vsel %vm1677, %v10020, %v9389
      %v10053 = vsel %vm1677, %v10021, %v9391
      %v10054 = vsel %vm1677, %v10022, %v9393
      %v10055 = vsel %vm1677, %v10023, %v9395
      %v10056 = vsel %vm1677, %v10024, %v9397
      %v10057 = vsel %vm1677, %v10025, %v9399
      %v10058 = vsel %vm1677, %v10026, %v9401
      %v10059 = vsel %vm1677, %v10027, %v9403
      %v10060 = vsel %vm1677, %v10028, %v9405
      %v10061 = vsel %vm1677, %v10029, %v9407
      %v10062 = vsel %vm1677, %v10030, %v9409
      %v10063 = vsel %vm1677, %v10031, %v9411
      %v10064 = vsel %vm1677, %v10032, %v9413
      %v10065 = vsel %vm1677, %v10033, %v9415
      %v10066 = vsel %vm1677, %v10034, %v9417
      %v10067 = vsel %vm1677, %v10035, %v9419
      %v10068 = vsel %vm1677, %v10036, %v9421
      %v10069 = vsel %vm1677, %v10037, %v9423
      %v10070 = vsel %vm1677, %v10038, %v9425
      %v10071 = vsel %vm1677, %v10039, %v9427
      %v10072 = vsel %vm1677, %v10040, %v9429
      %v10073 = vsel %vm1677, %v10041, %v9431
      %v10074 = vsel %vm1677, %v10042, %v9433
      %v10075 = vsel %vm1677, %v10043, %v9435
      %v10076 = vsel %vm1710, %v10044, %v9501
      %v10077 = vsel %vm1710, %v10045, %v9503
      %v10078 = vsel %vm1710, %v10046, %v9505
      %v10079 = vsel %vm1710, %v10047, %v9507
      %v10080 = vsel %vm1710, %v10048, %v9509
      %v10081 = vsel %vm1710, %v10049, %v9511
      %v10082 = vsel %vm1710, %v10050, %v9513
      %v10083 = vsel %vm1710, %v10051, %v9515
      %v10084 = vsel %vm1710, %v10052, %v9517
      %v10085 = vsel %vm1710, %v10053, %v9519
      %v10086 = vsel %vm1710, %v10054, %v9521
      %v10087 = vsel %vm1710, %v10055, %v9523
      %v10088 = vsel %vm1710, %v10056, %v9525
      %v10089 = vsel %vm1710, %v10057, %v9527
      %v10090 = vsel %vm1710, %v10058, %v9529
      %v10091 = vsel %vm1710, %v10059, %v9531
      %v10092 = vsel %vm1710, %v10060, %v9533
      %v10093 = vsel %vm1710, %v10061, %v9535
      %v10094 = vsel %vm1710, %v10062, %v9537
      %v10095 = vsel %vm1710, %v10063, %v9539
      %v10096 = vsel %vm1710, %v10064, %v9541
      %v10097 = vsel %vm1710, %v10065, %v9543
      %v10098 = vsel %vm1710, %v10066, %v9545
      %v10099 = vsel %vm1710, %v10067, %v9547
      %v10100 = vsel %vm1710, %v10068, %v9549
      %v10101 = vsel %vm1710, %v10069, %v9551
      %v10102 = vsel %vm1710, %v10070, %v9553
      %v10103 = vsel %vm1710, %v10071, %v9555
      %v10104 = vsel %vm1710, %v10072, %v9557
      %v10105 = vsel %vm1710, %v10073, %v9559
      %v10106 = vsel %vm1710, %v10074, %v9561
      %v10107 = vsel %vm1710, %v10075, %v9563
      %v10108 = vsel %vm1743, %v10076, %v9629
      %v10109 = vsel %vm1743, %v10077, %v9631
      %v10110 = vsel %vm1743, %v10078, %v9633
      %v10111 = vsel %vm1743, %v10079, %v9635
      %v10112 = vsel %vm1743, %v10080, %v9637
      %v10113 = vsel %vm1743, %v10081, %v9639
      %v10114 = vsel %vm1743, %v10082, %v9641
      %v10115 = vsel %vm1743, %v10083, %v9643
      %v10116 = vsel %vm1743, %v10084, %v9645
      %v10117 = vsel %vm1743, %v10085, %v9647
      %v10118 = vsel %vm1743, %v10086, %v9649
      %v10119 = vsel %vm1743, %v10087, %v9651
      %v10120 = vsel %vm1743, %v10088, %v9653
      %v10121 = vsel %vm1743, %v10089, %v9655
      %v10122 = vsel %vm1743, %v10090, %v9657
      %v10123 = vsel %vm1743, %v10091, %v9659
      %v10124 = vsel %vm1743, %v10092, %v9661
      %v10125 = vsel %vm1743, %v10093, %v9663
      %v10126 = vsel %vm1743, %v10094, %v9665
      %v10127 = vsel %vm1743, %v10095, %v9667
      %v10128 = vsel %vm1743, %v10096, %v9669
      %v10129 = vsel %vm1743, %v10097, %v9671
      %v10130 = vsel %vm1743, %v10098, %v9673
      %v10131 = vsel %vm1743, %v10099, %v9675
      %v10132 = vsel %vm1743, %v10100, %v9677
      %v10133 = vsel %vm1743, %v10101, %v9679
      %v10134 = vsel %vm1743, %v10102, %v9681
      %v10135 = vsel %vm1743, %v10103, %v9683
      %v10136 = vsel %vm1743, %v10104, %v9685
      %v10137 = vsel %vm1743, %v10105, %v9687
      %v10138 = vsel %vm1743, %v10106, %v9689
      %v10139 = vsel %vm1743, %v10107, %v9691
      %v10140 = vsel %vm1776, %v10108, %v9757
      %v10141 = vsel %vm1776, %v10109, %v9759
      %v10142 = vsel %vm1776, %v10110, %v9761
      %v10143 = vsel %vm1776, %v10111, %v9763
      %v10144 = vsel %vm1776, %v10112, %v9765
      %v10145 = vsel %vm1776, %v10113, %v9767
      %v10146 = vsel %vm1776, %v10114, %v9769
      %v10147 = vsel %vm1776, %v10115, %v9771
      %v10148 = vsel %vm1776, %v10116, %v9773
      %v10149 = vsel %vm1776, %v10117, %v9775
      %v10150 = vsel %vm1776, %v10118, %v9777
      %v10151 = vsel %vm1776, %v10119, %v9779
      %v10152 = vsel %vm1776, %v10120, %v9781
      %v10153 = vsel %vm1776, %v10121, %v9783
      %v10154 = vsel %vm1776, %v10122, %v9785
      %v10155 = vsel %vm1776, %v10123, %v9787
      %v10156 = vsel %vm1776, %v10124, %v9789
      %v10157 = vsel %vm1776, %v10125, %v9791
      %v10158 = vsel %vm1776, %v10126, %v9793
      %v10159 = vsel %vm1776, %v10127, %v9795
      %v10160 = vsel %vm1776, %v10128, %v9797
      %v10161 = vsel %vm1776, %v10129, %v9799
      %v10162 = vsel %vm1776, %v10130, %v9801
      %v10163 = vsel %vm1776, %v10131, %v9803
      %v10164 = vsel %vm1776, %v10132, %v9805
      %v10165 = vsel %vm1776, %v10133, %v9807
      %v10166 = vsel %vm1776, %v10134, %v9809
      %v10167 = vsel %vm1776, %v10135, %v9811
      %v10168 = vsel %vm1776, %v10136, %v9813
      %v10169 = vsel %vm1776, %v10137, %v9815
      %v10170 = vsel %vm1776, %v10138, %v9817
      %v10171 = vsel %vm1776, %v10139, %v9819
      %v10172 = vsel %vm1809, %v10140, %v9885
      %v10173 = vsel %vm1809, %v10141, %v9887
      %v10174 = vsel %vm1809, %v10142, %v9889
      %v10175 = vsel %vm1809, %v10143, %v9891
      %v10176 = vsel %vm1809, %v10144, %v9893
      %v10177 = vsel %vm1809, %v10145, %v9895
      %v10178 = vsel %vm1809, %v10146, %v9897
      %v10179 = vsel %vm1809, %v10147, %v9899
      %v10180 = vsel %vm1809, %v10148, %v9901
      %v10181 = vsel %vm1809, %v10149, %v9903
      %v10182 = vsel %vm1809, %v10150, %v9905
      %v10183 = vsel %vm1809, %v10151, %v9907
      %v10184 = vsel %vm1809, %v10152, %v9909
      %v10185 = vsel %vm1809, %v10153, %v9911
      %v10186 = vsel %vm1809, %v10154, %v9913
      %v10187 = vsel %vm1809, %v10155, %v9915
      %v10188 = vsel %vm1809, %v10156, %v9917
      %v10189 = vsel %vm1809, %v10157, %v9919
      %v10190 = vsel %vm1809, %v10158, %v9921
      %v10191 = vsel %vm1809, %v10159, %v9923
      %v10192 = vsel %vm1809, %v10160, %v9925
      %v10193 = vsel %vm1809, %v10161, %v9927
      %v10194 = vsel %vm1809, %v10162, %v9929
      %v10195 = vsel %vm1809, %v10163, %v9931
      %v10196 = vsel %vm1809, %v10164, %v9933
      %v10197 = vsel %vm1809, %v10165, %v9935
      %v10198 = vsel %vm1809, %v10166, %v9937
      %v10199 = vsel %vm1809, %v10167, %v9939
      %v10200 = vsel %vm1809, %v10168, %v9941
      %v10201 = vsel %vm1809, %v10169, %v9943
      %v10202 = vsel %vm1809, %v10170, %v9945
      %v10203 = vsel %vm1809, %v10171, %v9947
      %s10204 = scalar_lea.vmem %s1, 432
      %v10205 = vld [vmem:[%s10204] sm:$0xff]
      %v10206 = vld [vmem:[%s10204 + $0x8] sm:$0xff]
      %v10207 = vld [vmem:[%s10204 + $0x10] sm:$0xff]
      %v10208 = vld [vmem:[%s10204 + $0x18] sm:$0xff]
      %v10209 = vld [vmem:[%s10204 + $0x20] sm:$0xff]
      %v10210 = vld [vmem:[%s10204 + $0x28] sm:$0xff]
      %v10211 = vld [vmem:[%s10204 + $0x30] sm:$0xff]
      %v10212 = vld [vmem:[%s10204 + $0x38] sm:$0xff]
      %v10213 = vld [vmem:[%s10204 + $0x40] sm:$0xff]
      %v10214 = vld [vmem:[%s10204 + $0x48] sm:$0xff]
      %v10215 = vld [vmem:[%s10204 + $0x50] sm:$0xff]
      %v10216 = vld [vmem:[%s10204 + $0x58] sm:$0xff]
      %v10217 = vld [vmem:[%s10204 + $0x60] sm:$0xff]
      %v10218 = vld [vmem:[%s10204 + $0x68] sm:$0xff]
      %v10219 = vld [vmem:[%s10204 + $0x70] sm:$0xff]
      %v10220 = vld [vmem:[%s10204 + $0x78] sm:$0xff]
      %v10221 = vld [vmem:[%s10204 + $0x80] sm:$0xff]
      %v10222 = vld [vmem:[%s10204 + $0x88] sm:$0xff]
      %s10223 = scalar_lea.vmem %s2, 3
      %v10224 = vld [vmem:[%s10223] sm:$0x1]
      %v10226 = vlaneseq
      %v10227 = vshrl.u32 %v10226, 7
      %v10228 = vsub.s32 0, %v10227
      %v10229 = vrot.slane %v10224, %v10228
      %v10232 = vsel %vm306, %v9052, 0
      %v10235 = vsel %vm306, %v9053, 0
      %v10238 = vsel %vm306, %v9054, 0
      %v10241 = vsel %vm306, %v9055, 0
      %v10244 = vsel %vm306, %v9056, 0
      %v10247 = vsel %vm306, %v9057, 0
      %v10250 = vsel %vm306, %v9058, 0
      %v10253 = vsel %vm306, %v9059, 0
      %v10256 = vsel %vm306, %v9060, 0
      %v10259 = vsel %vm306, %v9061, 0
      %v10262 = vsel %vm306, %v9062, 0
      %v10265 = vsel %vm306, %v9063, 0
      %v10268 = vsel %vm306, %v9064, 0
      %v10271 = vsel %vm306, %v9065, 0
      %v10274 = vsel %vm306, %v9066, 0
      %v10277 = vsel %vm306, %v9067, 0
      %v10280 = vsel %vm306, %v9068, 0
      %v10283 = vsel %vm306, %v9069, 0
      %v10286 = vsel %vm306, %v9070, 0
      %v10289 = vsel %vm306, %v9071, 0
      %v10292 = vsel %vm306, %v9072, 0
      %v10295 = vsel %vm306, %v9073, 0
      %v10298 = vsel %vm306, %v9074, 0
      %v10301 = vsel %vm306, %v9075, 0
      %v10304 = vsel %vm306, %v9076, 0
      %v10307 = vsel %vm306, %v9077, 0
      %v10310 = vsel %vm306, %v9078, 0
      %v10313 = vsel %vm306, %v9079, 0
      %v10316 = vsel %vm306, %v9080, 0
      %v10319 = vsel %vm306, %v9081, 0
      %v10322 = vsel %vm306, %v9082, 0
      %v10325 = vsel %vm306, %v9083, 0
      %10327 = vmatprep.subr.mxu0 0.0
      %10328 = vmatpush1.msra.mxu0 %v10205
      %10329 = vmatprep.subr.mxu0 0.0
      %10330 = vmatpush1.msra.mxu0 %v10206
      %10331 = vmatprep.subr.mxu0 0.0
      %10332 = vmatpush1.msra.mxu0 %v10207
      %10333 = vmatprep.subr.mxu0 0.0
      %10334 = vmatpush1.msra.mxu0 %v10208
      %10335 = vmatprep.subr.mxu0 0.0
      %10336 = vmatpush1.msra.mxu0 %v10209
      %10337 = vmatprep.subr.mxu0 0.0
      %10338 = vmatpush1.msra.mxu0 %v10210
      %10339 = vmatprep.subr.mxu0 0.0
      %10340 = vmatpush1.msra.mxu0 %v10211
      %10341 = vmatprep.subr.mxu0 0.0
      %10342 = vmatpush1.msra.mxu0 %v10212
      %10343 = vmatprep.subr.mxu0 0.0
      %10344 = vmatpush1.msra.mxu0 %v10213
      %10345 = vmatprep.subr.mxu0 0.0
      %10346 = vmatpush1.msra.mxu0 %v10214
      %10347 = vmatprep.subr.mxu0 0.0
      %10348 = vmatpush1.msra.mxu0 %v10215
      %10349 = vmatprep.subr.mxu0 0.0
      %10350 = vmatpush1.msra.mxu0 %v10216
      %10351 = vmatprep.subr.mxu0 0.0
      %10352 = vmatpush1.msra.mxu0 %v10217
      %10353 = vmatprep.subr.mxu0 0.0
      %10354 = vmatpush1.msra.mxu0 %v10218
      %10355 = vmatprep.subr.mxu0 0.0
      %10356 = vmatpush1.msra.mxu0 %v10219
      %10357 = vmatprep.subr.mxu0 0.0
      %10358 = vmatpush1.msra.mxu0 %v10220
      %10359 = vmatprep.subr.mxu0 0.0
      %10360 = vmatpush1.msra.mxu0 %v10221
      %10361 = vmatprep.subr.mxu0 0.0
      %10362 = vmatpush1.msra.mxu0 %v10222
      %10363 = vmatprep.subr.mxu0 0.0
      %10364 = vmatpush1.msra.mxu0 0.0
      %10365 = vmatprep.subr.mxu0 0.0
      %10366 = vmatpush1.msra.mxu0 0.0
      %10367 = vmatprep.subr.mxu0 0.0
      %10368 = vmatpush1.msra.mxu0 0.0
      %10369 = vmatprep.subr.mxu0 0.0
      %10370 = vmatpush1.msra.mxu0 0.0
      %10371 = vmatprep.subr.mxu0 0.0
      %10372 = vmatpush1.msra.mxu0 0.0
      %10373 = vmatprep.subr.mxu0 0.0
      %10374 = vmatpush1.msra.mxu0 0.0
      %10375 = vmatprep.subr.mxu0 0.0
      %10376 = vmatpush1.msra.mxu0 0.0
      %10377 = vmatprep.subr.mxu0 0.0
      %10378 = vmatpush1.msra.mxu0 0.0
      %10379 = vmatprep.subr.mxu0 0.0
      %10380 = vmatpush1.msra.mxu0 0.0
      %10381 = vmatprep.subr.mxu0 0.0
      %10382 = vmatpush1.msra.mxu0 0.0
      %10383 = vmatprep.subr.mxu0 0.0
      %10384 = vmatpush1.msra.mxu0 0.0
      %10385 = vmatprep.subr.mxu0 0.0
      %10386 = vmatpush1.msra.mxu0 0.0
      %10387 = vmatprep.subr.mxu0 0.0
      %10388 = vmatpush1.msra.mxu0 0.0
      %10389 = vmatprep.subr.mxu0 0.0
      %10390 = vmatpush1.msra.mxu0 0.0
      %10391 = vmatprep.mubr.f32.mxu0 %v10232
      %10392 = vmatmul.mubr.f32.gmra.mrb[0].mxu0 %v10172
      %v10393 = vpop.f32.mrb[0].mxu0
      %v10394 = vadd.f32 %v10229, %v10393
      %v10395 = vpop.f32.mrb[0].mxu0
      %10396 = vmatprep.mubr.f32.mxu0 %v10235
      %10397 = vmatmul.mubr.f32.gmra.mrb[0].mxu0 %v10173
      %v10398 = vpop.f32.mrb[0].mxu0
      %v10399 = vadd.f32 %v10229, %v10398
      %v10400 = vpop.f32.mrb[0].mxu0
      %10401 = vmatprep.mubr.f32.mxu0 %v10238
      %10402 = vmatmul.mubr.f32.gmra.mrb[0].mxu0 %v10174
      %v10403 = vpop.f32.mrb[0].mxu0
      %v10404 = vadd.f32 %v10229, %v10403
      %v10405 = vpop.f32.mrb[0].mxu0
      %10406 = vmatprep.mubr.f32.mxu0 %v10241
      %10407 = vmatmul.mubr.f32.gmra.mrb[0].mxu0 %v10175
      %v10408 = vpop.f32.mrb[0].mxu0
      %v10409 = vadd.f32 %v10229, %v10408
      %v10410 = vpop.f32.mrb[0].mxu0
      %10411 = vmatprep.mubr.f32.mxu0 %v10244
      %10412 = vmatmul.mubr.f32.gmra.mrb[0].mxu0 %v10176
      %v10413 = vpop.f32.mrb[0].mxu0
      %v10414 = vadd.f32 %v10229, %v10413
      %v10415 = vpop.f32.mrb[0].mxu0
      %10416 = vmatprep.mubr.f32.mxu0 %v10247
      %10417 = vmatmul.mubr.f32.gmra.mrb[0].mxu0 %v10177
      %v10418 = vpop.f32.mrb[0].mxu0
      %v10419 = vadd.f32 %v10229, %v10418
      %v10420 = vpop.f32.mrb[0].mxu0
      %10421 = vmatprep.mubr.f32.mxu0 %v10250
      %10422 = vmatmul.mubr.f32.gmra.mrb[0].mxu0 %v10178
      %v10423 = vpop.f32.mrb[0].mxu0
      %v10424 = vadd.f32 %v10229, %v10423
      %v10425 = vpop.f32.mrb[0].mxu0
      %10426 = vmatprep.mubr.f32.mxu0 %v10253
      %10427 = vmatmul.mubr.f32.gmra.mrb[0].mxu0 %v10179
      %v10428 = vpop.f32.mrb[0].mxu0
      %v10429 = vadd.f32 %v10229, %v10428
      %v10430 = vpop.f32.mrb[0].mxu0
      %10431 = vmatprep.mubr.f32.mxu0 %v10256
      %10432 = vmatmul.mubr.f32.gmra.mrb[0].mxu0 %v10180
      %v10433 = vpop.f32.mrb[0].mxu0
      %v10434 = vadd.f32 %v10229, %v10433
      %v10435 = vpop.f32.mrb[0].mxu0
      %10436 = vmatprep.mubr.f32.mxu0 %v10259
      %10437 = vmatmul.mubr.f32.gmra.mrb[0].mxu0 %v10181
      %v10438 = vpop.f32.mrb[0].mxu0
      %v10439 = vadd.f32 %v10229, %v10438
      %v10440 = vpop.f32.mrb[0].mxu0
      %10441 = vmatprep.mubr.f32.mxu0 %v10262
      %10442 = vmatmul.mubr.f32.gmra.mrb[0].mxu0 %v10182
      %v10443 = vpop.f32.mrb[0].mxu0
      %v10444 = vadd.f32 %v10229, %v10443
      %v10445 = vpop.f32.mrb[0].mxu0
      %10446 = vmatprep.mubr.f32.mxu0 %v10265
      %10447 = vmatmul.mubr.f32.gmra.mrb[0].mxu0 %v10183
      %v10448 = vpop.f32.mrb[0].mxu0
      %v10449 = vadd.f32 %v10229, %v10448
      %v10450 = vpop.f32.mrb[0].mxu0
      %10451 = vmatprep.mubr.f32.mxu0 %v10268
      %10452 = vmatmul.mubr.f32.gmra.mrb[0].mxu0 %v10184
      %v10453 = vpop.f32.mrb[0].mxu0
      %v10454 = vadd.f32 %v10229, %v10453
      %v10455 = vpop.f32.mrb[0].mxu0
      %10456 = vmatprep.mubr.f32.mxu0 %v10271
      %10457 = vmatmul.mubr.f32.gmra.mrb[0].mxu0 %v10185
      %v10458 = vpop.f32.mrb[0].mxu0
      %v10459 = vadd.f32 %v10229, %v10458
      %v10460 = vpop.f32.mrb[0].mxu0
      %10461 = vmatprep.mubr.f32.mxu0 %v10274
      %10462 = vmatmul.mubr.f32.gmra.mrb[0].mxu0 %v10186
      %v10463 = vpop.f32.mrb[0].mxu0
      %v10464 = vadd.f32 %v10229, %v10463
      %v10465 = vpop.f32.mrb[0].mxu0
      %10466 = vmatprep.mubr.f32.mxu0 %v10277
      %10467 = vmatmul.mubr.f32.gmra.mrb[0].mxu0 %v10187
      %v10468 = vpop.f32.mrb[0].mxu0
      %v10469 = vadd.f32 %v10229, %v10468
      %v10470 = vpop.f32.mrb[0].mxu0
      %10471 = vmatprep.mubr.f32.mxu0 %v10280
      %10472 = vmatmul.mubr.f32.gmra.mrb[0].mxu0 %v10188
      %v10473 = vpop.f32.mrb[0].mxu0
      %v10474 = vadd.f32 %v10229, %v10473
      %v10475 = vpop.f32.mrb[0].mxu0
      %10476 = vmatprep.mubr.f32.mxu0 %v10283
      %10477 = vmatmul.mubr.f32.gmra.mrb[0].mxu0 %v10189
      %v10478 = vpop.f32.mrb[0].mxu0
      %v10479 = vadd.f32 %v10229, %v10478
      %v10480 = vpop.f32.mrb[0].mxu0
      %10481 = vmatprep.mubr.f32.mxu0 %v10286
      %10482 = vmatmul.mubr.f32.gmra.mrb[0].mxu0 %v10190
      %v10483 = vpop.f32.mrb[0].mxu0
      %v10484 = vadd.f32 %v10229, %v10483
      %v10485 = vpop.f32.mrb[0].mxu0
      %10486 = vmatprep.mubr.f32.mxu0 %v10289
      %10487 = vmatmul.mubr.f32.gmra.mrb[0].mxu0 %v10191
      %v10488 = vpop.f32.mrb[0].mxu0
      %v10489 = vadd.f32 %v10229, %v10488
      %v10490 = vpop.f32.mrb[0].mxu0
      %10491 = vmatprep.mubr.f32.mxu0 %v10292
      %10492 = vmatmul.mubr.f32.gmra.mrb[0].mxu0 %v10192
      %v10493 = vpop.f32.mrb[0].mxu0
      %v10494 = vadd.f32 %v10229, %v10493
      %v10495 = vpop.f32.mrb[0].mxu0
      %10496 = vmatprep.mubr.f32.mxu0 %v10295
      %10497 = vmatmul.mubr.f32.gmra.mrb[0].mxu0 %v10193
      %v10498 = vpop.f32.mrb[0].mxu0
      %v10499 = vadd.f32 %v10229, %v10498
      %v10500 = vpop.f32.mrb[0].mxu0
      %10501 = vmatprep.mubr.f32.mxu0 %v10298
      %10502 = vmatmul.mubr.f32.gmra.mrb[0].mxu0 %v10194
      %v10503 = vpop.f32.mrb[0].mxu0
      %v10504 = vadd.f32 %v10229, %v10503
      %v10505 = vpop.f32.mrb[0].mxu0
      %10506 = vmatprep.mubr.f32.mxu0 %v10301
      %10507 = vmatmul.mubr.f32.gmra.mrb[0].mxu0 %v10195
      %v10508 = vpop.f32.mrb[0].mxu0
      %v10509 = vadd.f32 %v10229, %v10508
      %v10510 = vpop.f32.mrb[0].mxu0
      %10511 = vmatprep.mubr.f32.mxu0 %v10304
      %10512 = vmatmul.mubr.f32.gmra.mrb[0].mxu0 %v10196
      %v10513 = vpop.f32.mrb[0].mxu0
      %v10514 = vadd.f32 %v10229, %v10513
      %v10515 = vpop.f32.mrb[0].mxu0
      %10516 = vmatprep.mubr.f32.mxu0 %v10307
      %10517 = vmatmul.mubr.f32.gmra.mrb[0].mxu0 %v10197
      %v10518 = vpop.f32.mrb[0].mxu0
      %v10519 = vadd.f32 %v10229, %v10518
      %v10520 = vpop.f32.mrb[0].mxu0
      %10521 = vmatprep.mubr.f32.mxu0 %v10310
      %10522 = vmatmul.mubr.f32.gmra.mrb[0].mxu0 %v10198
      %v10523 = vpop.f32.mrb[0].mxu0
      %v10524 = vadd.f32 %v10229, %v10523
      %v10525 = vpop.f32.mrb[0].mxu0
      %10526 = vmatprep.mubr.f32.mxu0 %v10313
      %10527 = vmatmul.mubr.f32.gmra.mrb[0].mxu0 %v10199
      %v10528 = vpop.f32.mrb[0].mxu0
      %v10529 = vadd.f32 %v10229, %v10528
      %v10530 = vpop.f32.mrb[0].mxu0
      %10531 = vmatprep.mubr.f32.mxu0 %v10316
      %10532 = vmatmul.mubr.f32.gmra.mrb[0].mxu0 %v10200
      %v10533 = vpop.f32.mrb[0].mxu0
      %v10534 = vadd.f32 %v10229, %v10533
      %v10535 = vpop.f32.mrb[0].mxu0
      %10536 = vmatprep.mubr.f32.mxu0 %v10319
      %10537 = vmatmul.mubr.f32.gmra.mrb[0].mxu0 %v10201
      %v10538 = vpop.f32.mrb[0].mxu0
      %v10539 = vadd.f32 %v10229, %v10538
      %v10540 = vpop.f32.mrb[0].mxu0
      %10541 = vmatprep.mubr.f32.mxu0 %v10322
      %10542 = vmatmul.mubr.f32.gmra.mrb[0].mxu0 %v10202
      %v10543 = vpop.f32.mrb[0].mxu0
      %v10544 = vadd.f32 %v10229, %v10543
      %v10545 = vpop.f32.mrb[0].mxu0
      %10546 = vmatprep.mubr.f32.mxu0 %v10325
      %10547 = vmatmul.mubr.f32.gmra.mrb[0].mxu0 %v10203
      %v10548 = vpop.f32.mrb[0].mxu0
      %v10549 = vadd.f32 %v10229, %v10548
      %v10550 = vpop.f32.mrb[0].mxu0
      %10551 = vdwg.mxu0
      %v10552 = vmax.f32 %v10394, 0.0
      %v10553 = vmax.f32 %v10399, 0.0
      %v10554 = vmax.f32 %v10404, 0.0
      %v10555 = vmax.f32 %v10409, 0.0
      %v10556 = vmax.f32 %v10414, 0.0
      %v10557 = vmax.f32 %v10419, 0.0
      %v10558 = vmax.f32 %v10424, 0.0
      %v10559 = vmax.f32 %v10429, 0.0
      %v10560 = vmax.f32 %v10434, 0.0
      %v10561 = vmax.f32 %v10439, 0.0
      %v10562 = vmax.f32 %v10444, 0.0
      %v10563 = vmax.f32 %v10449, 0.0
      %v10564 = vmax.f32 %v10454, 0.0
      %v10565 = vmax.f32 %v10459, 0.0
      %v10566 = vmax.f32 %v10464, 0.0
      %v10567 = vmax.f32 %v10469, 0.0
      %v10568 = vmax.f32 %v10474, 0.0
      %v10569 = vmax.f32 %v10479, 0.0
      %v10570 = vmax.f32 %v10484, 0.0
      %v10571 = vmax.f32 %v10489, 0.0
      %v10572 = vmax.f32 %v10494, 0.0
      %v10573 = vmax.f32 %v10499, 0.0
      %v10574 = vmax.f32 %v10504, 0.0
      %v10575 = vmax.f32 %v10509, 0.0
      %v10576 = vmax.f32 %v10514, 0.0
      %v10577 = vmax.f32 %v10519, 0.0
      %v10578 = vmax.f32 %v10524, 0.0
      %v10579 = vmax.f32 %v10529, 0.0
      %v10580 = vmax.f32 %v10534, 0.0
      %v10581 = vmax.f32 %v10539, 0.0
      %v10582 = vmax.f32 %v10544, 0.0
      %v10583 = vmax.f32 %v10549, 0.0
      %v10584 = vsel %vm1644, %v10552, 0.0
      %v10585 = vsel %vm1644, %v10553, 0.0
      %v10586 = vadd.f32 %v10584, %v10585
      %v10587 = vsel %vm1644, %v10554, 0.0
      %v10588 = vadd.f32 %v10586, %v10587
      %v10589 = vsel %vm1644, %v10555, 0.0
      %v10590 = vadd.f32 %v10588, %v10589
      %v10591 = vsel %vm1644, %v10556, 0.0
      %v10592 = vadd.f32 %v10590, %v10591
      %v10593 = vsel %vm1644, %v10557, 0.0
      %v10594 = vadd.f32 %v10592, %v10593
      %v10595 = vsel %vm1644, %v10558, 0.0
      %v10596 = vadd.f32 %v10594, %v10595
      %v10597 = vsel %vm1644, %v10559, 0.0
      %v10598 = vadd.f32 %v10596, %v10597
      %v10599 = vsel %vm1644, %v10560, 0.0
      %v10600 = vadd.f32 %v10598, %v10599
      %v10601 = vsel %vm1644, %v10561, 0.0
      %v10602 = vadd.f32 %v10600, %v10601
      %v10603 = vsel %vm1644, %v10562, 0.0
      %v10604 = vadd.f32 %v10602, %v10603
      %v10605 = vsel %vm1644, %v10563, 0.0
      %v10606 = vadd.f32 %v10604, %v10605
      %v10607 = vsel %vm1644, %v10564, 0.0
      %v10608 = vadd.f32 %v10606, %v10607
      %v10609 = vsel %vm1644, %v10565, 0.0
      %v10610 = vadd.f32 %v10608, %v10609
      %v10611 = vsel %vm1644, %v10566, 0.0
      %v10612 = vadd.f32 %v10610, %v10611
      %v10613 = vsel %vm1644, %v10567, 0.0
      %v10614 = vadd.f32 %v10612, %v10613
      %v10615 = vsel %vm1644, %v10568, 0.0
      %v10616 = vadd.f32 %v10614, %v10615
      %v10617 = vsel %vm1644, %v10569, 0.0
      %v10618 = vadd.f32 %v10616, %v10617
      %v10619 = vsel %vm1644, %v10570, 0.0
      %v10620 = vadd.f32 %v10618, %v10619
      %v10621 = vsel %vm1644, %v10571, 0.0
      %v10622 = vadd.f32 %v10620, %v10621
      %v10623 = vsel %vm1644, %v10572, 0.0
      %v10624 = vadd.f32 %v10622, %v10623
      %v10625 = vsel %vm1644, %v10573, 0.0
      %v10626 = vadd.f32 %v10624, %v10625
      %v10627 = vsel %vm1644, %v10574, 0.0
      %v10628 = vadd.f32 %v10626, %v10627
      %v10629 = vsel %vm1644, %v10575, 0.0
      %v10630 = vadd.f32 %v10628, %v10629
      %v10631 = vsel %vm1644, %v10576, 0.0
      %v10632 = vadd.f32 %v10630, %v10631
      %v10633 = vsel %vm1644, %v10577, 0.0
      %v10634 = vadd.f32 %v10632, %v10633
      %v10635 = vsel %vm1644, %v10578, 0.0
      %v10636 = vadd.f32 %v10634, %v10635
      %v10637 = vsel %vm1644, %v10579, 0.0
      %v10638 = vadd.f32 %v10636, %v10637
      %v10639 = vsel %vm1644, %v10580, 0.0
      %v10640 = vadd.f32 %v10638, %v10639
      %v10641 = vsel %vm1644, %v10581, 0.0
      %v10642 = vadd.f32 %v10640, %v10641
      %v10643 = vsel %vm1644, %v10582, 0.0
      %v10644 = vadd.f32 %v10642, %v10643
      %v10645 = vsel %vm1644, %v10583, 0.0
      %v10646 = vadd.f32 %v10644, %v10645
      %v10647 = vrot.slane %v10646, 4
      %v10648 = vadd.f32 %v10646, %v10647
      %v10649 = vrot.slane %v10648, 2
      %v10650 = vadd.f32 %v10648, %v10649
      %v10651 = vrot.slane %v10650, 1
      %v10652 = vadd.f32 %v10650, %v10651
      %v10653 = vrcp.pop 256.0
      %v10654 = vmul.f32 %v10652, %v10653
      %v10655 = vld [vmem:[%s4] sm:$0xff]
      %v10656 = vld [vmem:[%s4 + $0x8] sm:$0xff]
      %v10657 = vld [vmem:[%s4 + $0x10] sm:$0xff]
      %v10658 = vld [vmem:[%s4 + $0x18] sm:$0xff]
      %v10659 = vld [vmem:[%s5] sm:$0x1]
      %v10661 = vsel %vm1644, %v10654, 0
      %10663 = vmatprep.subr.mxu0 0.0
      %10664 = vmatpush1.msra.mxu0 %v10655
      %10665 = vmatprep.subr.mxu0 0.0
      %10666 = vmatpush1.msra.mxu0 %v10656
      %10667 = vmatprep.subr.mxu0 0.0
      %10668 = vmatpush1.msra.mxu0 %v10657
      %10669 = vmatprep.subr.mxu0 0.0
      %10670 = vmatpush1.msra.mxu0 %v10658
      %10671 = vmatprep.subr.mxu0 0.0
      %10672 = vmatpush1.msra.mxu0 0.0
      %10673 = vmatprep.subr.mxu0 0.0
      %10674 = vmatpush1.msra.mxu0 0.0
      %10675 = vmatprep.subr.mxu0 0.0
      %10676 = vmatpush1.msra.mxu0 0.0
      %10677 = vmatprep.subr.mxu0 0.0
      %10678 = vmatpush1.msra.mxu0 0.0
      %10679 = vmatprep.subr.mxu0 0.0
      %10680 = vmatpush1.msra.mxu0 0.0
      %10681 = vmatprep.subr.mxu0 0.0
      %10682 = vmatpush1.msra.mxu0 0.0
      %10683 = vmatprep.subr.mxu0 0.0
      %10684 = vmatpush1.msra.mxu0 0.0
      %10685 = vmatprep.subr.mxu0 0.0
      %10686 = vmatpush1.msra.mxu0 0.0
      %10687 = vmatprep.subr.mxu0 0.0
      %10688 = vmatpush1.msra.mxu0 0.0
      %10689 = vmatprep.subr.mxu0 0.0
      %10690 = vmatpush1.msra.mxu0 0.0
      %10691 = vmatprep.subr.mxu0 0.0
      %10692 = vmatpush1.msra.mxu0 0.0
      %10693 = vmatprep.subr.mxu0 0.0
      %10694 = vmatpush1.msra.mxu0 0.0
      %10695 = vmatprep.subr.mxu0 0.0
      %10696 = vmatpush1.msra.mxu0 0.0
      %10697 = vmatprep.subr.mxu0 0.0
      %10698 = vmatpush1.msra.mxu0 0.0
      %10699 = vmatprep.subr.mxu0 0.0
      %10700 = vmatpush1.msra.mxu0 0.0
      %10701 = vmatprep.subr.mxu0 0.0
      %10702 = vmatpush1.msra.mxu0 0.0
      %10703 = vmatprep.subr.mxu0 0.0
      %10704 = vmatpush1.msra.mxu0 0.0
      %10705 = vmatprep.subr.mxu0 0.0
      %10706 = vmatpush1.msra.mxu0 0.0
      %10707 = vmatprep.subr.mxu0 0.0
      %10708 = vmatpush1.msra.mxu0 0.0
      %10709 = vmatprep.subr.mxu0 0.0
      %10710 = vmatpush1.msra.mxu0 0.0
      %10711 = vmatprep.subr.mxu0 0.0
      %10712 = vmatpush1.msra.mxu0 0.0
      %10713 = vmatprep.subr.mxu0 0.0
      %10714 = vmatpush1.msra.mxu0 0.0
      %10715 = vmatprep.subr.mxu0 0.0
      %10716 = vmatpush1.msra.mxu0 0.0
      %10717 = vmatprep.subr.mxu0 0.0
      %10718 = vmatpush1.msra.mxu0 0.0
      %10719 = vmatprep.subr.mxu0 0.0
      %10720 = vmatpush1.msra.mxu0 0.0
      %10721 = vmatprep.subr.mxu0 0.0
      %10722 = vmatpush1.msra.mxu0 0.0
      %10723 = vmatprep.subr.mxu0 0.0
      %10724 = vmatpush1.msra.mxu0 0.0
      %10725 = vmatprep.subr.mxu0 0.0
      %10726 = vmatpush1.msra.mxu0 0.0
      %10727 = vmatprep.mubr.f32.mxu0 0.0
      %10728 = vmatmul.mubr.f32.gmra.mrb[0].mxu0 %v10661
      %v10729 = vpop.f32.mrb[0].mxu0
      %v10730 = vadd.f32 %v10659, %v10729
      %v10731 = vpop.f32.mrb[0].mxu0
      %10732 = vdwg.mxu0
      %v10733 = vmax.f32 %v10730, 0.0
      %v10734 = vld [vmem:[%s6] sm:$0xff]
      %v10735 = vld [vmem:[%s7] sm:$0x1]
      %vm10736 = vcmask 64512
      %v10738 = vsel %vm10736, %v10733, 0
      %10740 = vmatprep.subr.mxu0 0.0
      %10741 = vmatpush1.msra.mxu0 %v10734
      %10742 = vmatprep.subr.mxu0 0.0
      %10743 = vmatpush1.msra.mxu0 0.0
      %10744 = vmatprep.subr.mxu0 0.0
      %10745 = vmatpush1.msra.mxu0 0.0
      %10746 = vmatprep.subr.mxu0 0.0
      %10747 = vmatpush1.msra.mxu0 0.0
      %10748 = vmatprep.subr.mxu0 0.0
      %10749 = vmatpush1.msra.mxu0 0.0
      %10750 = vmatprep.subr.mxu0 0.0
      %10751 = vmatpush1.msra.mxu0 0.0
      %10752 = vmatprep.subr.mxu0 0.0
      %10753 = vmatpush1.msra.mxu0 0.0
      %10754 = vmatprep.subr.mxu0 0.0
      %10755 = vmatpush1.msra.mxu0 0.0
      %10756 = vmatprep.subr.mxu0 0.0
      %10757 = vmatpush1.msra.mxu0 0.0
      %10758 = vmatprep.subr.mxu0 0.0
      %10759 = vmatpush1.msra.mxu0 0.0
      %10760 = vmatprep.subr.mxu0 0.0
      %10761 = vmatpush1.msra.mxu0 0.0
      %10762 = vmatprep.subr.mxu0 0.0
      %10763 = vmatpush1.msra.mxu0 0.0
      %10764 = vmatprep.subr.mxu0 0.0
      %10765 = vmatpush1.msra.mxu0 0.0
      %10766 = vmatprep.subr.mxu0 0.0
      %10767 = vmatpush1.msra.mxu0 0.0
      %10768 = vmatprep.subr.mxu0 0.0
      %10769 = vmatpush1.msra.mxu0 0.0
      %10770 = vmatprep.subr.mxu0 0.0
      %10771 = vmatpush1.msra.mxu0 0.0
      %10772 = vmatprep.subr.mxu0 0.0
      %10773 = vmatpush1.msra.mxu0 0.0
      %10774 = vmatprep.subr.mxu0 0.0
      %10775 = vmatpush1.msra.mxu0 0.0
      %10776 = vmatprep.subr.mxu0 0.0
      %10777 = vmatpush1.msra.mxu0 0.0
      %10778 = vmatprep.subr.mxu0 0.0
      %10779 = vmatpush1.msra.mxu0 0.0
      %10780 = vmatprep.subr.mxu0 0.0
      %10781 = vmatpush1.msra.mxu0 0.0
      %10782 = vmatprep.subr.mxu0 0.0
      %10783 = vmatpush1.msra.mxu0 0.0
      %10784 = vmatprep.subr.mxu0 0.0
      %10785 = vmatpush1.msra.mxu0 0.0
      %10786 = vmatprep.subr.mxu0 0.0
      %10787 = vmatpush1.msra.mxu0 0.0
      %10788 = vmatprep.subr.mxu0 0.0
      %10789 = vmatpush1.msra.mxu0 0.0
      %10790 = vmatprep.subr.mxu0 0.0
      %10791 = vmatpush1.msra.mxu0 0.0
      %10792 = vmatprep.subr.mxu0 0.0
      %10793 = vmatpush1.msra.mxu0 0.0
      %10794 = vmatprep.subr.mxu0 0.0
      %10795 = vmatpush1.msra.mxu0 0.0
      %10796 = vmatprep.subr.mxu0 0.0
      %10797 = vmatpush1.msra.mxu0 0.0
      %10798 = vmatprep.subr.mxu0 0.0
      %10799 = vmatpush1.msra.mxu0 0.0
      %10800 = vmatprep.subr.mxu0 0.0
      %10801 = vmatpush1.msra.mxu0 0.0
      %10802 = vmatprep.subr.mxu0 0.0
      %10803 = vmatpush1.msra.mxu0 0.0
      %10804 = vmatprep.mubr.f32.mxu0 0.0
      %10805 = vmatmul.mubr.f32.gmra.mrb[0].mxu0 %v10738
      %v10806 = vpop.f32.mrb[0].mxu0
      %v10807 = vadd.f32 %v10735, %v10806
      %v10808 = vpop.f32.mrb[0].mxu0
      %10809 = vdwg.mxu0
      %v10810 = vxor.u32 %v10807, 2147483648
      %v10811 = vmul.f32 %v10810, 1.442695
      %v10812 = vpow.pop %v10811
      %v10813 = vadd.f32 %v10812, 1.0
      %v10814 = vrcp.pop %v10813
      %v10815 = vmul.f32 1.0, %v10814
      %v10816 = vlaneseq
      %v10817 = vshrl.u32 %v10816, 7
      %v10818 = vsub.s32 0, %v10817
      %v10819 = vrot.slane %v10815, %v10818
      %v10820 = vmul.f32 %v10552, %v10819
      %v10821 = vmul.f32 %v10553, %v10819
      %v10822 = vmul.f32 %v10554, %v10819
      %v10823 = vmul.f32 %v10555, %v10819
      %v10824 = vmul.f32 %v10556, %v10819
      %v10825 = vmul.f32 %v10557, %v10819
      %v10826 = vmul.f32 %v10558, %v10819
      %v10827 = vmul.f32 %v10559, %v10819
      %v10828 = vmul.f32 %v10560, %v10819
      %v10829 = vmul.f32 %v10561, %v10819
      %v10830 = vmul.f32 %v10562, %v10819
      %v10831 = vmul.f32 %v10563, %v10819
      %v10832 = vmul.f32 %v10564, %v10819
      %v10833 = vmul.f32 %v10565, %v10819
      %v10834 = vmul.f32 %v10566, %v10819
      %v10835 = vmul.f32 %v10567, %v10819
      %v10836 = vmul.f32 %v10568, %v10819
      %v10837 = vmul.f32 %v10569, %v10819
      %v10838 = vmul.f32 %v10570, %v10819
      %v10839 = vmul.f32 %v10571, %v10819
      %v10840 = vmul.f32 %v10572, %v10819
      %v10841 = vmul.f32 %v10573, %v10819
      %v10842 = vmul.f32 %v10574, %v10819
      %v10843 = vmul.f32 %v10575, %v10819
      %v10844 = vmul.f32 %v10576, %v10819
      %v10845 = vmul.f32 %v10577, %v10819
      %v10846 = vmul.f32 %v10578, %v10819
      %v10847 = vmul.f32 %v10579, %v10819
      %v10848 = vmul.f32 %v10580, %v10819
      %v10849 = vmul.f32 %v10581, %v10819
      %v10850 = vmul.f32 %v10582, %v10819
      %v10851 = vmul.f32 %v10583, %v10819
      %10884 = vrot.lane.b32.xlu0 %v10820, 112
      %v10885 = vpop.permute.xlu0 %10884
      %10886 = vrot.lane.b32.xlu0 %v10821, 112
      %v10887 = vpop.permute.xlu0 %10886
      %10888 = vrot.lane.b32.xlu0 %v10822, 112
      %v10889 = vpop.permute.xlu0 %10888
      %10890 = vrot.lane.b32.xlu0 %v10823, 112
      %v10891 = vpop.permute.xlu0 %10890
      %10892 = vrot.lane.b32.xlu0 %v10824, 112
      %v10893 = vpop.permute.xlu0 %10892
      %10894 = vrot.lane.b32.xlu0 %v10825, 112
      %v10895 = vpop.permute.xlu0 %10894
      %10896 = vrot.lane.b32.xlu0 %v10826, 112
      %v10897 = vpop.permute.xlu0 %10896
      %10898 = vrot.lane.b32.xlu0 %v10827, 112
      %v10899 = vpop.permute.xlu0 %10898
      %10900 = vrot.lane.b32.xlu0 %v10828, 112
      %v10901 = vpop.permute.xlu0 %10900
      %10902 = vrot.lane.b32.xlu0 %v10829, 112
      %v10903 = vpop.permute.xlu0 %10902
      %10904 = vrot.lane.b32.xlu0 %v10830, 112
      %v10905 = vpop.permute.xlu0 %10904
      %10906 = vrot.lane.b32.xlu0 %v10831, 112
      %v10907 = vpop.permute.xlu0 %10906
      %10908 = vrot.lane.b32.xlu0 %v10832, 112
      %v10909 = vpop.permute.xlu0 %10908
      %10910 = vrot.lane.b32.xlu0 %v10833, 112
      %v10911 = vpop.permute.xlu0 %10910
      %10912 = vrot.lane.b32.xlu0 %v10834, 112
      %v10913 = vpop.permute.xlu0 %10912
      %10914 = vrot.lane.b32.xlu0 %v10835, 112
      %v10915 = vpop.permute.xlu0 %10914
      %10916 = vrot.lane.b32.xlu0 %v10836, 112
      %v10917 = vpop.permute.xlu0 %10916
      %10918 = vrot.lane.b32.xlu0 %v10837, 112
      %v10919 = vpop.permute.xlu0 %10918
      %10920 = vrot.lane.b32.xlu0 %v10838, 112
      %v10921 = vpop.permute.xlu0 %10920
      %10922 = vrot.lane.b32.xlu0 %v10839, 112
      %v10923 = vpop.permute.xlu0 %10922
      %10924 = vrot.lane.b32.xlu0 %v10840, 112
      %v10925 = vpop.permute.xlu0 %10924
      %10926 = vrot.lane.b32.xlu0 %v10841, 112
      %v10927 = vpop.permute.xlu0 %10926
      %10928 = vrot.lane.b32.xlu0 %v10842, 112
      %v10929 = vpop.permute.xlu0 %10928
      %10930 = vrot.lane.b32.xlu0 %v10843, 112
      %v10931 = vpop.permute.xlu0 %10930
      %10932 = vrot.lane.b32.xlu0 %v10844, 112
      %v10933 = vpop.permute.xlu0 %10932
      %10934 = vrot.lane.b32.xlu0 %v10845, 112
      %v10935 = vpop.permute.xlu0 %10934
      %10936 = vrot.lane.b32.xlu0 %v10846, 112
      %v10937 = vpop.permute.xlu0 %10936
      %10938 = vrot.lane.b32.xlu0 %v10847, 112
      %v10939 = vpop.permute.xlu0 %10938
      %10940 = vrot.lane.b32.xlu0 %v10848, 112
      %v10941 = vpop.permute.xlu0 %10940
      %10942 = vrot.lane.b32.xlu0 %v10849, 112
      %v10943 = vpop.permute.xlu0 %10942
      %10944 = vrot.lane.b32.xlu0 %v10850, 112
      %v10945 = vpop.permute.xlu0 %10944
      %10946 = vrot.lane.b32.xlu0 %v10851, 112
      %v10947 = vpop.permute.xlu0 %10946
      %v10980 = vadd.f32 %v10820, %v10885
      %v10981 = vadd.f32 %v10821, %v10887
      %v10982 = vadd.f32 %v10822, %v10889
      %v10983 = vadd.f32 %v10823, %v10891
      %v10984 = vadd.f32 %v10824, %v10893
      %v10985 = vadd.f32 %v10825, %v10895
      %v10986 = vadd.f32 %v10826, %v10897
      %v10987 = vadd.f32 %v10827, %v10899
      %v10988 = vadd.f32 %v10828, %v10901
      %v10989 = vadd.f32 %v10829, %v10903
      %v10990 = vadd.f32 %v10830, %v10905
      %v10991 = vadd.f32 %v10831, %v10907
      %v10992 = vadd.f32 %v10832, %v10909
      %v10993 = vadd.f32 %v10833, %v10911
      %v10994 = vadd.f32 %v10834, %v10913
      %v10995 = vadd.f32 %v10835, %v10915
      %v10996 = vadd.f32 %v10836, %v10917
      %v10997 = vadd.f32 %v10837, %v10919
      %v10998 = vadd.f32 %v10838, %v10921
      %v10999 = vadd.f32 %v10839, %v10923
      %v11000 = vadd.f32 %v10840, %v10925
      %v11001 = vadd.f32 %v10841, %v10927
      %v11002 = vadd.f32 %v10842, %v10929
      %v11003 = vadd.f32 %v10843, %v10931
      %v11004 = vadd.f32 %v10844, %v10933
      %v11005 = vadd.f32 %v10845, %v10935
      %v11006 = vadd.f32 %v10846, %v10937
      %v11007 = vadd.f32 %v10847, %v10939
      %v11008 = vadd.f32 %v10848, %v10941
      %v11009 = vadd.f32 %v10849, %v10943
      %v11010 = vadd.f32 %v10850, %v10945
      %v11011 = vadd.f32 %v10851, %v10947
      %v11012 = vadd.f32 %v362, %v10980
      %v11013 = vadd.f32 %v363, %v10981
      %v11014 = vadd.f32 %v364, %v10982
      %v11015 = vadd.f32 %v365, %v10983
      %v11016 = vadd.f32 %v366, %v10984
      %v11017 = vadd.f32 %v367, %v10985
      %v11018 = vadd.f32 %v368, %v10986
      %v11019 = vadd.f32 %v369, %v10987
      %v11020 = vadd.f32 %v370, %v10988
      %v11021 = vadd.f32 %v371, %v10989
      %v11022 = vadd.f32 %v372, %v10990
      %v11023 = vadd.f32 %v373, %v10991
      %v11024 = vadd.f32 %v374, %v10992
      %v11025 = vadd.f32 %v375, %v10993
      %v11026 = vadd.f32 %v376, %v10994
      %v11027 = vadd.f32 %v377, %v10995
      %v11028 = vadd.f32 %v378, %v10996
      %v11029 = vadd.f32 %v379, %v10997
      %v11030 = vadd.f32 %v380, %v10998
      %v11031 = vadd.f32 %v381, %v10999
      %v11032 = vadd.f32 %v382, %v11000
      %v11033 = vadd.f32 %v383, %v11001
      %v11034 = vadd.f32 %v384, %v11002
      %v11035 = vadd.f32 %v385, %v11003
      %v11036 = vadd.f32 %v386, %v11004
      %v11037 = vadd.f32 %v387, %v11005
      %v11038 = vadd.f32 %v388, %v11006
      %v11039 = vadd.f32 %v389, %v11007
      %v11040 = vadd.f32 %v390, %v11008
      %v11041 = vadd.f32 %v391, %v11009
      %v11042 = vadd.f32 %v392, %v11010
      %v11043 = vadd.f32 %v393, %v11011
      %11044 = vst.msk [vmem:[%s305] sm:$0xff] %vm306, %v11012
      %11045 = vst.msk [vmem:[%s305 + $0x8] sm:$0xff] %vm306, %v11013
      %11046 = vst.msk [vmem:[%s305 + $0x10] sm:$0xff] %vm306, %v11014
      %11047 = vst.msk [vmem:[%s305 + $0x18] sm:$0xff] %vm306, %v11015
      %11048 = vst.msk [vmem:[%s305 + $0x20] sm:$0xff] %vm306, %v11016
      %11049 = vst.msk [vmem:[%s305 + $0x28] sm:$0xff] %vm306, %v11017
      %11050 = vst.msk [vmem:[%s305 + $0x30] sm:$0xff] %vm306, %v11018
      %11051 = vst.msk [vmem:[%s305 + $0x38] sm:$0xff] %vm306, %v11019
      %11052 = vst.msk [vmem:[%s305 + $0x40] sm:$0xff] %vm306, %v11020
      %11053 = vst.msk [vmem:[%s305 + $0x48] sm:$0xff] %vm306, %v11021
      %11054 = vst.msk [vmem:[%s305 + $0x50] sm:$0xff] %vm306, %v11022
      %11055 = vst.msk [vmem:[%s305 + $0x58] sm:$0xff] %vm306, %v11023
      %11056 = vst.msk [vmem:[%s305 + $0x60] sm:$0xff] %vm306, %v11024
      %11057 = vst.msk [vmem:[%s305 + $0x68] sm:$0xff] %vm306, %v11025
      %11058 = vst.msk [vmem:[%s305 + $0x70] sm:$0xff] %vm306, %v11026
      %11059 = vst.msk [vmem:[%s305 + $0x78] sm:$0xff] %vm306, %v11027
      %11060 = vst.msk [vmem:[%s305 + $0x80] sm:$0xff] %vm306, %v11028
      %11061 = vst.msk [vmem:[%s305 + $0x88] sm:$0xff] %vm306, %v11029
      %11062 = vst.msk [vmem:[%s305 + $0x90] sm:$0xff] %vm306, %v11030
      %11063 = vst.msk [vmem:[%s305 + $0x98] sm:$0xff] %vm306, %v11031
      %11064 = vst.msk [vmem:[%s305 + $0xa0] sm:$0xff] %vm306, %v11032
      %11065 = vst.msk [vmem:[%s305 + $0xa8] sm:$0xff] %vm306, %v11033
      %11066 = vst.msk [vmem:[%s305 + $0xb0] sm:$0xff] %vm306, %v11034
      %11067 = vst.msk [vmem:[%s305 + $0xb8] sm:$0xff] %vm306, %v11035
      %11068 = vst.msk [vmem:[%s305 + $0xc0] sm:$0xff] %vm306, %v11036
      %11069 = vst.msk [vmem:[%s305 + $0xc8] sm:$0xff] %vm306, %v11037
      %11070 = vst.msk [vmem:[%s305 + $0xd0] sm:$0xff] %vm306, %v11038
      %11071 = vst.msk [vmem:[%s305 + $0xd8] sm:$0xff] %vm306, %v11039
      %11072 = vst.msk [vmem:[%s305 + $0xe0] sm:$0xff] %vm306, %v11040
      %11073 = vst.msk [vmem:[%s305 + $0xe8] sm:$0xff] %vm306, %v11041
      %11074 = vst.msk [vmem:[%s305 + $0xf0] sm:$0xff] %vm306, %v11042
      %11075 = vst.msk [vmem:[%s305 + $0xf8] sm:$0xff] %vm306, %v11043
      %p11076 = scmp.lt.s32.totalorder %s19, 1
      %s11077 = scalar_select %p11076, %s19, 1
      %s11078 = smul.addr %s11077, 32
      %s11079 = smul.addr %s11078, 8
      %s11080 = scalar_lea.vmem %s8, %s11079
      // Predicated region
      $region53: #{cross_attention_block.1} parent=51 // pred_check
        %p11081 = pneg %p210
      $region54: #{cross_attention_block.1} parent=51 // pred_check_branch
        %11083 = sbr.rel (%p11081) target = $region56
      $region55: #{cross_attention_block.1} parent=51 // pred_region
        _
      $region56: #{cross_attention_block.1} parent=51 // pred_fallthru
        _
    $region52: #{cross_attention_block.1} parent=5 // pred_fallthru
      _
    %p11084 = scmp.le.s32.totalorder 2, %s14
    // Predicated region
    $region57: #{cross_attention_block.1} parent=5 // pred_check
      %p11085 = pneg %p11084
    $region58: #{cross_attention_block.1} parent=5 // pred_check_branch
      %11087 = sbr.rel (%p11085) target = $region60
    $region59: #{cross_attention_block.1} parent=5 // pred_region
      %s11088 = ssub.s32 %s14, 2
      // Predicated region
      $region61: #{cross_attention_block.1} parent=59 // pred_check
        %p11089 = pneg %p216
      $region62: #{cross_attention_block.1} parent=59 // pred_check_branch
        %11091 = sbr.rel (%p11089) target = $region64
      $region63: #{cross_attention_block.1} parent=59 // pred_region
        %p11092 = scmp.lt.s32.totalorder %s20, 1
        %s11093 = scalar_select %p11092, %s20, 1
        %s11094 = smul.addr %s11093, 32
        %s11095 = smul.addr %s11094, 8
        %s11096 = scalar_lea.vmem %s8, %s11095
      $region64: #{cross_attention_block.1} parent=59 // pred_fallthru
        _
    $region60: #{cross_attention_block.1} parent=5 // pred_fallthru
      _
  $region6: #{cross_attention_block.1} parent=0 // loop_footer
    %s18 = sadd.s32 1, %s14
  $region7: #{cross_attention_block.1} parent=0 // loop_footer_branch
    %13 = sbr.rel target = $region3
  $region8: #{cross_attention_block.1} parent=0 // loop_exit
    _

</llo_original>
